<compile_context>
chip_gen: v6e
topology: v6e:2x2x1
jax: 0.10.0
libtpu: 0.0.40
codegen_flags: <defaults>
</compile_context>

<pallas_src>
import jax
import jax.numpy as jnp
import numpy as np
from jax.experimental import pallas as pl
from jax.experimental.pallas import tpu as pltpu

IMG = 28
POOL = IMG // 2                     # 14
CONV_OUT = 32
K = 5
KPAD = 32                           # 25 conv taps zero-padded to 32 (MXU alignment)
FC1_IN = CONV_OUT * POOL * POOL     # 6272
FC1_OUT = 2048
FC2_OUT = 128
NUM_CLASSES = 10
HEAD_PAD = 128                      # classes padded to a lane-dense 128
TK = 896                            # 6272 = 7 * 896 ; 896 = 7 * 128 (lane aligned)


def _full_spec(shape):
    n = len(shape)
    return pl.BlockSpec(shape, lambda i: (0,) * n)


# ------------- Kernel A: fused conv + bias + 2x2 maxpool (MXU + VPU) ----------
def conv_pool_kernel(p_ref, w_ref, b_ref, o_ref):
    # p_ref: (4, B*196, 32) im2col taps, quadrant-major (q = hi*2 + wi), rows
    # ordered (b, ph, pw).  Compute the conv for the four pool partners, take
    # their max, add the per-channel bias (max commutes with a per-channel
    # constant) and store the pooled activation in bf16.
    w = w_ref[...]
    acc = jnp.dot(p_ref[0], w, preferred_element_type=jnp.float32)
    acc = jnp.maximum(acc, jnp.dot(p_ref[1], w, preferred_element_type=jnp.float32))
    acc = jnp.maximum(acc, jnp.dot(p_ref[2], w, preferred_element_type=jnp.float32))
    acc = jnp.maximum(acc, jnp.dot(p_ref[3], w, preferred_element_type=jnp.float32))
    o_ref[...] = (acc + b_ref[...]).astype(o_ref.dtype)


def conv_pool_via_pallas(x, w_mat, b_mat):
    """x: (B,1,28,28) f32 -> pooled NHWC-flattened activations (B, 6272) bf16."""
    B = x.shape[0]
    xp = jnp.pad(x[:, 0], ((0, 0), (2, 2), (2, 2)))                  # (B, 32, 32)
    # TODO(synk): im2col tap extraction stays wrapper-side (25 shifted views of
    # an 8 KB padded image, ~200 KB total); under the surrounding jit XLA fuses
    # this chain, and an in-kernel tap build needs minor-dim relayouts that are
    # not worth it at this size.
    taps = [xp[:, kh:kh + IMG, kw:kw + IMG] for kh in range(K) for kw in range(K)]
    pat = jnp.stack(taps, axis=-1)                                    # (B, 28, 28, 25)
    pat = pat.reshape(B, POOL, 2, POOL, 2, K * K)                     # (B, ph, hi, pw, wi, t)
    pat = pat.transpose(2, 4, 0, 1, 3, 5)                             # (hi, wi, B, ph, pw, t)
    pat = pat.reshape(4, B * POOL * POOL, K * K)
    pat = jnp.pad(pat, ((0, 0), (0, 0), (0, KPAD - K * K)))           # (4, B*196, 32)

    rows = B * POOL * POOL
    pooled = pl.pallas_call(
        conv_pool_kernel,
        out_shape=jax.ShapeDtypeStruct((rows, CONV_OUT), jnp.bfloat16),
        grid=(1,),
        in_specs=[_full_spec(pat.shape), _full_spec(w_mat.shape),
                  _full_spec(b_mat.shape)],
        out_specs=_full_spec((rows, CONV_OUT)),
    )(pat, w_mat, b_mat)
    # rows are (b, ph, pw), cols are channels -> this reshape IS the NHWC flatten,
    # matched by the one-time w1 input-dim permutation in prepare_params.
    return pooled.reshape(B, FC1_IN)


# ------------- Kernel B: fc1 (int8 weight stream) + fused head -----------------
def fc1_head_kernel(x_ref, w1_ref, s1_ref, b1_ref, w2_ref, b2_ref, w3_ref, b3_ref,
                    o_ref, acc_ref):
    k = pl.program_id(0)

    @pl.when(k == 0)
    def _():
        acc_ref[...] = jnp.zeros_like(acc_ref)

    # int8 weights are cast to bf16 in-kernel (storage-only quantization), so the
    # MXU sees bf16 x bf16 with f32 accumulation on every chip (incl. v7x).
    acc_ref[...] += jnp.dot(x_ref[...], w1_ref[...].astype(jnp.bfloat16),
                            preferred_element_type=jnp.float32)

    @pl.when(k == pl.num_programs(0) - 1)
    def _():
        # fc1 finalize: per-output-channel dequant scale + bias + ReLU.
        h1 = jnp.maximum(acc_ref[...] * s1_ref[...] + b1_ref[...], 0.0)
        # fc2 + ReLU (bf16 operands, f32 acc).
        h2 = jnp.maximum(
            jnp.dot(h1.astype(jnp.bfloat16), w2_ref[...],
                    preferred_element_type=jnp.float32) + b2_ref[...], 0.0)
        # fc3 (classes padded to 128, pad bias = -1e9) + softmax, lane-dense.
        logits = jnp.dot(h2, w3_ref[...],
                         preferred_element_type=jnp.float32) + b3_ref[...]
        m = jnp.max(logits, axis=1, keepdims=True)
        e = jnp.exp(logits - m)
        denom = jnp.sum(e, axis=1, keepdims=True)
        o_ref[...] = e * pl.reciprocal(denom, approx=True)


def fc1_head_via_pallas(x_bf16, w1q, s1, b1, w2t, b2, w3p, b3p):
    B = x_bf16.shape[0]
    nk = FC1_IN // TK                                     # 7 reduction steps
    return pl.pallas_call(
        fc1_head_kernel,
        out_shape=jax.ShapeDtypeStruct((B, HEAD_PAD), jnp.float32),
        grid_spec=pltpu.PrefetchScalarGridSpec(
            num_scalar_prefetch=0,
            grid=(nk,),                                   # K reduction only
            in_specs=[
                pl.BlockSpec((B, TK), lambda k: (0, k)),           # activations bf16
                pl.BlockSpec((TK, FC1_OUT), lambda k: (k, 0)),     # w1 stream int8
                pl.BlockSpec((1, FC1_OUT), lambda k: (0, 0)),      # dequant scale
                pl.BlockSpec((1, FC1_OUT), lambda k: (0, 0)),      # b1
                pl.BlockSpec((FC1_OUT, FC2_OUT), lambda k: (0, 0)),  # w2 bf16
                pl.BlockSpec((1, FC2_OUT), lambda k: (0, 0)),      # b2
                pl.BlockSpec((FC2_OUT, HEAD_PAD), lambda k: (0, 0)),  # w3 padded
                pl.BlockSpec((1, HEAD_PAD), lambda k: (0, 0)),     # b3 padded
            ],
            out_specs=pl.BlockSpec((B, HEAD_PAD), lambda k: (0, 0)),
            scratch_shapes=[pltpu.VMEM((B, FC1_OUT), jnp.float32)],
        ),
        compiler_params=pltpu.CompilerParams(
            dimension_semantics=("arbitrary",)),
    )(x_bf16, w1q, s1, b1, w2t, b2, w3p, b3p)


# ------------- One-time weight transforms (outside the hot path) --------------
def prepare_params(params):
    cw, cb, w1, b1, w2, b2, w3, b3 = params
    w_mat = jnp.pad(cw.reshape(CONV_OUT, K * K).T,
                    ((0, KPAD - K * K), (0, 0)))                     # (32, 32)
    b_mat = cb.reshape(1, CONV_OUT)
    # Permute fc1's input dim from NCHW-flatten to NHWC-flatten so activations
    # never need a layout transpose; pre-transpose to (in, out).
    w1_nhwc = (w1.reshape(FC1_OUT, CONV_OUT, POOL, POOL)
                 .transpose(0, 2, 3, 1).reshape(FC1_OUT, FC1_IN))
    w1t = w1_nhwc.T                                                  # (6272, 2048) f32
    # int8 symmetric quantization, per output channel (column of w1t).
    s1 = jnp.maximum(jnp.max(jnp.abs(w1t), axis=0, keepdims=True), 1e-12) / 127.0
    w1q = jnp.clip(jnp.round(w1t / s1), -127, 127).astype(jnp.int8)  # (6272, 2048)
    w2t = w2.T.astype(jnp.bfloat16)                                  # (2048, 128)
    # Pad the class dim to 128: zero weight columns, -1e9 bias -> exp() == 0.
    w3p = jnp.pad(w3.T, ((0, 0), (0, HEAD_PAD - NUM_CLASSES)))       # (128, 128)
    b3p = jnp.concatenate(
        [b3, jnp.full((HEAD_PAD - NUM_CLASSES,), -1e9, jnp.float32)]).reshape(1, HEAD_PAD)
    return (w_mat, b_mat, w1q, s1.astype(jnp.float32), b1.reshape(1, -1),
            w2t, b2.reshape(1, -1), w3p, b3p)


# ------------- Full forward (jitted pipeline + host-side PrintSize print) -----
@jax.jit
def _pipeline(x, prepared):
    w_mat, b_mat, w1q, s1, b1, w2t, b2, w3p, b3p = prepared
    act = conv_pool_via_pallas(x, w_mat, b_mat)          # (B, 6272) bf16, NHWC flatten
    probs = fc1_head_via_pallas(act, w1q, s1, b1, w2t, b2, w3p, b3p)   # (B, 128)
    return probs[:, :NUM_CLASSES]                        # (B, 10)


def sudokunet_forward(x, prepared):
    # TODO(synk): the spec module PrintSize.forward only prints x.shape (a
    # host-side side effect on a static shape) and returns None; there is no
    # device op to kernelize for it, so the print happens here (outside the jit,
    # so it fires on every call) and the reviewed SudokuNet pipeline follows.
    print(x.shape)
    return _pipeline(x, prepared)


# ------------- Pure-JAX f32 reference (sanity check) ---------------------------
def reference_forward(x, params):
    cw, cb, w1, b1, w2, b2, w3, b3 = params
    y = jax.lax.conv_general_dilated(
        x, cw, window_strides=(1, 1), padding=((2, 2), (2, 2)),
        dimension_numbers=("NCHW", "OIHW", "NCHW"))
    y = y + cb[None, :, None, None]
    y = jax.lax.reduce_window(y, -jnp.inf, jax.lax.max,
                              (1, 1, 2, 2), (1, 1, 2, 2), "VALID")
    f = y.reshape(x.shape[0], -1)
    h1 = jnp.maximum(f @ w1.T + b1, 0.0)
    h2 = jnp.maximum(h1 @ w2.T + b2, 0.0)
    logits = h2 @ w3.T + b3
    return jax.nn.softmax(logits, axis=1)


# ------------- Deterministic parameter init (PyTorch shapes) -------------------
def init_params(key):
    ks = jax.random.split(key, 8)
    cw = jax.random.normal(ks[0], (CONV_OUT, 1, K, K), jnp.float32) * 0.1
    cb = jax.random.normal(ks[1], (CONV_OUT,), jnp.float32) * 0.1
    w1 = jax.random.normal(ks[2], (FC1_OUT, FC1_IN), jnp.float32) * 0.02
    b1 = jax.random.normal(ks[3], (FC1_OUT,), jnp.float32) * 0.02
    w2 = jax.random.normal(ks[4], (FC2_OUT, FC1_OUT), jnp.float32) * 0.02
    b2 = jax.random.normal(ks[5], (FC2_OUT,), jnp.float32) * 0.02
    w3 = jax.random.normal(ks[6], (NUM_CLASSES, FC2_OUT), jnp.float32) * 0.05
    b3 = jax.random.normal(ks[7], (NUM_CLASSES,), jnp.float32) * 0.05
    return (cw, cb, w1, b1, w2, b2, w3, b3)


if __name__ == "__main__":
    root = jax.random.PRNGKey(0)
    kx, kp = jax.random.split(root)
    x = jax.random.normal(kx, (2, 1, IMG, IMG), jnp.float32)
    params = init_params(kp)
    prepared = prepare_params(params)

    out = jax.block_until_ready(sudokunet_forward(x, prepared))
    ref = jax.block_until_ready(reference_forward(x, params))

    assert out.shape == (2, NUM_CLASSES)
    # approx-reciprocal softmax still sums to ~1
    np.testing.assert_allclose(np.asarray(jnp.sum(out, axis=1)),
                               np.ones(2, np.float32), atol=5e-3)
    # int8 w1 / bf16 activation+w2 quantization vs. the pure-f32 reference
    np.testing.assert_allclose(np.asarray(out), np.asarray(ref),
                               atol=2e-2, rtol=0)
    print("KERNEL_OK")
</pallas_src>

<mosaic_0001>
module attributes {stable_mosaic.version = 11 : i64} {
  func.func @conv_pool_kernel(%arg0: i32, %arg1: memref<4x392x32xf32, #tpu.memory_space<vmem>>, %arg2: memref<32x32xf32, #tpu.memory_space<vmem>>, %arg3: memref<1x32xf32, #tpu.memory_space<vmem>>, %arg4: memref<392x32xbf16, #tpu.memory_space<vmem>>) attributes {dimension_semantics = [#tpu.dimension_semantics<arbitrary>], iteration_bounds = array<i64: 1>, scalar_prefetch = 0 : i64, scratch_operands = 0 : i64, tpu.core_type = #tpu.core_type<tc>, window_params = [{pipeline_mode = #tpu.pipeline_mode<synchronous>, transform_indices = @transform_0, window_bounds = array<i64: 4, 392, 32>}, {pipeline_mode = #tpu.pipeline_mode<synchronous>, transform_indices = @transform_1, window_bounds = array<i64: 32, 32>}, {pipeline_mode = #tpu.pipeline_mode<synchronous>, transform_indices = @transform_2, window_bounds = array<i64: 1, 32>}, {pipeline_mode = #tpu.pipeline_mode<synchronous>, transform_indices = @transform_3, window_bounds = array<i64: 392, 32>}]} {
    %c0 = arith.constant 0 : index
    %c0_0 = arith.constant 0 : index
    %0 = vector.load %arg2[%c0, %c0_0] : memref<32x32xf32, #tpu.memory_space<vmem>>, vector<32x32xf32>
    %c0_1 = arith.constant 0 : index
    %c0_2 = arith.constant 0 : index
    %c0_3 = arith.constant 0 : index
    %1 = vector.load %arg1[%c0_1, %c0_2, %c0_3] : memref<4x392x32xf32, #tpu.memory_space<vmem>>, vector<1x392x32xf32>
    %2 = vector.shape_cast %1 : vector<1x392x32xf32> to vector<392x32xf32>
    %cst = arith.constant dense<0.000000e+00> : vector<392x32xf32>
    %3 = tpu.matmul %2, %0, %cst {dimension_numbers = #tpu.dot_dimension_numbers<[1], [0], [0], [1], [0, 0, 1, 1], [], []>} : vector<392x32xf32>, vector<32x32xf32>, vector<392x32xf32> -> vector<392x32xf32>
    %c1 = arith.constant 1 : index
    %c0_4 = arith.constant 0 : index
    %c0_5 = arith.constant 0 : index
    %4 = vector.load %arg1[%c1, %c0_4, %c0_5] : memref<4x392x32xf32, #tpu.memory_space<vmem>>, vector<1x392x32xf32>
    %5 = vector.shape_cast %4 : vector<1x392x32xf32> to vector<392x32xf32>
    %cst_6 = arith.constant dense<0.000000e+00> : vector<392x32xf32>
    %6 = tpu.matmul %5, %0, %cst_6 {dimension_numbers = #tpu.dot_dimension_numbers<[1], [0], [0], [1], [0, 0, 1, 1], [], []>} : vector<392x32xf32>, vector<32x32xf32>, vector<392x32xf32> -> vector<392x32xf32>
    %7 = arith.maximumf %3, %6 : vector<392x32xf32>
    %c2 = arith.constant 2 : index
    %c0_7 = arith.constant 0 : index
    %c0_8 = arith.constant 0 : index
    %8 = vector.load %arg1[%c2, %c0_7, %c0_8] : memref<4x392x32xf32, #tpu.memory_space<vmem>>, vector<1x392x32xf32>
    %9 = vector.shape_cast %8 : vector<1x392x32xf32> to vector<392x32xf32>
    %cst_9 = arith.constant dense<0.000000e+00> : vector<392x32xf32>
    %10 = tpu.matmul %9, %0, %cst_9 {dimension_numbers = #tpu.dot_dimension_numbers<[1], [0], [0], [1], [0, 0, 1, 1], [], []>} : vector<392x32xf32>, vector<32x32xf32>, vector<392x32xf32> -> vector<392x32xf32>
    %11 = arith.maximumf %7, %10 : vector<392x32xf32>
    %c3 = arith.constant 3 : index
    %c0_10 = arith.constant 0 : index
    %c0_11 = arith.constant 0 : index
    %12 = vector.load %arg1[%c3, %c0_10, %c0_11] : memref<4x392x32xf32, #tpu.memory_space<vmem>>, vector<1x392x32xf32>
    %13 = vector.shape_cast %12 : vector<1x392x32xf32> to vector<392x32xf32>
    %cst_12 = arith.constant dense<0.000000e+00> : vector<392x32xf32>
    %14 = tpu.matmul %13, %0, %cst_12 {dimension_numbers = #tpu.dot_dimension_numbers<[1], [0], [0], [1], [0, 0, 1, 1], [], []>} : vector<392x32xf32>, vector<32x32xf32>, vector<392x32xf32> -> vector<392x32xf32>
    %15 = arith.maximumf %11, %14 : vector<392x32xf32>
    %c0_13 = arith.constant 0 : index
    %c0_14 = arith.constant 0 : index
    %16 = vector.load %arg3[%c0_13, %c0_14] : memref<1x32xf32, #tpu.memory_space<vmem>>, vector<1x32xf32>
    %17 = vector.broadcast %16 : vector<1x32xf32> to vector<392x32xf32>
    %18 = arith.addf %15, %17 : vector<392x32xf32>
    %19 = arith.truncf %18 : vector<392x32xf32> to vector<392x32xbf16>
    %c0_15 = arith.constant 0 : index
    %c0_16 = arith.constant 0 : index
    %20 = vector.load %arg4[%c0_15, %c0_16] : memref<392x32xbf16, #tpu.memory_space<vmem>>, vector<392x32xbf16>
    tpu.vector_store %arg4[%c0_15, %c0_16], %19 {strides = array<i32>} : memref<392x32xbf16, #tpu.memory_space<vmem>>, vector<392x32xbf16>,
    return
  }
  func.func @transform_0(%arg0: i32) -> (i32, i32, i32) {
    %c0_i32 = arith.constant 0 : i32
    %c0_i32_0 = arith.constant 0 : i32
    %c0_i32_1 = arith.constant 0 : i32
    %c0_i32_2 = arith.constant 0 : i32
    return %c0_i32, %c0_i32_0, %c0_i32_1 : i32, i32, i32
  }
  func.func @transform_1(%arg0: i32) -> (i32, i32) {
    %c0_i32 = arith.constant 0 : i32
    %c0_i32_0 = arith.constant 0 : i32
    %c0_i32_1 = arith.constant 0 : i32
    return %c0_i32, %c0_i32_0 : i32, i32
  }
  func.func @transform_2(%arg0: i32) -> (i32, i32) {
    %c0_i32 = arith.constant 0 : i32
    %c0_i32_0 = arith.constant 0 : i32
    %c0_i32_1 = arith.constant 0 : i32
    return %c0_i32, %c0_i32_0 : i32, i32
  }
  func.func @transform_3(%arg0: i32) -> (i32, i32) {
    %c0_i32 = arith.constant 0 : i32
    %c0_i32_0 = arith.constant 0 : i32
    %c0_i32_1 = arith.constant 0 : i32
    return %c0_i32, %c0_i32_0 : i32, i32
  }
}

module attributes {stable_mosaic.version = 11 : i64} {
  func.func @fc1_head_kernel(%arg0: i32, %arg1: memref<2x896xbf16, #tpu.memory_space<vmem>>, %arg2: memref<896x2048xi8, #tpu.memory_space<vmem>>, %arg3: memref<1x2048xf32, #tpu.memory_space<vmem>>, %arg4: memref<1x2048xf32, #tpu.memory_space<vmem>>, %arg5: memref<2048x128xbf16, #tpu.memory_space<vmem>>, %arg6: memref<1x128xf32, #tpu.memory_space<vmem>>, %arg7: memref<128x128xf32, #tpu.memory_space<vmem>>, %arg8: memref<1x128xf32, #tpu.memory_space<vmem>>, %arg9: memref<2x128xf32, #tpu.memory_space<vmem>>, %arg10: memref<2x2048xf32, #tpu.memory_space<vmem>>) attributes {dimension_semantics = [#tpu.dimension_semantics<arbitrary>], iteration_bounds = array<i64: 7>, scalar_prefetch = 0 : i64, scratch_operands = 1 : i64, tpu.core_type = #tpu.core_type<tc>, window_params = [{transform_indices = @transform_0, window_bounds = array<i64: 2, 896>}, {transform_indices = @transform_1, window_bounds = array<i64: 896, 2048>}, {pipeline_mode = #tpu.pipeline_mode<synchronous>, transform_indices = @transform_2, window_bounds = array<i64: 1, 2048>}, {pipeline_mode = #tpu.pipeline_mode<synchronous>, transform_indices = @transform_3, window_bounds = array<i64: 1, 2048>}, {pipeline_mode = #tpu.pipeline_mode<synchronous>, transform_indices = @transform_4, window_bounds = array<i64: 2048, 128>}, {pipeline_mode = #tpu.pipeline_mode<synchronous>, transform_indices = @transform_5, window_bounds = array<i64: 1, 128>}, {pipeline_mode = #tpu.pipeline_mode<synchronous>, transform_indices = @transform_6, window_bounds = array<i64: 128, 128>}, {pipeline_mode = #tpu.pipeline_mode<synchronous>, transform_indices = @transform_7, window_bounds = array<i64: 1, 128>}, {pipeline_mode = #tpu.pipeline_mode<synchronous>, transform_indices = @transform_8, window_bounds = array<i64: 2, 128>}]} {
    %c0_i32 = arith.constant 0 : i32
    %0 = arith.cmpi eq, %arg0, %c0_i32 : i32
    %1 = arith.extui %0 : i1 to i32
    %c0_i32_0 = arith.constant 0 : i32
    %2 = arith.cmpi ne, %1, %c0_i32_0 : i32
    scf.if %2 {
      %cst_9 = arith.constant 0.000000e+00 : f32
      %13 = vector.broadcast %cst_9 : f32 to vector<2x2048xf32>
      %c0_10 = arith.constant 0 : index
      %c0_11 = arith.constant 0 : index
      %14 = vector.load %arg10[%c0_10, %c0_11] : memref<2x2048xf32, #tpu.memory_space<vmem>>, vector<2x2048xf32>
      tpu.vector_store %arg10[%c0_10, %c0_11], %13 {strides = array<i32>} : memref<2x2048xf32, #tpu.memory_space<vmem>>, vector<2x2048xf32>,
    } else {
    }
    %c0 = arith.constant 0 : index
    %c0_1 = arith.constant 0 : index
    %3 = vector.load %arg10[%c0, %c0_1] : memref<2x2048xf32, #tpu.memory_space<vmem>>, vector<2x2048xf32>
    %c0_2 = arith.constant 0 : index
    %c0_3 = arith.constant 0 : index
    %4 = vector.load %arg1[%c0_2, %c0_3] : memref<2x896xbf16, #tpu.memory_space<vmem>>, vector<2x896xbf16>
    %c0_4 = arith.constant 0 : index
    %c0_5 = arith.constant 0 : index
    %5 = vector.load %arg2[%c0_4, %c0_5] : memref<896x2048xi8, #tpu.memory_space<vmem>>, vector<896x2048xi8>
    %6 = arith.sitofp %5 : vector<896x2048xi8> to vector<896x2048xbf16>
    %cst = arith.constant dense<0.000000e+00> : vector<2x2048xf32>
    %7 = tpu.matmul %4, %6, %cst {dimension_numbers = #tpu.dot_dimension_numbers<[1], [0], [0], [1], [0, 0, 1, 1], [], []>} : vector<2x896xbf16>, vector<896x2048xbf16>, vector<2x2048xf32> -> vector<2x2048xf32>
    %8 = arith.addf %3, %7 : vector<2x2048xf32>
    %c0_6 = arith.constant 0 : index
    %c0_7 = arith.constant 0 : index
    %9 = vector.load %arg10[%c0_6, %c0_7] : memref<2x2048xf32, #tpu.memory_space<vmem>>, vector<2x2048xf32>
    tpu.vector_store %arg10[%c0_6, %c0_7], %8 {strides = array<i32>} : memref<2x2048xf32, #tpu.memory_space<vmem>>, vector<2x2048xf32>,
    %c6_i32 = arith.constant 6 : i32
    %10 = arith.cmpi eq, %arg0, %c6_i32 : i32
    %11 = arith.extui %10 : i1 to i32
    %c0_i32_8 = arith.constant 0 : i32
    %12 = arith.cmpi ne, %11, %c0_i32_8 : i32
    scf.if %12 {
      %c0_9 = arith.constant 0 : index
      %c0_10 = arith.constant 0 : index
      %13 = vector.load %arg10[%c0_9, %c0_10] : memref<2x2048xf32, #tpu.memory_space<vmem>>, vector<2x2048xf32>
      %c0_11 = arith.constant 0 : index
      %c0_12 = arith.constant 0 : index
      %14 = vector.load %arg3[%c0_11, %c0_12] : memref<1x2048xf32, #tpu.memory_space<vmem>>, vector<1x2048xf32>
      %15 = vector.broadcast %14 : vector<1x2048xf32> to vector<2x2048xf32>
      %16 = arith.mulf %13, %15 : vector<2x2048xf32>
      %c0_13 = arith.constant 0 : index
      %c0_14 = arith.constant 0 : index
      %17 = vector.load %arg4[%c0_13, %c0_14] : memref<1x2048xf32, #tpu.memory_space<vmem>>, vector<1x2048xf32>
      %18 = vector.broadcast %17 : vector<1x2048xf32> to vector<2x2048xf32>
      %19 = arith.addf %16, %18 : vector<2x2048xf32>
      %cst_15 = arith.constant 0.000000e+00 : f32
      %20 = vector.broadcast %cst_15 : f32 to vector<2x2048xf32>
      %21 = arith.maximumf %19, %20 : vector<2x2048xf32>
      %22 = arith.truncf %21 : vector<2x2048xf32> to vector<2x2048xbf16>
      %c0_16 = arith.constant 0 : index
      %c0_17 = arith.constant 0 : index
      %23 = vector.load %arg5[%c0_16, %c0_17] : memref<2048x128xbf16, #tpu.memory_space<vmem>>, vector<2048x128xbf16>
      %cst_18 = arith.constant dense<0.000000e+00> : vector<2x128xf32>
      %24 = tpu.matmul %22, %23, %cst_18 {dimension_numbers = #tpu.dot_dimension_numbers<[1], [0], [0], [1], [0, 0, 1, 1], [], []>} : vector<2x2048xbf16>, vector<2048x128xbf16>, vector<2x128xf32> -> vector<2x128xf32>
      %c0_19 = arith.constant 0 : index
      %c0_20 = arith.constant 0 : index
      %25 = vector.load %arg6[%c0_19, %c0_20] : memref<1x128xf32, #tpu.memory_space<vmem>>, vector<1x128xf32>
      %26 = vector.broadcast %25 : vector<1x128xf32> to vector<2x128xf32>
      %27 = arith.addf %24, %26 : vector<2x128xf32>
      %cst_21 = arith.constant 0.000000e+00 : f32
      %28 = vector.broadcast %cst_21 : f32 to vector<2x128xf32>
      %29 = arith.maximumf %27, %28 : vector<2x128xf32>
      %c0_22 = arith.constant 0 : index
      %c0_23 = arith.constant 0 : index
      %30 = vector.load %arg7[%c0_22, %c0_23] : memref<128x128xf32, #tpu.memory_space<vmem>>, vector<128x128xf32>
      %cst_24 = arith.constant dense<0.000000e+00> : vector<2x128xf32>
      %31 = tpu.matmul %29, %30, %cst_24 {dimension_numbers = #tpu.dot_dimension_numbers<[1], [0], [0], [1], [0, 0, 1, 1], [], []>} : vector<2x128xf32>, vector<128x128xf32>, vector<2x128xf32> -> vector<2x128xf32>
      %c0_25 = arith.constant 0 : index
      %c0_26 = arith.constant 0 : index
      %32 = vector.load %arg8[%c0_25, %c0_26] : memref<1x128xf32, #tpu.memory_space<vmem>>, vector<1x128xf32>
      %33 = vector.broadcast %32 : vector<1x128xf32> to vector<2x128xf32>
      %34 = arith.addf %31, %33 : vector<2x128xf32>
      %cst_27 = arith.constant dense<0xFF800000> : vector<2xf32>
      %35 = vector.multi_reduction <maximumf>, %34, %cst_27 [1] : vector<2x128xf32> to vector<2xf32>
      %36 = vector.shape_cast %35 : vector<2xf32> to vector<2x1xf32>
      %37 = vector.broadcast %36 : vector<2x1xf32> to vector<2x128xf32>
      %38 = arith.subf %34, %37 : vector<2x128xf32>
      %39 = math.exp %38 : vector<2x128xf32>
      %cst_28 = arith.constant dense<0.000000e+00> : vector<2xf32>
      %40 = vector.multi_reduction <add>, %39, %cst_28 [1] : vector<2x128xf32> to vector<2xf32>
      %41 = vector.shape_cast %40 : vector<2xf32> to vector<2x1xf32>
      %42 = tpu.reciprocal %41 {approx = true} : vector<2x1xf32> -> vector<2x1xf32>
      %43 = vector.broadcast %42 : vector<2x1xf32> to vector<2x128xf32>
      %44 = arith.mulf %39, %43 : vector<2x128xf32>
      %c0_29 = arith.constant 0 : index
      %c0_30 = arith.constant 0 : index
      %45 = vector.load %arg9[%c0_29, %c0_30] : memref<2x128xf32, #tpu.memory_space<vmem>>, vector<2x128xf32>
      tpu.vector_store %arg9[%c0_29, %c0_30], %44 {strides = array<i32>} : memref<2x128xf32, #tpu.memory_space<vmem>>, vector<2x128xf32>,
    } else {
    }
    return
  }
  func.func @transform_0(%arg0: i32) -> (i32, i32) {
    %c0_i32 = arith.constant 0 : i32
    %c0_i32_0 = arith.constant 0 : i32
    return %c0_i32, %arg0 : i32, i32
  }
  func.func @transform_1(%arg0: i32) -> (i32, i32) {
    %c0_i32 = arith.constant 0 : i32
    %c0_i32_0 = arith.constant 0 : i32
    return %arg0, %c0_i32 : i32, i32
  }
  func.func @transform_2(%arg0: i32) -> (i32, i32) {
    %c0_i32 = arith.constant 0 : i32
    %c0_i32_0 = arith.constant 0 : i32
    %c0_i32_1 = arith.constant 0 : i32
    return %c0_i32, %c0_i32_0 : i32, i32
  }
  func.func @transform_3(%arg0: i32) -> (i32, i32) {
    %c0_i32 = arith.constant 0 : i32
    %c0_i32_0 = arith.constant 0 : i32
    %c0_i32_1 = arith.constant 0 : i32
    return %c0_i32, %c0_i32_0 : i32, i32
  }
  func.func @transform_4(%arg0: i32) -> (i32, i32) {
    %c0_i32 = arith.constant 0 : i32
    %c0_i32_0 = arith.constant 0 : i32
    %c0_i32_1 = arith.constant 0 : i32
    return %c0_i32, %c0_i32_0 : i32, i32
  }
  func.func @transform_5(%arg0: i32) -> (i32, i32) {
    %c0_i32 = arith.constant 0 : i32
    %c0_i32_0 = arith.constant 0 : i32
    %c0_i32_1 = arith.constant 0 : i32
    return %c0_i32, %c0_i32_0 : i32, i32
  }
  func.func @transform_6(%arg0: i32) -> (i32, i32) {
    %c0_i32 = arith.constant 0 : i32
    %c0_i32_0 = arith.constant 0 : i32
    %c0_i32_1 = arith.constant 0 : i32
    return %c0_i32, %c0_i32_0 : i32, i32
  }
  func.func @transform_7(%arg0: i32) -> (i32, i32) {
    %c0_i32 = arith.constant 0 : i32
    %c0_i32_0 = arith.constant 0 : i32
    %c0_i32_1 = arith.constant 0 : i32
    return %c0_i32, %c0_i32_0 : i32, i32
  }
  func.func @transform_8(%arg0: i32) -> (i32, i32) {
    %c0_i32 = arith.constant 0 : i32
    %c0_i32_0 = arith.constant 0 : i32
    %c0_i32_1 = arith.constant 0 : i32
    return %c0_i32, %c0_i32_0 : i32, i32
  }
}

</mosaic_0001>

<llo_original>
// kernel: _pipeline.2
$region0: #{_pipeline.2}
  #allocation0 [shape = 'u32[]', space=smem, size = 0x4, offset = 0x4, fixed_abs, tag = 'smem constant byte address 0x4 - core index']
  #allocation1 [shape = 'u32[144,128]{1,0:T(1,128)}', space=vmem, size = 0x12000, scoped, tag = 'internal scratch']
  %s0 = inlined_call_operand.vmem [shape: f32[4,392,32], index: 0, kind: input, shape index: {}]
  %s1 = inlined_call_operand.vmem [shape: f32[32,32], index: 1, kind: input, shape index: {}]
  %s2 = inlined_call_operand.vmem [shape: f32[1,32], index: 2, kind: input, shape index: {}]
  %s3 = inlined_call_operand.vmem [shape: bf16[392,32], index: 3, kind: output, shape index: {}]
  %s4 = sld [smem:[#allocation0]]
  $region22: #{_pipeline.2} parent=0
    _
  %s6 = ssub.s32 1, %s4
  %s7 = scalar_select 0, %s6, %s4
  // Predicated region
  $region2: #{_pipeline.2} parent=0 // pred_check
    _
  $region3: #{_pipeline.2} parent=0 // pred_check_branch
    %9 = sbr.rel (0) target = $region5
  $region4: #{_pipeline.2} parent=0 // pred_region
    _
  $region5: #{_pipeline.2} parent=0 // pred_fallthru
    _
  // Predicated region
  $region6: #{_pipeline.2} parent=0 // pred_check
    _
  $region7: #{_pipeline.2} parent=0 // pred_check_branch
    %11 = sbr.rel (0) target = $region9
  $region8: #{_pipeline.2} parent=0 // pred_region
    _
  $region9: #{_pipeline.2} parent=0 // pred_fallthru
    _
  // Predicated region
  $region10: #{_pipeline.2} parent=0 // pred_check
    _
  $region11: #{_pipeline.2} parent=0 // pred_check_branch
    %13 = sbr.rel (0) target = $region13
  $region12: #{_pipeline.2} parent=0 // pred_region
    _
  $region13: #{_pipeline.2} parent=0 // pred_fallthru
    _
  %v14 = vld [vmem:[%s1] sm:$0xff]
  %v15 = vld [vmem:[%s1 + $0x8] sm:$0xff]
  %v16 = vld [vmem:[%s1 + $0x10] sm:$0xff]
  %v17 = vld [vmem:[%s1 + $0x18] sm:$0xff]
  %v18 = vld [vmem:[%s0] sm:$0xff]
  %v19 = vld [vmem:[%s0 + $0x8] sm:$0xff]
  %v20 = vld [vmem:[%s0 + $0x10] sm:$0xff]
  %v21 = vld [vmem:[%s0 + $0x18] sm:$0xff]
  %v22 = vld [vmem:[%s0 + $0x20] sm:$0xff]
  %v23 = vld [vmem:[%s0 + $0x28] sm:$0xff]
  %v24 = vld [vmem:[%s0 + $0x30] sm:$0xff]
  %v25 = vld [vmem:[%s0 + $0x38] sm:$0xff]
  %v26 = vld [vmem:[%s0 + $0x40] sm:$0xff]
  %v27 = vld [vmem:[%s0 + $0x48] sm:$0xff]
  %v28 = vld [vmem:[%s0 + $0x50] sm:$0xff]
  %v29 = vld [vmem:[%s0 + $0x58] sm:$0xff]
  %v30 = vld [vmem:[%s0 + $0x60] sm:$0xff]
  %v31 = vld [vmem:[%s0 + $0x68] sm:$0xff]
  %v32 = vld [vmem:[%s0 + $0x70] sm:$0xff]
  %v33 = vld [vmem:[%s0 + $0x78] sm:$0xff]
  %v34 = vld [vmem:[%s0 + $0x80] sm:$0xff]
  %v35 = vld [vmem:[%s0 + $0x88] sm:$0xff]
  %v36 = vld [vmem:[%s0 + $0x90] sm:$0xff]
  %v37 = vld [vmem:[%s0 + $0x98] sm:$0xff]
  %v38 = vld [vmem:[%s0 + $0xa0] sm:$0xff]
  %v39 = vld [vmem:[%s0 + $0xa8] sm:$0xff]
  %v40 = vld [vmem:[%s0 + $0xb0] sm:$0xff]
  %v41 = vld [vmem:[%s0 + $0xb8] sm:$0xff]
  %v42 = vld [vmem:[%s0 + $0xc0] sm:$0xff]
  %v43 = vld [vmem:[%s0 + $0xc8] sm:$0xff]
  %v44 = vld [vmem:[%s0 + $0xd0] sm:$0xff]
  %v45 = vld [vmem:[%s0 + $0xd8] sm:$0xff]
  %v46 = vld [vmem:[%s0 + $0xe0] sm:$0xff]
  %v47 = vld [vmem:[%s0 + $0xe8] sm:$0xff]
  %v48 = vld [vmem:[%s0 + $0xf0] sm:$0xff]
  %v49 = vld [vmem:[%s0 + $0xf8] sm:$0xff]
  %v50 = vld [vmem:[%s0 + $0x100] sm:$0xff]
  %v51 = vld [vmem:[%s0 + $0x108] sm:$0xff]
  %v52 = vld [vmem:[%s0 + $0x110] sm:$0xff]
  %v53 = vld [vmem:[%s0 + $0x118] sm:$0xff]
  %v54 = vld [vmem:[%s0 + $0x120] sm:$0xff]
  %v55 = vld [vmem:[%s0 + $0x128] sm:$0xff]
  %v56 = vld [vmem:[%s0 + $0x130] sm:$0xff]
  %v57 = vld [vmem:[%s0 + $0x138] sm:$0xff]
  %v58 = vld [vmem:[%s0 + $0x140] sm:$0xff]
  %v59 = vld [vmem:[%s0 + $0x148] sm:$0xff]
  %v60 = vld [vmem:[%s0 + $0x150] sm:$0xff]
  %v61 = vld [vmem:[%s0 + $0x158] sm:$0xff]
  %v62 = vld [vmem:[%s0 + $0x160] sm:$0xff]
  %v63 = vld [vmem:[%s0 + $0x168] sm:$0xff]
  %v64 = vld [vmem:[%s0 + $0x170] sm:$0xff]
  %v65 = vld [vmem:[%s0 + $0x178] sm:$0xff]
  %v66 = vld [vmem:[%s0 + $0x180] sm:$0xff]
  %vm67 = vcmask 261120
  %v69 = vsel %vm67, %v18, 0
  %v72 = vsel %vm67, %v19, 0
  %v75 = vsel %vm67, %v20, 0
  %v78 = vsel %vm67, %v21, 0
  %v81 = vsel %vm67, %v22, 0
  %v84 = vsel %vm67, %v23, 0
  %v87 = vsel %vm67, %v24, 0
  %v90 = vsel %vm67, %v25, 0
  %v93 = vsel %vm67, %v26, 0
  %v96 = vsel %vm67, %v27, 0
  %v99 = vsel %vm67, %v28, 0
  %v102 = vsel %vm67, %v29, 0
  %v105 = vsel %vm67, %v30, 0
  %v108 = vsel %vm67, %v31, 0
  %v111 = vsel %vm67, %v32, 0
  %v114 = vsel %vm67, %v33, 0
  %v117 = vsel %vm67, %v34, 0
  %v120 = vsel %vm67, %v35, 0
  %v123 = vsel %vm67, %v36, 0
  %v126 = vsel %vm67, %v37, 0
  %v129 = vsel %vm67, %v38, 0
  %v132 = vsel %vm67, %v39, 0
  %v135 = vsel %vm67, %v40, 0
  %v138 = vsel %vm67, %v41, 0
  %v141 = vsel %vm67, %v42, 0
  %v144 = vsel %vm67, %v43, 0
  %v147 = vsel %vm67, %v44, 0
  %v150 = vsel %vm67, %v45, 0
  %v153 = vsel %vm67, %v46, 0
  %v156 = vsel %vm67, %v47, 0
  %v159 = vsel %vm67, %v48, 0
  %v162 = vsel %vm67, %v49, 0
  %v165 = vsel %vm67, %v50, 0
  %v168 = vsel %vm67, %v51, 0
  %v171 = vsel %vm67, %v52, 0
  %v174 = vsel %vm67, %v53, 0
  %v177 = vsel %vm67, %v54, 0
  %v180 = vsel %vm67, %v55, 0
  %v183 = vsel %vm67, %v56, 0
  %v186 = vsel %vm67, %v57, 0
  %v189 = vsel %vm67, %v58, 0
  %v192 = vsel %vm67, %v59, 0
  %v195 = vsel %vm67, %v60, 0
  %v198 = vsel %vm67, %v61, 0
  %v201 = vsel %vm67, %v62, 0
  %v204 = vsel %vm67, %v63, 0
  %v207 = vsel %vm67, %v64, 0
  %v210 = vsel %vm67, %v65, 0
  %v213 = vsel %vm67, %v66, 0
  %215 = vmatprep.subr.mxu0 0.0
  %216 = vmatpush1.msra.mxu0 0.0
  %217 = vmatprep.subr.mxu0 0.0
  %218 = vmatpush1.msra.mxu0 0.0
  %219 = vmatprep.subr.mxu0 0.0
  %220 = vmatpush1.msra.mxu0 0.0
  %221 = vmatprep.subr.mxu0 0.0
  %222 = vmatpush1.msra.mxu0 0.0
  %223 = vmatprep.subr.mxu0 0.0
  %224 = vmatpush1.msra.mxu0 0.0
  %225 = vmatprep.subr.mxu0 0.0
  %226 = vmatpush1.msra.mxu0 0.0
  %227 = vmatprep.subr.mxu0 0.0
  %228 = vmatpush1.msra.mxu0 0.0
  %229 = vmatprep.subr.mxu0 0.0
  %230 = vmatpush1.msra.mxu0 0.0
  %231 = vmatprep.subr.mxu0 0.0
  %232 = vmatpush1.msra.mxu0 0.0
  %233 = vmatprep.subr.mxu0 0.0
  %234 = vmatpush1.msra.mxu0 0.0
  %235 = vmatprep.subr.mxu0 0.0
  %236 = vmatpush1.msra.mxu0 0.0
  %237 = vmatprep.subr.mxu0 0.0
  %238 = vmatpush1.msra.mxu0 0.0
  %239 = vmatprep.subr.mxu0 0.0
  %240 = vmatpush1.msra.mxu0 %v17
  %241 = vmatprep.subr.mxu0 0.0
  %242 = vmatpush1.msra.mxu0 %v16
  %243 = vmatprep.subr.mxu0 0.0
  %244 = vmatpush1.msra.mxu0 %v15
  %245 = vmatprep.subr.mxu0 0.0
  %246 = vmatpush1.msra.mxu0 %v14
  %247 = vmatprep.subr.mxu0 0.0
  %248 = vmatpush2.msra.mxu0 0.0
  %249 = vmatprep.subr.mxu0 0.0
  %250 = vmatpush2.msra.mxu0 0.0
  %251 = vmatprep.subr.mxu0 0.0
  %252 = vmatpush2.msra.mxu0 0.0
  %253 = vmatprep.subr.mxu0 0.0
  %254 = vmatpush2.msra.mxu0 0.0
  %255 = vmatprep.subr.mxu0 0.0
  %256 = vmatpush2.msra.mxu0 0.0
  %257 = vmatprep.subr.mxu0 0.0
  %258 = vmatpush2.msra.mxu0 0.0
  %259 = vmatprep.subr.mxu0 0.0
  %260 = vmatpush2.msra.mxu0 0.0
  %261 = vmatprep.subr.mxu0 0.0
  %262 = vmatpush2.msra.mxu0 0.0
  %263 = vmatprep.subr.mxu0 0.0
  %264 = vmatpush2.msra.mxu0 0.0
  %265 = vmatprep.subr.mxu0 0.0
  %266 = vmatpush2.msra.mxu0 0.0
  %267 = vmatprep.subr.mxu0 0.0
  %268 = vmatpush2.msra.mxu0 0.0
  %269 = vmatprep.subr.mxu0 0.0
  %270 = vmatpush2.msra.mxu0 0.0
  %271 = vmatprep.subr.mxu0 0.0
  %272 = vmatpush2.msra.mxu0 0.0
  %273 = vmatprep.subr.mxu0 0.0
  %274 = vmatpush2.msra.mxu0 0.0
  %275 = vmatprep.subr.mxu0 0.0
  %276 = vmatpush2.msra.mxu0 0.0
  %277 = vmatprep.subr.mxu0 0.0
  %278 = vmatpush2.msra.mxu0 0.0
  %279 = vmatprep.mubr.f32.mxu0 0.0
  %280 = vmatmul.mubr.f32.gmra.mxu0 %v69
  %v281 = vpop.f32.mrf.mxu0
  %v282 = vadd.f32 0.0, %v281
  %v283 = vpop.f32.mrf.mxu0
  %284 = vmatprep.mubr.f32.mxu0 0.0
  %285 = vmatmul.mubr.f32.gmra.mxu0 %v72
  %v286 = vpop.f32.mrf.mxu0
  %v287 = vadd.f32 0.0, %v286
  %v288 = vpop.f32.mrf.mxu0
  %289 = vmatprep.mubr.f32.mxu0 0.0
  %290 = vmatmul.mubr.f32.gmra.mxu0 %v75
  %v291 = vpop.f32.mrf.mxu0
  %v292 = vadd.f32 0.0, %v291
  %v293 = vpop.f32.mrf.mxu0
  %294 = vmatprep.mubr.f32.mxu0 0.0
  %295 = vmatmul.mubr.f32.gmra.mxu0 %v78
  %v296 = vpop.f32.mrf.mxu0
  %v297 = vadd.f32 0.0, %v296
  %v298 = vpop.f32.mrf.mxu0
  %299 = vmatprep.mubr.f32.mxu0 0.0
  %300 = vmatmul.mubr.f32.gmra.mxu0 %v81
  %v301 = vpop.f32.mrf.mxu0
  %v302 = vadd.f32 0.0, %v301
  %v303 = vpop.f32.mrf.mxu0
  %304 = vmatprep.mubr.f32.mxu0 0.0
  %305 = vmatmul.mubr.f32.gmra.mxu0 %v84
  %v306 = vpop.f32.mrf.mxu0
  %v307 = vadd.f32 0.0, %v306
  %v308 = vpop.f32.mrf.mxu0
  %309 = vmatprep.mubr.f32.mxu0 0.0
  %310 = vmatmul.mubr.f32.gmra.mxu0 %v87
  %v311 = vpop.f32.mrf.mxu0
  %v312 = vadd.f32 0.0, %v311
  %v313 = vpop.f32.mrf.mxu0
  %314 = vmatprep.mubr.f32.mxu0 0.0
  %315 = vmatmul.mubr.f32.gmra.mxu0 %v90
  %v316 = vpop.f32.mrf.mxu0
  %v317 = vadd.f32 0.0, %v316
  %v318 = vpop.f32.mrf.mxu0
  %319 = vmatprep.mubr.f32.mxu0 0.0
  %320 = vmatmul.mubr.f32.gmra.mxu0 %v93
  %v321 = vpop.f32.mrf.mxu0
  %v322 = vadd.f32 0.0, %v321
  %v323 = vpop.f32.mrf.mxu0
  %324 = vmatprep.mubr.f32.mxu0 0.0
  %325 = vmatmul.mubr.f32.gmra.mxu0 %v96
  %v326 = vpop.f32.mrf.mxu0
  %v327 = vadd.f32 0.0, %v326
  %v328 = vpop.f32.mrf.mxu0
  %329 = vmatprep.mubr.f32.mxu0 0.0
  %330 = vmatmul.mubr.f32.gmra.mxu0 %v99
  %v331 = vpop.f32.mrf.mxu0
  %v332 = vadd.f32 0.0, %v331
  %v333 = vpop.f32.mrf.mxu0
  %334 = vmatprep.mubr.f32.mxu0 0.0
  %335 = vmatmul.mubr.f32.gmra.mxu0 %v102
  %v336 = vpop.f32.mrf.mxu0
  %v337 = vadd.f32 0.0, %v336
  %v338 = vpop.f32.mrf.mxu0
  %339 = vmatprep.mubr.f32.mxu0 0.0
  %340 = vmatmul.mubr.f32.gmra.mxu0 %v105
  %v341 = vpop.f32.mrf.mxu0
  %v342 = vadd.f32 0.0, %v341
  %v343 = vpop.f32.mrf.mxu0
  %344 = vmatprep.mubr.f32.mxu0 0.0
  %345 = vmatmul.mubr.f32.gmra.mxu0 %v108
  %v346 = vpop.f32.mrf.mxu0
  %v347 = vadd.f32 0.0, %v346
  %v348 = vpop.f32.mrf.mxu0
  %349 = vmatprep.mubr.f32.mxu0 0.0
  %350 = vmatmul.mubr.f32.gmra.mxu0 %v111
  %v351 = vpop.f32.mrf.mxu0
  %v352 = vadd.f32 0.0, %v351
  %v353 = vpop.f32.mrf.mxu0
  %354 = vmatprep.mubr.f32.mxu0 0.0
  %355 = vmatmul.mubr.f32.gmra.mxu0 %v114
  %v356 = vpop.f32.mrf.mxu0
  %v357 = vadd.f32 0.0, %v356
  %v358 = vpop.f32.mrf.mxu0
  %359 = vmatprep.mubr.f32.mxu0 0.0
  %360 = vmatmul.mubr.f32.gmra.mxu0 %v117
  %v361 = vpop.f32.mrf.mxu0
  %v362 = vadd.f32 0.0, %v361
  %v363 = vpop.f32.mrf.mxu0
  %364 = vmatprep.mubr.f32.mxu0 0.0
  %365 = vmatmul.mubr.f32.gmra.mxu0 %v120
  %v366 = vpop.f32.mrf.mxu0
  %v367 = vadd.f32 0.0, %v366
  %v368 = vpop.f32.mrf.mxu0
  %369 = vmatprep.mubr.f32.mxu0 0.0
  %370 = vmatmul.mubr.f32.gmra.mxu0 %v123
  %v371 = vpop.f32.mrf.mxu0
  %v372 = vadd.f32 0.0, %v371
  %v373 = vpop.f32.mrf.mxu0
  %374 = vmatprep.mubr.f32.mxu0 0.0
  %375 = vmatmul.mubr.f32.gmra.mxu0 %v126
  %v376 = vpop.f32.mrf.mxu0
  %v377 = vadd.f32 0.0, %v376
  %v378 = vpop.f32.mrf.mxu0
  %379 = vmatprep.mubr.f32.mxu0 0.0
  %380 = vmatmul.mubr.f32.gmra.mxu0 %v129
  %v381 = vpop.f32.mrf.mxu0
  %v382 = vadd.f32 0.0, %v381
  %v383 = vpop.f32.mrf.mxu0
  %384 = vmatprep.mubr.f32.mxu0 0.0
  %385 = vmatmul.mubr.f32.gmra.mxu0 %v132
  %v386 = vpop.f32.mrf.mxu0
  %v387 = vadd.f32 0.0, %v386
  %v388 = vpop.f32.mrf.mxu0
  %389 = vmatprep.mubr.f32.mxu0 0.0
  %390 = vmatmul.mubr.f32.gmra.mxu0 %v135
  %v391 = vpop.f32.mrf.mxu0
  %v392 = vadd.f32 0.0, %v391
  %v393 = vpop.f32.mrf.mxu0
  %394 = vmatprep.mubr.f32.mxu0 0.0
  %395 = vmatmul.mubr.f32.gmra.mxu0 %v138
  %v396 = vpop.f32.mrf.mxu0
  %v397 = vadd.f32 0.0, %v396
  %v398 = vpop.f32.mrf.mxu0
  %399 = vmatprep.mubr.f32.mxu0 0.0
  %400 = vmatmul.mubr.f32.gmra.mxu0 %v141
  %v401 = vpop.f32.mrf.mxu0
  %v402 = vadd.f32 0.0, %v401
  %v403 = vpop.f32.mrf.mxu0
  %404 = vmatprep.mubr.f32.mxu0 0.0
  %405 = vmatmul.mubr.f32.gmra.mxu0 %v144
  %v406 = vpop.f32.mrf.mxu0
  %v407 = vadd.f32 0.0, %v406
  %v408 = vpop.f32.mrf.mxu0
  %409 = vmatprep.mubr.f32.mxu0 0.0
  %410 = vmatmul.mubr.f32.gmra.mxu0 %v147
  %v411 = vpop.f32.mrf.mxu0
  %v412 = vadd.f32 0.0, %v411
  %v413 = vpop.f32.mrf.mxu0
  %414 = vmatprep.mubr.f32.mxu0 0.0
  %415 = vmatmul.mubr.f32.gmra.mxu0 %v150
  %v416 = vpop.f32.mrf.mxu0
  %v417 = vadd.f32 0.0, %v416
  %v418 = vpop.f32.mrf.mxu0
  %419 = vmatprep.mubr.f32.mxu0 0.0
  %420 = vmatmul.mubr.f32.gmra.mxu0 %v153
  %v421 = vpop.f32.mrf.mxu0
  %v422 = vadd.f32 0.0, %v421
  %v423 = vpop.f32.mrf.mxu0
  %424 = vmatprep.mubr.f32.mxu0 0.0
  %425 = vmatmul.mubr.f32.gmra.mxu0 %v156
  %v426 = vpop.f32.mrf.mxu0
  %v427 = vadd.f32 0.0, %v426
  %v428 = vpop.f32.mrf.mxu0
  %429 = vmatprep.mubr.f32.mxu0 0.0
  %430 = vmatmul.mubr.f32.gmra.mxu0 %v159
  %v431 = vpop.f32.mrf.mxu0
  %v432 = vadd.f32 0.0, %v431
  %v433 = vpop.f32.mrf.mxu0
  %434 = vmatprep.mubr.f32.mxu0 0.0
  %435 = vmatmul.mubr.f32.gmra.mxu0 %v162
  %v436 = vpop.f32.mrf.mxu0
  %v437 = vadd.f32 0.0, %v436
  %v438 = vpop.f32.mrf.mxu0
  %439 = vmatprep.mubr.f32.mxu0 0.0
  %440 = vmatmul.mubr.f32.gmra.mxu0 %v165
  %v441 = vpop.f32.mrf.mxu0
  %v442 = vadd.f32 0.0, %v441
  %v443 = vpop.f32.mrf.mxu0
  %444 = vmatprep.mubr.f32.mxu0 0.0
  %445 = vmatmul.mubr.f32.gmra.mxu0 %v168
  %v446 = vpop.f32.mrf.mxu0
  %v447 = vadd.f32 0.0, %v446
  %v448 = vpop.f32.mrf.mxu0
  %449 = vmatprep.mubr.f32.mxu0 0.0
  %450 = vmatmul.mubr.f32.gmra.mxu0 %v171
  %v451 = vpop.f32.mrf.mxu0
  %v452 = vadd.f32 0.0, %v451
  %v453 = vpop.f32.mrf.mxu0
  %454 = vmatprep.mubr.f32.mxu0 0.0
  %455 = vmatmul.mubr.f32.gmra.mxu0 %v174
  %v456 = vpop.f32.mrf.mxu0
  %v457 = vadd.f32 0.0, %v456
  %v458 = vpop.f32.mrf.mxu0
  %459 = vmatprep.mubr.f32.mxu0 0.0
  %460 = vmatmul.mubr.f32.gmra.mxu0 %v177
  %v461 = vpop.f32.mrf.mxu0
  %v462 = vadd.f32 0.0, %v461
  %v463 = vpop.f32.mrf.mxu0
  %464 = vmatprep.mubr.f32.mxu0 0.0
  %465 = vmatmul.mubr.f32.gmra.mxu0 %v180
  %v466 = vpop.f32.mrf.mxu0
  %v467 = vadd.f32 0.0, %v466
  %v468 = vpop.f32.mrf.mxu0
  %469 = vmatprep.mubr.f32.mxu0 0.0
  %470 = vmatmul.mubr.f32.gmra.mxu0 %v183
  %v471 = vpop.f32.mrf.mxu0
  %v472 = vadd.f32 0.0, %v471
  %v473 = vpop.f32.mrf.mxu0
  %474 = vmatprep.mubr.f32.mxu0 0.0
  %475 = vmatmul.mubr.f32.gmra.mxu0 %v186
  %v476 = vpop.f32.mrf.mxu0
  %v477 = vadd.f32 0.0, %v476
  %v478 = vpop.f32.mrf.mxu0
  %479 = vmatprep.mubr.f32.mxu0 0.0
  %480 = vmatmul.mubr.f32.gmra.mxu0 %v189
  %v481 = vpop.f32.mrf.mxu0
  %v482 = vadd.f32 0.0, %v481
  %v483 = vpop.f32.mrf.mxu0
  %484 = vmatprep.mubr.f32.mxu0 0.0
  %485 = vmatmul.mubr.f32.gmra.mxu0 %v192
  %v486 = vpop.f32.mrf.mxu0
  %v487 = vadd.f32 0.0, %v486
  %v488 = vpop.f32.mrf.mxu0
  %489 = vmatprep.mubr.f32.mxu0 0.0
  %490 = vmatmul.mubr.f32.gmra.mxu0 %v195
  %v491 = vpop.f32.mrf.mxu0
  %v492 = vadd.f32 0.0, %v491
  %v493 = vpop.f32.mrf.mxu0
  %494 = vmatprep.mubr.f32.mxu0 0.0
  %495 = vmatmul.mubr.f32.gmra.mxu0 %v198
  %v496 = vpop.f32.mrf.mxu0
  %v497 = vadd.f32 0.0, %v496
  %v498 = vpop.f32.mrf.mxu0
  %499 = vmatprep.mubr.f32.mxu0 0.0
  %500 = vmatmul.mubr.f32.gmra.mxu0 %v201
  %v501 = vpop.f32.mrf.mxu0
  %v502 = vadd.f32 0.0, %v501
  %v503 = vpop.f32.mrf.mxu0
  %504 = vmatprep.mubr.f32.mxu0 0.0
  %505 = vmatmul.mubr.f32.gmra.mxu0 %v204
  %v506 = vpop.f32.mrf.mxu0
  %v507 = vadd.f32 0.0, %v506
  %v508 = vpop.f32.mrf.mxu0
  %509 = vmatprep.mubr.f32.mxu0 0.0
  %510 = vmatmul.mubr.f32.gmra.mxu0 %v207
  %v511 = vpop.f32.mrf.mxu0
  %v512 = vadd.f32 0.0, %v511
  %v513 = vpop.f32.mrf.mxu0
  %514 = vmatprep.mubr.f32.mxu0 0.0
  %515 = vmatmul.mubr.f32.gmra.mxu0 %v210
  %v516 = vpop.f32.mrf.mxu0
  %v517 = vadd.f32 0.0, %v516
  %v518 = vpop.f32.mrf.mxu0
  %519 = vmatprep.mubr.f32.mxu0 0.0
  %520 = vmatmul.mubr.f32.gmra.mxu0 %v213
  %v521 = vpop.f32.mrf.mxu0
  %v522 = vadd.f32 0.0, %v521
  %v523 = vpop.f32.mrf.mxu0
  %524 = vdwg.mxu0
  %s525 = scalar_lea.vmem %s0, 392
  %v526 = vld [vmem:[%s525] sm:$0xff]
  %v527 = vld [vmem:[%s525 + $0x8] sm:$0xff]
  %v528 = vld [vmem:[%s525 + $0x10] sm:$0xff]
  %v529 = vld [vmem:[%s525 + $0x18] sm:$0xff]
  %v530 = vld [vmem:[%s525 + $0x20] sm:$0xff]
  %v531 = vld [vmem:[%s525 + $0x28] sm:$0xff]
  %v532 = vld [vmem:[%s525 + $0x30] sm:$0xff]
  %v533 = vld [vmem:[%s525 + $0x38] sm:$0xff]
  %v534 = vld [vmem:[%s525 + $0x40] sm:$0xff]
  %v535 = vld [vmem:[%s525 + $0x48] sm:$0xff]
  %v536 = vld [vmem:[%s525 + $0x50] sm:$0xff]
  %v537 = vld [vmem:[%s525 + $0x58] sm:$0xff]
  %v538 = vld [vmem:[%s525 + $0x60] sm:$0xff]
  %v539 = vld [vmem:[%s525 + $0x68] sm:$0xff]
  %v540 = vld [vmem:[%s525 + $0x70] sm:$0xff]
  %v541 = vld [vmem:[%s525 + $0x78] sm:$0xff]
  %v542 = vld [vmem:[%s525 + $0x80] sm:$0xff]
  %v543 = vld [vmem:[%s525 + $0x88] sm:$0xff]
  %v544 = vld [vmem:[%s525 + $0x90] sm:$0xff]
  %v545 = vld [vmem:[%s525 + $0x98] sm:$0xff]
  %v546 = vld [vmem:[%s525 + $0xa0] sm:$0xff]
  %v547 = vld [vmem:[%s525 + $0xa8] sm:$0xff]
  %v548 = vld [vmem:[%s525 + $0xb0] sm:$0xff]
  %v549 = vld [vmem:[%s525 + $0xb8] sm:$0xff]
  %v550 = vld [vmem:[%s525 + $0xc0] sm:$0xff]
  %v551 = vld [vmem:[%s525 + $0xc8] sm:$0xff]
  %v552 = vld [vmem:[%s525 + $0xd0] sm:$0xff]
  %v553 = vld [vmem:[%s525 + $0xd8] sm:$0xff]
  %v554 = vld [vmem:[%s525 + $0xe0] sm:$0xff]
  %v555 = vld [vmem:[%s525 + $0xe8] sm:$0xff]
  %v556 = vld [vmem:[%s525 + $0xf0] sm:$0xff]
  %v557 = vld [vmem:[%s525 + $0xf8] sm:$0xff]
  %v558 = vld [vmem:[%s525 + $0x100] sm:$0xff]
  %v559 = vld [vmem:[%s525 + $0x108] sm:$0xff]
  %v560 = vld [vmem:[%s525 + $0x110] sm:$0xff]
  %v561 = vld [vmem:[%s525 + $0x118] sm:$0xff]
  %v562 = vld [vmem:[%s525 + $0x120] sm:$0xff]
  %v563 = vld [vmem:[%s525 + $0x128] sm:$0xff]
  %v564 = vld [vmem:[%s525 + $0x130] sm:$0xff]
  %v565 = vld [vmem:[%s525 + $0x138] sm:$0xff]
  %v566 = vld [vmem:[%s525 + $0x140] sm:$0xff]
  %v567 = vld [vmem:[%s525 + $0x148] sm:$0xff]
  %v568 = vld [vmem:[%s525 + $0x150] sm:$0xff]
  %v569 = vld [vmem:[%s525 + $0x158] sm:$0xff]
  %v570 = vld [vmem:[%s525 + $0x160] sm:$0xff]
  %v571 = vld [vmem:[%s525 + $0x168] sm:$0xff]
  %v572 = vld [vmem:[%s525 + $0x170] sm:$0xff]
  %v573 = vld [vmem:[%s525 + $0x178] sm:$0xff]
  %v574 = vld [vmem:[%s525 + $0x180] sm:$0xff]
  %v576 = vsel %vm67, %v526, 0
  %v579 = vsel %vm67, %v527, 0
  %v582 = vsel %vm67, %v528, 0
  %v585 = vsel %vm67, %v529, 0
  %v588 = vsel %vm67, %v530, 0
  %v591 = vsel %vm67, %v531, 0
  %v594 = vsel %vm67, %v532, 0
  %v597 = vsel %vm67, %v533, 0
  %v600 = vsel %vm67, %v534, 0
  %v603 = vsel %vm67, %v535, 0
  %v606 = vsel %vm67, %v536, 0
  %v609 = vsel %vm67, %v537, 0
  %v612 = vsel %vm67, %v538, 0
  %v615 = vsel %vm67, %v539, 0
  %v618 = vsel %vm67, %v540, 0
  %v621 = vsel %vm67, %v541, 0
  %v624 = vsel %vm67, %v542, 0
  %v627 = vsel %vm67, %v543, 0
  %v630 = vsel %vm67, %v544, 0
  %v633 = vsel %vm67, %v545, 0
  %v636 = vsel %vm67, %v546, 0
  %v639 = vsel %vm67, %v547, 0
  %v642 = vsel %vm67, %v548, 0
  %v645 = vsel %vm67, %v549, 0
  %v648 = vsel %vm67, %v550, 0
  %v651 = vsel %vm67, %v551, 0
  %v654 = vsel %vm67, %v552, 0
  %v657 = vsel %vm67, %v553, 0
  %v660 = vsel %vm67, %v554, 0
  %v663 = vsel %vm67, %v555, 0
  %v666 = vsel %vm67, %v556, 0
  %v669 = vsel %vm67, %v557, 0
  %v672 = vsel %vm67, %v558, 0
  %v675 = vsel %vm67, %v559, 0
  %v678 = vsel %vm67, %v560, 0
  %v681 = vsel %vm67, %v561, 0
  %v684 = vsel %vm67, %v562, 0
  %v687 = vsel %vm67, %v563, 0
  %v690 = vsel %vm67, %v564, 0
  %v693 = vsel %vm67, %v565, 0
  %v696 = vsel %vm67, %v566, 0
  %v699 = vsel %vm67, %v567, 0
  %v702 = vsel %vm67, %v568, 0
  %v705 = vsel %vm67, %v569, 0
  %v708 = vsel %vm67, %v570, 0
  %v711 = vsel %vm67, %v571, 0
  %v714 = vsel %vm67, %v572, 0
  %v717 = vsel %vm67, %v573, 0
  %v720 = vsel %vm67, %v574, 0
  %722 = vmatprep.subr.mxu0 0.0
  %723 = vmatpush1.msra.mxu0 0.0
  %724 = vmatprep.subr.mxu0 0.0
  %725 = vmatpush1.msra.mxu0 0.0
  %726 = vmatprep.subr.mxu0 0.0
  %727 = vmatpush1.msra.mxu0 0.0
  %728 = vmatprep.subr.mxu0 0.0
  %729 = vmatpush1.msra.mxu0 0.0
  %730 = vmatprep.subr.mxu0 0.0
  %731 = vmatpush1.msra.mxu0 0.0
  %732 = vmatprep.subr.mxu0 0.0
  %733 = vmatpush1.msra.mxu0 0.0
  %734 = vmatprep.subr.mxu0 0.0
  %735 = vmatpush1.msra.mxu0 0.0
  %736 = vmatprep.subr.mxu0 0.0
  %737 = vmatpush1.msra.mxu0 0.0
  %738 = vmatprep.subr.mxu0 0.0
  %739 = vmatpush1.msra.mxu0 0.0
  %740 = vmatprep.subr.mxu0 0.0
  %741 = vmatpush1.msra.mxu0 0.0
  %742 = vmatprep.subr.mxu0 0.0
  %743 = vmatpush1.msra.mxu0 0.0
  %744 = vmatprep.subr.mxu0 0.0
  %745 = vmatpush1.msra.mxu0 0.0
  %746 = vmatprep.subr.mxu0 0.0
  %747 = vmatpush1.msra.mxu0 %v17
  %748 = vmatprep.subr.mxu0 0.0
  %749 = vmatpush1.msra.mxu0 %v16
  %750 = vmatprep.subr.mxu0 0.0
  %751 = vmatpush1.msra.mxu0 %v15
  %752 = vmatprep.subr.mxu0 0.0
  %753 = vmatpush1.msra.mxu0 %v14
  %754 = vmatprep.subr.mxu0 0.0
  %755 = vmatpush2.msra.mxu0 0.0
  %756 = vmatprep.subr.mxu0 0.0
  %757 = vmatpush2.msra.mxu0 0.0
  %758 = vmatprep.subr.mxu0 0.0
  %759 = vmatpush2.msra.mxu0 0.0
  %760 = vmatprep.subr.mxu0 0.0
  %761 = vmatpush2.msra.mxu0 0.0
  %762 = vmatprep.subr.mxu0 0.0
  %763 = vmatpush2.msra.mxu0 0.0
  %764 = vmatprep.subr.mxu0 0.0
  %765 = vmatpush2.msra.mxu0 0.0
  %766 = vmatprep.subr.mxu0 0.0
  %767 = vmatpush2.msra.mxu0 0.0
  %768 = vmatprep.subr.mxu0 0.0
  %769 = vmatpush2.msra.mxu0 0.0
  %770 = vmatprep.subr.mxu0 0.0
  %771 = vmatpush2.msra.mxu0 0.0
  %772 = vmatprep.subr.mxu0 0.0
  %773 = vmatpush2.msra.mxu0 0.0
  %774 = vmatprep.subr.mxu0 0.0
  %775 = vmatpush2.msra.mxu0 0.0
  %776 = vmatprep.subr.mxu0 0.0
  %777 = vmatpush2.msra.mxu0 0.0
  %778 = vmatprep.subr.mxu0 0.0
  %779 = vmatpush2.msra.mxu0 0.0
  %780 = vmatprep.subr.mxu0 0.0
  %781 = vmatpush2.msra.mxu0 0.0
  %782 = vmatprep.subr.mxu0 0.0
  %783 = vmatpush2.msra.mxu0 0.0
  %784 = vmatprep.subr.mxu0 0.0
  %785 = vmatpush2.msra.mxu0 0.0
  %786 = vmatprep.mubr.f32.mxu0 0.0
  %787 = vmatmul.mubr.f32.gmra.mxu0 %v576
  %v788 = vpop.f32.mrf.mxu0
  %v789 = vadd.f32 0.0, %v788
  %v790 = vpop.f32.mrf.mxu0
  %791 = vmatprep.mubr.f32.mxu0 0.0
  %792 = vmatmul.mubr.f32.gmra.mxu0 %v579
  %v793 = vpop.f32.mrf.mxu0
  %v794 = vadd.f32 0.0, %v793
  %v795 = vpop.f32.mrf.mxu0
  %796 = vmatprep.mubr.f32.mxu0 0.0
  %797 = vmatmul.mubr.f32.gmra.mxu0 %v582
  %v798 = vpop.f32.mrf.mxu0
  %v799 = vadd.f32 0.0, %v798
  %v800 = vpop.f32.mrf.mxu0
  %801 = vmatprep.mubr.f32.mxu0 0.0
  %802 = vmatmul.mubr.f32.gmra.mxu0 %v585
  %v803 = vpop.f32.mrf.mxu0
  %v804 = vadd.f32 0.0, %v803
  %v805 = vpop.f32.mrf.mxu0
  %806 = vmatprep.mubr.f32.mxu0 0.0
  %807 = vmatmul.mubr.f32.gmra.mxu0 %v588
  %v808 = vpop.f32.mrf.mxu0
  %v809 = vadd.f32 0.0, %v808
  %v810 = vpop.f32.mrf.mxu0
  %811 = vmatprep.mubr.f32.mxu0 0.0
  %812 = vmatmul.mubr.f32.gmra.mxu0 %v591
  %v813 = vpop.f32.mrf.mxu0
  %v814 = vadd.f32 0.0, %v813
  %v815 = vpop.f32.mrf.mxu0
  %816 = vmatprep.mubr.f32.mxu0 0.0
  %817 = vmatmul.mubr.f32.gmra.mxu0 %v594
  %v818 = vpop.f32.mrf.mxu0
  %v819 = vadd.f32 0.0, %v818
  %v820 = vpop.f32.mrf.mxu0
  %821 = vmatprep.mubr.f32.mxu0 0.0
  %822 = vmatmul.mubr.f32.gmra.mxu0 %v597
  %v823 = vpop.f32.mrf.mxu0
  %v824 = vadd.f32 0.0, %v823
  %v825 = vpop.f32.mrf.mxu0
  %826 = vmatprep.mubr.f32.mxu0 0.0
  %827 = vmatmul.mubr.f32.gmra.mxu0 %v600
  %v828 = vpop.f32.mrf.mxu0
  %v829 = vadd.f32 0.0, %v828
  %v830 = vpop.f32.mrf.mxu0
  %831 = vmatprep.mubr.f32.mxu0 0.0
  %832 = vmatmul.mubr.f32.gmra.mxu0 %v603
  %v833 = vpop.f32.mrf.mxu0
  %v834 = vadd.f32 0.0, %v833
  %v835 = vpop.f32.mrf.mxu0
  %836 = vmatprep.mubr.f32.mxu0 0.0
  %837 = vmatmul.mubr.f32.gmra.mxu0 %v606
  %v838 = vpop.f32.mrf.mxu0
  %v839 = vadd.f32 0.0, %v838
  %v840 = vpop.f32.mrf.mxu0
  %841 = vmatprep.mubr.f32.mxu0 0.0
  %842 = vmatmul.mubr.f32.gmra.mxu0 %v609
  %v843 = vpop.f32.mrf.mxu0
  %v844 = vadd.f32 0.0, %v843
  %v845 = vpop.f32.mrf.mxu0
  %846 = vmatprep.mubr.f32.mxu0 0.0
  %847 = vmatmul.mubr.f32.gmra.mxu0 %v612
  %v848 = vpop.f32.mrf.mxu0
  %v849 = vadd.f32 0.0, %v848
  %v850 = vpop.f32.mrf.mxu0
  %851 = vmatprep.mubr.f32.mxu0 0.0
  %852 = vmatmul.mubr.f32.gmra.mxu0 %v615
  %v853 = vpop.f32.mrf.mxu0
  %v854 = vadd.f32 0.0, %v853
  %v855 = vpop.f32.mrf.mxu0
  %856 = vmatprep.mubr.f32.mxu0 0.0
  %857 = vmatmul.mubr.f32.gmra.mxu0 %v618
  %v858 = vpop.f32.mrf.mxu0
  %v859 = vadd.f32 0.0, %v858
  %v860 = vpop.f32.mrf.mxu0
  %861 = vmatprep.mubr.f32.mxu0 0.0
  %862 = vmatmul.mubr.f32.gmra.mxu0 %v621
  %v863 = vpop.f32.mrf.mxu0
  %v864 = vadd.f32 0.0, %v863
  %v865 = vpop.f32.mrf.mxu0
  %866 = vmatprep.mubr.f32.mxu0 0.0
  %867 = vmatmul.mubr.f32.gmra.mxu0 %v624
  %v868 = vpop.f32.mrf.mxu0
  %v869 = vadd.f32 0.0, %v868
  %v870 = vpop.f32.mrf.mxu0
  %871 = vmatprep.mubr.f32.mxu0 0.0
  %872 = vmatmul.mubr.f32.gmra.mxu0 %v627
  %v873 = vpop.f32.mrf.mxu0
  %v874 = vadd.f32 0.0, %v873
  %v875 = vpop.f32.mrf.mxu0
  %876 = vmatprep.mubr.f32.mxu0 0.0
  %877 = vmatmul.mubr.f32.gmra.mxu0 %v630
  %v878 = vpop.f32.mrf.mxu0
  %v879 = vadd.f32 0.0, %v878
  %v880 = vpop.f32.mrf.mxu0
  %881 = vmatprep.mubr.f32.mxu0 0.0
  %882 = vmatmul.mubr.f32.gmra.mxu0 %v633
  %v883 = vpop.f32.mrf.mxu0
  %v884 = vadd.f32 0.0, %v883
  %v885 = vpop.f32.mrf.mxu0
  %886 = vmatprep.mubr.f32.mxu0 0.0
  %887 = vmatmul.mubr.f32.gmra.mxu0 %v636
  %v888 = vpop.f32.mrf.mxu0
  %v889 = vadd.f32 0.0, %v888
  %v890 = vpop.f32.mrf.mxu0
  %891 = vmatprep.mubr.f32.mxu0 0.0
  %892 = vmatmul.mubr.f32.gmra.mxu0 %v639
  %v893 = vpop.f32.mrf.mxu0
  %v894 = vadd.f32 0.0, %v893
  %v895 = vpop.f32.mrf.mxu0
  %896 = vmatprep.mubr.f32.mxu0 0.0
  %897 = vmatmul.mubr.f32.gmra.mxu0 %v642
  %v898 = vpop.f32.mrf.mxu0
  %v899 = vadd.f32 0.0, %v898
  %v900 = vpop.f32.mrf.mxu0
  %901 = vmatprep.mubr.f32.mxu0 0.0
  %902 = vmatmul.mubr.f32.gmra.mxu0 %v645
  %v903 = vpop.f32.mrf.mxu0
  %v904 = vadd.f32 0.0, %v903
  %v905 = vpop.f32.mrf.mxu0
  %906 = vmatprep.mubr.f32.mxu0 0.0
  %907 = vmatmul.mubr.f32.gmra.mxu0 %v648
  %v908 = vpop.f32.mrf.mxu0
  %v909 = vadd.f32 0.0, %v908
  %v910 = vpop.f32.mrf.mxu0
  %911 = vmatprep.mubr.f32.mxu0 0.0
  %912 = vmatmul.mubr.f32.gmra.mxu0 %v651
  %v913 = vpop.f32.mrf.mxu0
  %v914 = vadd.f32 0.0, %v913
  %v915 = vpop.f32.mrf.mxu0
  %916 = vmatprep.mubr.f32.mxu0 0.0
  %917 = vmatmul.mubr.f32.gmra.mxu0 %v654
  %v918 = vpop.f32.mrf.mxu0
  %v919 = vadd.f32 0.0, %v918
  %v920 = vpop.f32.mrf.mxu0
  %921 = vmatprep.mubr.f32.mxu0 0.0
  %922 = vmatmul.mubr.f32.gmra.mxu0 %v657
  %v923 = vpop.f32.mrf.mxu0
  %v924 = vadd.f32 0.0, %v923
  %v925 = vpop.f32.mrf.mxu0
  %926 = vmatprep.mubr.f32.mxu0 0.0
  %927 = vmatmul.mubr.f32.gmra.mxu0 %v660
  %v928 = vpop.f32.mrf.mxu0
  %v929 = vadd.f32 0.0, %v928
  %v930 = vpop.f32.mrf.mxu0
  %931 = vmatprep.mubr.f32.mxu0 0.0
  %932 = vmatmul.mubr.f32.gmra.mxu0 %v663
  %v933 = vpop.f32.mrf.mxu0
  %v934 = vadd.f32 0.0, %v933
  %v935 = vpop.f32.mrf.mxu0
  %936 = vmatprep.mubr.f32.mxu0 0.0
  %937 = vmatmul.mubr.f32.gmra.mxu0 %v666
  %v938 = vpop.f32.mrf.mxu0
  %v939 = vadd.f32 0.0, %v938
  %v940 = vpop.f32.mrf.mxu0
  %941 = vmatprep.mubr.f32.mxu0 0.0
  %942 = vmatmul.mubr.f32.gmra.mxu0 %v669
  %v943 = vpop.f32.mrf.mxu0
  %v944 = vadd.f32 0.0, %v943
  %v945 = vpop.f32.mrf.mxu0
  %946 = vmatprep.mubr.f32.mxu0 0.0
  %947 = vmatmul.mubr.f32.gmra.mxu0 %v672
  %v948 = vpop.f32.mrf.mxu0
  %v949 = vadd.f32 0.0, %v948
  %v950 = vpop.f32.mrf.mxu0
  %951 = vmatprep.mubr.f32.mxu0 0.0
  %952 = vmatmul.mubr.f32.gmra.mxu0 %v675
  %v953 = vpop.f32.mrf.mxu0
  %v954 = vadd.f32 0.0, %v953
  %v955 = vpop.f32.mrf.mxu0
  %956 = vmatprep.mubr.f32.mxu0 0.0
  %957 = vmatmul.mubr.f32.gmra.mxu0 %v678
  %v958 = vpop.f32.mrf.mxu0
  %v959 = vadd.f32 0.0, %v958
  %v960 = vpop.f32.mrf.mxu0
  %961 = vmatprep.mubr.f32.mxu0 0.0
  %962 = vmatmul.mubr.f32.gmra.mxu0 %v681
  %v963 = vpop.f32.mrf.mxu0
  %v964 = vadd.f32 0.0, %v963
  %v965 = vpop.f32.mrf.mxu0
  %966 = vmatprep.mubr.f32.mxu0 0.0
  %967 = vmatmul.mubr.f32.gmra.mxu0 %v684
  %v968 = vpop.f32.mrf.mxu0
  %v969 = vadd.f32 0.0, %v968
  %v970 = vpop.f32.mrf.mxu0
  %971 = vmatprep.mubr.f32.mxu0 0.0
  %972 = vmatmul.mubr.f32.gmra.mxu0 %v687
  %v973 = vpop.f32.mrf.mxu0
  %v974 = vadd.f32 0.0, %v973
  %v975 = vpop.f32.mrf.mxu0
  %976 = vmatprep.mubr.f32.mxu0 0.0
  %977 = vmatmul.mubr.f32.gmra.mxu0 %v690
  %v978 = vpop.f32.mrf.mxu0
  %v979 = vadd.f32 0.0, %v978
  %v980 = vpop.f32.mrf.mxu0
  %981 = vmatprep.mubr.f32.mxu0 0.0
  %982 = vmatmul.mubr.f32.gmra.mxu0 %v693
  %v983 = vpop.f32.mrf.mxu0
  %v984 = vadd.f32 0.0, %v983
  %v985 = vpop.f32.mrf.mxu0
  %986 = vmatprep.mubr.f32.mxu0 0.0
  %987 = vmatmul.mubr.f32.gmra.mxu0 %v696
  %v988 = vpop.f32.mrf.mxu0
  %v989 = vadd.f32 0.0, %v988
  %v990 = vpop.f32.mrf.mxu0
  %991 = vmatprep.mubr.f32.mxu0 0.0
  %992 = vmatmul.mubr.f32.gmra.mxu0 %v699
  %v993 = vpop.f32.mrf.mxu0
  %v994 = vadd.f32 0.0, %v993
  %v995 = vpop.f32.mrf.mxu0
  %996 = vmatprep.mubr.f32.mxu0 0.0
  %997 = vmatmul.mubr.f32.gmra.mxu0 %v702
  %v998 = vpop.f32.mrf.mxu0
  %v999 = vadd.f32 0.0, %v998
  %v1000 = vpop.f32.mrf.mxu0
  %1001 = vmatprep.mubr.f32.mxu0 0.0
  %1002 = vmatmul.mubr.f32.gmra.mxu0 %v705
  %v1003 = vpop.f32.mrf.mxu0
  %v1004 = vadd.f32 0.0, %v1003
  %v1005 = vpop.f32.mrf.mxu0
  %1006 = vmatprep.mubr.f32.mxu0 0.0
  %1007 = vmatmul.mubr.f32.gmra.mxu0 %v708
  %v1008 = vpop.f32.mrf.mxu0
  %v1009 = vadd.f32 0.0, %v1008
  %v1010 = vpop.f32.mrf.mxu0
  %1011 = vmatprep.mubr.f32.mxu0 0.0
  %1012 = vmatmul.mubr.f32.gmra.mxu0 %v711
  %v1013 = vpop.f32.mrf.mxu0
  %v1014 = vadd.f32 0.0, %v1013
  %v1015 = vpop.f32.mrf.mxu0
  %1016 = vmatprep.mubr.f32.mxu0 0.0
  %1017 = vmatmul.mubr.f32.gmra.mxu0 %v714
  %v1018 = vpop.f32.mrf.mxu0
  %v1019 = vadd.f32 0.0, %v1018
  %v1020 = vpop.f32.mrf.mxu0
  %1021 = vmatprep.mubr.f32.mxu0 0.0
  %1022 = vmatmul.mubr.f32.gmra.mxu0 %v717
  %v1023 = vpop.f32.mrf.mxu0
  %v1024 = vadd.f32 0.0, %v1023
  %v1025 = vpop.f32.mrf.mxu0
  %1026 = vmatprep.mubr.f32.mxu0 0.0
  %1027 = vmatmul.mubr.f32.gmra.mxu0 %v720
  %v1028 = vpop.f32.mrf.mxu0
  %v1029 = vadd.f32 0.0, %v1028
  %v1030 = vpop.f32.mrf.mxu0
  %1031 = vdwg.mxu0
  %v1032 = vmax.f32 %v282, %v789
  %v1033 = vmax.f32 %v287, %v794
  %v1034 = vmax.f32 %v292, %v799
  %v1035 = vmax.f32 %v297, %v804
  %v1036 = vmax.f32 %v302, %v809
  %v1037 = vmax.f32 %v307, %v814
  %v1038 = vmax.f32 %v312, %v819
  %v1039 = vmax.f32 %v317, %v824
  %v1040 = vmax.f32 %v322, %v829
  %v1041 = vmax.f32 %v327, %v834
  %v1042 = vmax.f32 %v332, %v839
  %v1043 = vmax.f32 %v337, %v844
  %v1044 = vmax.f32 %v342, %v849
  %v1045 = vmax.f32 %v347, %v854
  %v1046 = vmax.f32 %v352, %v859
  %v1047 = vmax.f32 %v357, %v864
  %v1048 = vmax.f32 %v362, %v869
  %v1049 = vmax.f32 %v367, %v874
  %v1050 = vmax.f32 %v372, %v879
  %v1051 = vmax.f32 %v377, %v884
  %v1052 = vmax.f32 %v382, %v889
  %v1053 = vmax.f32 %v387, %v894
  %v1054 = vmax.f32 %v392, %v899
  %v1055 = vmax.f32 %v397, %v904
  %v1056 = vmax.f32 %v402, %v909
  %v1057 = vmax.f32 %v407, %v914
  %v1058 = vmax.f32 %v412, %v919
  %v1059 = vmax.f32 %v417, %v924
  %v1060 = vmax.f32 %v422, %v929
  %v1061 = vmax.f32 %v427, %v934
  %v1062 = vmax.f32 %v432, %v939
  %v1063 = vmax.f32 %v437, %v944
  %v1064 = vmax.f32 %v442, %v949
  %v1065 = vmax.f32 %v447, %v954
  %v1066 = vmax.f32 %v452, %v959
  %v1067 = vmax.f32 %v457, %v964
  %v1068 = vmax.f32 %v462, %v969
  %v1069 = vmax.f32 %v467, %v974
  %v1070 = vmax.f32 %v472, %v979
  %v1071 = vmax.f32 %v477, %v984
  %v1072 = vmax.f32 %v482, %v989
  %v1073 = vmax.f32 %v487, %v994
  %v1074 = vmax.f32 %v492, %v999
  %v1075 = vmax.f32 %v497, %v1004
  %v1076 = vmax.f32 %v502, %v1009
  %v1077 = vmax.f32 %v507, %v1014
  %v1078 = vmax.f32 %v512, %v1019
  %v1079 = vmax.f32 %v517, %v1024
  %v1080 = vmax.f32 %v522, %v1029
  %s1081 = scalar_lea.vmem %s0, 784
  %v1082 = vld [vmem:[%s1081] sm:$0xff]
  %v1083 = vld [vmem:[%s1081 + $0x8] sm:$0xff]
  %v1084 = vld [vmem:[%s1081 + $0x10] sm:$0xff]
  %v1085 = vld [vmem:[%s1081 + $0x18] sm:$0xff]
  %v1086 = vld [vmem:[%s1081 + $0x20] sm:$0xff]
  %v1087 = vld [vmem:[%s1081 + $0x28] sm:$0xff]
  %v1088 = vld [vmem:[%s1081 + $0x30] sm:$0xff]
  %v1089 = vld [vmem:[%s1081 + $0x38] sm:$0xff]
  %v1090 = vld [vmem:[%s1081 + $0x40] sm:$0xff]
  %v1091 = vld [vmem:[%s1081 + $0x48] sm:$0xff]
  %v1092 = vld [vmem:[%s1081 + $0x50] sm:$0xff]
  %v1093 = vld [vmem:[%s1081 + $0x58] sm:$0xff]
  %v1094 = vld [vmem:[%s1081 + $0x60] sm:$0xff]
  %v1095 = vld [vmem:[%s1081 + $0x68] sm:$0xff]
  %v1096 = vld [vmem:[%s1081 + $0x70] sm:$0xff]
  %v1097 = vld [vmem:[%s1081 + $0x78] sm:$0xff]
  %v1098 = vld [vmem:[%s1081 + $0x80] sm:$0xff]
  %v1099 = vld [vmem:[%s1081 + $0x88] sm:$0xff]
  %v1100 = vld [vmem:[%s1081 + $0x90] sm:$0xff]
  %v1101 = vld [vmem:[%s1081 + $0x98] sm:$0xff]
  %v1102 = vld [vmem:[%s1081 + $0xa0] sm:$0xff]
  %v1103 = vld [vmem:[%s1081 + $0xa8] sm:$0xff]
  %v1104 = vld [vmem:[%s1081 + $0xb0] sm:$0xff]
  %v1105 = vld [vmem:[%s1081 + $0xb8] sm:$0xff]
  %v1106 = vld [vmem:[%s1081 + $0xc0] sm:$0xff]
  %v1107 = vld [vmem:[%s1081 + $0xc8] sm:$0xff]
  %v1108 = vld [vmem:[%s1081 + $0xd0] sm:$0xff]
  %v1109 = vld [vmem:[%s1081 + $0xd8] sm:$0xff]
  %v1110 = vld [vmem:[%s1081 + $0xe0] sm:$0xff]
  %v1111 = vld [vmem:[%s1081 + $0xe8] sm:$0xff]
  %v1112 = vld [vmem:[%s1081 + $0xf0] sm:$0xff]
  %v1113 = vld [vmem:[%s1081 + $0xf8] sm:$0xff]
  %v1114 = vld [vmem:[%s1081 + $0x100] sm:$0xff]
  %v1115 = vld [vmem:[%s1081 + $0x108] sm:$0xff]
  %v1116 = vld [vmem:[%s1081 + $0x110] sm:$0xff]
  %v1117 = vld [vmem:[%s1081 + $0x118] sm:$0xff]
  %v1118 = vld [vmem:[%s1081 + $0x120] sm:$0xff]
  %v1119 = vld [vmem:[%s1081 + $0x128] sm:$0xff]
  %v1120 = vld [vmem:[%s1081 + $0x130] sm:$0xff]
  %v1121 = vld [vmem:[%s1081 + $0x138] sm:$0xff]
  %v1122 = vld [vmem:[%s1081 + $0x140] sm:$0xff]
  %v1123 = vld [vmem:[%s1081 + $0x148] sm:$0xff]
  %v1124 = vld [vmem:[%s1081 + $0x150] sm:$0xff]
  %v1125 = vld [vmem:[%s1081 + $0x158] sm:$0xff]
  %v1126 = vld [vmem:[%s1081 + $0x160] sm:$0xff]
  %v1127 = vld [vmem:[%s1081 + $0x168] sm:$0xff]
  %v1128 = vld [vmem:[%s1081 + $0x170] sm:$0xff]
  %v1129 = vld [vmem:[%s1081 + $0x178] sm:$0xff]
  %v1130 = vld [vmem:[%s1081 + $0x180] sm:$0xff]
  %v1132 = vsel %vm67, %v1082, 0
  %v1135 = vsel %vm67, %v1083, 0
  %v1138 = vsel %vm67, %v1084, 0
  %v1141 = vsel %vm67, %v1085, 0
  %v1144 = vsel %vm67, %v1086, 0
  %v1147 = vsel %vm67, %v1087, 0
  %v1150 = vsel %vm67, %v1088, 0
  %v1153 = vsel %vm67, %v1089, 0
  %v1156 = vsel %vm67, %v1090, 0
  %v1159 = vsel %vm67, %v1091, 0
  %v1162 = vsel %vm67, %v1092, 0
  %v1165 = vsel %vm67, %v1093, 0
  %v1168 = vsel %vm67, %v1094, 0
  %v1171 = vsel %vm67, %v1095, 0
  %v1174 = vsel %vm67, %v1096, 0
  %v1177 = vsel %vm67, %v1097, 0
  %v1180 = vsel %vm67, %v1098, 0
  %v1183 = vsel %vm67, %v1099, 0
  %v1186 = vsel %vm67, %v1100, 0
  %v1189 = vsel %vm67, %v1101, 0
  %v1192 = vsel %vm67, %v1102, 0
  %v1195 = vsel %vm67, %v1103, 0
  %v1198 = vsel %vm67, %v1104, 0
  %v1201 = vsel %vm67, %v1105, 0
  %v1204 = vsel %vm67, %v1106, 0
  %v1207 = vsel %vm67, %v1107, 0
  %v1210 = vsel %vm67, %v1108, 0
  %v1213 = vsel %vm67, %v1109, 0
  %v1216 = vsel %vm67, %v1110, 0
  %v1219 = vsel %vm67, %v1111, 0
  %v1222 = vsel %vm67, %v1112, 0
  %v1225 = vsel %vm67, %v1113, 0
  %v1228 = vsel %vm67, %v1114, 0
  %v1231 = vsel %vm67, %v1115, 0
  %v1234 = vsel %vm67, %v1116, 0
  %v1237 = vsel %vm67, %v1117, 0
  %v1240 = vsel %vm67, %v1118, 0
  %v1243 = vsel %vm67, %v1119, 0
  %v1246 = vsel %vm67, %v1120, 0
  %v1249 = vsel %vm67, %v1121, 0
  %v1252 = vsel %vm67, %v1122, 0
  %v1255 = vsel %vm67, %v1123, 0
  %v1258 = vsel %vm67, %v1124, 0
  %v1261 = vsel %vm67, %v1125, 0
  %v1264 = vsel %vm67, %v1126, 0
  %v1267 = vsel %vm67, %v1127, 0
  %v1270 = vsel %vm67, %v1128, 0
  %v1273 = vsel %vm67, %v1129, 0
  %v1276 = vsel %vm67, %v1130, 0
  %1278 = vmatprep.subr.mxu0 0.0
  %1279 = vmatpush1.msra.mxu0 0.0
  %1280 = vmatprep.subr.mxu0 0.0
  %1281 = vmatpush1.msra.mxu0 0.0
  %1282 = vmatprep.subr.mxu0 0.0
  %1283 = vmatpush1.msra.mxu0 0.0
  %1284 = vmatprep.subr.mxu0 0.0
  %1285 = vmatpush1.msra.mxu0 0.0
  %1286 = vmatprep.subr.mxu0 0.0
  %1287 = vmatpush1.msra.mxu0 0.0
  %1288 = vmatprep.subr.mxu0 0.0
  %1289 = vmatpush1.msra.mxu0 0.0
  %1290 = vmatprep.subr.mxu0 0.0
  %1291 = vmatpush1.msra.mxu0 0.0
  %1292 = vmatprep.subr.mxu0 0.0
  %1293 = vmatpush1.msra.mxu0 0.0
  %1294 = vmatprep.subr.mxu0 0.0
  %1295 = vmatpush1.msra.mxu0 0.0
  %1296 = vmatprep.subr.mxu0 0.0
  %1297 = vmatpush1.msra.mxu0 0.0
  %1298 = vmatprep.subr.mxu0 0.0
  %1299 = vmatpush1.msra.mxu0 0.0
  %1300 = vmatprep.subr.mxu0 0.0
  %1301 = vmatpush1.msra.mxu0 0.0
  %1302 = vmatprep.subr.mxu0 0.0
  %1303 = vmatpush1.msra.mxu0 %v17
  %1304 = vmatprep.subr.mxu0 0.0
  %1305 = vmatpush1.msra.mxu0 %v16
  %1306 = vmatprep.subr.mxu0 0.0
  %1307 = vmatpush1.msra.mxu0 %v15
  %1308 = vmatprep.subr.mxu0 0.0
  %1309 = vmatpush1.msra.mxu0 %v14
  %1310 = vmatprep.subr.mxu0 0.0
  %1311 = vmatpush2.msra.mxu0 0.0
  %1312 = vmatprep.subr.mxu0 0.0
  %1313 = vmatpush2.msra.mxu0 0.0
  %1314 = vmatprep.subr.mxu0 0.0
  %1315 = vmatpush2.msra.mxu0 0.0
  %1316 = vmatprep.subr.mxu0 0.0
  %1317 = vmatpush2.msra.mxu0 0.0
  %1318 = vmatprep.subr.mxu0 0.0
  %1319 = vmatpush2.msra.mxu0 0.0
  %1320 = vmatprep.subr.mxu0 0.0
  %1321 = vmatpush2.msra.mxu0 0.0
  %1322 = vmatprep.subr.mxu0 0.0
  %1323 = vmatpush2.msra.mxu0 0.0
  %1324 = vmatprep.subr.mxu0 0.0
  %1325 = vmatpush2.msra.mxu0 0.0
  %1326 = vmatprep.subr.mxu0 0.0
  %1327 = vmatpush2.msra.mxu0 0.0
  %1328 = vmatprep.subr.mxu0 0.0
  %1329 = vmatpush2.msra.mxu0 0.0
  %1330 = vmatprep.subr.mxu0 0.0
  %1331 = vmatpush2.msra.mxu0 0.0
  %1332 = vmatprep.subr.mxu0 0.0
  %1333 = vmatpush2.msra.mxu0 0.0
  %1334 = vmatprep.subr.mxu0 0.0
  %1335 = vmatpush2.msra.mxu0 0.0
  %1336 = vmatprep.subr.mxu0 0.0
  %1337 = vmatpush2.msra.mxu0 0.0
  %1338 = vmatprep.subr.mxu0 0.0
  %1339 = vmatpush2.msra.mxu0 0.0
  %1340 = vmatprep.subr.mxu0 0.0
  %1341 = vmatpush2.msra.mxu0 0.0
  %1342 = vmatprep.mubr.f32.mxu0 0.0
  %1343 = vmatmul.mubr.f32.gmra.mxu0 %v1132
  %v1344 = vpop.f32.mrf.mxu0
  %v1345 = vadd.f32 0.0, %v1344
  %v1346 = vpop.f32.mrf.mxu0
  %1347 = vmatprep.mubr.f32.mxu0 0.0
  %1348 = vmatmul.mubr.f32.gmra.mxu0 %v1135
  %v1349 = vpop.f32.mrf.mxu0
  %v1350 = vadd.f32 0.0, %v1349
  %v1351 = vpop.f32.mrf.mxu0
  %1352 = vmatprep.mubr.f32.mxu0 0.0
  %1353 = vmatmul.mubr.f32.gmra.mxu0 %v1138
  %v1354 = vpop.f32.mrf.mxu0
  %v1355 = vadd.f32 0.0, %v1354
  %v1356 = vpop.f32.mrf.mxu0
  %1357 = vmatprep.mubr.f32.mxu0 0.0
  %1358 = vmatmul.mubr.f32.gmra.mxu0 %v1141
  %v1359 = vpop.f32.mrf.mxu0
  %v1360 = vadd.f32 0.0, %v1359
  %v1361 = vpop.f32.mrf.mxu0
  %1362 = vmatprep.mubr.f32.mxu0 0.0
  %1363 = vmatmul.mubr.f32.gmra.mxu0 %v1144
  %v1364 = vpop.f32.mrf.mxu0
  %v1365 = vadd.f32 0.0, %v1364
  %v1366 = vpop.f32.mrf.mxu0
  %1367 = vmatprep.mubr.f32.mxu0 0.0
  %1368 = vmatmul.mubr.f32.gmra.mxu0 %v1147
  %v1369 = vpop.f32.mrf.mxu0
  %v1370 = vadd.f32 0.0, %v1369
  %v1371 = vpop.f32.mrf.mxu0
  %1372 = vmatprep.mubr.f32.mxu0 0.0
  %1373 = vmatmul.mubr.f32.gmra.mxu0 %v1150
  %v1374 = vpop.f32.mrf.mxu0
  %v1375 = vadd.f32 0.0, %v1374
  %v1376 = vpop.f32.mrf.mxu0
  %1377 = vmatprep.mubr.f32.mxu0 0.0
  %1378 = vmatmul.mubr.f32.gmra.mxu0 %v1153
  %v1379 = vpop.f32.mrf.mxu0
  %v1380 = vadd.f32 0.0, %v1379
  %v1381 = vpop.f32.mrf.mxu0
  %1382 = vmatprep.mubr.f32.mxu0 0.0
  %1383 = vmatmul.mubr.f32.gmra.mxu0 %v1156
  %v1384 = vpop.f32.mrf.mxu0
  %v1385 = vadd.f32 0.0, %v1384
  %v1386 = vpop.f32.mrf.mxu0
  %1387 = vmatprep.mubr.f32.mxu0 0.0
  %1388 = vmatmul.mubr.f32.gmra.mxu0 %v1159
  %v1389 = vpop.f32.mrf.mxu0
  %v1390 = vadd.f32 0.0, %v1389
  %v1391 = vpop.f32.mrf.mxu0
  %1392 = vmatprep.mubr.f32.mxu0 0.0
  %1393 = vmatmul.mubr.f32.gmra.mxu0 %v1162
  %v1394 = vpop.f32.mrf.mxu0
  %v1395 = vadd.f32 0.0, %v1394
  %v1396 = vpop.f32.mrf.mxu0
  %1397 = vmatprep.mubr.f32.mxu0 0.0
  %1398 = vmatmul.mubr.f32.gmra.mxu0 %v1165
  %v1399 = vpop.f32.mrf.mxu0
  %v1400 = vadd.f32 0.0, %v1399
  %v1401 = vpop.f32.mrf.mxu0
  %1402 = vmatprep.mubr.f32.mxu0 0.0
  %1403 = vmatmul.mubr.f32.gmra.mxu0 %v1168
  %v1404 = vpop.f32.mrf.mxu0
  %v1405 = vadd.f32 0.0, %v1404
  %v1406 = vpop.f32.mrf.mxu0
  %1407 = vmatprep.mubr.f32.mxu0 0.0
  %1408 = vmatmul.mubr.f32.gmra.mxu0 %v1171
  %v1409 = vpop.f32.mrf.mxu0
  %v1410 = vadd.f32 0.0, %v1409
  %v1411 = vpop.f32.mrf.mxu0
  %1412 = vmatprep.mubr.f32.mxu0 0.0
  %1413 = vmatmul.mubr.f32.gmra.mxu0 %v1174
  %v1414 = vpop.f32.mrf.mxu0
  %v1415 = vadd.f32 0.0, %v1414
  %v1416 = vpop.f32.mrf.mxu0
  %1417 = vmatprep.mubr.f32.mxu0 0.0
  %1418 = vmatmul.mubr.f32.gmra.mxu0 %v1177
  %v1419 = vpop.f32.mrf.mxu0
  %v1420 = vadd.f32 0.0, %v1419
  %v1421 = vpop.f32.mrf.mxu0
  %1422 = vmatprep.mubr.f32.mxu0 0.0
  %1423 = vmatmul.mubr.f32.gmra.mxu0 %v1180
  %v1424 = vpop.f32.mrf.mxu0
  %v1425 = vadd.f32 0.0, %v1424
  %v1426 = vpop.f32.mrf.mxu0
  %1427 = vmatprep.mubr.f32.mxu0 0.0
  %1428 = vmatmul.mubr.f32.gmra.mxu0 %v1183
  %v1429 = vpop.f32.mrf.mxu0
  %v1430 = vadd.f32 0.0, %v1429
  %v1431 = vpop.f32.mrf.mxu0
  %1432 = vmatprep.mubr.f32.mxu0 0.0
  %1433 = vmatmul.mubr.f32.gmra.mxu0 %v1186
  %v1434 = vpop.f32.mrf.mxu0
  %v1435 = vadd.f32 0.0, %v1434
  %v1436 = vpop.f32.mrf.mxu0
  %1437 = vmatprep.mubr.f32.mxu0 0.0
  %1438 = vmatmul.mubr.f32.gmra.mxu0 %v1189
  %v1439 = vpop.f32.mrf.mxu0
  %v1440 = vadd.f32 0.0, %v1439
  %v1441 = vpop.f32.mrf.mxu0
  %1442 = vmatprep.mubr.f32.mxu0 0.0
  %1443 = vmatmul.mubr.f32.gmra.mxu0 %v1192
  %v1444 = vpop.f32.mrf.mxu0
  %v1445 = vadd.f32 0.0, %v1444
  %v1446 = vpop.f32.mrf.mxu0
  %1447 = vmatprep.mubr.f32.mxu0 0.0
  %1448 = vmatmul.mubr.f32.gmra.mxu0 %v1195
  %v1449 = vpop.f32.mrf.mxu0
  %v1450 = vadd.f32 0.0, %v1449
  %v1451 = vpop.f32.mrf.mxu0
  %1452 = vmatprep.mubr.f32.mxu0 0.0
  %1453 = vmatmul.mubr.f32.gmra.mxu0 %v1198
  %v1454 = vpop.f32.mrf.mxu0
  %v1455 = vadd.f32 0.0, %v1454
  %v1456 = vpop.f32.mrf.mxu0
  %1457 = vmatprep.mubr.f32.mxu0 0.0
  %1458 = vmatmul.mubr.f32.gmra.mxu0 %v1201
  %v1459 = vpop.f32.mrf.mxu0
  %v1460 = vadd.f32 0.0, %v1459
  %v1461 = vpop.f32.mrf.mxu0
  %1462 = vmatprep.mubr.f32.mxu0 0.0
  %1463 = vmatmul.mubr.f32.gmra.mxu0 %v1204
  %v1464 = vpop.f32.mrf.mxu0
  %v1465 = vadd.f32 0.0, %v1464
  %v1466 = vpop.f32.mrf.mxu0
  %1467 = vmatprep.mubr.f32.mxu0 0.0
  %1468 = vmatmul.mubr.f32.gmra.mxu0 %v1207
  %v1469 = vpop.f32.mrf.mxu0
  %v1470 = vadd.f32 0.0, %v1469
  %v1471 = vpop.f32.mrf.mxu0
  %1472 = vmatprep.mubr.f32.mxu0 0.0
  %1473 = vmatmul.mubr.f32.gmra.mxu0 %v1210
  %v1474 = vpop.f32.mrf.mxu0
  %v1475 = vadd.f32 0.0, %v1474
  %v1476 = vpop.f32.mrf.mxu0
  %1477 = vmatprep.mubr.f32.mxu0 0.0
  %1478 = vmatmul.mubr.f32.gmra.mxu0 %v1213
  %v1479 = vpop.f32.mrf.mxu0
  %v1480 = vadd.f32 0.0, %v1479
  %v1481 = vpop.f32.mrf.mxu0
  %1482 = vmatprep.mubr.f32.mxu0 0.0
  %1483 = vmatmul.mubr.f32.gmra.mxu0 %v1216
  %v1484 = vpop.f32.mrf.mxu0
  %v1485 = vadd.f32 0.0, %v1484
  %v1486 = vpop.f32.mrf.mxu0
  %1487 = vmatprep.mubr.f32.mxu0 0.0
  %1488 = vmatmul.mubr.f32.gmra.mxu0 %v1219
  %v1489 = vpop.f32.mrf.mxu0
  %v1490 = vadd.f32 0.0, %v1489
  %v1491 = vpop.f32.mrf.mxu0
  %1492 = vmatprep.mubr.f32.mxu0 0.0
  %1493 = vmatmul.mubr.f32.gmra.mxu0 %v1222
  %v1494 = vpop.f32.mrf.mxu0
  %v1495 = vadd.f32 0.0, %v1494
  %v1496 = vpop.f32.mrf.mxu0
  %1497 = vmatprep.mubr.f32.mxu0 0.0
  %1498 = vmatmul.mubr.f32.gmra.mxu0 %v1225
  %v1499 = vpop.f32.mrf.mxu0
  %v1500 = vadd.f32 0.0, %v1499
  %v1501 = vpop.f32.mrf.mxu0
  %1502 = vmatprep.mubr.f32.mxu0 0.0
  %1503 = vmatmul.mubr.f32.gmra.mxu0 %v1228
  %v1504 = vpop.f32.mrf.mxu0
  %v1505 = vadd.f32 0.0, %v1504
  %v1506 = vpop.f32.mrf.mxu0
  %1507 = vmatprep.mubr.f32.mxu0 0.0
  %1508 = vmatmul.mubr.f32.gmra.mxu0 %v1231
  %v1509 = vpop.f32.mrf.mxu0
  %v1510 = vadd.f32 0.0, %v1509
  %v1511 = vpop.f32.mrf.mxu0
  %1512 = vmatprep.mubr.f32.mxu0 0.0
  %1513 = vmatmul.mubr.f32.gmra.mxu0 %v1234
  %v1514 = vpop.f32.mrf.mxu0
  %v1515 = vadd.f32 0.0, %v1514
  %v1516 = vpop.f32.mrf.mxu0
  %1517 = vmatprep.mubr.f32.mxu0 0.0
  %1518 = vmatmul.mubr.f32.gmra.mxu0 %v1237
  %v1519 = vpop.f32.mrf.mxu0
  %v1520 = vadd.f32 0.0, %v1519
  %v1521 = vpop.f32.mrf.mxu0
  %1522 = vmatprep.mubr.f32.mxu0 0.0
  %1523 = vmatmul.mubr.f32.gmra.mxu0 %v1240
  %v1524 = vpop.f32.mrf.mxu0
  %v1525 = vadd.f32 0.0, %v1524
  %v1526 = vpop.f32.mrf.mxu0
  %1527 = vmatprep.mubr.f32.mxu0 0.0
  %1528 = vmatmul.mubr.f32.gmra.mxu0 %v1243
  %v1529 = vpop.f32.mrf.mxu0
  %v1530 = vadd.f32 0.0, %v1529
  %v1531 = vpop.f32.mrf.mxu0
  %1532 = vmatprep.mubr.f32.mxu0 0.0
  %1533 = vmatmul.mubr.f32.gmra.mxu0 %v1246
  %v1534 = vpop.f32.mrf.mxu0
  %v1535 = vadd.f32 0.0, %v1534
  %v1536 = vpop.f32.mrf.mxu0
  %1537 = vmatprep.mubr.f32.mxu0 0.0
  %1538 = vmatmul.mubr.f32.gmra.mxu0 %v1249
  %v1539 = vpop.f32.mrf.mxu0
  %v1540 = vadd.f32 0.0, %v1539
  %v1541 = vpop.f32.mrf.mxu0
  %1542 = vmatprep.mubr.f32.mxu0 0.0
  %1543 = vmatmul.mubr.f32.gmra.mxu0 %v1252
  %v1544 = vpop.f32.mrf.mxu0
  %v1545 = vadd.f32 0.0, %v1544
  %v1546 = vpop.f32.mrf.mxu0
  %1547 = vmatprep.mubr.f32.mxu0 0.0
  %1548 = vmatmul.mubr.f32.gmra.mxu0 %v1255
  %v1549 = vpop.f32.mrf.mxu0
  %v1550 = vadd.f32 0.0, %v1549
  %v1551 = vpop.f32.mrf.mxu0
  %1552 = vmatprep.mubr.f32.mxu0 0.0
  %1553 = vmatmul.mubr.f32.gmra.mxu0 %v1258
  %v1554 = vpop.f32.mrf.mxu0
  %v1555 = vadd.f32 0.0, %v1554
  %v1556 = vpop.f32.mrf.mxu0
  %1557 = vmatprep.mubr.f32.mxu0 0.0
  %1558 = vmatmul.mubr.f32.gmra.mxu0 %v1261
  %v1559 = vpop.f32.mrf.mxu0
  %v1560 = vadd.f32 0.0, %v1559
  %v1561 = vpop.f32.mrf.mxu0
  %1562 = vmatprep.mubr.f32.mxu0 0.0
  %1563 = vmatmul.mubr.f32.gmra.mxu0 %v1264
  %v1564 = vpop.f32.mrf.mxu0
  %v1565 = vadd.f32 0.0, %v1564
  %v1566 = vpop.f32.mrf.mxu0
  %1567 = vmatprep.mubr.f32.mxu0 0.0
  %1568 = vmatmul.mubr.f32.gmra.mxu0 %v1267
  %v1569 = vpop.f32.mrf.mxu0
  %v1570 = vadd.f32 0.0, %v1569
  %v1571 = vpop.f32.mrf.mxu0
  %1572 = vmatprep.mubr.f32.mxu0 0.0
  %1573 = vmatmul.mubr.f32.gmra.mxu0 %v1270
  %v1574 = vpop.f32.mrf.mxu0
  %v1575 = vadd.f32 0.0, %v1574
  %v1576 = vpop.f32.mrf.mxu0
  %1577 = vmatprep.mubr.f32.mxu0 0.0
  %1578 = vmatmul.mubr.f32.gmra.mxu0 %v1273
  %v1579 = vpop.f32.mrf.mxu0
  %v1580 = vadd.f32 0.0, %v1579
  %v1581 = vpop.f32.mrf.mxu0
  %1582 = vmatprep.mubr.f32.mxu0 0.0
  %1583 = vmatmul.mubr.f32.gmra.mxu0 %v1276
  %v1584 = vpop.f32.mrf.mxu0
  %v1585 = vadd.f32 0.0, %v1584
  %v1586 = vpop.f32.mrf.mxu0
  %1587 = vdwg.mxu0
  %v1588 = vmax.f32 %v1032, %v1345
  %v1589 = vmax.f32 %v1033, %v1350
  %v1590 = vmax.f32 %v1034, %v1355
  %v1591 = vmax.f32 %v1035, %v1360
  %v1592 = vmax.f32 %v1036, %v1365
  %v1593 = vmax.f32 %v1037, %v1370
  %v1594 = vmax.f32 %v1038, %v1375
  %v1595 = vmax.f32 %v1039, %v1380
  %v1596 = vmax.f32 %v1040, %v1385
  %v1597 = vmax.f32 %v1041, %v1390
  %v1598 = vmax.f32 %v1042, %v1395
  %v1599 = vmax.f32 %v1043, %v1400
  %v1600 = vmax.f32 %v1044, %v1405
  %v1601 = vmax.f32 %v1045, %v1410
  %v1602 = vmax.f32 %v1046, %v1415
  %v1603 = vmax.f32 %v1047, %v1420
  %v1604 = vmax.f32 %v1048, %v1425
  %v1605 = vmax.f32 %v1049, %v1430
  %v1606 = vmax.f32 %v1050, %v1435
  %v1607 = vmax.f32 %v1051, %v1440
  %v1608 = vmax.f32 %v1052, %v1445
  %v1609 = vmax.f32 %v1053, %v1450
  %v1610 = vmax.f32 %v1054, %v1455
  %v1611 = vmax.f32 %v1055, %v1460
  %v1612 = vmax.f32 %v1056, %v1465
  %v1613 = vmax.f32 %v1057, %v1470
  %v1614 = vmax.f32 %v1058, %v1475
  %v1615 = vmax.f32 %v1059, %v1480
  %v1616 = vmax.f32 %v1060, %v1485
  %v1617 = vmax.f32 %v1061, %v1490
  %v1618 = vmax.f32 %v1062, %v1495
  %v1619 = vmax.f32 %v1063, %v1500
  %v1620 = vmax.f32 %v1064, %v1505
  %v1621 = vmax.f32 %v1065, %v1510
  %v1622 = vmax.f32 %v1066, %v1515
  %v1623 = vmax.f32 %v1067, %v1520
  %v1624 = vmax.f32 %v1068, %v1525
  %v1625 = vmax.f32 %v1069, %v1530
  %v1626 = vmax.f32 %v1070, %v1535
  %v1627 = vmax.f32 %v1071, %v1540
  %v1628 = vmax.f32 %v1072, %v1545
  %v1629 = vmax.f32 %v1073, %v1550
  %v1630 = vmax.f32 %v1074, %v1555
  %v1631 = vmax.f32 %v1075, %v1560
  %v1632 = vmax.f32 %v1076, %v1565
  %v1633 = vmax.f32 %v1077, %v1570
  %v1634 = vmax.f32 %v1078, %v1575
  %v1635 = vmax.f32 %v1079, %v1580
  %v1636 = vmax.f32 %v1080, %v1585
  %s1637 = scalar_lea.vmem %s0, 1176
  %v1638 = vld [vmem:[%s1637] sm:$0xff]
  %v1639 = vld [vmem:[%s1637 + $0x8] sm:$0xff]
  %v1640 = vld [vmem:[%s1637 + $0x10] sm:$0xff]
  %v1641 = vld [vmem:[%s1637 + $0x18] sm:$0xff]
  %v1642 = vld [vmem:[%s1637 + $0x20] sm:$0xff]
  %v1643 = vld [vmem:[%s1637 + $0x28] sm:$0xff]
  %v1644 = vld [vmem:[%s1637 + $0x30] sm:$0xff]
  %v1645 = vld [vmem:[%s1637 + $0x38] sm:$0xff]
  %v1646 = vld [vmem:[%s1637 + $0x40] sm:$0xff]
  %v1647 = vld [vmem:[%s1637 + $0x48] sm:$0xff]
  %v1648 = vld [vmem:[%s1637 + $0x50] sm:$0xff]
  %v1649 = vld [vmem:[%s1637 + $0x58] sm:$0xff]
  %v1650 = vld [vmem:[%s1637 + $0x60] sm:$0xff]
  %v1651 = vld [vmem:[%s1637 + $0x68] sm:$0xff]
  %v1652 = vld [vmem:[%s1637 + $0x70] sm:$0xff]
  %v1653 = vld [vmem:[%s1637 + $0x78] sm:$0xff]
  %v1654 = vld [vmem:[%s1637 + $0x80] sm:$0xff]
  %v1655 = vld [vmem:[%s1637 + $0x88] sm:$0xff]
  %v1656 = vld [vmem:[%s1637 + $0x90] sm:$0xff]
  %v1657 = vld [vmem:[%s1637 + $0x98] sm:$0xff]
  %v1658 = vld [vmem:[%s1637 + $0xa0] sm:$0xff]
  %v1659 = vld [vmem:[%s1637 + $0xa8] sm:$0xff]
  %v1660 = vld [vmem:[%s1637 + $0xb0] sm:$0xff]
  %v1661 = vld [vmem:[%s1637 + $0xb8] sm:$0xff]
  %v1662 = vld [vmem:[%s1637 + $0xc0] sm:$0xff]
  %v1663 = vld [vmem:[%s1637 + $0xc8] sm:$0xff]
  %v1664 = vld [vmem:[%s1637 + $0xd0] sm:$0xff]
  %v1665 = vld [vmem:[%s1637 + $0xd8] sm:$0xff]
  %v1666 = vld [vmem:[%s1637 + $0xe0] sm:$0xff]
  %v1667 = vld [vmem:[%s1637 + $0xe8] sm:$0xff]
  %v1668 = vld [vmem:[%s1637 + $0xf0] sm:$0xff]
  %v1669 = vld [vmem:[%s1637 + $0xf8] sm:$0xff]
  %v1670 = vld [vmem:[%s1637 + $0x100] sm:$0xff]
  %v1671 = vld [vmem:[%s1637 + $0x108] sm:$0xff]
  %v1672 = vld [vmem:[%s1637 + $0x110] sm:$0xff]
  %v1673 = vld [vmem:[%s1637 + $0x118] sm:$0xff]
  %v1674 = vld [vmem:[%s1637 + $0x120] sm:$0xff]
  %v1675 = vld [vmem:[%s1637 + $0x128] sm:$0xff]
  %v1676 = vld [vmem:[%s1637 + $0x130] sm:$0xff]
  %v1677 = vld [vmem:[%s1637 + $0x138] sm:$0xff]
  %v1678 = vld [vmem:[%s1637 + $0x140] sm:$0xff]
  %v1679 = vld [vmem:[%s1637 + $0x148] sm:$0xff]
  %v1680 = vld [vmem:[%s1637 + $0x150] sm:$0xff]
  %v1681 = vld [vmem:[%s1637 + $0x158] sm:$0xff]
  %v1682 = vld [vmem:[%s1637 + $0x160] sm:$0xff]
  %v1683 = vld [vmem:[%s1637 + $0x168] sm:$0xff]
  %v1684 = vld [vmem:[%s1637 + $0x170] sm:$0xff]
  %v1685 = vld [vmem:[%s1637 + $0x178] sm:$0xff]
  %v1686 = vld [vmem:[%s1637 + $0x180] sm:$0xff]
  %v1688 = vsel %vm67, %v1638, 0
  %v1691 = vsel %vm67, %v1639, 0
  %v1694 = vsel %vm67, %v1640, 0
  %v1697 = vsel %vm67, %v1641, 0
  %v1700 = vsel %vm67, %v1642, 0
  %v1703 = vsel %vm67, %v1643, 0
  %v1706 = vsel %vm67, %v1644, 0
  %v1709 = vsel %vm67, %v1645, 0
  %v1712 = vsel %vm67, %v1646, 0
  %v1715 = vsel %vm67, %v1647, 0
  %v1718 = vsel %vm67, %v1648, 0
  %v1721 = vsel %vm67, %v1649, 0
  %v1724 = vsel %vm67, %v1650, 0
  %v1727 = vsel %vm67, %v1651, 0
  %v1730 = vsel %vm67, %v1652, 0
  %v1733 = vsel %vm67, %v1653, 0
  %v1736 = vsel %vm67, %v1654, 0
  %v1739 = vsel %vm67, %v1655, 0
  %v1742 = vsel %vm67, %v1656, 0
  %v1745 = vsel %vm67, %v1657, 0
  %v1748 = vsel %vm67, %v1658, 0
  %v1751 = vsel %vm67, %v1659, 0
  %v1754 = vsel %vm67, %v1660, 0
  %v1757 = vsel %vm67, %v1661, 0
  %v1760 = vsel %vm67, %v1662, 0
  %v1763 = vsel %vm67, %v1663, 0
  %v1766 = vsel %vm67, %v1664, 0
  %v1769 = vsel %vm67, %v1665, 0
  %v1772 = vsel %vm67, %v1666, 0
  %v1775 = vsel %vm67, %v1667, 0
  %v1778 = vsel %vm67, %v1668, 0
  %v1781 = vsel %vm67, %v1669, 0
  %v1784 = vsel %vm67, %v1670, 0
  %v1787 = vsel %vm67, %v1671, 0
  %v1790 = vsel %vm67, %v1672, 0
  %v1793 = vsel %vm67, %v1673, 0
  %v1796 = vsel %vm67, %v1674, 0
  %v1799 = vsel %vm67, %v1675, 0
  %v1802 = vsel %vm67, %v1676, 0
  %v1805 = vsel %vm67, %v1677, 0
  %v1808 = vsel %vm67, %v1678, 0
  %v1811 = vsel %vm67, %v1679, 0
  %v1814 = vsel %vm67, %v1680, 0
  %v1817 = vsel %vm67, %v1681, 0
  %v1820 = vsel %vm67, %v1682, 0
  %v1823 = vsel %vm67, %v1683, 0
  %v1826 = vsel %vm67, %v1684, 0
  %v1829 = vsel %vm67, %v1685, 0
  %v1832 = vsel %vm67, %v1686, 0
  %1834 = vmatprep.subr.mxu0 0.0
  %1835 = vmatpush1.msra.mxu0 0.0
  %1836 = vmatprep.subr.mxu0 0.0
  %1837 = vmatpush1.msra.mxu0 0.0
  %1838 = vmatprep.subr.mxu0 0.0
  %1839 = vmatpush1.msra.mxu0 0.0
  %1840 = vmatprep.subr.mxu0 0.0
  %1841 = vmatpush1.msra.mxu0 0.0
  %1842 = vmatprep.subr.mxu0 0.0
  %1843 = vmatpush1.msra.mxu0 0.0
  %1844 = vmatprep.subr.mxu0 0.0
  %1845 = vmatpush1.msra.mxu0 0.0
  %1846 = vmatprep.subr.mxu0 0.0
  %1847 = vmatpush1.msra.mxu0 0.0
  %1848 = vmatprep.subr.mxu0 0.0
  %1849 = vmatpush1.msra.mxu0 0.0
  %1850 = vmatprep.subr.mxu0 0.0
  %1851 = vmatpush1.msra.mxu0 0.0
  %1852 = vmatprep.subr.mxu0 0.0
  %1853 = vmatpush1.msra.mxu0 0.0
  %1854 = vmatprep.subr.mxu0 0.0
  %1855 = vmatpush1.msra.mxu0 0.0
  %1856 = vmatprep.subr.mxu0 0.0
  %1857 = vmatpush1.msra.mxu0 0.0
  %1858 = vmatprep.subr.mxu0 0.0
  %1859 = vmatpush1.msra.mxu0 %v17
  %1860 = vmatprep.subr.mxu0 0.0
  %1861 = vmatpush1.msra.mxu0 %v16
  %1862 = vmatprep.subr.mxu0 0.0
  %1863 = vmatpush1.msra.mxu0 %v15
  %1864 = vmatprep.subr.mxu0 0.0
  %1865 = vmatpush1.msra.mxu0 %v14
  %1866 = vmatprep.subr.mxu0 0.0
  %1867 = vmatpush2.msra.mxu0 0.0
  %1868 = vmatprep.subr.mxu0 0.0
  %1869 = vmatpush2.msra.mxu0 0.0
  %1870 = vmatprep.subr.mxu0 0.0
  %1871 = vmatpush2.msra.mxu0 0.0
  %1872 = vmatprep.subr.mxu0 0.0
  %1873 = vmatpush2.msra.mxu0 0.0
  %1874 = vmatprep.subr.mxu0 0.0
  %1875 = vmatpush2.msra.mxu0 0.0
  %1876 = vmatprep.subr.mxu0 0.0
  %1877 = vmatpush2.msra.mxu0 0.0
  %1878 = vmatprep.subr.mxu0 0.0
  %1879 = vmatpush2.msra.mxu0 0.0
  %1880 = vmatprep.subr.mxu0 0.0
  %1881 = vmatpush2.msra.mxu0 0.0
  %1882 = vmatprep.subr.mxu0 0.0
  %1883 = vmatpush2.msra.mxu0 0.0
  %1884 = vmatprep.subr.mxu0 0.0
  %1885 = vmatpush2.msra.mxu0 0.0
  %1886 = vmatprep.subr.mxu0 0.0
  %1887 = vmatpush2.msra.mxu0 0.0
  %1888 = vmatprep.subr.mxu0 0.0
  %1889 = vmatpush2.msra.mxu0 0.0
  %1890 = vmatprep.subr.mxu0 0.0
  %1891 = vmatpush2.msra.mxu0 0.0
  %1892 = vmatprep.subr.mxu0 0.0
  %1893 = vmatpush2.msra.mxu0 0.0
  %1894 = vmatprep.subr.mxu0 0.0
  %1895 = vmatpush2.msra.mxu0 0.0
  %1896 = vmatprep.subr.mxu0 0.0
  %1897 = vmatpush2.msra.mxu0 0.0
  %1898 = vmatprep.mubr.f32.mxu0 0.0
  %1899 = vmatmul.mubr.f32.gmra.mxu0 %v1688
  %v1900 = vpop.f32.mrf.mxu0
  %v1901 = vadd.f32 0.0, %v1900
  %v1902 = vpop.f32.mrf.mxu0
  %1903 = vmatprep.mubr.f32.mxu0 0.0
  %1904 = vmatmul.mubr.f32.gmra.mxu0 %v1691
  %v1905 = vpop.f32.mrf.mxu0
  %v1906 = vadd.f32 0.0, %v1905
  %v1907 = vpop.f32.mrf.mxu0
  %1908 = vmatprep.mubr.f32.mxu0 0.0
  %1909 = vmatmul.mubr.f32.gmra.mxu0 %v1694
  %v1910 = vpop.f32.mrf.mxu0
  %v1911 = vadd.f32 0.0, %v1910
  %v1912 = vpop.f32.mrf.mxu0
  %1913 = vmatprep.mubr.f32.mxu0 0.0
  %1914 = vmatmul.mubr.f32.gmra.mxu0 %v1697
  %v1915 = vpop.f32.mrf.mxu0
  %v1916 = vadd.f32 0.0, %v1915
  %v1917 = vpop.f32.mrf.mxu0
  %1918 = vmatprep.mubr.f32.mxu0 0.0
  %1919 = vmatmul.mubr.f32.gmra.mxu0 %v1700
  %v1920 = vpop.f32.mrf.mxu0
  %v1921 = vadd.f32 0.0, %v1920
  %v1922 = vpop.f32.mrf.mxu0
  %1923 = vmatprep.mubr.f32.mxu0 0.0
  %1924 = vmatmul.mubr.f32.gmra.mxu0 %v1703
  %v1925 = vpop.f32.mrf.mxu0
  %v1926 = vadd.f32 0.0, %v1925
  %v1927 = vpop.f32.mrf.mxu0
  %1928 = vmatprep.mubr.f32.mxu0 0.0
  %1929 = vmatmul.mubr.f32.gmra.mxu0 %v1706
  %v1930 = vpop.f32.mrf.mxu0
  %v1931 = vadd.f32 0.0, %v1930
  %v1932 = vpop.f32.mrf.mxu0
  %1933 = vmatprep.mubr.f32.mxu0 0.0
  %1934 = vmatmul.mubr.f32.gmra.mxu0 %v1709
  %v1935 = vpop.f32.mrf.mxu0
  %v1936 = vadd.f32 0.0, %v1935
  %v1937 = vpop.f32.mrf.mxu0
  %1938 = vmatprep.mubr.f32.mxu0 0.0
  %1939 = vmatmul.mubr.f32.gmra.mxu0 %v1712
  %v1940 = vpop.f32.mrf.mxu0
  %v1941 = vadd.f32 0.0, %v1940
  %v1942 = vpop.f32.mrf.mxu0
  %1943 = vmatprep.mubr.f32.mxu0 0.0
  %1944 = vmatmul.mubr.f32.gmra.mxu0 %v1715
  %v1945 = vpop.f32.mrf.mxu0
  %v1946 = vadd.f32 0.0, %v1945
  %v1947 = vpop.f32.mrf.mxu0
  %1948 = vmatprep.mubr.f32.mxu0 0.0
  %1949 = vmatmul.mubr.f32.gmra.mxu0 %v1718
  %v1950 = vpop.f32.mrf.mxu0
  %v1951 = vadd.f32 0.0, %v1950
  %v1952 = vpop.f32.mrf.mxu0
  %1953 = vmatprep.mubr.f32.mxu0 0.0
  %1954 = vmatmul.mubr.f32.gmra.mxu0 %v1721
  %v1955 = vpop.f32.mrf.mxu0
  %v1956 = vadd.f32 0.0, %v1955
  %v1957 = vpop.f32.mrf.mxu0
  %1958 = vmatprep.mubr.f32.mxu0 0.0
  %1959 = vmatmul.mubr.f32.gmra.mxu0 %v1724
  %v1960 = vpop.f32.mrf.mxu0
  %v1961 = vadd.f32 0.0, %v1960
  %v1962 = vpop.f32.mrf.mxu0
  %1963 = vmatprep.mubr.f32.mxu0 0.0
  %1964 = vmatmul.mubr.f32.gmra.mxu0 %v1727
  %v1965 = vpop.f32.mrf.mxu0
  %v1966 = vadd.f32 0.0, %v1965
  %v1967 = vpop.f32.mrf.mxu0
  %1968 = vmatprep.mubr.f32.mxu0 0.0
  %1969 = vmatmul.mubr.f32.gmra.mxu0 %v1730
  %v1970 = vpop.f32.mrf.mxu0
  %v1971 = vadd.f32 0.0, %v1970
  %v1972 = vpop.f32.mrf.mxu0
  %1973 = vmatprep.mubr.f32.mxu0 0.0
  %1974 = vmatmul.mubr.f32.gmra.mxu0 %v1733
  %v1975 = vpop.f32.mrf.mxu0
  %v1976 = vadd.f32 0.0, %v1975
  %v1977 = vpop.f32.mrf.mxu0
  %1978 = vmatprep.mubr.f32.mxu0 0.0
  %1979 = vmatmul.mubr.f32.gmra.mxu0 %v1736
  %v1980 = vpop.f32.mrf.mxu0
  %v1981 = vadd.f32 0.0, %v1980
  %v1982 = vpop.f32.mrf.mxu0
  %1983 = vmatprep.mubr.f32.mxu0 0.0
  %1984 = vmatmul.mubr.f32.gmra.mxu0 %v1739
  %v1985 = vpop.f32.mrf.mxu0
  %v1986 = vadd.f32 0.0, %v1985
  %v1987 = vpop.f32.mrf.mxu0
  %1988 = vmatprep.mubr.f32.mxu0 0.0
  %1989 = vmatmul.mubr.f32.gmra.mxu0 %v1742
  %v1990 = vpop.f32.mrf.mxu0
  %v1991 = vadd.f32 0.0, %v1990
  %v1992 = vpop.f32.mrf.mxu0
  %1993 = vmatprep.mubr.f32.mxu0 0.0
  %1994 = vmatmul.mubr.f32.gmra.mxu0 %v1745
  %v1995 = vpop.f32.mrf.mxu0
  %v1996 = vadd.f32 0.0, %v1995
  %v1997 = vpop.f32.mrf.mxu0
  %1998 = vmatprep.mubr.f32.mxu0 0.0
  %1999 = vmatmul.mubr.f32.gmra.mxu0 %v1748
  %v2000 = vpop.f32.mrf.mxu0
  %v2001 = vadd.f32 0.0, %v2000
  %v2002 = vpop.f32.mrf.mxu0
  %2003 = vmatprep.mubr.f32.mxu0 0.0
  %2004 = vmatmul.mubr.f32.gmra.mxu0 %v1751
  %v2005 = vpop.f32.mrf.mxu0
  %v2006 = vadd.f32 0.0, %v2005
  %v2007 = vpop.f32.mrf.mxu0
  %2008 = vmatprep.mubr.f32.mxu0 0.0
  %2009 = vmatmul.mubr.f32.gmra.mxu0 %v1754
  %v2010 = vpop.f32.mrf.mxu0
  %v2011 = vadd.f32 0.0, %v2010
  %v2012 = vpop.f32.mrf.mxu0
  %2013 = vmatprep.mubr.f32.mxu0 0.0
  %2014 = vmatmul.mubr.f32.gmra.mxu0 %v1757
  %v2015 = vpop.f32.mrf.mxu0
  %v2016 = vadd.f32 0.0, %v2015
  %v2017 = vpop.f32.mrf.mxu0
  %2018 = vmatprep.mubr.f32.mxu0 0.0
  %2019 = vmatmul.mubr.f32.gmra.mxu0 %v1760
  %v2020 = vpop.f32.mrf.mxu0
  %v2021 = vadd.f32 0.0, %v2020
  %v2022 = vpop.f32.mrf.mxu0
  %2023 = vmatprep.mubr.f32.mxu0 0.0
  %2024 = vmatmul.mubr.f32.gmra.mxu0 %v1763
  %v2025 = vpop.f32.mrf.mxu0
  %v2026 = vadd.f32 0.0, %v2025
  %v2027 = vpop.f32.mrf.mxu0
  %2028 = vmatprep.mubr.f32.mxu0 0.0
  %2029 = vmatmul.mubr.f32.gmra.mxu0 %v1766
  %v2030 = vpop.f32.mrf.mxu0
  %v2031 = vadd.f32 0.0, %v2030
  %v2032 = vpop.f32.mrf.mxu0
  %2033 = vmatprep.mubr.f32.mxu0 0.0
  %2034 = vmatmul.mubr.f32.gmra.mxu0 %v1769
  %v2035 = vpop.f32.mrf.mxu0
  %v2036 = vadd.f32 0.0, %v2035
  %v2037 = vpop.f32.mrf.mxu0
  %2038 = vmatprep.mubr.f32.mxu0 0.0
  %2039 = vmatmul.mubr.f32.gmra.mxu0 %v1772
  %v2040 = vpop.f32.mrf.mxu0
  %v2041 = vadd.f32 0.0, %v2040
  %v2042 = vpop.f32.mrf.mxu0
  %2043 = vmatprep.mubr.f32.mxu0 0.0
  %2044 = vmatmul.mubr.f32.gmra.mxu0 %v1775
  %v2045 = vpop.f32.mrf.mxu0
  %v2046 = vadd.f32 0.0, %v2045
  %v2047 = vpop.f32.mrf.mxu0
  %2048 = vmatprep.mubr.f32.mxu0 0.0
  %2049 = vmatmul.mubr.f32.gmra.mxu0 %v1778
  %v2050 = vpop.f32.mrf.mxu0
  %v2051 = vadd.f32 0.0, %v2050
  %v2052 = vpop.f32.mrf.mxu0
  %2053 = vmatprep.mubr.f32.mxu0 0.0
  %2054 = vmatmul.mubr.f32.gmra.mxu0 %v1781
  %v2055 = vpop.f32.mrf.mxu0
  %v2056 = vadd.f32 0.0, %v2055
  %v2057 = vpop.f32.mrf.mxu0
  %2058 = vmatprep.mubr.f32.mxu0 0.0
  %2059 = vmatmul.mubr.f32.gmra.mxu0 %v1784
  %v2060 = vpop.f32.mrf.mxu0
  %v2061 = vadd.f32 0.0, %v2060
  %v2062 = vpop.f32.mrf.mxu0
  %2063 = vmatprep.mubr.f32.mxu0 0.0
  %2064 = vmatmul.mubr.f32.gmra.mxu0 %v1787
  %v2065 = vpop.f32.mrf.mxu0
  %v2066 = vadd.f32 0.0, %v2065
  %v2067 = vpop.f32.mrf.mxu0
  %2068 = vmatprep.mubr.f32.mxu0 0.0
  %2069 = vmatmul.mubr.f32.gmra.mxu0 %v1790
  %v2070 = vpop.f32.mrf.mxu0
  %v2071 = vadd.f32 0.0, %v2070
  %v2072 = vpop.f32.mrf.mxu0
  %2073 = vmatprep.mubr.f32.mxu0 0.0
  %2074 = vmatmul.mubr.f32.gmra.mxu0 %v1793
  %v2075 = vpop.f32.mrf.mxu0
  %v2076 = vadd.f32 0.0, %v2075
  %v2077 = vpop.f32.mrf.mxu0
  %2078 = vmatprep.mubr.f32.mxu0 0.0
  %2079 = vmatmul.mubr.f32.gmra.mxu0 %v1796
  %v2080 = vpop.f32.mrf.mxu0
  %v2081 = vadd.f32 0.0, %v2080
  %v2082 = vpop.f32.mrf.mxu0
  %2083 = vmatprep.mubr.f32.mxu0 0.0
  %2084 = vmatmul.mubr.f32.gmra.mxu0 %v1799
  %v2085 = vpop.f32.mrf.mxu0
  %v2086 = vadd.f32 0.0, %v2085
  %v2087 = vpop.f32.mrf.mxu0
  %2088 = vmatprep.mubr.f32.mxu0 0.0
  %2089 = vmatmul.mubr.f32.gmra.mxu0 %v1802
  %v2090 = vpop.f32.mrf.mxu0
  %v2091 = vadd.f32 0.0, %v2090
  %v2092 = vpop.f32.mrf.mxu0
  %2093 = vmatprep.mubr.f32.mxu0 0.0
  %2094 = vmatmul.mubr.f32.gmra.mxu0 %v1805
  %v2095 = vpop.f32.mrf.mxu0
  %v2096 = vadd.f32 0.0, %v2095
  %v2097 = vpop.f32.mrf.mxu0
  %2098 = vmatprep.mubr.f32.mxu0 0.0
  %2099 = vmatmul.mubr.f32.gmra.mxu0 %v1808
  %v2100 = vpop.f32.mrf.mxu0
  %v2101 = vadd.f32 0.0, %v2100
  %v2102 = vpop.f32.mrf.mxu0
  %2103 = vmatprep.mubr.f32.mxu0 0.0
  %2104 = vmatmul.mubr.f32.gmra.mxu0 %v1811
  %v2105 = vpop.f32.mrf.mxu0
  %v2106 = vadd.f32 0.0, %v2105
  %v2107 = vpop.f32.mrf.mxu0
  %2108 = vmatprep.mubr.f32.mxu0 0.0
  %2109 = vmatmul.mubr.f32.gmra.mxu0 %v1814
  %v2110 = vpop.f32.mrf.mxu0
  %v2111 = vadd.f32 0.0, %v2110
  %v2112 = vpop.f32.mrf.mxu0
  %2113 = vmatprep.mubr.f32.mxu0 0.0
  %2114 = vmatmul.mubr.f32.gmra.mxu0 %v1817
  %v2115 = vpop.f32.mrf.mxu0
  %v2116 = vadd.f32 0.0, %v2115
  %v2117 = vpop.f32.mrf.mxu0
  %2118 = vmatprep.mubr.f32.mxu0 0.0
  %2119 = vmatmul.mubr.f32.gmra.mxu0 %v1820
  %v2120 = vpop.f32.mrf.mxu0
  %v2121 = vadd.f32 0.0, %v2120
  %v2122 = vpop.f32.mrf.mxu0
  %2123 = vmatprep.mubr.f32.mxu0 0.0
  %2124 = vmatmul.mubr.f32.gmra.mxu0 %v1823
  %v2125 = vpop.f32.mrf.mxu0
  %v2126 = vadd.f32 0.0, %v2125
  %v2127 = vpop.f32.mrf.mxu0
  %2128 = vmatprep.mubr.f32.mxu0 0.0
  %2129 = vmatmul.mubr.f32.gmra.mxu0 %v1826
  %v2130 = vpop.f32.mrf.mxu0
  %v2131 = vadd.f32 0.0, %v2130
  %v2132 = vpop.f32.mrf.mxu0
  %2133 = vmatprep.mubr.f32.mxu0 0.0
  %2134 = vmatmul.mubr.f32.gmra.mxu0 %v1829
  %v2135 = vpop.f32.mrf.mxu0
  %v2136 = vadd.f32 0.0, %v2135
  %v2137 = vpop.f32.mrf.mxu0
  %2138 = vmatprep.mubr.f32.mxu0 0.0
  %2139 = vmatmul.mubr.f32.gmra.mxu0 %v1832
  %v2140 = vpop.f32.mrf.mxu0
  %v2141 = vadd.f32 0.0, %v2140
  %v2142 = vpop.f32.mrf.mxu0
  %2143 = vdwg.mxu0
  %v2144 = vmax.f32 %v1588, %v1901
  %v2145 = vmax.f32 %v1589, %v1906
  %v2146 = vmax.f32 %v1590, %v1911
  %v2147 = vmax.f32 %v1591, %v1916
  %v2148 = vmax.f32 %v1592, %v1921
  %v2149 = vmax.f32 %v1593, %v1926
  %v2150 = vmax.f32 %v1594, %v1931
  %v2151 = vmax.f32 %v1595, %v1936
  %v2152 = vmax.f32 %v1596, %v1941
  %v2153 = vmax.f32 %v1597, %v1946
  %v2154 = vmax.f32 %v1598, %v1951
  %v2155 = vmax.f32 %v1599, %v1956
  %v2156 = vmax.f32 %v1600, %v1961
  %v2157 = vmax.f32 %v1601, %v1966
  %v2158 = vmax.f32 %v1602, %v1971
  %v2159 = vmax.f32 %v1603, %v1976
  %v2160 = vmax.f32 %v1604, %v1981
  %v2161 = vmax.f32 %v1605, %v1986
  %v2162 = vmax.f32 %v1606, %v1991
  %v2163 = vmax.f32 %v1607, %v1996
  %v2164 = vmax.f32 %v1608, %v2001
  %v2165 = vmax.f32 %v1609, %v2006
  %v2166 = vmax.f32 %v1610, %v2011
  %v2167 = vmax.f32 %v1611, %v2016
  %v2168 = vmax.f32 %v1612, %v2021
  %v2169 = vmax.f32 %v1613, %v2026
  %v2170 = vmax.f32 %v1614, %v2031
  %v2171 = vmax.f32 %v1615, %v2036
  %v2172 = vmax.f32 %v1616, %v2041
  %v2173 = vmax.f32 %v1617, %v2046
  %v2174 = vmax.f32 %v1618, %v2051
  %v2175 = vmax.f32 %v1619, %v2056
  %v2176 = vmax.f32 %v1620, %v2061
  %v2177 = vmax.f32 %v1621, %v2066
  %v2178 = vmax.f32 %v1622, %v2071
  %v2179 = vmax.f32 %v1623, %v2076
  %v2180 = vmax.f32 %v1624, %v2081
  %v2181 = vmax.f32 %v1625, %v2086
  %v2182 = vmax.f32 %v1626, %v2091
  %v2183 = vmax.f32 %v1627, %v2096
  %v2184 = vmax.f32 %v1628, %v2101
  %v2185 = vmax.f32 %v1629, %v2106
  %v2186 = vmax.f32 %v1630, %v2111
  %v2187 = vmax.f32 %v1631, %v2116
  %v2188 = vmax.f32 %v1632, %v2121
  %v2189 = vmax.f32 %v1633, %v2126
  %v2190 = vmax.f32 %v1634, %v2131
  %v2191 = vmax.f32 %v1635, %v2136
  %v2192 = vmax.f32 %v1636, %v2141
  %v2193 = vld [vmem:[%s2] sm:$0x1]
  %v2195 = vlaneseq
  %v2196 = vshrl.u32 %v2195, 7
  %v2197 = vsub.s32 0, %v2196
  %v2198 = vrot.slane %v2193, %v2197
  %v2200 = vadd.f32 %v2144, %v2198
  %v2201 = vadd.f32 %v2145, %v2198
  %v2202 = vadd.f32 %v2146, %v2198
  %v2203 = vadd.f32 %v2147, %v2198
  %v2204 = vadd.f32 %v2148, %v2198
  %v2205 = vadd.f32 %v2149, %v2198
  %v2206 = vadd.f32 %v2150, %v2198
  %v2207 = vadd.f32 %v2151, %v2198
  %v2208 = vadd.f32 %v2152, %v2198
  %v2209 = vadd.f32 %v2153, %v2198
  %v2210 = vadd.f32 %v2154, %v2198
  %v2211 = vadd.f32 %v2155, %v2198
  %v2212 = vadd.f32 %v2156, %v2198
  %v2213 = vadd.f32 %v2157, %v2198
  %v2214 = vadd.f32 %v2158, %v2198
  %v2215 = vadd.f32 %v2159, %v2198
  %v2216 = vadd.f32 %v2160, %v2198
  %v2217 = vadd.f32 %v2161, %v2198
  %v2218 = vadd.f32 %v2162, %v2198
  %v2219 = vadd.f32 %v2163, %v2198
  %v2220 = vadd.f32 %v2164, %v2198
  %v2221 = vadd.f32 %v2165, %v2198
  %v2222 = vadd.f32 %v2166, %v2198
  %v2223 = vadd.f32 %v2167, %v2198
  %v2224 = vadd.f32 %v2168, %v2198
  %v2225 = vadd.f32 %v2169, %v2198
  %v2226 = vadd.f32 %v2170, %v2198
  %v2227 = vadd.f32 %v2171, %v2198
  %v2228 = vadd.f32 %v2172, %v2198
  %v2229 = vadd.f32 %v2173, %v2198
  %v2230 = vadd.f32 %v2174, %v2198
  %v2231 = vadd.f32 %v2175, %v2198
  %v2232 = vadd.f32 %v2176, %v2198
  %v2233 = vadd.f32 %v2177, %v2198
  %v2234 = vadd.f32 %v2178, %v2198
  %v2235 = vadd.f32 %v2179, %v2198
  %v2236 = vadd.f32 %v2180, %v2198
  %v2237 = vadd.f32 %v2181, %v2198
  %v2238 = vadd.f32 %v2182, %v2198
  %v2239 = vadd.f32 %v2183, %v2198
  %v2240 = vadd.f32 %v2184, %v2198
  %v2241 = vadd.f32 %v2185, %v2198
  %v2242 = vadd.f32 %v2186, %v2198
  %v2243 = vadd.f32 %v2187, %v2198
  %v2244 = vadd.f32 %v2188, %v2198
  %v2245 = vadd.f32 %v2189, %v2198
  %v2246 = vadd.f32 %v2190, %v2198
  %v2247 = vadd.f32 %v2191, %v2198
  %v2248 = vadd.f32 %v2192, %v2198
  %v2249 = vpack.c.bf16 %v2201, %v2200
  %v2250 = vpack.c.bf16 %v2203, %v2202
  %v2251 = vpack.c.bf16 %v2205, %v2204
  %v2252 = vpack.c.bf16 %v2207, %v2206
  %v2253 = vpack.c.bf16 %v2209, %v2208
  %v2254 = vpack.c.bf16 %v2211, %v2210
  %v2255 = vpack.c.bf16 %v2213, %v2212
  %v2256 = vpack.c.bf16 %v2215, %v2214
  %v2257 = vpack.c.bf16 %v2217, %v2216
  %v2258 = vpack.c.bf16 %v2219, %v2218
  %v2259 = vpack.c.bf16 %v2221, %v2220
  %v2260 = vpack.c.bf16 %v2223, %v2222
  %v2261 = vpack.c.bf16 %v2225, %v2224
  %v2262 = vpack.c.bf16 %v2227, %v2226
  %v2263 = vpack.c.bf16 %v2229, %v2228
  %v2264 = vpack.c.bf16 %v2231, %v2230
  %v2265 = vpack.c.bf16 %v2233, %v2232
  %v2266 = vpack.c.bf16 %v2235, %v2234
  %v2267 = vpack.c.bf16 %v2237, %v2236
  %v2268 = vpack.c.bf16 %v2239, %v2238
  %v2269 = vpack.c.bf16 %v2241, %v2240
  %v2270 = vpack.c.bf16 %v2243, %v2242
  %v2271 = vpack.c.bf16 %v2245, %v2244
  %v2272 = vpack.c.bf16 %v2247, %v2246
  %v2273 = vpack.c.bf16 %v2248, %v2248
  %v2299 = vunpack.c.l.b16 %v2249
  %v2300 = vunpack.c.h.b16 %v2249
  %v2301 = vunpack.c.l.b16 %v2250
  %v2302 = vunpack.c.h.b16 %v2250
  %v2303 = vunpack.c.l.b16 %v2251
  %v2304 = vunpack.c.h.b16 %v2251
  %v2305 = vunpack.c.l.b16 %v2252
  %v2306 = vunpack.c.h.b16 %v2252
  %v2307 = vunpack.c.l.b16 %v2253
  %v2308 = vunpack.c.h.b16 %v2253
  %v2309 = vunpack.c.l.b16 %v2254
  %v2310 = vunpack.c.h.b16 %v2254
  %v2311 = vunpack.c.l.b16 %v2255
  %v2312 = vunpack.c.h.b16 %v2255
  %v2313 = vunpack.c.l.b16 %v2256
  %v2314 = vunpack.c.h.b16 %v2256
  %v2315 = vunpack.c.l.b16 %v2257
  %v2316 = vunpack.c.h.b16 %v2257
  %v2317 = vunpack.c.l.b16 %v2258
  %v2318 = vunpack.c.h.b16 %v2258
  %v2319 = vunpack.c.l.b16 %v2259
  %v2320 = vunpack.c.h.b16 %v2259
  %v2321 = vunpack.c.l.b16 %v2260
  %v2322 = vunpack.c.h.b16 %v2260
  %v2323 = vunpack.c.l.b16 %v2261
  %v2324 = vunpack.c.h.b16 %v2261
  %v2325 = vunpack.c.l.b16 %v2262
  %v2326 = vunpack.c.h.b16 %v2262
  %v2327 = vunpack.c.l.b16 %v2263
  %v2328 = vunpack.c.h.b16 %v2263
  %v2329 = vunpack.c.l.b16 %v2264
  %v2330 = vunpack.c.h.b16 %v2264
  %v2331 = vunpack.c.l.b16 %v2265
  %v2332 = vunpack.c.h.b16 %v2265
  %v2333 = vunpack.c.l.b16 %v2266
  %v2334 = vunpack.c.h.b16 %v2266
  %v2335 = vunpack.c.l.b16 %v2267
  %v2336 = vunpack.c.h.b16 %v2267
  %v2337 = vunpack.c.l.b16 %v2268
  %v2338 = vunpack.c.h.b16 %v2268
  %v2339 = vunpack.c.l.b16 %v2269
  %v2340 = vunpack.c.h.b16 %v2269
  %v2341 = vunpack.c.l.b16 %v2270
  %v2342 = vunpack.c.h.b16 %v2270
  %v2343 = vunpack.c.l.b16 %v2271
  %v2344 = vunpack.c.h.b16 %v2271
  %v2345 = vunpack.c.l.b16 %v2272
  %v2346 = vunpack.c.h.b16 %v2272
  %v2347 = vunpack.c.l.b16 %v2273
  %v2348 = vpack.c.b16 %v2299, %v2299
  %v2349 = vpack.c.b16 %v2300, %v2300
  %v2350 = vpack.c.b16 %v2301, %v2301
  %v2351 = vpack.c.b16 %v2302, %v2302
  %v2352 = vpack.c.b16 %v2303, %v2303
  %v2353 = vpack.c.b16 %v2304, %v2304
  %v2354 = vpack.c.b16 %v2305, %v2305
  %v2355 = vpack.c.b16 %v2306, %v2306
  %v2356 = vpack.c.b16 %v2307, %v2307
  %v2357 = vpack.c.b16 %v2308, %v2308
  %v2358 = vpack.c.b16 %v2309, %v2309
  %v2359 = vpack.c.b16 %v2310, %v2310
  %v2360 = vpack.c.b16 %v2311, %v2311
  %v2361 = vpack.c.b16 %v2312, %v2312
  %v2362 = vpack.c.b16 %v2313, %v2313
  %v2363 = vpack.c.b16 %v2314, %v2314
  %v2364 = vpack.c.b16 %v2315, %v2315
  %v2365 = vpack.c.b16 %v2316, %v2316
  %v2366 = vpack.c.b16 %v2317, %v2317
  %v2367 = vpack.c.b16 %v2318, %v2318
  %v2368 = vpack.c.b16 %v2319, %v2319
  %v2369 = vpack.c.b16 %v2320, %v2320
  %v2370 = vpack.c.b16 %v2321, %v2321
  %v2371 = vpack.c.b16 %v2322, %v2322
  %v2372 = vpack.c.b16 %v2323, %v2323
  %v2373 = vpack.c.b16 %v2324, %v2324
  %v2374 = vpack.c.b16 %v2325, %v2325
  %v2375 = vpack.c.b16 %v2326, %v2326
  %v2376 = vpack.c.b16 %v2327, %v2327
  %v2377 = vpack.c.b16 %v2328, %v2328
  %v2378 = vpack.c.b16 %v2329, %v2329
  %v2379 = vpack.c.b16 %v2330, %v2330
  %v2380 = vpack.c.b16 %v2331, %v2331
  %v2381 = vpack.c.b16 %v2332, %v2332
  %v2382 = vpack.c.b16 %v2333, %v2333
  %v2383 = vpack.c.b16 %v2334, %v2334
  %v2384 = vpack.c.b16 %v2335, %v2335
  %v2385 = vpack.c.b16 %v2336, %v2336
  %v2386 = vpack.c.b16 %v2337, %v2337
  %v2387 = vpack.c.b16 %v2338, %v2338
  %v2388 = vpack.c.b16 %v2339, %v2339
  %v2389 = vpack.c.b16 %v2340, %v2340
  %v2390 = vpack.c.b16 %v2341, %v2341
  %v2391 = vpack.c.b16 %v2342, %v2342
  %v2392 = vpack.c.b16 %v2343, %v2343
  %v2393 = vpack.c.b16 %v2344, %v2344
  %v2394 = vpack.c.b16 %v2345, %v2345
  %v2395 = vpack.c.b16 %v2346, %v2346
  %v2396 = vpack.c.b16 %v2347, %v2347
  %vm2446 = vcmask 257024
  %2447 = vst.msk [vmem:[%s3] sm:$0xf] %vm2446, %v2348
  %2448 = vst.msk [vmem:[%s3 + $0x4] sm:$0xf] %vm2446, %v2349
  %2449 = vst.msk [vmem:[%s3 + $0x8] sm:$0xf] %vm2446, %v2350
  %2450 = vst.msk [vmem:[%s3 + $0xc] sm:$0xf] %vm2446, %v2351
  %2451 = vst.msk [vmem:[%s3 + $0x10] sm:$0xf] %vm2446, %v2352
  %2452 = vst.msk [vmem:[%s3 + $0x14] sm:$0xf] %vm2446, %v2353
  %2453 = vst.msk [vmem:[%s3 + $0x18] sm:$0xf] %vm2446, %v2354
  %2454 = vst.msk [vmem:[%s3 + $0x1c] sm:$0xf] %vm2446, %v2355
  %2455 = vst.msk [vmem:[%s3 + $0x20] sm:$0xf] %vm2446, %v2356
  %2456 = vst.msk [vmem:[%s3 + $0x24] sm:$0xf] %vm2446, %v2357
  %2457 = vst.msk [vmem:[%s3 + $0x28] sm:$0xf] %vm2446, %v2358
  %2458 = vst.msk [vmem:[%s3 + $0x2c] sm:$0xf] %vm2446, %v2359
  %2459 = vst.msk [vmem:[%s3 + $0x30] sm:$0xf] %vm2446, %v2360
  %2460 = vst.msk [vmem:[%s3 + $0x34] sm:$0xf] %vm2446, %v2361
  %2461 = vst.msk [vmem:[%s3 + $0x38] sm:$0xf] %vm2446, %v2362
  %2462 = vst.msk [vmem:[%s3 + $0x3c] sm:$0xf] %vm2446, %v2363
  %2463 = vst.msk [vmem:[%s3 + $0x40] sm:$0xf] %vm2446, %v2364
  %2464 = vst.msk [vmem:[%s3 + $0x44] sm:$0xf] %vm2446, %v2365
  %2465 = vst.msk [vmem:[%s3 + $0x48] sm:$0xf] %vm2446, %v2366
  %2466 = vst.msk [vmem:[%s3 + $0x4c] sm:$0xf] %vm2446, %v2367
  %2467 = vst.msk [vmem:[%s3 + $0x50] sm:$0xf] %vm2446, %v2368
  %2468 = vst.msk [vmem:[%s3 + $0x54] sm:$0xf] %vm2446, %v2369
  %2469 = vst.msk [vmem:[%s3 + $0x58] sm:$0xf] %vm2446, %v2370
  %2470 = vst.msk [vmem:[%s3 + $0x5c] sm:$0xf] %vm2446, %v2371
  %2471 = vst.msk [vmem:[%s3 + $0x60] sm:$0xf] %vm2446, %v2372
  %2472 = vst.msk [vmem:[%s3 + $0x64] sm:$0xf] %vm2446, %v2373
  %2473 = vst.msk [vmem:[%s3 + $0x68] sm:$0xf] %vm2446, %v2374
  %2474 = vst.msk [vmem:[%s3 + $0x6c] sm:$0xf] %vm2446, %v2375
  %2475 = vst.msk [vmem:[%s3 + $0x70] sm:$0xf] %vm2446, %v2376
  %2476 = vst.msk [vmem:[%s3 + $0x74] sm:$0xf] %vm2446, %v2377
  %2477 = vst.msk [vmem:[%s3 + $0x78] sm:$0xf] %vm2446, %v2378
  %2478 = vst.msk [vmem:[%s3 + $0x7c] sm:$0xf] %vm2446, %v2379
  %2479 = vst.msk [vmem:[%s3 + $0x80] sm:$0xf] %vm2446, %v2380
  %2480 = vst.msk [vmem:[%s3 + $0x84] sm:$0xf] %vm2446, %v2381
  %2481 = vst.msk [vmem:[%s3 + $0x88] sm:$0xf] %vm2446, %v2382
  %2482 = vst.msk [vmem:[%s3 + $0x8c] sm:$0xf] %vm2446, %v2383
  %2483 = vst.msk [vmem:[%s3 + $0x90] sm:$0xf] %vm2446, %v2384
  %2484 = vst.msk [vmem:[%s3 + $0x94] sm:$0xf] %vm2446, %v2385
  %2485 = vst.msk [vmem:[%s3 + $0x98] sm:$0xf] %vm2446, %v2386
  %2486 = vst.msk [vmem:[%s3 + $0x9c] sm:$0xf] %vm2446, %v2387
  %2487 = vst.msk [vmem:[%s3 + $0xa0] sm:$0xf] %vm2446, %v2388
  %2488 = vst.msk [vmem:[%s3 + $0xa4] sm:$0xf] %vm2446, %v2389
  %2489 = vst.msk [vmem:[%s3 + $0xa8] sm:$0xf] %vm2446, %v2390
  %2490 = vst.msk [vmem:[%s3 + $0xac] sm:$0xf] %vm2446, %v2391
  %2491 = vst.msk [vmem:[%s3 + $0xb0] sm:$0xf] %vm2446, %v2392
  %2492 = vst.msk [vmem:[%s3 + $0xb4] sm:$0xf] %vm2446, %v2393
  %2493 = vst.msk [vmem:[%s3 + $0xb8] sm:$0xf] %vm2446, %v2394
  %2494 = vst.msk [vmem:[%s3 + $0xbc] sm:$0xf] %vm2446, %v2395
  %2495 = vst.msk [vmem:[%s3 + $0xc0] sm:$0xf] %vm2446, %v2396
  // Predicated region
  $region14: #{_pipeline.2} parent=0 // pred_check
    _
  $region15: #{_pipeline.2} parent=0 // pred_check_branch
    %2497 = sbr.rel (0) target = $region17
  $region16: #{_pipeline.2} parent=0 // pred_region
    _
  $region17: #{_pipeline.2} parent=0 // pred_fallthru
    _
  // Predicated region
  $region18: #{_pipeline.2} parent=0 // pred_check
    _
  $region19: #{_pipeline.2} parent=0 // pred_check_branch
    %2499 = sbr.rel (0) target = $region21
  $region20: #{_pipeline.2} parent=0 // pred_region
    _
  $region21: #{_pipeline.2} parent=0 // pred_fallthru
    _

// kernel: _pipeline.3
$region0: #{_pipeline.3}
  #allocation0 [shape = 'u32[]', space=smem, size = 0x4, offset = 0x4, fixed_abs, tag = 'smem constant byte address 0x4 - core index']
  #allocation1 [shape = 'u32[144,128]{1,0:T(1,128)}', space=vmem, size = 0x12000, scoped, tag = 'internal scratch']
  #allocation2 [shape = 'f32[2,2048]{1,0:T(2,128)}', space=vmem, size = 0x4000, scoped, tag = 'scratch operand']
  %s0 = inlined_call_operand.vmem [shape: bf16[2,6272], index: 0, kind: input, shape index: {}]
  %s1 = inlined_call_operand.vmem [shape: s8[6272,2048], index: 1, kind: input, shape index: {}]
  %s2 = inlined_call_operand.vmem [shape: f32[1,2048], index: 2, kind: input, shape index: {}]
  %s3 = inlined_call_operand.vmem [shape: f32[1,2048], index: 3, kind: input, shape index: {}]
  %s4 = inlined_call_operand.vmem [shape: bf16[2048,128], index: 4, kind: input, shape index: {}]
  %s5 = inlined_call_operand.vmem [shape: f32[1,128], index: 5, kind: input, shape index: {}]
  %s6 = inlined_call_operand.vmem [shape: f32[128,128], index: 6, kind: input, shape index: {}]
  %s7 = inlined_call_operand.vmem [shape: f32[1,128], index: 7, kind: input, shape index: {}]
  %s8 = inlined_call_operand.hbm [shape: f32[2,128], index: 8, kind: output, shape index: {}]
  %s9 = sld [smem:[#allocation0]]
  $region73: #{_pipeline.3} parent=0
    _
  %s11 = ssub.s32 1, %s9
  %s12 = scalar_select 0, %s11, %s9
  $region1: #{_pipeline.3} parent=0
    #allocation3 [shape = 'u8[1024]{0}', space=vmem, size = 0x400, scoped, tag = 'output window, operand 0, single buffered']
    #allocation4 [shape = 's32[2]{0}', space=sflag, size = 0x8, scoped, tag = 'scoped memory for _pipeline.3']
    %13 = vsyncpa [#allocation4], 0
    loop: start=0, step=1, limit=9
    $region2: #{_pipeline.3} parent=1 // loop_pre_header
      _
    $region3: #{_pipeline.3} parent=1 // loop_header
      %s15 = sphi 0, %s19
      %p16 = scmp.ge.s32.totalorder %s15, 9
      %s25 = sphi 0, %s27
      %s28 = sphi 0, %s25
      %s29 = sphi 0, %s28
      %s45 = sphi 0, %s29
      %s51 = sphi 0, %s53
      %s54 = sphi 0, %s51
      %s55 = sphi 0, %s54
      %s71 = sphi 0, %s55
      %s75 = sphi 0, %s75
      %s77 = sphi 0, %s75
      %s78 = sphi 0, %s77
      %s92 = sphi 0, %s78
      %s96 = sphi 0, %s96
      %s98 = sphi 0, %s96
      %s99 = sphi 0, %s98
      %s113 = sphi 0, %s99
      %s117 = sphi 0, %s117
      %s119 = sphi 0, %s117
      %s120 = sphi 0, %s119
      %s134 = sphi 0, %s120
      %s138 = sphi 0, %s138
      %s140 = sphi 0, %s138
      %s141 = sphi 0, %s140
      %s155 = sphi 0, %s141
      %s159 = sphi 0, %s159
      %s161 = sphi 0, %s159
      %s162 = sphi 0, %s161
      %s176 = sphi 0, %s162
      %s180 = sphi 0, %s180
      %s182 = sphi 0, %s180
      %s183 = sphi 0, %s182
      %s197 = sphi 0, %s183
      %s201 = sphi 0, %s201
      %s203 = sphi 0, %s201
      %s204 = sphi 0, %s203
      %s218 = sphi 0, %s204
    $region4: #{_pipeline.3} parent=1 // loop_header_branch
      %18 = sbr.rel (%p16) target = $region8
    $region5: #{_pipeline.3} parent=1 // loop_body
      %s20 = ssub.s32 %s15, 1
      %s21 = ssub.s32 %s15, 2
      %s22 = sadd.s32 %s15, 1
      %s23 = ssub.s32 %s15, %s22
      %p24 = scmp.eq.s32.totalorder %s23, 0
      %s26 = sadd.s32 %s25, 1
      %s27 = scalar_select %p24, %s25, %s26
      %p30 = pneg %p24
      %p31 = scmp.eq.s32.totalorder %s15, 6
      %p32 = por %p30, %p31
      %p33 = scmp.ne.s32.totalorder %s25, %s28
      %p34 = scmp.eq.s32.totalorder %s15, 0
      %p35 = por %p33, %p34
      %p36 = scmp.ne.s32.totalorder %s25, %s28
      %p37 = scmp.eq.s32.totalorder %s20, 6
      %p38 = por %p36, %p37
      %p39 = scmp.ne.s32.totalorder %s28, %s29
      %p40 = scmp.eq.s32.totalorder %s20, 0
      %p41 = por %p39, %p40
      %p42 = scmp.ne.s32.totalorder %s28, %s29
      %p43 = scmp.eq.s32.totalorder %s21, 6
      %p44 = por %p42, %p43
      %p46 = scmp.ne.s32.totalorder %s29, %s45
      %p47 = scmp.eq.s32.totalorder %s21, 0
      %p48 = por %p46, %p47
      %s49 = ssub.s32 %s15, %s22
      %p50 = scmp.eq.s32.totalorder %s49, 0
      %s52 = sadd.s32 %s51, 1
      %s53 = scalar_select %p50, %s51, %s52
      %p56 = pneg %p50
      %p57 = scmp.eq.s32.totalorder %s15, 6
      %p58 = por %p56, %p57
      %p59 = scmp.ne.s32.totalorder %s51, %s54
      %p60 = scmp.eq.s32.totalorder %s15, 0
      %p61 = por %p59, %p60
      %p62 = scmp.ne.s32.totalorder %s51, %s54
      %p63 = scmp.eq.s32.totalorder %s20, 6
      %p64 = por %p62, %p63
      %p65 = scmp.ne.s32.totalorder %s54, %s55
      %p66 = scmp.eq.s32.totalorder %s20, 0
      %p67 = por %p65, %p66
      %p68 = scmp.ne.s32.totalorder %s54, %s55
      %p69 = scmp.eq.s32.totalorder %s21, 6
      %p70 = por %p68, %p69
      %p72 = scmp.ne.s32.totalorder %s55, %s71
      %p73 = scmp.eq.s32.totalorder %s21, 0
      %p74 = por %p72, %p73
      %s76 = sadd.s32 %s75, 1
      %p79 = scmp.eq.s32.totalorder %s15, 6
      %p80 = scmp.ne.s32.totalorder %s75, %s77
      %p81 = scmp.eq.s32.totalorder %s15, 0
      %p82 = por %p80, %p81
      %p83 = scmp.ne.s32.totalorder %s75, %s77
      %p84 = scmp.eq.s32.totalorder %s20, 6
      %p85 = por %p83, %p84
      %p86 = scmp.ne.s32.totalorder %s77, %s78
      %p87 = scmp.eq.s32.totalorder %s20, 0
      %p88 = por %p86, %p87
      %p89 = scmp.ne.s32.totalorder %s77, %s78
      %p90 = scmp.eq.s32.totalorder %s21, 6
      %p91 = por %p89, %p90
      %p93 = scmp.ne.s32.totalorder %s78, %s92
      %p94 = scmp.eq.s32.totalorder %s21, 0
      %p95 = por %p93, %p94
      %s97 = sadd.s32 %s96, 1
      %p100 = scmp.eq.s32.totalorder %s15, 6
      %p101 = scmp.ne.s32.totalorder %s96, %s98
      %p102 = scmp.eq.s32.totalorder %s15, 0
      %p103 = por %p101, %p102
      %p104 = scmp.ne.s32.totalorder %s96, %s98
      %p105 = scmp.eq.s32.totalorder %s20, 6
      %p106 = por %p104, %p105
      %p107 = scmp.ne.s32.totalorder %s98, %s99
      %p108 = scmp.eq.s32.totalorder %s20, 0
      %p109 = por %p107, %p108
      %p110 = scmp.ne.s32.totalorder %s98, %s99
      %p111 = scmp.eq.s32.totalorder %s21, 6
      %p112 = por %p110, %p111
      %p114 = scmp.ne.s32.totalorder %s99, %s113
      %p115 = scmp.eq.s32.totalorder %s21, 0
      %p116 = por %p114, %p115
      %s118 = sadd.s32 %s117, 1
      %p121 = scmp.eq.s32.totalorder %s15, 6
      %p122 = scmp.ne.s32.totalorder %s117, %s119
      %p123 = scmp.eq.s32.totalorder %s15, 0
      %p124 = por %p122, %p123
      %p125 = scmp.ne.s32.totalorder %s117, %s119
      %p126 = scmp.eq.s32.totalorder %s20, 6
      %p127 = por %p125, %p126
      %p128 = scmp.ne.s32.totalorder %s119, %s120
      %p129 = scmp.eq.s32.totalorder %s20, 0
      %p130 = por %p128, %p129
      %p131 = scmp.ne.s32.totalorder %s119, %s120
      %p132 = scmp.eq.s32.totalorder %s21, 6
      %p133 = por %p131, %p132
      %p135 = scmp.ne.s32.totalorder %s120, %s134
      %p136 = scmp.eq.s32.totalorder %s21, 0
      %p137 = por %p135, %p136
      %s139 = sadd.s32 %s138, 1
      %p142 = scmp.eq.s32.totalorder %s15, 6
      %p143 = scmp.ne.s32.totalorder %s138, %s140
      %p144 = scmp.eq.s32.totalorder %s15, 0
      %p145 = por %p143, %p144
      %p146 = scmp.ne.s32.totalorder %s138, %s140
      %p147 = scmp.eq.s32.totalorder %s20, 6
      %p148 = por %p146, %p147
      %p149 = scmp.ne.s32.totalorder %s140, %s141
      %p150 = scmp.eq.s32.totalorder %s20, 0
      %p151 = por %p149, %p150
      %p152 = scmp.ne.s32.totalorder %s140, %s141
      %p153 = scmp.eq.s32.totalorder %s21, 6
      %p154 = por %p152, %p153
      %p156 = scmp.ne.s32.totalorder %s141, %s155
      %p157 = scmp.eq.s32.totalorder %s21, 0
      %p158 = por %p156, %p157
      %s160 = sadd.s32 %s159, 1
      %p163 = scmp.eq.s32.totalorder %s15, 6
      %p164 = scmp.ne.s32.totalorder %s159, %s161
      %p165 = scmp.eq.s32.totalorder %s15, 0
      %p166 = por %p164, %p165
      %p167 = scmp.ne.s32.totalorder %s159, %s161
      %p168 = scmp.eq.s32.totalorder %s20, 6
      %p169 = por %p167, %p168
      %p170 = scmp.ne.s32.totalorder %s161, %s162
      %p171 = scmp.eq.s32.totalorder %s20, 0
      %p172 = por %p170, %p171
      %p173 = scmp.ne.s32.totalorder %s161, %s162
      %p174 = scmp.eq.s32.totalorder %s21, 6
      %p175 = por %p173, %p174
      %p177 = scmp.ne.s32.totalorder %s162, %s176
      %p178 = scmp.eq.s32.totalorder %s21, 0
      %p179 = por %p177, %p178
      %s181 = sadd.s32 %s180, 1
      %p184 = scmp.eq.s32.totalorder %s15, 6
      %p185 = scmp.ne.s32.totalorder %s180, %s182
      %p186 = scmp.eq.s32.totalorder %s15, 0
      %p187 = por %p185, %p186
      %p188 = scmp.ne.s32.totalorder %s180, %s182
      %p189 = scmp.eq.s32.totalorder %s20, 6
      %p190 = por %p188, %p189
      %p191 = scmp.ne.s32.totalorder %s182, %s183
      %p192 = scmp.eq.s32.totalorder %s20, 0
      %p193 = por %p191, %p192
      %p194 = scmp.ne.s32.totalorder %s182, %s183
      %p195 = scmp.eq.s32.totalorder %s21, 6
      %p196 = por %p194, %p195
      %p198 = scmp.ne.s32.totalorder %s183, %s197
      %p199 = scmp.eq.s32.totalorder %s21, 0
      %p200 = por %p198, %p199
      %s202 = sadd.s32 %s201, 1
      %p205 = scmp.eq.s32.totalorder %s15, 6
      %p206 = scmp.ne.s32.totalorder %s201, %s203
      %p207 = scmp.eq.s32.totalorder %s15, 0
      %p208 = por %p206, %p207
      %p209 = scmp.ne.s32.totalorder %s201, %s203
      %p210 = scmp.eq.s32.totalorder %s20, 6
      %p211 = por %p209, %p210
      %p212 = scmp.ne.s32.totalorder %s203, %s204
      %p213 = scmp.eq.s32.totalorder %s20, 0
      %p214 = por %p212, %p213
      %p215 = scmp.ne.s32.totalorder %s203, %s204
      %p216 = scmp.eq.s32.totalorder %s21, 6
      %p217 = por %p215, %p216
      %p219 = scmp.ne.s32.totalorder %s204, %s218
      %p220 = scmp.eq.s32.totalorder %s21, 0
      %p221 = por %p219, %p220
      %p222 = scmp.le.s32.totalorder 1, %s15
      %p223 = scmp.lt.s32.totalorder %s15, 8
      %p224 = pnand %p222, %p223
      %p225 = pneg %p224
      // Predicated region
      $region9: #{_pipeline.3} parent=5 // pred_check
        _
      $region10: #{_pipeline.3} parent=5 // pred_check_branch
        %227 = sbr.rel (%p224) target = $region12
      $region11: #{_pipeline.3} parent=5 // pred_region
        %s228 = ssub.s32 %s15, 1
        // Predicated region
        $region13: #{_pipeline.3} parent=11 // pred_check
          %p229 = pneg %p88
        $region14: #{_pipeline.3} parent=11 // pred_check_branch
          %231 = sbr.rel (%p229) target = $region16
        $region15: #{_pipeline.3} parent=11 // pred_region
          _
        $region16: #{_pipeline.3} parent=11 // pred_fallthru
          _
        // Predicated region
        $region17: #{_pipeline.3} parent=11 // pred_check
          %p232 = pneg %p109
        $region18: #{_pipeline.3} parent=11 // pred_check_branch
          %234 = sbr.rel (%p232) target = $region20
        $region19: #{_pipeline.3} parent=11 // pred_region
          _
        $region20: #{_pipeline.3} parent=11 // pred_fallthru
          _
        // Predicated region
        $region21: #{_pipeline.3} parent=11 // pred_check
          %p235 = pneg %p130
        $region22: #{_pipeline.3} parent=11 // pred_check_branch
          %237 = sbr.rel (%p235) target = $region24
        $region23: #{_pipeline.3} parent=11 // pred_region
          _
        $region24: #{_pipeline.3} parent=11 // pred_fallthru
          _
        // Predicated region
        $region25: #{_pipeline.3} parent=11 // pred_check
          %p238 = pneg %p151
        $region26: #{_pipeline.3} parent=11 // pred_check_branch
          %240 = sbr.rel (%p238) target = $region28
        $region27: #{_pipeline.3} parent=11 // pred_region
          _
        $region28: #{_pipeline.3} parent=11 // pred_fallthru
          _
        // Predicated region
        $region29: #{_pipeline.3} parent=11 // pred_check
          %p241 = pneg %p172
        $region30: #{_pipeline.3} parent=11 // pred_check_branch
          %243 = sbr.rel (%p241) target = $region32
        $region31: #{_pipeline.3} parent=11 // pred_region
          _
        $region32: #{_pipeline.3} parent=11 // pred_fallthru
          _
        // Predicated region
        $region33: #{_pipeline.3} parent=11 // pred_check
          %p244 = pneg %p193
        $region34: #{_pipeline.3} parent=11 // pred_check_branch
          %246 = sbr.rel (%p244) target = $region36
        $region35: #{_pipeline.3} parent=11 // pred_region
          _
        $region36: #{_pipeline.3} parent=11 // pred_fallthru
          _
      $region12: #{_pipeline.3} parent=5 // pred_fallthru
        _
      %p247 = scmp.lt.s32.totalorder %s15, 7
      // Predicated region
      $region37: #{_pipeline.3} parent=5 // pred_check
        %p248 = pneg %p247
      $region38: #{_pipeline.3} parent=5 // pred_check_branch
        %250 = sbr.rel (%p248) target = $region40
      $region39: #{_pipeline.3} parent=5 // pred_region
        // Predicated region
        $region41: #{_pipeline.3} parent=39 // pred_check
          %p251 = pneg %p35
        $region42: #{_pipeline.3} parent=39 // pred_check_branch
          %253 = sbr.rel (%p251) target = $region44
        $region43: #{_pipeline.3} parent=39 // pred_region
          %s254 = smul.u32 7, %s15
          %p255 = scmp.lt.s32.totalorder %s254, 48
          %s256 = scalar_select %p255, %s254, 48
          %s257 = scalar_lea.vmem %s0, %s256
          %s258 = smul.u32 7, %s15
        $region44: #{_pipeline.3} parent=39 // pred_fallthru
          _
        // Predicated region
        $region45: #{_pipeline.3} parent=39 // pred_check
          %p259 = pneg %p61
        $region46: #{_pipeline.3} parent=39 // pred_check_branch
          %261 = sbr.rel (%p259) target = $region48
        $region47: #{_pipeline.3} parent=39 // pred_region
          %s262 = smul.u32 28, %s15
          %p263 = scmp.lt.s32.totalorder %s262, 195
          %s264 = scalar_select %p263, %s262, 195
          %s265 = smul.addr %s264, 16
          %s266 = smul.addr %s265, 8
          %s267 = scalar_lea.vmem %s1, %s266
          %s268 = smul.u32 28, %s15
        $region48: #{_pipeline.3} parent=39 // pred_fallthru
          _
      $region40: #{_pipeline.3} parent=5 // pred_fallthru
        _
      %p269 = scmp.le.s32.totalorder 1, %s15
      %p270 = scmp.lt.s32.totalorder %s15, 8
      %p271 = pnand %p269, %p270
      %p272 = pneg %p271
      // Predicated region
      $region49: #{_pipeline.3} parent=5 // pred_check
        _
      $region50: #{_pipeline.3} parent=5 // pred_check_branch
        %274 = sbr.rel (%p271) target = $region52
      $region51: #{_pipeline.3} parent=5 // pred_region
        %s275 = ssub.s32 %s15, 1
        %s276 = smul.u32 7, %s20
        %p277 = scmp.lt.s32.totalorder %s276, 48
        %s278 = scalar_select %p277, %s276, 48
        %s279 = scalar_lea.vmem %s0, %s278
        %p280 = pneg %p41
        %p281 = pneg %p38
        %s282 = smul.u32 28, %s20
        %p283 = scmp.lt.s32.totalorder %s282, 195
        %s284 = scalar_select %p283, %s282, 195
        %s285 = smul.addr %s284, 16
        %s286 = smul.addr %s285, 8
        %s287 = scalar_lea.vmem %s1, %s286
        %p288 = pneg %p67
        %p289 = pneg %p64
        %p290 = pneg %p88
        %p291 = pneg %p85
        %p292 = pneg %p109
        %p293 = pneg %p106
        %p294 = pneg %p130
        %p295 = pneg %p127
        %p296 = pneg %p151
        %p297 = pneg %p148
        %p298 = pneg %p172
        %p299 = pneg %p169
        %p300 = pneg %p193
        %p301 = pneg %p190
        %p302 = pneg %p214
        %p303 = pneg %p211
        %s304 = smul.u32 7, %s20
        %p305 = scmp.lt.s32.totalorder %s304, 48
        %s306 = scalar_select %p305, %s304, 48
        %s307 = scalar_lea.vmem %s0, %s306
        %s308 = smul.u32 7, %s20
        %s309 = smul.u32 28, %s20
        %p310 = scmp.lt.s32.totalorder %s309, 195
        %s311 = scalar_select %p310, %s309, 195
        %s312 = smul.addr %s311, 16
        %s313 = smul.addr %s312, 8
        %s314 = scalar_lea.vmem %s1, %s313
        %s315 = smul.u32 28, %s20
        %p317 = scmp.eq.s32.totalorder %s20, 0
        // Predicated region
        $region53: #{_pipeline.3} parent=51 // pred_check
          %p318 = pneg %p317
        $region54: #{_pipeline.3} parent=51 // pred_check_branch
          %320 = sbr.rel (%p318) target = $region56
        $region55: #{_pipeline.3} parent=51 // pred_region
          %321 = vst [vmem:[#allocation2] sm:$0xff] 0.0
          %322 = vst [vmem:[#allocation2 + $0x8] sm:$0xff] 0.0
          %323 = vst [vmem:[#allocation2 + $0x10] sm:$0xff] 0.0
          %324 = vst [vmem:[#allocation2 + $0x18] sm:$0xff] 0.0
        $region56: #{_pipeline.3} parent=51 // pred_fallthru
          _
        %v325 = vld [vmem:[#allocation2] sm:$0xff]
        %v326 = vld [vmem:[#allocation2 + $0x8] sm:$0xff]
        %v327 = vld [vmem:[#allocation2 + $0x10] sm:$0xff]
        %v328 = vld [vmem:[#allocation2 + $0x18] sm:$0xff]
        %v329 = vld [vmem:[%s307] sm:$0x7f]
        %v330 = vld [vmem:[%s314] sm:$0xff]
        %v331 = vld [vmem:[%s314 + $0x8] sm:$0xff]
        %v332 = vld [vmem:[%s314 + $0x10] sm:$0xff]
        %v333 = vld [vmem:[%s314 + $0x18] sm:$0xff]
        %v334 = vld [vmem:[%s314 + $0x20] sm:$0xff]
        %v335 = vld [vmem:[%s314 + $0x28] sm:$0xff]
        %v336 = vld [vmem:[%s314 + $0x30] sm:$0xff]
        %v337 = vld [vmem:[%s314 + $0x38] sm:$0xff]
        %v338 = vld [vmem:[%s314 + $0x40] sm:$0xff]
        %v339 = vld [vmem:[%s314 + $0x48] sm:$0xff]
        %v340 = vld [vmem:[%s314 + $0x50] sm:$0xff]
        %v341 = vld [vmem:[%s314 + $0x58] sm:$0xff]
        %v342 = vld [vmem:[%s314 + $0x60] sm:$0xff]
        %v343 = vld [vmem:[%s314 + $0x68] sm:$0xff]
        %v344 = vld [vmem:[%s314 + $0x70] sm:$0xff]
        %v345 = vld [vmem:[%s314 + $0x78] sm:$0xff]
        %v346 = vld [vmem:[%s314 + $0x80] sm:$0xff]
        %v347 = vld [vmem:[%s314 + $0x88] sm:$0xff]
        %v348 = vld [vmem:[%s314 + $0x90] sm:$0xff]
        %v349 = vld [vmem:[%s314 + $0x98] sm:$0xff]
        %v350 = vld [vmem:[%s314 + $0xa0] sm:$0xff]
        %v351 = vld [vmem:[%s314 + $0xa8] sm:$0xff]
        %v352 = vld [vmem:[%s314 + $0xb0] sm:$0xff]
        %v353 = vld [vmem:[%s314 + $0xb8] sm:$0xff]
        %v354 = vld [vmem:[%s314 + $0xc0] sm:$0xff]
        %v355 = vld [vmem:[%s314 + $0xc8] sm:$0xff]
        %v356 = vld [vmem:[%s314 + $0xd0] sm:$0xff]
        %v357 = vld [vmem:[%s314 + $0xd8] sm:$0xff]
        %v358 = vld [vmem:[%s314 + $0xe0] sm:$0xff]
        %v359 = vld [vmem:[%s314 + $0xe8] sm:$0xff]
        %v360 = vld [vmem:[%s314 + $0xf0] sm:$0xff]
        %v361 = vld [vmem:[%s314 + $0xf8] sm:$0xff]
        %v362 = vld [vmem:[%s314 + $0x100] sm:$0xff]
        %v363 = vld [vmem:[%s314 + $0x108] sm:$0xff]
        %v364 = vld [vmem:[%s314 + $0x110] sm:$0xff]
        %v365 = vld [vmem:[%s314 + $0x118] sm:$0xff]
        %v366 = vld [vmem:[%s314 + $0x120] sm:$0xff]
        %v367 = vld [vmem:[%s314 + $0x128] sm:$0xff]
        %v368 = vld [vmem:[%s314 + $0x130] sm:$0xff]
        %v369 = vld [vmem:[%s314 + $0x138] sm:$0xff]
        %v370 = vld [vmem:[%s314 + $0x140] sm:$0xff]
        %v371 = vld [vmem:[%s314 + $0x148] sm:$0xff]
        %v372 = vld [vmem:[%s314 + $0x150] sm:$0xff]
        %v373 = vld [vmem:[%s314 + $0x158] sm:$0xff]
        %v374 = vld [vmem:[%s314 + $0x160] sm:$0xff]
        %v375 = vld [vmem:[%s314 + $0x168] sm:$0xff]
        %v376 = vld [vmem:[%s314 + $0x170] sm:$0xff]
        %v377 = vld [vmem:[%s314 + $0x178] sm:$0xff]
        %v378 = vld [vmem:[%s314 + $0x180] sm:$0xff]
        %v379 = vld [vmem:[%s314 + $0x188] sm:$0xff]
        %v380 = vld [vmem:[%s314 + $0x190] sm:$0xff]
        %v381 = vld [vmem:[%s314 + $0x198] sm:$0xff]
        %v382 = vld [vmem:[%s314 + $0x1a0] sm:$0xff]
        %v383 = vld [vmem:[%s314 + $0x1a8] sm:$0xff]
        %v384 = vld [vmem:[%s314 + $0x1b0] sm:$0xff]
        %v385 = vld [vmem:[%s314 + $0x1b8] sm:$0xff]
        %v386 = vld [vmem:[%s314 + $0x1c0] sm:$0xff]
        %v387 = vld [vmem:[%s314 + $0x1c8] sm:$0xff]
        %v388 = vld [vmem:[%s314 + $0x1d0] sm:$0xff]
        %v389 = vld [vmem:[%s314 + $0x1d8] sm:$0xff]
        %v390 = vld [vmem:[%s314 + $0x1e0] sm:$0xff]
        %v391 = vld [vmem:[%s314 + $0x1e8] sm:$0xff]
        %v392 = vld [vmem:[%s314 + $0x1f0] sm:$0xff]
        %v393 = vld [vmem:[%s314 + $0x1f8] sm:$0xff]
        %v394 = vld [vmem:[%s314 + $0x200] sm:$0xff]
        %v395 = vld [vmem:[%s314 + $0x208] sm:$0xff]
        %v396 = vld [vmem:[%s314 + $0x210] sm:$0xff]
        %v397 = vld [vmem:[%s314 + $0x218] sm:$0xff]
        %v398 = vld [vmem:[%s314 + $0x220] sm:$0xff]
        %v399 = vld [vmem:[%s314 + $0x228] sm:$0xff]
        %v400 = vld [vmem:[%s314 + $0x230] sm:$0xff]
        %v401 = vld [vmem:[%s314 + $0x238] sm:$0xff]
        %v402 = vld [vmem:[%s314 + $0x240] sm:$0xff]
        %v403 = vld [vmem:[%s314 + $0x248] sm:$0xff]
        %v404 = vld [vmem:[%s314 + $0x250] sm:$0xff]
        %v405 = vld [vmem:[%s314 + $0x258] sm:$0xff]
        %v406 = vld [vmem:[%s314 + $0x260] sm:$0xff]
        %v407 = vld [vmem:[%s314 + $0x268] sm:$0xff]
        %v408 = vld [vmem:[%s314 + $0x270] sm:$0xff]
        %v409 = vld [vmem:[%s314 + $0x278] sm:$0xff]
        %v410 = vld [vmem:[%s314 + $0x280] sm:$0xff]
        %v411 = vld [vmem:[%s314 + $0x288] sm:$0xff]
        %v412 = vld [vmem:[%s314 + $0x290] sm:$0xff]
        %v413 = vld [vmem:[%s314 + $0x298] sm:$0xff]
        %v414 = vld [vmem:[%s314 + $0x2a0] sm:$0xff]
        %v415 = vld [vmem:[%s314 + $0x2a8] sm:$0xff]
        %v416 = vld [vmem:[%s314 + $0x2b0] sm:$0xff]
        %v417 = vld [vmem:[%s314 + $0x2b8] sm:$0xff]
        %v418 = vld [vmem:[%s314 + $0x2c0] sm:$0xff]
        %v419 = vld [vmem:[%s314 + $0x2c8] sm:$0xff]
        %v420 = vld [vmem:[%s314 + $0x2d0] sm:$0xff]
        %v421 = vld [vmem:[%s314 + $0x2d8] sm:$0xff]
        %v422 = vld [vmem:[%s314 + $0x2e0] sm:$0xff]
        %v423 = vld [vmem:[%s314 + $0x2e8] sm:$0xff]
        %v424 = vld [vmem:[%s314 + $0x2f0] sm:$0xff]
        %v425 = vld [vmem:[%s314 + $0x2f8] sm:$0xff]
        %v426 = vld [vmem:[%s314 + $0x300] sm:$0xff]
        %v427 = vld [vmem:[%s314 + $0x308] sm:$0xff]
        %v428 = vld [vmem:[%s314 + $0x310] sm:$0xff]
        %v429 = vld [vmem:[%s314 + $0x318] sm:$0xff]
        %v430 = vld [vmem:[%s314 + $0x320] sm:$0xff]
        %v431 = vld [vmem:[%s314 + $0x328] sm:$0xff]
        %v432 = vld [vmem:[%s314 + $0x330] sm:$0xff]
        %v433 = vld [vmem:[%s314 + $0x338] sm:$0xff]
        %v434 = vld [vmem:[%s314 + $0x340] sm:$0xff]
        %v435 = vld [vmem:[%s314 + $0x348] sm:$0xff]
        %v436 = vld [vmem:[%s314 + $0x350] sm:$0xff]
        %v437 = vld [vmem:[%s314 + $0x358] sm:$0xff]
        %v438 = vld [vmem:[%s314 + $0x360] sm:$0xff]
        %v439 = vld [vmem:[%s314 + $0x368] sm:$0xff]
        %v440 = vld [vmem:[%s314 + $0x370] sm:$0xff]
        %v441 = vld [vmem:[%s314 + $0x378] sm:$0xff]
        %v442 = vld [vmem:[%s314 + $0x380] sm:$0xff]
        %v443 = vld [vmem:[%s314 + $0x388] sm:$0xff]
        %v444 = vld [vmem:[%s314 + $0x390] sm:$0xff]
        %v445 = vld [vmem:[%s314 + $0x398] sm:$0xff]
        %v446 = vld [vmem:[%s314 + $0x3a0] sm:$0xff]
        %v447 = vld [vmem:[%s314 + $0x3a8] sm:$0xff]
        %v448 = vld [vmem:[%s314 + $0x3b0] sm:$0xff]
        %v449 = vld [vmem:[%s314 + $0x3b8] sm:$0xff]
        %v450 = vld [vmem:[%s314 + $0x3c0] sm:$0xff]
        %v451 = vld [vmem:[%s314 + $0x3c8] sm:$0xff]
        %v452 = vld [vmem:[%s314 + $0x3d0] sm:$0xff]
        %v453 = vld [vmem:[%s314 + $0x3d8] sm:$0xff]
        %v454 = vld [vmem:[%s314 + $0x3e0] sm:$0xff]
        %v455 = vld [vmem:[%s314 + $0x3e8] sm:$0xff]
        %v456 = vld [vmem:[%s314 + $0x3f0] sm:$0xff]
        %v457 = vld [vmem:[%s314 + $0x3f8] sm:$0xff]
        %v458 = vld [vmem:[%s314 + $0x400] sm:$0xff]
        %v459 = vld [vmem:[%s314 + $0x408] sm:$0xff]
        %v460 = vld [vmem:[%s314 + $0x410] sm:$0xff]
        %v461 = vld [vmem:[%s314 + $0x418] sm:$0xff]
        %v462 = vld [vmem:[%s314 + $0x420] sm:$0xff]
        %v463 = vld [vmem:[%s314 + $0x428] sm:$0xff]
        %v464 = vld [vmem:[%s314 + $0x430] sm:$0xff]
        %v465 = vld [vmem:[%s314 + $0x438] sm:$0xff]
        %v466 = vld [vmem:[%s314 + $0x440] sm:$0xff]
        %v467 = vld [vmem:[%s314 + $0x448] sm:$0xff]
        %v468 = vld [vmem:[%s314 + $0x450] sm:$0xff]
        %v469 = vld [vmem:[%s314 + $0x458] sm:$0xff]
        %v470 = vld [vmem:[%s314 + $0x460] sm:$0xff]
        %v471 = vld [vmem:[%s314 + $0x468] sm:$0xff]
        %v472 = vld [vmem:[%s314 + $0x470] sm:$0xff]
        %v473 = vld [vmem:[%s314 + $0x478] sm:$0xff]
        %v474 = vld [vmem:[%s314 + $0x480] sm:$0xff]
        %v475 = vld [vmem:[%s314 + $0x488] sm:$0xff]
        %v476 = vld [vmem:[%s314 + $0x490] sm:$0xff]
        %v477 = vld [vmem:[%s314 + $0x498] sm:$0xff]
        %v478 = vld [vmem:[%s314 + $0x4a0] sm:$0xff]
        %v479 = vld [vmem:[%s314 + $0x4a8] sm:$0xff]
        %v480 = vld [vmem:[%s314 + $0x4b0] sm:$0xff]
        %v481 = vld [vmem:[%s314 + $0x4b8] sm:$0xff]
        %v482 = vld [vmem:[%s314 + $0x4c0] sm:$0xff]
        %v483 = vld [vmem:[%s314 + $0x4c8] sm:$0xff]
        %v484 = vld [vmem:[%s314 + $0x4d0] sm:$0xff]
        %v485 = vld [vmem:[%s314 + $0x4d8] sm:$0xff]
        %v486 = vld [vmem:[%s314 + $0x4e0] sm:$0xff]
        %v487 = vld [vmem:[%s314 + $0x4e8] sm:$0xff]
        %v488 = vld [vmem:[%s314 + $0x4f0] sm:$0xff]
        %v489 = vld [vmem:[%s314 + $0x4f8] sm:$0xff]
        %v490 = vld [vmem:[%s314 + $0x500] sm:$0xff]
        %v491 = vld [vmem:[%s314 + $0x508] sm:$0xff]
        %v492 = vld [vmem:[%s314 + $0x510] sm:$0xff]
        %v493 = vld [vmem:[%s314 + $0x518] sm:$0xff]
        %v494 = vld [vmem:[%s314 + $0x520] sm:$0xff]
        %v495 = vld [vmem:[%s314 + $0x528] sm:$0xff]
        %v496 = vld [vmem:[%s314 + $0x530] sm:$0xff]
        %v497 = vld [vmem:[%s314 + $0x538] sm:$0xff]
        %v498 = vld [vmem:[%s314 + $0x540] sm:$0xff]
        %v499 = vld [vmem:[%s314 + $0x548] sm:$0xff]
        %v500 = vld [vmem:[%s314 + $0x550] sm:$0xff]
        %v501 = vld [vmem:[%s314 + $0x558] sm:$0xff]
        %v502 = vld [vmem:[%s314 + $0x560] sm:$0xff]
        %v503 = vld [vmem:[%s314 + $0x568] sm:$0xff]
        %v504 = vld [vmem:[%s314 + $0x570] sm:$0xff]
        %v505 = vld [vmem:[%s314 + $0x578] sm:$0xff]
        %v506 = vld [vmem:[%s314 + $0x580] sm:$0xff]
        %v507 = vld [vmem:[%s314 + $0x588] sm:$0xff]
        %v508 = vld [vmem:[%s314 + $0x590] sm:$0xff]
        %v509 = vld [vmem:[%s314 + $0x598] sm:$0xff]
        %v510 = vld [vmem:[%s314 + $0x5a0] sm:$0xff]
        %v511 = vld [vmem:[%s314 + $0x5a8] sm:$0xff]
        %v512 = vld [vmem:[%s314 + $0x5b0] sm:$0xff]
        %v513 = vld [vmem:[%s314 + $0x5b8] sm:$0xff]
        %v514 = vld [vmem:[%s314 + $0x5c0] sm:$0xff]
        %v515 = vld [vmem:[%s314 + $0x5c8] sm:$0xff]
        %v516 = vld [vmem:[%s314 + $0x5d0] sm:$0xff]
        %v517 = vld [vmem:[%s314 + $0x5d8] sm:$0xff]
        %v518 = vld [vmem:[%s314 + $0x5e0] sm:$0xff]
        %v519 = vld [vmem:[%s314 + $0x5e8] sm:$0xff]
        %v520 = vld [vmem:[%s314 + $0x5f0] sm:$0xff]
        %v521 = vld [vmem:[%s314 + $0x5f8] sm:$0xff]
        %v522 = vld [vmem:[%s314 + $0x600] sm:$0xff]
        %v523 = vld [vmem:[%s314 + $0x608] sm:$0xff]
        %v524 = vld [vmem:[%s314 + $0x610] sm:$0xff]
        %v525 = vld [vmem:[%s314 + $0x618] sm:$0xff]
        %v526 = vld [vmem:[%s314 + $0x620] sm:$0xff]
        %v527 = vld [vmem:[%s314 + $0x628] sm:$0xff]
        %v528 = vld [vmem:[%s314 + $0x630] sm:$0xff]
        %v529 = vld [vmem:[%s314 + $0x638] sm:$0xff]
        %v530 = vld [vmem:[%s314 + $0x640] sm:$0xff]
        %v531 = vld [vmem:[%s314 + $0x648] sm:$0xff]
        %v532 = vld [vmem:[%s314 + $0x650] sm:$0xff]
        %v533 = vld [vmem:[%s314 + $0x658] sm:$0xff]
        %v534 = vld [vmem:[%s314 + $0x660] sm:$0xff]
        %v535 = vld [vmem:[%s314 + $0x668] sm:$0xff]
        %v536 = vld [vmem:[%s314 + $0x670] sm:$0xff]
        %v537 = vld [vmem:[%s314 + $0x678] sm:$0xff]
        %v538 = vld [vmem:[%s314 + $0x680] sm:$0xff]
        %v539 = vld [vmem:[%s314 + $0x688] sm:$0xff]
        %v540 = vld [vmem:[%s314 + $0x690] sm:$0xff]
        %v541 = vld [vmem:[%s314 + $0x698] sm:$0xff]
        %v542 = vld [vmem:[%s314 + $0x6a0] sm:$0xff]
        %v543 = vld [vmem:[%s314 + $0x6a8] sm:$0xff]
        %v544 = vld [vmem:[%s314 + $0x6b0] sm:$0xff]
        %v545 = vld [vmem:[%s314 + $0x6b8] sm:$0xff]
        %v546 = vld [vmem:[%s314 + $0x6c0] sm:$0xff]
        %v547 = vld [vmem:[%s314 + $0x6c8] sm:$0xff]
        %v548 = vld [vmem:[%s314 + $0x6d0] sm:$0xff]
        %v549 = vld [vmem:[%s314 + $0x6d8] sm:$0xff]
        %v550 = vld [vmem:[%s314 + $0x6e0] sm:$0xff]
        %v551 = vld [vmem:[%s314 + $0x6e8] sm:$0xff]
        %v552 = vld [vmem:[%s314 + $0x6f0] sm:$0xff]
        %v553 = vld [vmem:[%s314 + $0x6f8] sm:$0xff]
        %v554 = vld [vmem:[%s314 + $0x700] sm:$0xff]
        %v555 = vld [vmem:[%s314 + $0x708] sm:$0xff]
        %v556 = vld [vmem:[%s314 + $0x710] sm:$0xff]
        %v557 = vld [vmem:[%s314 + $0x718] sm:$0xff]
        %v558 = vld [vmem:[%s314 + $0x720] sm:$0xff]
        %v559 = vld [vmem:[%s314 + $0x728] sm:$0xff]
        %v560 = vld [vmem:[%s314 + $0x730] sm:$0xff]
        %v561 = vld [vmem:[%s314 + $0x738] sm:$0xff]
        %v562 = vld [vmem:[%s314 + $0x740] sm:$0xff]
        %v563 = vld [vmem:[%s314 + $0x748] sm:$0xff]
        %v564 = vld [vmem:[%s314 + $0x750] sm:$0xff]
        %v565 = vld [vmem:[%s314 + $0x758] sm:$0xff]
        %v566 = vld [vmem:[%s314 + $0x760] sm:$0xff]
        %v567 = vld [vmem:[%s314 + $0x768] sm:$0xff]
        %v568 = vld [vmem:[%s314 + $0x770] sm:$0xff]
        %v569 = vld [vmem:[%s314 + $0x778] sm:$0xff]
        %v570 = vld [vmem:[%s314 + $0x780] sm:$0xff]
        %v571 = vld [vmem:[%s314 + $0x788] sm:$0xff]
        %v572 = vld [vmem:[%s314 + $0x790] sm:$0xff]
        %v573 = vld [vmem:[%s314 + $0x798] sm:$0xff]
        %v574 = vld [vmem:[%s314 + $0x7a0] sm:$0xff]
        %v575 = vld [vmem:[%s314 + $0x7a8] sm:$0xff]
        %v576 = vld [vmem:[%s314 + $0x7b0] sm:$0xff]
        %v577 = vld [vmem:[%s314 + $0x7b8] sm:$0xff]
        %v578 = vld [vmem:[%s314 + $0x7c0] sm:$0xff]
        %v579 = vld [vmem:[%s314 + $0x7c8] sm:$0xff]
        %v580 = vld [vmem:[%s314 + $0x7d0] sm:$0xff]
        %v581 = vld [vmem:[%s314 + $0x7d8] sm:$0xff]
        %v582 = vld [vmem:[%s314 + $0x7e0] sm:$0xff]
        %v583 = vld [vmem:[%s314 + $0x7e8] sm:$0xff]
        %v584 = vld [vmem:[%s314 + $0x7f0] sm:$0xff]
        %v585 = vld [vmem:[%s314 + $0x7f8] sm:$0xff]
        %v586 = vld [vmem:[%s314 + $0x800] sm:$0xff]
        %v587 = vld [vmem:[%s314 + $0x808] sm:$0xff]
        %v588 = vld [vmem:[%s314 + $0x810] sm:$0xff]
        %v589 = vld [vmem:[%s314 + $0x818] sm:$0xff]
        %v590 = vld [vmem:[%s314 + $0x820] sm:$0xff]
        %v591 = vld [vmem:[%s314 + $0x828] sm:$0xff]
        %v592 = vld [vmem:[%s314 + $0x830] sm:$0xff]
        %v593 = vld [vmem:[%s314 + $0x838] sm:$0xff]
        %v594 = vld [vmem:[%s314 + $0x840] sm:$0xff]
        %v595 = vld [vmem:[%s314 + $0x848] sm:$0xff]
        %v596 = vld [vmem:[%s314 + $0x850] sm:$0xff]
        %v597 = vld [vmem:[%s314 + $0x858] sm:$0xff]
        %v598 = vld [vmem:[%s314 + $0x860] sm:$0xff]
        %v599 = vld [vmem:[%s314 + $0x868] sm:$0xff]
        %v600 = vld [vmem:[%s314 + $0x870] sm:$0xff]
        %v601 = vld [vmem:[%s314 + $0x878] sm:$0xff]
        %v602 = vld [vmem:[%s314 + $0x880] sm:$0xff]
        %v603 = vld [vmem:[%s314 + $0x888] sm:$0xff]
        %v604 = vld [vmem:[%s314 + $0x890] sm:$0xff]
        %v605 = vld [vmem:[%s314 + $0x898] sm:$0xff]
        %v606 = vld [vmem:[%s314 + $0x8a0] sm:$0xff]
        %v607 = vld [vmem:[%s314 + $0x8a8] sm:$0xff]
        %v608 = vld [vmem:[%s314 + $0x8b0] sm:$0xff]
        %v609 = vld [vmem:[%s314 + $0x8b8] sm:$0xff]
        %v610 = vld [vmem:[%s314 + $0x8c0] sm:$0xff]
        %v611 = vld [vmem:[%s314 + $0x8c8] sm:$0xff]
        %v612 = vld [vmem:[%s314 + $0x8d0] sm:$0xff]
        %v613 = vld [vmem:[%s314 + $0x8d8] sm:$0xff]
        %v614 = vld [vmem:[%s314 + $0x8e0] sm:$0xff]
        %v615 = vld [vmem:[%s314 + $0x8e8] sm:$0xff]
        %v616 = vld [vmem:[%s314 + $0x8f0] sm:$0xff]
        %v617 = vld [vmem:[%s314 + $0x8f8] sm:$0xff]
        %v618 = vld [vmem:[%s314 + $0x900] sm:$0xff]
        %v619 = vld [vmem:[%s314 + $0x908] sm:$0xff]
        %v620 = vld [vmem:[%s314 + $0x910] sm:$0xff]
        %v621 = vld [vmem:[%s314 + $0x918] sm:$0xff]
        %v622 = vld [vmem:[%s314 + $0x920] sm:$0xff]
        %v623 = vld [vmem:[%s314 + $0x928] sm:$0xff]
        %v624 = vld [vmem:[%s314 + $0x930] sm:$0xff]
        %v625 = vld [vmem:[%s314 + $0x938] sm:$0xff]
        %v626 = vld [vmem:[%s314 + $0x940] sm:$0xff]
        %v627 = vld [vmem:[%s314 + $0x948] sm:$0xff]
        %v628 = vld [vmem:[%s314 + $0x950] sm:$0xff]
        %v629 = vld [vmem:[%s314 + $0x958] sm:$0xff]
        %v630 = vld [vmem:[%s314 + $0x960] sm:$0xff]
        %v631 = vld [vmem:[%s314 + $0x968] sm:$0xff]
        %v632 = vld [vmem:[%s314 + $0x970] sm:$0xff]
        %v633 = vld [vmem:[%s314 + $0x978] sm:$0xff]
        %v634 = vld [vmem:[%s314 + $0x980] sm:$0xff]
        %v635 = vld [vmem:[%s314 + $0x988] sm:$0xff]
        %v636 = vld [vmem:[%s314 + $0x990] sm:$0xff]
        %v637 = vld [vmem:[%s314 + $0x998] sm:$0xff]
        %v638 = vld [vmem:[%s314 + $0x9a0] sm:$0xff]
        %v639 = vld [vmem:[%s314 + $0x9a8] sm:$0xff]
        %v640 = vld [vmem:[%s314 + $0x9b0] sm:$0xff]
        %v641 = vld [vmem:[%s314 + $0x9b8] sm:$0xff]
        %v642 = vld [vmem:[%s314 + $0x9c0] sm:$0xff]
        %v643 = vld [vmem:[%s314 + $0x9c8] sm:$0xff]
        %v644 = vld [vmem:[%s314 + $0x9d0] sm:$0xff]
        %v645 = vld [vmem:[%s314 + $0x9d8] sm:$0xff]
        %v646 = vld [vmem:[%s314 + $0x9e0] sm:$0xff]
        %v647 = vld [vmem:[%s314 + $0x9e8] sm:$0xff]
        %v648 = vld [vmem:[%s314 + $0x9f0] sm:$0xff]
        %v649 = vld [vmem:[%s314 + $0x9f8] sm:$0xff]
        %v650 = vld [vmem:[%s314 + $0xa00] sm:$0xff]
        %v651 = vld [vmem:[%s314 + $0xa08] sm:$0xff]
        %v652 = vld [vmem:[%s314 + $0xa10] sm:$0xff]
        %v653 = vld [vmem:[%s314 + $0xa18] sm:$0xff]
        %v654 = vld [vmem:[%s314 + $0xa20] sm:$0xff]
        %v655 = vld [vmem:[%s314 + $0xa28] sm:$0xff]
        %v656 = vld [vmem:[%s314 + $0xa30] sm:$0xff]
        %v657 = vld [vmem:[%s314 + $0xa38] sm:$0xff]
        %v658 = vld [vmem:[%s314 + $0xa40] sm:$0xff]
        %v659 = vld [vmem:[%s314 + $0xa48] sm:$0xff]
        %v660 = vld [vmem:[%s314 + $0xa50] sm:$0xff]
        %v661 = vld [vmem:[%s314 + $0xa58] sm:$0xff]
        %v662 = vld [vmem:[%s314 + $0xa60] sm:$0xff]
        %v663 = vld [vmem:[%s314 + $0xa68] sm:$0xff]
        %v664 = vld [vmem:[%s314 + $0xa70] sm:$0xff]
        %v665 = vld [vmem:[%s314 + $0xa78] sm:$0xff]
        %v666 = vld [vmem:[%s314 + $0xa80] sm:$0xff]
        %v667 = vld [vmem:[%s314 + $0xa88] sm:$0xff]
        %v668 = vld [vmem:[%s314 + $0xa90] sm:$0xff]
        %v669 = vld [vmem:[%s314 + $0xa98] sm:$0xff]
        %v670 = vld [vmem:[%s314 + $0xaa0] sm:$0xff]
        %v671 = vld [vmem:[%s314 + $0xaa8] sm:$0xff]
        %v672 = vld [vmem:[%s314 + $0xab0] sm:$0xff]
        %v673 = vld [vmem:[%s314 + $0xab8] sm:$0xff]
        %v674 = vld [vmem:[%s314 + $0xac0] sm:$0xff]
        %v675 = vld [vmem:[%s314 + $0xac8] sm:$0xff]
        %v676 = vld [vmem:[%s314 + $0xad0] sm:$0xff]
        %v677 = vld [vmem:[%s314 + $0xad8] sm:$0xff]
        %v678 = vld [vmem:[%s314 + $0xae0] sm:$0xff]
        %v679 = vld [vmem:[%s314 + $0xae8] sm:$0xff]
        %v680 = vld [vmem:[%s314 + $0xaf0] sm:$0xff]
        %v681 = vld [vmem:[%s314 + $0xaf8] sm:$0xff]
        %v682 = vld [vmem:[%s314 + $0xb00] sm:$0xff]
        %v683 = vld [vmem:[%s314 + $0xb08] sm:$0xff]
        %v684 = vld [vmem:[%s314 + $0xb10] sm:$0xff]
        %v685 = vld [vmem:[%s314 + $0xb18] sm:$0xff]
        %v686 = vld [vmem:[%s314 + $0xb20] sm:$0xff]
        %v687 = vld [vmem:[%s314 + $0xb28] sm:$0xff]
        %v688 = vld [vmem:[%s314 + $0xb30] sm:$0xff]
        %v689 = vld [vmem:[%s314 + $0xb38] sm:$0xff]
        %v690 = vld [vmem:[%s314 + $0xb40] sm:$0xff]
        %v691 = vld [vmem:[%s314 + $0xb48] sm:$0xff]
        %v692 = vld [vmem:[%s314 + $0xb50] sm:$0xff]
        %v693 = vld [vmem:[%s314 + $0xb58] sm:$0xff]
        %v694 = vld [vmem:[%s314 + $0xb60] sm:$0xff]
        %v695 = vld [vmem:[%s314 + $0xb68] sm:$0xff]
        %v696 = vld [vmem:[%s314 + $0xb70] sm:$0xff]
        %v697 = vld [vmem:[%s314 + $0xb78] sm:$0xff]
        %v698 = vld [vmem:[%s314 + $0xb80] sm:$0xff]
        %v699 = vld [vmem:[%s314 + $0xb88] sm:$0xff]
        %v700 = vld [vmem:[%s314 + $0xb90] sm:$0xff]
        %v701 = vld [vmem:[%s314 + $0xb98] sm:$0xff]
        %v702 = vld [vmem:[%s314 + $0xba0] sm:$0xff]
        %v703 = vld [vmem:[%s314 + $0xba8] sm:$0xff]
        %v704 = vld [vmem:[%s314 + $0xbb0] sm:$0xff]
        %v705 = vld [vmem:[%s314 + $0xbb8] sm:$0xff]
        %v706 = vld [vmem:[%s314 + $0xbc0] sm:$0xff]
        %v707 = vld [vmem:[%s314 + $0xbc8] sm:$0xff]
        %v708 = vld [vmem:[%s314 + $0xbd0] sm:$0xff]
        %v709 = vld [vmem:[%s314 + $0xbd8] sm:$0xff]
        %v710 = vld [vmem:[%s314 + $0xbe0] sm:$0xff]
        %v711 = vld [vmem:[%s314 + $0xbe8] sm:$0xff]
        %v712 = vld [vmem:[%s314 + $0xbf0] sm:$0xff]
        %v713 = vld [vmem:[%s314 + $0xbf8] sm:$0xff]
        %v714 = vld [vmem:[%s314 + $0xc00] sm:$0xff]
        %v715 = vld [vmem:[%s314 + $0xc08] sm:$0xff]
        %v716 = vld [vmem:[%s314 + $0xc10] sm:$0xff]
        %v717 = vld [vmem:[%s314 + $0xc18] sm:$0xff]
        %v718 = vld [vmem:[%s314 + $0xc20] sm:$0xff]
        %v719 = vld [vmem:[%s314 + $0xc28] sm:$0xff]
        %v720 = vld [vmem:[%s314 + $0xc30] sm:$0xff]
        %v721 = vld [vmem:[%s314 + $0xc38] sm:$0xff]
        %v722 = vld [vmem:[%s314 + $0xc40] sm:$0xff]
        %v723 = vld [vmem:[%s314 + $0xc48] sm:$0xff]
        %v724 = vld [vmem:[%s314 + $0xc50] sm:$0xff]
        %v725 = vld [vmem:[%s314 + $0xc58] sm:$0xff]
        %v726 = vld [vmem:[%s314 + $0xc60] sm:$0xff]
        %v727 = vld [vmem:[%s314 + $0xc68] sm:$0xff]
        %v728 = vld [vmem:[%s314 + $0xc70] sm:$0xff]
        %v729 = vld [vmem:[%s314 + $0xc78] sm:$0xff]
        %v730 = vld [vmem:[%s314 + $0xc80] sm:$0xff]
        %v731 = vld [vmem:[%s314 + $0xc88] sm:$0xff]
        %v732 = vld [vmem:[%s314 + $0xc90] sm:$0xff]
        %v733 = vld [vmem:[%s314 + $0xc98] sm:$0xff]
        %v734 = vld [vmem:[%s314 + $0xca0] sm:$0xff]
        %v735 = vld [vmem:[%s314 + $0xca8] sm:$0xff]
        %v736 = vld [vmem:[%s314 + $0xcb0] sm:$0xff]
        %v737 = vld [vmem:[%s314 + $0xcb8] sm:$0xff]
        %v738 = vld [vmem:[%s314 + $0xcc0] sm:$0xff]
        %v739 = vld [vmem:[%s314 + $0xcc8] sm:$0xff]
        %v740 = vld [vmem:[%s314 + $0xcd0] sm:$0xff]
        %v741 = vld [vmem:[%s314 + $0xcd8] sm:$0xff]
        %v742 = vld [vmem:[%s314 + $0xce0] sm:$0xff]
        %v743 = vld [vmem:[%s314 + $0xce8] sm:$0xff]
        %v744 = vld [vmem:[%s314 + $0xcf0] sm:$0xff]
        %v745 = vld [vmem:[%s314 + $0xcf8] sm:$0xff]
        %v746 = vld [vmem:[%s314 + $0xd00] sm:$0xff]
        %v747 = vld [vmem:[%s314 + $0xd08] sm:$0xff]
        %v748 = vld [vmem:[%s314 + $0xd10] sm:$0xff]
        %v749 = vld [vmem:[%s314 + $0xd18] sm:$0xff]
        %v750 = vld [vmem:[%s314 + $0xd20] sm:$0xff]
        %v751 = vld [vmem:[%s314 + $0xd28] sm:$0xff]
        %v752 = vld [vmem:[%s314 + $0xd30] sm:$0xff]
        %v753 = vld [vmem:[%s314 + $0xd38] sm:$0xff]
        %v754 = vld [vmem:[%s314 + $0xd40] sm:$0xff]
        %v755 = vld [vmem:[%s314 + $0xd48] sm:$0xff]
        %v756 = vld [vmem:[%s314 + $0xd50] sm:$0xff]
        %v757 = vld [vmem:[%s314 + $0xd58] sm:$0xff]
        %v758 = vld [vmem:[%s314 + $0xd60] sm:$0xff]
        %v759 = vld [vmem:[%s314 + $0xd68] sm:$0xff]
        %v760 = vld [vmem:[%s314 + $0xd70] sm:$0xff]
        %v761 = vld [vmem:[%s314 + $0xd78] sm:$0xff]
        %v762 = vld [vmem:[%s314 + $0xd80] sm:$0xff]
        %v763 = vld [vmem:[%s314 + $0xd88] sm:$0xff]
        %v764 = vld [vmem:[%s314 + $0xd90] sm:$0xff]
        %v765 = vld [vmem:[%s314 + $0xd98] sm:$0xff]
        %v766 = vld [vmem:[%s314 + $0xda0] sm:$0xff]
        %v767 = vld [vmem:[%s314 + $0xda8] sm:$0xff]
        %v768 = vld [vmem:[%s314 + $0xdb0] sm:$0xff]
        %v769 = vld [vmem:[%s314 + $0xdb8] sm:$0xff]
        %v770 = vld [vmem:[%s314 + $0xdc0] sm:$0xff]
        %v771 = vld [vmem:[%s314 + $0xdc8] sm:$0xff]
        %v772 = vld [vmem:[%s314 + $0xdd0] sm:$0xff]
        %v773 = vld [vmem:[%s314 + $0xdd8] sm:$0xff]
        %v774 = vld [vmem:[%s314 + $0xde0] sm:$0xff]
        %v775 = vld [vmem:[%s314 + $0xde8] sm:$0xff]
        %v776 = vld [vmem:[%s314 + $0xdf0] sm:$0xff]
        %v777 = vld [vmem:[%s314 + $0xdf8] sm:$0xff]
        %v778 = vunpack.c.l.s8.bf16 %v330
        %v779 = vunpack.c.l.s8.bf16 %v331
        %v780 = vunpack.c.l.s8.bf16 %v332
        %v781 = vunpack.c.l.s8.bf16 %v333
        %v782 = vunpack.c.l.s8.bf16 %v334
        %v783 = vunpack.c.l.s8.bf16 %v335
        %v784 = vunpack.c.l.s8.bf16 %v336
        %v785 = vunpack.c.l.s8.bf16 %v337
        %v786 = vunpack.c.l.s8.bf16 %v338
        %v787 = vunpack.c.l.s8.bf16 %v339
        %v788 = vunpack.c.l.s8.bf16 %v340
        %v789 = vunpack.c.l.s8.bf16 %v341
        %v790 = vunpack.c.l.s8.bf16 %v342
        %v791 = vunpack.c.l.s8.bf16 %v343
        %v792 = vunpack.c.l.s8.bf16 %v344
        %v793 = vunpack.c.l.s8.bf16 %v345
        %v794 = vunpack.c.h.s8.bf16 %v330
        %v795 = vunpack.c.h.s8.bf16 %v331
        %v796 = vunpack.c.h.s8.bf16 %v332
        %v797 = vunpack.c.h.s8.bf16 %v333
        %v798 = vunpack.c.h.s8.bf16 %v334
        %v799 = vunpack.c.h.s8.bf16 %v335
        %v800 = vunpack.c.h.s8.bf16 %v336
        %v801 = vunpack.c.h.s8.bf16 %v337
        %v802 = vunpack.c.h.s8.bf16 %v338
        %v803 = vunpack.c.h.s8.bf16 %v339
        %v804 = vunpack.c.h.s8.bf16 %v340
        %v805 = vunpack.c.h.s8.bf16 %v341
        %v806 = vunpack.c.h.s8.bf16 %v342
        %v807 = vunpack.c.h.s8.bf16 %v343
        %v808 = vunpack.c.h.s8.bf16 %v344
        %v809 = vunpack.c.h.s8.bf16 %v345
        %v810 = vunpack.c.l.s8.bf16 %v346
        %v811 = vunpack.c.l.s8.bf16 %v347
        %v812 = vunpack.c.l.s8.bf16 %v348
        %v813 = vunpack.c.l.s8.bf16 %v349
        %v814 = vunpack.c.l.s8.bf16 %v350
        %v815 = vunpack.c.l.s8.bf16 %v351
        %v816 = vunpack.c.l.s8.bf16 %v352
        %v817 = vunpack.c.l.s8.bf16 %v353
        %v818 = vunpack.c.l.s8.bf16 %v354
        %v819 = vunpack.c.l.s8.bf16 %v355
        %v820 = vunpack.c.l.s8.bf16 %v356
        %v821 = vunpack.c.l.s8.bf16 %v357
        %v822 = vunpack.c.l.s8.bf16 %v358
        %v823 = vunpack.c.l.s8.bf16 %v359
        %v824 = vunpack.c.l.s8.bf16 %v360
        %v825 = vunpack.c.l.s8.bf16 %v361
        %v826 = vunpack.c.h.s8.bf16 %v346
        %v827 = vunpack.c.h.s8.bf16 %v347
        %v828 = vunpack.c.h.s8.bf16 %v348
        %v829 = vunpack.c.h.s8.bf16 %v349
        %v830 = vunpack.c.h.s8.bf16 %v350
        %v831 = vunpack.c.h.s8.bf16 %v351
        %v832 = vunpack.c.h.s8.bf16 %v352
        %v833 = vunpack.c.h.s8.bf16 %v353
        %v834 = vunpack.c.h.s8.bf16 %v354
        %v835 = vunpack.c.h.s8.bf16 %v355
        %v836 = vunpack.c.h.s8.bf16 %v356
        %v837 = vunpack.c.h.s8.bf16 %v357
        %v838 = vunpack.c.h.s8.bf16 %v358
        %v839 = vunpack.c.h.s8.bf16 %v359
        %v840 = vunpack.c.h.s8.bf16 %v360
        %v841 = vunpack.c.h.s8.bf16 %v361
        %v842 = vunpack.c.l.s8.bf16 %v362
        %v843 = vunpack.c.l.s8.bf16 %v363
        %v844 = vunpack.c.l.s8.bf16 %v364
        %v845 = vunpack.c.l.s8.bf16 %v365
        %v846 = vunpack.c.l.s8.bf16 %v366
        %v847 = vunpack.c.l.s8.bf16 %v367
        %v848 = vunpack.c.l.s8.bf16 %v368
        %v849 = vunpack.c.l.s8.bf16 %v369
        %v850 = vunpack.c.l.s8.bf16 %v370
        %v851 = vunpack.c.l.s8.bf16 %v371
        %v852 = vunpack.c.l.s8.bf16 %v372
        %v853 = vunpack.c.l.s8.bf16 %v373
        %v854 = vunpack.c.l.s8.bf16 %v374
        %v855 = vunpack.c.l.s8.bf16 %v375
        %v856 = vunpack.c.l.s8.bf16 %v376
        %v857 = vunpack.c.l.s8.bf16 %v377
        %v858 = vunpack.c.h.s8.bf16 %v362
        %v859 = vunpack.c.h.s8.bf16 %v363
        %v860 = vunpack.c.h.s8.bf16 %v364
        %v861 = vunpack.c.h.s8.bf16 %v365
        %v862 = vunpack.c.h.s8.bf16 %v366
        %v863 = vunpack.c.h.s8.bf16 %v367
        %v864 = vunpack.c.h.s8.bf16 %v368
        %v865 = vunpack.c.h.s8.bf16 %v369
        %v866 = vunpack.c.h.s8.bf16 %v370
        %v867 = vunpack.c.h.s8.bf16 %v371
        %v868 = vunpack.c.h.s8.bf16 %v372
        %v869 = vunpack.c.h.s8.bf16 %v373
        %v870 = vunpack.c.h.s8.bf16 %v374
        %v871 = vunpack.c.h.s8.bf16 %v375
        %v872 = vunpack.c.h.s8.bf16 %v376
        %v873 = vunpack.c.h.s8.bf16 %v377
        %v874 = vunpack.c.l.s8.bf16 %v378
        %v875 = vunpack.c.l.s8.bf16 %v379
        %v876 = vunpack.c.l.s8.bf16 %v380
        %v877 = vunpack.c.l.s8.bf16 %v381
        %v878 = vunpack.c.l.s8.bf16 %v382
        %v879 = vunpack.c.l.s8.bf16 %v383
        %v880 = vunpack.c.l.s8.bf16 %v384
        %v881 = vunpack.c.l.s8.bf16 %v385
        %v882 = vunpack.c.l.s8.bf16 %v386
        %v883 = vunpack.c.l.s8.bf16 %v387
        %v884 = vunpack.c.l.s8.bf16 %v388
        %v885 = vunpack.c.l.s8.bf16 %v389
        %v886 = vunpack.c.l.s8.bf16 %v390
        %v887 = vunpack.c.l.s8.bf16 %v391
        %v888 = vunpack.c.l.s8.bf16 %v392
        %v889 = vunpack.c.l.s8.bf16 %v393
        %v890 = vunpack.c.h.s8.bf16 %v378
        %v891 = vunpack.c.h.s8.bf16 %v379
        %v892 = vunpack.c.h.s8.bf16 %v380
        %v893 = vunpack.c.h.s8.bf16 %v381
        %v894 = vunpack.c.h.s8.bf16 %v382
        %v895 = vunpack.c.h.s8.bf16 %v383
        %v896 = vunpack.c.h.s8.bf16 %v384
        %v897 = vunpack.c.h.s8.bf16 %v385
        %v898 = vunpack.c.h.s8.bf16 %v386
        %v899 = vunpack.c.h.s8.bf16 %v387
        %v900 = vunpack.c.h.s8.bf16 %v388
        %v901 = vunpack.c.h.s8.bf16 %v389
        %v902 = vunpack.c.h.s8.bf16 %v390
        %v903 = vunpack.c.h.s8.bf16 %v391
        %v904 = vunpack.c.h.s8.bf16 %v392
        %v905 = vunpack.c.h.s8.bf16 %v393
        %v906 = vunpack.c.l.s8.bf16 %v394
        %v907 = vunpack.c.l.s8.bf16 %v395
        %v908 = vunpack.c.l.s8.bf16 %v396
        %v909 = vunpack.c.l.s8.bf16 %v397
        %v910 = vunpack.c.l.s8.bf16 %v398
        %v911 = vunpack.c.l.s8.bf16 %v399
        %v912 = vunpack.c.l.s8.bf16 %v400
        %v913 = vunpack.c.l.s8.bf16 %v401
        %v914 = vunpack.c.l.s8.bf16 %v402
        %v915 = vunpack.c.l.s8.bf16 %v403
        %v916 = vunpack.c.l.s8.bf16 %v404
        %v917 = vunpack.c.l.s8.bf16 %v405
        %v918 = vunpack.c.l.s8.bf16 %v406
        %v919 = vunpack.c.l.s8.bf16 %v407
        %v920 = vunpack.c.l.s8.bf16 %v408
        %v921 = vunpack.c.l.s8.bf16 %v409
        %v922 = vunpack.c.h.s8.bf16 %v394
        %v923 = vunpack.c.h.s8.bf16 %v395
        %v924 = vunpack.c.h.s8.bf16 %v396
        %v925 = vunpack.c.h.s8.bf16 %v397
        %v926 = vunpack.c.h.s8.bf16 %v398
        %v927 = vunpack.c.h.s8.bf16 %v399
        %v928 = vunpack.c.h.s8.bf16 %v400
        %v929 = vunpack.c.h.s8.bf16 %v401
        %v930 = vunpack.c.h.s8.bf16 %v402
        %v931 = vunpack.c.h.s8.bf16 %v403
        %v932 = vunpack.c.h.s8.bf16 %v404
        %v933 = vunpack.c.h.s8.bf16 %v405
        %v934 = vunpack.c.h.s8.bf16 %v406
        %v935 = vunpack.c.h.s8.bf16 %v407
        %v936 = vunpack.c.h.s8.bf16 %v408
        %v937 = vunpack.c.h.s8.bf16 %v409
        %v938 = vunpack.c.l.s8.bf16 %v410
        %v939 = vunpack.c.l.s8.bf16 %v411
        %v940 = vunpack.c.l.s8.bf16 %v412
        %v941 = vunpack.c.l.s8.bf16 %v413
        %v942 = vunpack.c.l.s8.bf16 %v414
        %v943 = vunpack.c.l.s8.bf16 %v415
        %v944 = vunpack.c.l.s8.bf16 %v416
        %v945 = vunpack.c.l.s8.bf16 %v417
        %v946 = vunpack.c.l.s8.bf16 %v418
        %v947 = vunpack.c.l.s8.bf16 %v419
        %v948 = vunpack.c.l.s8.bf16 %v420
        %v949 = vunpack.c.l.s8.bf16 %v421
        %v950 = vunpack.c.l.s8.bf16 %v422
        %v951 = vunpack.c.l.s8.bf16 %v423
        %v952 = vunpack.c.l.s8.bf16 %v424
        %v953 = vunpack.c.l.s8.bf16 %v425
        %v954 = vunpack.c.h.s8.bf16 %v410
        %v955 = vunpack.c.h.s8.bf16 %v411
        %v956 = vunpack.c.h.s8.bf16 %v412
        %v957 = vunpack.c.h.s8.bf16 %v413
        %v958 = vunpack.c.h.s8.bf16 %v414
        %v959 = vunpack.c.h.s8.bf16 %v415
        %v960 = vunpack.c.h.s8.bf16 %v416
        %v961 = vunpack.c.h.s8.bf16 %v417
        %v962 = vunpack.c.h.s8.bf16 %v418
        %v963 = vunpack.c.h.s8.bf16 %v419
        %v964 = vunpack.c.h.s8.bf16 %v420
        %v965 = vunpack.c.h.s8.bf16 %v421
        %v966 = vunpack.c.h.s8.bf16 %v422
        %v967 = vunpack.c.h.s8.bf16 %v423
        %v968 = vunpack.c.h.s8.bf16 %v424
        %v969 = vunpack.c.h.s8.bf16 %v425
        %v970 = vunpack.c.l.s8.bf16 %v426
        %v971 = vunpack.c.l.s8.bf16 %v427
        %v972 = vunpack.c.l.s8.bf16 %v428
        %v973 = vunpack.c.l.s8.bf16 %v429
        %v974 = vunpack.c.l.s8.bf16 %v430
        %v975 = vunpack.c.l.s8.bf16 %v431
        %v976 = vunpack.c.l.s8.bf16 %v432
        %v977 = vunpack.c.l.s8.bf16 %v433
        %v978 = vunpack.c.l.s8.bf16 %v434
        %v979 = vunpack.c.l.s8.bf16 %v435
        %v980 = vunpack.c.l.s8.bf16 %v436
        %v981 = vunpack.c.l.s8.bf16 %v437
        %v982 = vunpack.c.l.s8.bf16 %v438
        %v983 = vunpack.c.l.s8.bf16 %v439
        %v984 = vunpack.c.l.s8.bf16 %v440
        %v985 = vunpack.c.l.s8.bf16 %v441
        %v986 = vunpack.c.h.s8.bf16 %v426
        %v987 = vunpack.c.h.s8.bf16 %v427
        %v988 = vunpack.c.h.s8.bf16 %v428
        %v989 = vunpack.c.h.s8.bf16 %v429
        %v990 = vunpack.c.h.s8.bf16 %v430
        %v991 = vunpack.c.h.s8.bf16 %v431
        %v992 = vunpack.c.h.s8.bf16 %v432
        %v993 = vunpack.c.h.s8.bf16 %v433
        %v994 = vunpack.c.h.s8.bf16 %v434
        %v995 = vunpack.c.h.s8.bf16 %v435
        %v996 = vunpack.c.h.s8.bf16 %v436
        %v997 = vunpack.c.h.s8.bf16 %v437
        %v998 = vunpack.c.h.s8.bf16 %v438
        %v999 = vunpack.c.h.s8.bf16 %v439
        %v1000 = vunpack.c.h.s8.bf16 %v440
        %v1001 = vunpack.c.h.s8.bf16 %v441
        %v1002 = vunpack.c.l.s8.bf16 %v442
        %v1003 = vunpack.c.l.s8.bf16 %v443
        %v1004 = vunpack.c.l.s8.bf16 %v444
        %v1005 = vunpack.c.l.s8.bf16 %v445
        %v1006 = vunpack.c.l.s8.bf16 %v446
        %v1007 = vunpack.c.l.s8.bf16 %v447
        %v1008 = vunpack.c.l.s8.bf16 %v448
        %v1009 = vunpack.c.l.s8.bf16 %v449
        %v1010 = vunpack.c.l.s8.bf16 %v450
        %v1011 = vunpack.c.l.s8.bf16 %v451
        %v1012 = vunpack.c.l.s8.bf16 %v452
        %v1013 = vunpack.c.l.s8.bf16 %v453
        %v1014 = vunpack.c.l.s8.bf16 %v454
        %v1015 = vunpack.c.l.s8.bf16 %v455
        %v1016 = vunpack.c.l.s8.bf16 %v456
        %v1017 = vunpack.c.l.s8.bf16 %v457
        %v1018 = vunpack.c.h.s8.bf16 %v442
        %v1019 = vunpack.c.h.s8.bf16 %v443
        %v1020 = vunpack.c.h.s8.bf16 %v444
        %v1021 = vunpack.c.h.s8.bf16 %v445
        %v1022 = vunpack.c.h.s8.bf16 %v446
        %v1023 = vunpack.c.h.s8.bf16 %v447
        %v1024 = vunpack.c.h.s8.bf16 %v448
        %v1025 = vunpack.c.h.s8.bf16 %v449
        %v1026 = vunpack.c.h.s8.bf16 %v450
        %v1027 = vunpack.c.h.s8.bf16 %v451
        %v1028 = vunpack.c.h.s8.bf16 %v452
        %v1029 = vunpack.c.h.s8.bf16 %v453
        %v1030 = vunpack.c.h.s8.bf16 %v454
        %v1031 = vunpack.c.h.s8.bf16 %v455
        %v1032 = vunpack.c.h.s8.bf16 %v456
        %v1033 = vunpack.c.h.s8.bf16 %v457
        %v1034 = vunpack.c.l.s8.bf16 %v458
        %v1035 = vunpack.c.l.s8.bf16 %v459
        %v1036 = vunpack.c.l.s8.bf16 %v460
        %v1037 = vunpack.c.l.s8.bf16 %v461
        %v1038 = vunpack.c.l.s8.bf16 %v462
        %v1039 = vunpack.c.l.s8.bf16 %v463
        %v1040 = vunpack.c.l.s8.bf16 %v464
        %v1041 = vunpack.c.l.s8.bf16 %v465
        %v1042 = vunpack.c.l.s8.bf16 %v466
        %v1043 = vunpack.c.l.s8.bf16 %v467
        %v1044 = vunpack.c.l.s8.bf16 %v468
        %v1045 = vunpack.c.l.s8.bf16 %v469
        %v1046 = vunpack.c.l.s8.bf16 %v470
        %v1047 = vunpack.c.l.s8.bf16 %v471
        %v1048 = vunpack.c.l.s8.bf16 %v472
        %v1049 = vunpack.c.l.s8.bf16 %v473
        %v1050 = vunpack.c.h.s8.bf16 %v458
        %v1051 = vunpack.c.h.s8.bf16 %v459
        %v1052 = vunpack.c.h.s8.bf16 %v460
        %v1053 = vunpack.c.h.s8.bf16 %v461
        %v1054 = vunpack.c.h.s8.bf16 %v462
        %v1055 = vunpack.c.h.s8.bf16 %v463
        %v1056 = vunpack.c.h.s8.bf16 %v464
        %v1057 = vunpack.c.h.s8.bf16 %v465
        %v1058 = vunpack.c.h.s8.bf16 %v466
        %v1059 = vunpack.c.h.s8.bf16 %v467
        %v1060 = vunpack.c.h.s8.bf16 %v468
        %v1061 = vunpack.c.h.s8.bf16 %v469
        %v1062 = vunpack.c.h.s8.bf16 %v470
        %v1063 = vunpack.c.h.s8.bf16 %v471
        %v1064 = vunpack.c.h.s8.bf16 %v472
        %v1065 = vunpack.c.h.s8.bf16 %v473
        %v1066 = vunpack.c.l.s8.bf16 %v474
        %v1067 = vunpack.c.l.s8.bf16 %v475
        %v1068 = vunpack.c.l.s8.bf16 %v476
        %v1069 = vunpack.c.l.s8.bf16 %v477
        %v1070 = vunpack.c.l.s8.bf16 %v478
        %v1071 = vunpack.c.l.s8.bf16 %v479
        %v1072 = vunpack.c.l.s8.bf16 %v480
        %v1073 = vunpack.c.l.s8.bf16 %v481
        %v1074 = vunpack.c.l.s8.bf16 %v482
        %v1075 = vunpack.c.l.s8.bf16 %v483
        %v1076 = vunpack.c.l.s8.bf16 %v484
        %v1077 = vunpack.c.l.s8.bf16 %v485
        %v1078 = vunpack.c.l.s8.bf16 %v486
        %v1079 = vunpack.c.l.s8.bf16 %v487
        %v1080 = vunpack.c.l.s8.bf16 %v488
        %v1081 = vunpack.c.l.s8.bf16 %v489
        %v1082 = vunpack.c.h.s8.bf16 %v474
        %v1083 = vunpack.c.h.s8.bf16 %v475
        %v1084 = vunpack.c.h.s8.bf16 %v476
        %v1085 = vunpack.c.h.s8.bf16 %v477
        %v1086 = vunpack.c.h.s8.bf16 %v478
        %v1087 = vunpack.c.h.s8.bf16 %v479
        %v1088 = vunpack.c.h.s8.bf16 %v480
        %v1089 = vunpack.c.h.s8.bf16 %v481
        %v1090 = vunpack.c.h.s8.bf16 %v482
        %v1091 = vunpack.c.h.s8.bf16 %v483
        %v1092 = vunpack.c.h.s8.bf16 %v484
        %v1093 = vunpack.c.h.s8.bf16 %v485
        %v1094 = vunpack.c.h.s8.bf16 %v486
        %v1095 = vunpack.c.h.s8.bf16 %v487
        %v1096 = vunpack.c.h.s8.bf16 %v488
        %v1097 = vunpack.c.h.s8.bf16 %v489
        %v1098 = vunpack.c.l.s8.bf16 %v490
        %v1099 = vunpack.c.l.s8.bf16 %v491
        %v1100 = vunpack.c.l.s8.bf16 %v492
        %v1101 = vunpack.c.l.s8.bf16 %v493
        %v1102 = vunpack.c.l.s8.bf16 %v494
        %v1103 = vunpack.c.l.s8.bf16 %v495
        %v1104 = vunpack.c.l.s8.bf16 %v496
        %v1105 = vunpack.c.l.s8.bf16 %v497
        %v1106 = vunpack.c.l.s8.bf16 %v498
        %v1107 = vunpack.c.l.s8.bf16 %v499
        %v1108 = vunpack.c.l.s8.bf16 %v500
        %v1109 = vunpack.c.l.s8.bf16 %v501
        %v1110 = vunpack.c.l.s8.bf16 %v502
        %v1111 = vunpack.c.l.s8.bf16 %v503
        %v1112 = vunpack.c.l.s8.bf16 %v504
        %v1113 = vunpack.c.l.s8.bf16 %v505
        %v1114 = vunpack.c.h.s8.bf16 %v490
        %v1115 = vunpack.c.h.s8.bf16 %v491
        %v1116 = vunpack.c.h.s8.bf16 %v492
        %v1117 = vunpack.c.h.s8.bf16 %v493
        %v1118 = vunpack.c.h.s8.bf16 %v494
        %v1119 = vunpack.c.h.s8.bf16 %v495
        %v1120 = vunpack.c.h.s8.bf16 %v496
        %v1121 = vunpack.c.h.s8.bf16 %v497
        %v1122 = vunpack.c.h.s8.bf16 %v498
        %v1123 = vunpack.c.h.s8.bf16 %v499
        %v1124 = vunpack.c.h.s8.bf16 %v500
        %v1125 = vunpack.c.h.s8.bf16 %v501
        %v1126 = vunpack.c.h.s8.bf16 %v502
        %v1127 = vunpack.c.h.s8.bf16 %v503
        %v1128 = vunpack.c.h.s8.bf16 %v504
        %v1129 = vunpack.c.h.s8.bf16 %v505
        %v1130 = vunpack.c.l.s8.bf16 %v506
        %v1131 = vunpack.c.l.s8.bf16 %v507
        %v1132 = vunpack.c.l.s8.bf16 %v508
        %v1133 = vunpack.c.l.s8.bf16 %v509
        %v1134 = vunpack.c.l.s8.bf16 %v510
        %v1135 = vunpack.c.l.s8.bf16 %v511
        %v1136 = vunpack.c.l.s8.bf16 %v512
        %v1137 = vunpack.c.l.s8.bf16 %v513
        %v1138 = vunpack.c.l.s8.bf16 %v514
        %v1139 = vunpack.c.l.s8.bf16 %v515
        %v1140 = vunpack.c.l.s8.bf16 %v516
        %v1141 = vunpack.c.l.s8.bf16 %v517
        %v1142 = vunpack.c.l.s8.bf16 %v518
        %v1143 = vunpack.c.l.s8.bf16 %v519
        %v1144 = vunpack.c.l.s8.bf16 %v520
        %v1145 = vunpack.c.l.s8.bf16 %v521
        %v1146 = vunpack.c.h.s8.bf16 %v506
        %v1147 = vunpack.c.h.s8.bf16 %v507
        %v1148 = vunpack.c.h.s8.bf16 %v508
        %v1149 = vunpack.c.h.s8.bf16 %v509
        %v1150 = vunpack.c.h.s8.bf16 %v510
        %v1151 = vunpack.c.h.s8.bf16 %v511
        %v1152 = vunpack.c.h.s8.bf16 %v512
        %v1153 = vunpack.c.h.s8.bf16 %v513
        %v1154 = vunpack.c.h.s8.bf16 %v514
        %v1155 = vunpack.c.h.s8.bf16 %v515
        %v1156 = vunpack.c.h.s8.bf16 %v516
        %v1157 = vunpack.c.h.s8.bf16 %v517
        %v1158 = vunpack.c.h.s8.bf16 %v518
        %v1159 = vunpack.c.h.s8.bf16 %v519
        %v1160 = vunpack.c.h.s8.bf16 %v520
        %v1161 = vunpack.c.h.s8.bf16 %v521
        %v1162 = vunpack.c.l.s8.bf16 %v522
        %v1163 = vunpack.c.l.s8.bf16 %v523
        %v1164 = vunpack.c.l.s8.bf16 %v524
        %v1165 = vunpack.c.l.s8.bf16 %v525
        %v1166 = vunpack.c.l.s8.bf16 %v526
        %v1167 = vunpack.c.l.s8.bf16 %v527
        %v1168 = vunpack.c.l.s8.bf16 %v528
        %v1169 = vunpack.c.l.s8.bf16 %v529
        %v1170 = vunpack.c.l.s8.bf16 %v530
        %v1171 = vunpack.c.l.s8.bf16 %v531
        %v1172 = vunpack.c.l.s8.bf16 %v532
        %v1173 = vunpack.c.l.s8.bf16 %v533
        %v1174 = vunpack.c.l.s8.bf16 %v534
        %v1175 = vunpack.c.l.s8.bf16 %v535
        %v1176 = vunpack.c.l.s8.bf16 %v536
        %v1177 = vunpack.c.l.s8.bf16 %v537
        %v1178 = vunpack.c.h.s8.bf16 %v522
        %v1179 = vunpack.c.h.s8.bf16 %v523
        %v1180 = vunpack.c.h.s8.bf16 %v524
        %v1181 = vunpack.c.h.s8.bf16 %v525
        %v1182 = vunpack.c.h.s8.bf16 %v526
        %v1183 = vunpack.c.h.s8.bf16 %v527
        %v1184 = vunpack.c.h.s8.bf16 %v528
        %v1185 = vunpack.c.h.s8.bf16 %v529
        %v1186 = vunpack.c.h.s8.bf16 %v530
        %v1187 = vunpack.c.h.s8.bf16 %v531
        %v1188 = vunpack.c.h.s8.bf16 %v532
        %v1189 = vunpack.c.h.s8.bf16 %v533
        %v1190 = vunpack.c.h.s8.bf16 %v534
        %v1191 = vunpack.c.h.s8.bf16 %v535
        %v1192 = vunpack.c.h.s8.bf16 %v536
        %v1193 = vunpack.c.h.s8.bf16 %v537
        %v1194 = vunpack.c.l.s8.bf16 %v538
        %v1195 = vunpack.c.l.s8.bf16 %v539
        %v1196 = vunpack.c.l.s8.bf16 %v540
        %v1197 = vunpack.c.l.s8.bf16 %v541
        %v1198 = vunpack.c.l.s8.bf16 %v542
        %v1199 = vunpack.c.l.s8.bf16 %v543
        %v1200 = vunpack.c.l.s8.bf16 %v544
        %v1201 = vunpack.c.l.s8.bf16 %v545
        %v1202 = vunpack.c.l.s8.bf16 %v546
        %v1203 = vunpack.c.l.s8.bf16 %v547
        %v1204 = vunpack.c.l.s8.bf16 %v548
        %v1205 = vunpack.c.l.s8.bf16 %v549
        %v1206 = vunpack.c.l.s8.bf16 %v550
        %v1207 = vunpack.c.l.s8.bf16 %v551
        %v1208 = vunpack.c.l.s8.bf16 %v552
        %v1209 = vunpack.c.l.s8.bf16 %v553
        %v1210 = vunpack.c.h.s8.bf16 %v538
        %v1211 = vunpack.c.h.s8.bf16 %v539
        %v1212 = vunpack.c.h.s8.bf16 %v540
        %v1213 = vunpack.c.h.s8.bf16 %v541
        %v1214 = vunpack.c.h.s8.bf16 %v542
        %v1215 = vunpack.c.h.s8.bf16 %v543
        %v1216 = vunpack.c.h.s8.bf16 %v544
        %v1217 = vunpack.c.h.s8.bf16 %v545
        %v1218 = vunpack.c.h.s8.bf16 %v546
        %v1219 = vunpack.c.h.s8.bf16 %v547
        %v1220 = vunpack.c.h.s8.bf16 %v548
        %v1221 = vunpack.c.h.s8.bf16 %v549
        %v1222 = vunpack.c.h.s8.bf16 %v550
        %v1223 = vunpack.c.h.s8.bf16 %v551
        %v1224 = vunpack.c.h.s8.bf16 %v552
        %v1225 = vunpack.c.h.s8.bf16 %v553
        %v1226 = vunpack.c.l.s8.bf16 %v554
        %v1227 = vunpack.c.l.s8.bf16 %v555
        %v1228 = vunpack.c.l.s8.bf16 %v556
        %v1229 = vunpack.c.l.s8.bf16 %v557
        %v1230 = vunpack.c.l.s8.bf16 %v558
        %v1231 = vunpack.c.l.s8.bf16 %v559
        %v1232 = vunpack.c.l.s8.bf16 %v560
        %v1233 = vunpack.c.l.s8.bf16 %v561
        %v1234 = vunpack.c.l.s8.bf16 %v562
        %v1235 = vunpack.c.l.s8.bf16 %v563
        %v1236 = vunpack.c.l.s8.bf16 %v564
        %v1237 = vunpack.c.l.s8.bf16 %v565
        %v1238 = vunpack.c.l.s8.bf16 %v566
        %v1239 = vunpack.c.l.s8.bf16 %v567
        %v1240 = vunpack.c.l.s8.bf16 %v568
        %v1241 = vunpack.c.l.s8.bf16 %v569
        %v1242 = vunpack.c.h.s8.bf16 %v554
        %v1243 = vunpack.c.h.s8.bf16 %v555
        %v1244 = vunpack.c.h.s8.bf16 %v556
        %v1245 = vunpack.c.h.s8.bf16 %v557
        %v1246 = vunpack.c.h.s8.bf16 %v558
        %v1247 = vunpack.c.h.s8.bf16 %v559
        %v1248 = vunpack.c.h.s8.bf16 %v560
        %v1249 = vunpack.c.h.s8.bf16 %v561
        %v1250 = vunpack.c.h.s8.bf16 %v562
        %v1251 = vunpack.c.h.s8.bf16 %v563
        %v1252 = vunpack.c.h.s8.bf16 %v564
        %v1253 = vunpack.c.h.s8.bf16 %v565
        %v1254 = vunpack.c.h.s8.bf16 %v566
        %v1255 = vunpack.c.h.s8.bf16 %v567
        %v1256 = vunpack.c.h.s8.bf16 %v568
        %v1257 = vunpack.c.h.s8.bf16 %v569
        %v1258 = vunpack.c.l.s8.bf16 %v570
        %v1259 = vunpack.c.l.s8.bf16 %v571
        %v1260 = vunpack.c.l.s8.bf16 %v572
        %v1261 = vunpack.c.l.s8.bf16 %v573
        %v1262 = vunpack.c.l.s8.bf16 %v574
        %v1263 = vunpack.c.l.s8.bf16 %v575
        %v1264 = vunpack.c.l.s8.bf16 %v576
        %v1265 = vunpack.c.l.s8.bf16 %v577
        %v1266 = vunpack.c.l.s8.bf16 %v578
        %v1267 = vunpack.c.l.s8.bf16 %v579
        %v1268 = vunpack.c.l.s8.bf16 %v580
        %v1269 = vunpack.c.l.s8.bf16 %v581
        %v1270 = vunpack.c.l.s8.bf16 %v582
        %v1271 = vunpack.c.l.s8.bf16 %v583
        %v1272 = vunpack.c.l.s8.bf16 %v584
        %v1273 = vunpack.c.l.s8.bf16 %v585
        %v1274 = vunpack.c.h.s8.bf16 %v570
        %v1275 = vunpack.c.h.s8.bf16 %v571
        %v1276 = vunpack.c.h.s8.bf16 %v572
        %v1277 = vunpack.c.h.s8.bf16 %v573
        %v1278 = vunpack.c.h.s8.bf16 %v574
        %v1279 = vunpack.c.h.s8.bf16 %v575
        %v1280 = vunpack.c.h.s8.bf16 %v576
        %v1281 = vunpack.c.h.s8.bf16 %v577
        %v1282 = vunpack.c.h.s8.bf16 %v578
        %v1283 = vunpack.c.h.s8.bf16 %v579
        %v1284 = vunpack.c.h.s8.bf16 %v580
        %v1285 = vunpack.c.h.s8.bf16 %v581
        %v1286 = vunpack.c.h.s8.bf16 %v582
        %v1287 = vunpack.c.h.s8.bf16 %v583
        %v1288 = vunpack.c.h.s8.bf16 %v584
        %v1289 = vunpack.c.h.s8.bf16 %v585
        %v1290 = vunpack.c.l.s8.bf16 %v586
        %v1291 = vunpack.c.l.s8.bf16 %v587
        %v1292 = vunpack.c.l.s8.bf16 %v588
        %v1293 = vunpack.c.l.s8.bf16 %v589
        %v1294 = vunpack.c.l.s8.bf16 %v590
        %v1295 = vunpack.c.l.s8.bf16 %v591
        %v1296 = vunpack.c.l.s8.bf16 %v592
        %v1297 = vunpack.c.l.s8.bf16 %v593
        %v1298 = vunpack.c.l.s8.bf16 %v594
        %v1299 = vunpack.c.l.s8.bf16 %v595
        %v1300 = vunpack.c.l.s8.bf16 %v596
        %v1301 = vunpack.c.l.s8.bf16 %v597
        %v1302 = vunpack.c.l.s8.bf16 %v598
        %v1303 = vunpack.c.l.s8.bf16 %v599
        %v1304 = vunpack.c.l.s8.bf16 %v600
        %v1305 = vunpack.c.l.s8.bf16 %v601
        %v1306 = vunpack.c.h.s8.bf16 %v586
        %v1307 = vunpack.c.h.s8.bf16 %v587
        %v1308 = vunpack.c.h.s8.bf16 %v588
        %v1309 = vunpack.c.h.s8.bf16 %v589
        %v1310 = vunpack.c.h.s8.bf16 %v590
        %v1311 = vunpack.c.h.s8.bf16 %v591
        %v1312 = vunpack.c.h.s8.bf16 %v592
        %v1313 = vunpack.c.h.s8.bf16 %v593
        %v1314 = vunpack.c.h.s8.bf16 %v594
        %v1315 = vunpack.c.h.s8.bf16 %v595
        %v1316 = vunpack.c.h.s8.bf16 %v596
        %v1317 = vunpack.c.h.s8.bf16 %v597
        %v1318 = vunpack.c.h.s8.bf16 %v598
        %v1319 = vunpack.c.h.s8.bf16 %v599
        %v1320 = vunpack.c.h.s8.bf16 %v600
        %v1321 = vunpack.c.h.s8.bf16 %v601
        %v1322 = vunpack.c.l.s8.bf16 %v602
        %v1323 = vunpack.c.l.s8.bf16 %v603
        %v1324 = vunpack.c.l.s8.bf16 %v604
        %v1325 = vunpack.c.l.s8.bf16 %v605
        %v1326 = vunpack.c.l.s8.bf16 %v606
        %v1327 = vunpack.c.l.s8.bf16 %v607
        %v1328 = vunpack.c.l.s8.bf16 %v608
        %v1329 = vunpack.c.l.s8.bf16 %v609
        %v1330 = vunpack.c.l.s8.bf16 %v610
        %v1331 = vunpack.c.l.s8.bf16 %v611
        %v1332 = vunpack.c.l.s8.bf16 %v612
        %v1333 = vunpack.c.l.s8.bf16 %v613
        %v1334 = vunpack.c.l.s8.bf16 %v614
        %v1335 = vunpack.c.l.s8.bf16 %v615
        %v1336 = vunpack.c.l.s8.bf16 %v616
        %v1337 = vunpack.c.l.s8.bf16 %v617
        %v1338 = vunpack.c.h.s8.bf16 %v602
        %v1339 = vunpack.c.h.s8.bf16 %v603
        %v1340 = vunpack.c.h.s8.bf16 %v604
        %v1341 = vunpack.c.h.s8.bf16 %v605
        %v1342 = vunpack.c.h.s8.bf16 %v606
        %v1343 = vunpack.c.h.s8.bf16 %v607
        %v1344 = vunpack.c.h.s8.bf16 %v608
        %v1345 = vunpack.c.h.s8.bf16 %v609
        %v1346 = vunpack.c.h.s8.bf16 %v610
        %v1347 = vunpack.c.h.s8.bf16 %v611
        %v1348 = vunpack.c.h.s8.bf16 %v612
        %v1349 = vunpack.c.h.s8.bf16 %v613
        %v1350 = vunpack.c.h.s8.bf16 %v614
        %v1351 = vunpack.c.h.s8.bf16 %v615
        %v1352 = vunpack.c.h.s8.bf16 %v616
        %v1353 = vunpack.c.h.s8.bf16 %v617
        %v1354 = vunpack.c.l.s8.bf16 %v618
        %v1355 = vunpack.c.l.s8.bf16 %v619
        %v1356 = vunpack.c.l.s8.bf16 %v620
        %v1357 = vunpack.c.l.s8.bf16 %v621
        %v1358 = vunpack.c.l.s8.bf16 %v622
        %v1359 = vunpack.c.l.s8.bf16 %v623
        %v1360 = vunpack.c.l.s8.bf16 %v624
        %v1361 = vunpack.c.l.s8.bf16 %v625
        %v1362 = vunpack.c.l.s8.bf16 %v626
        %v1363 = vunpack.c.l.s8.bf16 %v627
        %v1364 = vunpack.c.l.s8.bf16 %v628
        %v1365 = vunpack.c.l.s8.bf16 %v629
        %v1366 = vunpack.c.l.s8.bf16 %v630
        %v1367 = vunpack.c.l.s8.bf16 %v631
        %v1368 = vunpack.c.l.s8.bf16 %v632
        %v1369 = vunpack.c.l.s8.bf16 %v633
        %v1370 = vunpack.c.h.s8.bf16 %v618
        %v1371 = vunpack.c.h.s8.bf16 %v619
        %v1372 = vunpack.c.h.s8.bf16 %v620
        %v1373 = vunpack.c.h.s8.bf16 %v621
        %v1374 = vunpack.c.h.s8.bf16 %v622
        %v1375 = vunpack.c.h.s8.bf16 %v623
        %v1376 = vunpack.c.h.s8.bf16 %v624
        %v1377 = vunpack.c.h.s8.bf16 %v625
        %v1378 = vunpack.c.h.s8.bf16 %v626
        %v1379 = vunpack.c.h.s8.bf16 %v627
        %v1380 = vunpack.c.h.s8.bf16 %v628
        %v1381 = vunpack.c.h.s8.bf16 %v629
        %v1382 = vunpack.c.h.s8.bf16 %v630
        %v1383 = vunpack.c.h.s8.bf16 %v631
        %v1384 = vunpack.c.h.s8.bf16 %v632
        %v1385 = vunpack.c.h.s8.bf16 %v633
        %v1386 = vunpack.c.l.s8.bf16 %v634
        %v1387 = vunpack.c.l.s8.bf16 %v635
        %v1388 = vunpack.c.l.s8.bf16 %v636
        %v1389 = vunpack.c.l.s8.bf16 %v637
        %v1390 = vunpack.c.l.s8.bf16 %v638
        %v1391 = vunpack.c.l.s8.bf16 %v639
        %v1392 = vunpack.c.l.s8.bf16 %v640
        %v1393 = vunpack.c.l.s8.bf16 %v641
        %v1394 = vunpack.c.l.s8.bf16 %v642
        %v1395 = vunpack.c.l.s8.bf16 %v643
        %v1396 = vunpack.c.l.s8.bf16 %v644
        %v1397 = vunpack.c.l.s8.bf16 %v645
        %v1398 = vunpack.c.l.s8.bf16 %v646
        %v1399 = vunpack.c.l.s8.bf16 %v647
        %v1400 = vunpack.c.l.s8.bf16 %v648
        %v1401 = vunpack.c.l.s8.bf16 %v649
        %v1402 = vunpack.c.h.s8.bf16 %v634
        %v1403 = vunpack.c.h.s8.bf16 %v635
        %v1404 = vunpack.c.h.s8.bf16 %v636
        %v1405 = vunpack.c.h.s8.bf16 %v637
        %v1406 = vunpack.c.h.s8.bf16 %v638
        %v1407 = vunpack.c.h.s8.bf16 %v639
        %v1408 = vunpack.c.h.s8.bf16 %v640
        %v1409 = vunpack.c.h.s8.bf16 %v641
        %v1410 = vunpack.c.h.s8.bf16 %v642
        %v1411 = vunpack.c.h.s8.bf16 %v643
        %v1412 = vunpack.c.h.s8.bf16 %v644
        %v1413 = vunpack.c.h.s8.bf16 %v645
        %v1414 = vunpack.c.h.s8.bf16 %v646
        %v1415 = vunpack.c.h.s8.bf16 %v647
        %v1416 = vunpack.c.h.s8.bf16 %v648
        %v1417 = vunpack.c.h.s8.bf16 %v649
        %v1418 = vunpack.c.l.s8.bf16 %v650
        %v1419 = vunpack.c.l.s8.bf16 %v651
        %v1420 = vunpack.c.l.s8.bf16 %v652
        %v1421 = vunpack.c.l.s8.bf16 %v653
        %v1422 = vunpack.c.l.s8.bf16 %v654
        %v1423 = vunpack.c.l.s8.bf16 %v655
        %v1424 = vunpack.c.l.s8.bf16 %v656
        %v1425 = vunpack.c.l.s8.bf16 %v657
        %v1426 = vunpack.c.l.s8.bf16 %v658
        %v1427 = vunpack.c.l.s8.bf16 %v659
        %v1428 = vunpack.c.l.s8.bf16 %v660
        %v1429 = vunpack.c.l.s8.bf16 %v661
        %v1430 = vunpack.c.l.s8.bf16 %v662
        %v1431 = vunpack.c.l.s8.bf16 %v663
        %v1432 = vunpack.c.l.s8.bf16 %v664
        %v1433 = vunpack.c.l.s8.bf16 %v665
        %v1434 = vunpack.c.h.s8.bf16 %v650
        %v1435 = vunpack.c.h.s8.bf16 %v651
        %v1436 = vunpack.c.h.s8.bf16 %v652
        %v1437 = vunpack.c.h.s8.bf16 %v653
        %v1438 = vunpack.c.h.s8.bf16 %v654
        %v1439 = vunpack.c.h.s8.bf16 %v655
        %v1440 = vunpack.c.h.s8.bf16 %v656
        %v1441 = vunpack.c.h.s8.bf16 %v657
        %v1442 = vunpack.c.h.s8.bf16 %v658
        %v1443 = vunpack.c.h.s8.bf16 %v659
        %v1444 = vunpack.c.h.s8.bf16 %v660
        %v1445 = vunpack.c.h.s8.bf16 %v661
        %v1446 = vunpack.c.h.s8.bf16 %v662
        %v1447 = vunpack.c.h.s8.bf16 %v663
        %v1448 = vunpack.c.h.s8.bf16 %v664
        %v1449 = vunpack.c.h.s8.bf16 %v665
        %v1450 = vunpack.c.l.s8.bf16 %v666
        %v1451 = vunpack.c.l.s8.bf16 %v667
        %v1452 = vunpack.c.l.s8.bf16 %v668
        %v1453 = vunpack.c.l.s8.bf16 %v669
        %v1454 = vunpack.c.l.s8.bf16 %v670
        %v1455 = vunpack.c.l.s8.bf16 %v671
        %v1456 = vunpack.c.l.s8.bf16 %v672
        %v1457 = vunpack.c.l.s8.bf16 %v673
        %v1458 = vunpack.c.l.s8.bf16 %v674
        %v1459 = vunpack.c.l.s8.bf16 %v675
        %v1460 = vunpack.c.l.s8.bf16 %v676
        %v1461 = vunpack.c.l.s8.bf16 %v677
        %v1462 = vunpack.c.l.s8.bf16 %v678
        %v1463 = vunpack.c.l.s8.bf16 %v679
        %v1464 = vunpack.c.l.s8.bf16 %v680
        %v1465 = vunpack.c.l.s8.bf16 %v681
        %v1466 = vunpack.c.h.s8.bf16 %v666
        %v1467 = vunpack.c.h.s8.bf16 %v667
        %v1468 = vunpack.c.h.s8.bf16 %v668
        %v1469 = vunpack.c.h.s8.bf16 %v669
        %v1470 = vunpack.c.h.s8.bf16 %v670
        %v1471 = vunpack.c.h.s8.bf16 %v671
        %v1472 = vunpack.c.h.s8.bf16 %v672
        %v1473 = vunpack.c.h.s8.bf16 %v673
        %v1474 = vunpack.c.h.s8.bf16 %v674
        %v1475 = vunpack.c.h.s8.bf16 %v675
        %v1476 = vunpack.c.h.s8.bf16 %v676
        %v1477 = vunpack.c.h.s8.bf16 %v677
        %v1478 = vunpack.c.h.s8.bf16 %v678
        %v1479 = vunpack.c.h.s8.bf16 %v679
        %v1480 = vunpack.c.h.s8.bf16 %v680
        %v1481 = vunpack.c.h.s8.bf16 %v681
        %v1482 = vunpack.c.l.s8.bf16 %v682
        %v1483 = vunpack.c.l.s8.bf16 %v683
        %v1484 = vunpack.c.l.s8.bf16 %v684
        %v1485 = vunpack.c.l.s8.bf16 %v685
        %v1486 = vunpack.c.l.s8.bf16 %v686
        %v1487 = vunpack.c.l.s8.bf16 %v687
        %v1488 = vunpack.c.l.s8.bf16 %v688
        %v1489 = vunpack.c.l.s8.bf16 %v689
        %v1490 = vunpack.c.l.s8.bf16 %v690
        %v1491 = vunpack.c.l.s8.bf16 %v691
        %v1492 = vunpack.c.l.s8.bf16 %v692
        %v1493 = vunpack.c.l.s8.bf16 %v693
        %v1494 = vunpack.c.l.s8.bf16 %v694
        %v1495 = vunpack.c.l.s8.bf16 %v695
        %v1496 = vunpack.c.l.s8.bf16 %v696
        %v1497 = vunpack.c.l.s8.bf16 %v697
        %v1498 = vunpack.c.h.s8.bf16 %v682
        %v1499 = vunpack.c.h.s8.bf16 %v683
        %v1500 = vunpack.c.h.s8.bf16 %v684
        %v1501 = vunpack.c.h.s8.bf16 %v685
        %v1502 = vunpack.c.h.s8.bf16 %v686
        %v1503 = vunpack.c.h.s8.bf16 %v687
        %v1504 = vunpack.c.h.s8.bf16 %v688
        %v1505 = vunpack.c.h.s8.bf16 %v689
        %v1506 = vunpack.c.h.s8.bf16 %v690
        %v1507 = vunpack.c.h.s8.bf16 %v691
        %v1508 = vunpack.c.h.s8.bf16 %v692
        %v1509 = vunpack.c.h.s8.bf16 %v693
        %v1510 = vunpack.c.h.s8.bf16 %v694
        %v1511 = vunpack.c.h.s8.bf16 %v695
        %v1512 = vunpack.c.h.s8.bf16 %v696
        %v1513 = vunpack.c.h.s8.bf16 %v697
        %v1514 = vunpack.c.l.s8.bf16 %v698
        %v1515 = vunpack.c.l.s8.bf16 %v699
        %v1516 = vunpack.c.l.s8.bf16 %v700
        %v1517 = vunpack.c.l.s8.bf16 %v701
        %v1518 = vunpack.c.l.s8.bf16 %v702
        %v1519 = vunpack.c.l.s8.bf16 %v703
        %v1520 = vunpack.c.l.s8.bf16 %v704
        %v1521 = vunpack.c.l.s8.bf16 %v705
        %v1522 = vunpack.c.l.s8.bf16 %v706
        %v1523 = vunpack.c.l.s8.bf16 %v707
        %v1524 = vunpack.c.l.s8.bf16 %v708
        %v1525 = vunpack.c.l.s8.bf16 %v709
        %v1526 = vunpack.c.l.s8.bf16 %v710
        %v1527 = vunpack.c.l.s8.bf16 %v711
        %v1528 = vunpack.c.l.s8.bf16 %v712
        %v1529 = vunpack.c.l.s8.bf16 %v713
        %v1530 = vunpack.c.h.s8.bf16 %v698
        %v1531 = vunpack.c.h.s8.bf16 %v699
        %v1532 = vunpack.c.h.s8.bf16 %v700
        %v1533 = vunpack.c.h.s8.bf16 %v701
        %v1534 = vunpack.c.h.s8.bf16 %v702
        %v1535 = vunpack.c.h.s8.bf16 %v703
        %v1536 = vunpack.c.h.s8.bf16 %v704
        %v1537 = vunpack.c.h.s8.bf16 %v705
        %v1538 = vunpack.c.h.s8.bf16 %v706
        %v1539 = vunpack.c.h.s8.bf16 %v707
        %v1540 = vunpack.c.h.s8.bf16 %v708
        %v1541 = vunpack.c.h.s8.bf16 %v709
        %v1542 = vunpack.c.h.s8.bf16 %v710
        %v1543 = vunpack.c.h.s8.bf16 %v711
        %v1544 = vunpack.c.h.s8.bf16 %v712
        %v1545 = vunpack.c.h.s8.bf16 %v713
        %v1546 = vunpack.c.l.s8.bf16 %v714
        %v1547 = vunpack.c.l.s8.bf16 %v715
        %v1548 = vunpack.c.l.s8.bf16 %v716
        %v1549 = vunpack.c.l.s8.bf16 %v717
        %v1550 = vunpack.c.l.s8.bf16 %v718
        %v1551 = vunpack.c.l.s8.bf16 %v719
        %v1552 = vunpack.c.l.s8.bf16 %v720
        %v1553 = vunpack.c.l.s8.bf16 %v721
        %v1554 = vunpack.c.l.s8.bf16 %v722
        %v1555 = vunpack.c.l.s8.bf16 %v723
        %v1556 = vunpack.c.l.s8.bf16 %v724
        %v1557 = vunpack.c.l.s8.bf16 %v725
        %v1558 = vunpack.c.l.s8.bf16 %v726
        %v1559 = vunpack.c.l.s8.bf16 %v727
        %v1560 = vunpack.c.l.s8.bf16 %v728
        %v1561 = vunpack.c.l.s8.bf16 %v729
        %v1562 = vunpack.c.h.s8.bf16 %v714
        %v1563 = vunpack.c.h.s8.bf16 %v715
        %v1564 = vunpack.c.h.s8.bf16 %v716
        %v1565 = vunpack.c.h.s8.bf16 %v717
        %v1566 = vunpack.c.h.s8.bf16 %v718
        %v1567 = vunpack.c.h.s8.bf16 %v719
        %v1568 = vunpack.c.h.s8.bf16 %v720
        %v1569 = vunpack.c.h.s8.bf16 %v721
        %v1570 = vunpack.c.h.s8.bf16 %v722
        %v1571 = vunpack.c.h.s8.bf16 %v723
        %v1572 = vunpack.c.h.s8.bf16 %v724
        %v1573 = vunpack.c.h.s8.bf16 %v725
        %v1574 = vunpack.c.h.s8.bf16 %v726
        %v1575 = vunpack.c.h.s8.bf16 %v727
        %v1576 = vunpack.c.h.s8.bf16 %v728
        %v1577 = vunpack.c.h.s8.bf16 %v729
        %v1578 = vunpack.c.l.s8.bf16 %v730
        %v1579 = vunpack.c.l.s8.bf16 %v731
        %v1580 = vunpack.c.l.s8.bf16 %v732
        %v1581 = vunpack.c.l.s8.bf16 %v733
        %v1582 = vunpack.c.l.s8.bf16 %v734
        %v1583 = vunpack.c.l.s8.bf16 %v735
        %v1584 = vunpack.c.l.s8.bf16 %v736
        %v1585 = vunpack.c.l.s8.bf16 %v737
        %v1586 = vunpack.c.l.s8.bf16 %v738
        %v1587 = vunpack.c.l.s8.bf16 %v739
        %v1588 = vunpack.c.l.s8.bf16 %v740
        %v1589 = vunpack.c.l.s8.bf16 %v741
        %v1590 = vunpack.c.l.s8.bf16 %v742
        %v1591 = vunpack.c.l.s8.bf16 %v743
        %v1592 = vunpack.c.l.s8.bf16 %v744
        %v1593 = vunpack.c.l.s8.bf16 %v745
        %v1594 = vunpack.c.h.s8.bf16 %v730
        %v1595 = vunpack.c.h.s8.bf16 %v731
        %v1596 = vunpack.c.h.s8.bf16 %v732
        %v1597 = vunpack.c.h.s8.bf16 %v733
        %v1598 = vunpack.c.h.s8.bf16 %v734
        %v1599 = vunpack.c.h.s8.bf16 %v735
        %v1600 = vunpack.c.h.s8.bf16 %v736
        %v1601 = vunpack.c.h.s8.bf16 %v737
        %v1602 = vunpack.c.h.s8.bf16 %v738
        %v1603 = vunpack.c.h.s8.bf16 %v739
        %v1604 = vunpack.c.h.s8.bf16 %v740
        %v1605 = vunpack.c.h.s8.bf16 %v741
        %v1606 = vunpack.c.h.s8.bf16 %v742
        %v1607 = vunpack.c.h.s8.bf16 %v743
        %v1608 = vunpack.c.h.s8.bf16 %v744
        %v1609 = vunpack.c.h.s8.bf16 %v745
        %v1610 = vunpack.c.l.s8.bf16 %v746
        %v1611 = vunpack.c.l.s8.bf16 %v747
        %v1612 = vunpack.c.l.s8.bf16 %v748
        %v1613 = vunpack.c.l.s8.bf16 %v749
        %v1614 = vunpack.c.l.s8.bf16 %v750
        %v1615 = vunpack.c.l.s8.bf16 %v751
        %v1616 = vunpack.c.l.s8.bf16 %v752
        %v1617 = vunpack.c.l.s8.bf16 %v753
        %v1618 = vunpack.c.l.s8.bf16 %v754
        %v1619 = vunpack.c.l.s8.bf16 %v755
        %v1620 = vunpack.c.l.s8.bf16 %v756
        %v1621 = vunpack.c.l.s8.bf16 %v757
        %v1622 = vunpack.c.l.s8.bf16 %v758
        %v1623 = vunpack.c.l.s8.bf16 %v759
        %v1624 = vunpack.c.l.s8.bf16 %v760
        %v1625 = vunpack.c.l.s8.bf16 %v761
        %v1626 = vunpack.c.h.s8.bf16 %v746
        %v1627 = vunpack.c.h.s8.bf16 %v747
        %v1628 = vunpack.c.h.s8.bf16 %v748
        %v1629 = vunpack.c.h.s8.bf16 %v749
        %v1630 = vunpack.c.h.s8.bf16 %v750
        %v1631 = vunpack.c.h.s8.bf16 %v751
        %v1632 = vunpack.c.h.s8.bf16 %v752
        %v1633 = vunpack.c.h.s8.bf16 %v753
        %v1634 = vunpack.c.h.s8.bf16 %v754
        %v1635 = vunpack.c.h.s8.bf16 %v755
        %v1636 = vunpack.c.h.s8.bf16 %v756
        %v1637 = vunpack.c.h.s8.bf16 %v757
        %v1638 = vunpack.c.h.s8.bf16 %v758
        %v1639 = vunpack.c.h.s8.bf16 %v759
        %v1640 = vunpack.c.h.s8.bf16 %v760
        %v1641 = vunpack.c.h.s8.bf16 %v761
        %v1642 = vunpack.c.l.s8.bf16 %v762
        %v1643 = vunpack.c.l.s8.bf16 %v763
        %v1644 = vunpack.c.l.s8.bf16 %v764
        %v1645 = vunpack.c.l.s8.bf16 %v765
        %v1646 = vunpack.c.l.s8.bf16 %v766
        %v1647 = vunpack.c.l.s8.bf16 %v767
        %v1648 = vunpack.c.l.s8.bf16 %v768
        %v1649 = vunpack.c.l.s8.bf16 %v769
        %v1650 = vunpack.c.l.s8.bf16 %v770
        %v1651 = vunpack.c.l.s8.bf16 %v771
        %v1652 = vunpack.c.l.s8.bf16 %v772
        %v1653 = vunpack.c.l.s8.bf16 %v773
        %v1654 = vunpack.c.l.s8.bf16 %v774
        %v1655 = vunpack.c.l.s8.bf16 %v775
        %v1656 = vunpack.c.l.s8.bf16 %v776
        %v1657 = vunpack.c.l.s8.bf16 %v777
        %v1658 = vunpack.c.h.s8.bf16 %v762
        %v1659 = vunpack.c.h.s8.bf16 %v763
        %v1660 = vunpack.c.h.s8.bf16 %v764
        %v1661 = vunpack.c.h.s8.bf16 %v765
        %v1662 = vunpack.c.h.s8.bf16 %v766
        %v1663 = vunpack.c.h.s8.bf16 %v767
        %v1664 = vunpack.c.h.s8.bf16 %v768
        %v1665 = vunpack.c.h.s8.bf16 %v769
        %v1666 = vunpack.c.h.s8.bf16 %v770
        %v1667 = vunpack.c.h.s8.bf16 %v771
        %v1668 = vunpack.c.h.s8.bf16 %v772
        %v1669 = vunpack.c.h.s8.bf16 %v773
        %v1670 = vunpack.c.h.s8.bf16 %v774
        %v1671 = vunpack.c.h.s8.bf16 %v775
        %v1672 = vunpack.c.h.s8.bf16 %v776
        %v1673 = vunpack.c.h.s8.bf16 %v777
        %v1675 = vcombine.high %v329, %v329
        %v1677 = vunpack.c.l.s4 1966171168
        %v1678 = vunpack.c.0.s8 %v1677
        %v1679 = vlaneseq
        %v1680 = vshrl.u32 %v1679, 7
        %v1681 = vsub.s32 %v1678, %v1680
        %v1682 = vrot.slane %v329, %v1681
        %v1684 = vunpack.c.l.s4 1966171168
        %v1685 = vunpack.c.0.s8 %v1684
        %v1686 = vlaneseq
        %v1687 = vshrl.u32 %v1686, 7
        %v1688 = vsub.s32 %v1685, %v1687
        %v1689 = vrot.slane %v1675, %v1688
        %v1690 = vcombine.high %v1682, %v1682
        %v1691 = vcombine.high %v1689, %v1689
        %v1693 = vunpack.c.l.s4 1966171168
        %v1694 = vunpack.c.0.s8 %v1693
        %v1695 = vlaneseq
        %v1696 = vshrl.u32 %v1695, 7
        %v1697 = vsub.s32 %v1694, %v1696
        %v1698 = vrot.slane %v1682, %v1697
        %v1700 = vunpack.c.l.s4 1966171168
        %v1701 = vunpack.c.0.s8 %v1700
        %v1702 = vlaneseq
        %v1703 = vshrl.u32 %v1702, 7
        %v1704 = vsub.s32 %v1701, %v1703
        %v1705 = vrot.slane %v1689, %v1704
        %v1707 = vunpack.c.l.s4 1966171168
        %v1708 = vunpack.c.0.s8 %v1707
        %v1709 = vlaneseq
        %v1710 = vshrl.u32 %v1709, 7
        %v1711 = vsub.s32 %v1708, %v1710
        %v1712 = vrot.slane %v1690, %v1711
        %v1714 = vunpack.c.l.s4 1966171168
        %v1715 = vunpack.c.0.s8 %v1714
        %v1716 = vlaneseq
        %v1717 = vshrl.u32 %v1716, 7
        %v1718 = vsub.s32 %v1715, %v1717
        %v1719 = vrot.slane %v1691, %v1718
        %v1720 = vcombine.high %v1698, %v1698
        %v1721 = vcombine.high %v1705, %v1705
        %v1722 = vcombine.high %v1712, %v1712
        %1730 = vmatprep.subr.bf16.mxu0 %v891
        %1731 = vmatpush1.bf16.msra.mxu0 %v890
        %1732 = vmatprep.subr.bf16.mxu0 %v875
        %1733 = vmatpush1.bf16.msra.mxu0 %v874
        %1734 = vmatprep.subr.bf16.mxu0 %v859
        %1735 = vmatpush1.bf16.msra.mxu0 %v858
        %1736 = vmatprep.subr.bf16.mxu0 %v843
        %1737 = vmatpush1.bf16.msra.mxu0 %v842
        %1738 = vmatprep.subr.bf16.mxu0 %v827
        %1739 = vmatpush1.bf16.msra.mxu0 %v826
        %1740 = vmatprep.subr.bf16.mxu0 %v811
        %1741 = vmatpush1.bf16.msra.mxu0 %v810
        %1742 = vmatprep.subr.bf16.mxu0 %v795
        %1743 = vmatpush1.bf16.msra.mxu0 %v794
        %1744 = vmatprep.subr.bf16.mxu0 %v779
        %1745 = vmatpush1.bf16.msra.mxu0 %v778
        %1746 = vmatprep.subr.bf16.mxu0 %v1019
        %1747 = vmatpush2.bf16.msra.mxu0 %v1018
        %1748 = vmatprep.subr.bf16.mxu0 %v1003
        %1749 = vmatpush2.bf16.msra.mxu0 %v1002
        %1750 = vmatprep.subr.bf16.mxu0 %v987
        %1751 = vmatpush2.bf16.msra.mxu0 %v986
        %1752 = vmatprep.subr.bf16.mxu0 %v971
        %1753 = vmatpush2.bf16.msra.mxu0 %v970
        %1754 = vmatprep.subr.bf16.mxu0 %v955
        %1755 = vmatpush2.bf16.msra.mxu0 %v954
        %1756 = vmatprep.subr.bf16.mxu0 %v939
        %1757 = vmatpush2.bf16.msra.mxu0 %v938
        %1758 = vmatprep.subr.bf16.mxu0 %v923
        %1759 = vmatpush2.bf16.msra.mxu0 %v922
        %1760 = vmatprep.subr.bf16.mxu0 %v907
        %1761 = vmatpush2.bf16.msra.mxu0 %v906
        %1762 = vmatprep.mubr.bf16.mxu0 %v1712
        %1763 = vmatmul.mubr.bf16.gmra.mxu0 %v1698
        %v1764 = vpop.f32.mrf.mxu0
        %v1765 = vadd.f32 0.0, %v1764
        %v1766 = vpop.f32.mrf.mxu0
        %v1767 = vadd.f32 0.0, %v1766
        %v1768 = vpop.f32.mrf.mxu0
        %v1769 = vpop.f32.mrf.mxu0
        %1770 = vdwg.mxu0
        %1771 = vmatprep.subr.bf16.mxu0 %v1147
        %1772 = vmatpush1.bf16.msra.mxu0 %v1146
        %1773 = vmatprep.subr.bf16.mxu0 %v1131
        %1774 = vmatpush1.bf16.msra.mxu0 %v1130
        %1775 = vmatprep.subr.bf16.mxu0 %v1115
        %1776 = vmatpush1.bf16.msra.mxu0 %v1114
        %1777 = vmatprep.subr.bf16.mxu0 %v1099
        %1778 = vmatpush1.bf16.msra.mxu0 %v1098
        %1779 = vmatprep.subr.bf16.mxu0 %v1083
        %1780 = vmatpush1.bf16.msra.mxu0 %v1082
        %1781 = vmatprep.subr.bf16.mxu0 %v1067
        %1782 = vmatpush1.bf16.msra.mxu0 %v1066
        %1783 = vmatprep.subr.bf16.mxu0 %v1051
        %1784 = vmatpush1.bf16.msra.mxu0 %v1050
        %1785 = vmatprep.subr.bf16.mxu0 %v1035
        %1786 = vmatpush1.bf16.msra.mxu0 %v1034
        %1787 = vmatprep.subr.bf16.mxu0 %v1275
        %1788 = vmatpush2.bf16.msra.mxu0 %v1274
        %1789 = vmatprep.subr.bf16.mxu0 %v1259
        %1790 = vmatpush2.bf16.msra.mxu0 %v1258
        %1791 = vmatprep.subr.bf16.mxu0 %v1243
        %1792 = vmatpush2.bf16.msra.mxu0 %v1242
        %1793 = vmatprep.subr.bf16.mxu0 %v1227
        %1794 = vmatpush2.bf16.msra.mxu0 %v1226
        %1795 = vmatprep.subr.bf16.mxu0 %v1211
        %1796 = vmatpush2.bf16.msra.mxu0 %v1210
        %1797 = vmatprep.subr.bf16.mxu0 %v1195
        %1798 = vmatpush2.bf16.msra.mxu0 %v1194
        %1799 = vmatprep.subr.bf16.mxu0 %v1179
        %1800 = vmatpush2.bf16.msra.mxu0 %v1178
        %1801 = vmatprep.subr.bf16.mxu0 %v1163
        %1802 = vmatpush2.bf16.msra.mxu0 %v1162
        %1803 = vmatprep.mubr.bf16.mxu0 %v1722
        %1804 = vmatmul.mubr.bf16.gmra.mxu0 %v1720
        %v1805 = vpop.f32.mrf.mxu0
        %v1806 = vadd.f32 %v1765, %v1805
        %v1807 = vpop.f32.mrf.mxu0
        %v1808 = vadd.f32 %v1767, %v1807
        %v1809 = vpop.f32.mrf.mxu0
        %v1810 = vpop.f32.mrf.mxu0
        %1811 = vdwg.mxu0
        %1812 = vmatprep.subr.bf16.mxu0 %v1403
        %1813 = vmatpush1.bf16.msra.mxu0 %v1402
        %1814 = vmatprep.subr.bf16.mxu0 %v1387
        %1815 = vmatpush1.bf16.msra.mxu0 %v1386
        %1816 = vmatprep.subr.bf16.mxu0 %v1371
        %1817 = vmatpush1.bf16.msra.mxu0 %v1370
        %1818 = vmatprep.subr.bf16.mxu0 %v1355
        %1819 = vmatpush1.bf16.msra.mxu0 %v1354
        %1820 = vmatprep.subr.bf16.mxu0 %v1339
        %1821 = vmatpush1.bf16.msra.mxu0 %v1338
        %1822 = vmatprep.subr.bf16.mxu0 %v1323
        %1823 = vmatpush1.bf16.msra.mxu0 %v1322
        %1824 = vmatprep.subr.bf16.mxu0 %v1307
        %1825 = vmatpush1.bf16.msra.mxu0 %v1306
        %1826 = vmatprep.subr.bf16.mxu0 %v1291
        %1827 = vmatpush1.bf16.msra.mxu0 %v1290
        %1828 = vmatprep.subr.bf16.mxu0 %v1531
        %1829 = vmatpush2.bf16.msra.mxu0 %v1530
        %1830 = vmatprep.subr.bf16.mxu0 %v1515
        %1831 = vmatpush2.bf16.msra.mxu0 %v1514
        %1832 = vmatprep.subr.bf16.mxu0 %v1499
        %1833 = vmatpush2.bf16.msra.mxu0 %v1498
        %1834 = vmatprep.subr.bf16.mxu0 %v1483
        %1835 = vmatpush2.bf16.msra.mxu0 %v1482
        %1836 = vmatprep.subr.bf16.mxu0 %v1467
        %1837 = vmatpush2.bf16.msra.mxu0 %v1466
        %1838 = vmatprep.subr.bf16.mxu0 %v1451
        %1839 = vmatpush2.bf16.msra.mxu0 %v1450
        %1840 = vmatprep.subr.bf16.mxu0 %v1435
        %1841 = vmatpush2.bf16.msra.mxu0 %v1434
        %1842 = vmatprep.subr.bf16.mxu0 %v1419
        %1843 = vmatpush2.bf16.msra.mxu0 %v1418
        %1844 = vmatprep.mubr.bf16.mxu0 %v1719
        %1845 = vmatmul.mubr.bf16.gmra.mxu0 %v1705
        %v1846 = vpop.f32.mrf.mxu0
        %v1847 = vadd.f32 %v1806, %v1846
        %v1848 = vpop.f32.mrf.mxu0
        %v1849 = vadd.f32 %v1808, %v1848
        %v1850 = vpop.f32.mrf.mxu0
        %v1851 = vpop.f32.mrf.mxu0
        %1852 = vdwg.mxu0
        %1853 = vmatprep.subr.bf16.mxu0 %v1659
        %1854 = vmatpush1.bf16.msra.mxu0 %v1658
        %1855 = vmatprep.subr.bf16.mxu0 %v1643
        %1856 = vmatpush1.bf16.msra.mxu0 %v1642
        %1857 = vmatprep.subr.bf16.mxu0 %v1627
        %1858 = vmatpush1.bf16.msra.mxu0 %v1626
        %1859 = vmatprep.subr.bf16.mxu0 %v1611
        %1860 = vmatpush1.bf16.msra.mxu0 %v1610
        %1861 = vmatprep.subr.bf16.mxu0 %v1595
        %1862 = vmatpush1.bf16.msra.mxu0 %v1594
        %1863 = vmatprep.subr.bf16.mxu0 %v1579
        %1864 = vmatpush1.bf16.msra.mxu0 %v1578
        %1865 = vmatprep.subr.bf16.mxu0 %v1563
        %1866 = vmatpush1.bf16.msra.mxu0 %v1562
        %1867 = vmatprep.subr.bf16.mxu0 %v1547
        %1868 = vmatpush1.bf16.msra.mxu0 %v1546
        %1869 = vmatprep.subr.bf16.mxu0 0
        %1870 = vmatpush2.bf16.msra.mxu0 0
        %1871 = vmatprep.subr.bf16.mxu0 0
        %1872 = vmatpush2.bf16.msra.mxu0 0
        %1873 = vmatprep.subr.bf16.mxu0 0
        %1874 = vmatpush2.bf16.msra.mxu0 0
        %1875 = vmatprep.subr.bf16.mxu0 0
        %1876 = vmatpush2.bf16.msra.mxu0 0
        %1877 = vmatprep.subr.bf16.mxu0 0
        %1878 = vmatpush2.bf16.msra.mxu0 0
        %1879 = vmatprep.subr.bf16.mxu0 0
        %1880 = vmatpush2.bf16.msra.mxu0 0
        %1881 = vmatprep.subr.bf16.mxu0 0
        %1882 = vmatpush2.bf16.msra.mxu0 0
        %1883 = vmatprep.subr.bf16.mxu0 0
        %1884 = vmatpush2.bf16.msra.mxu0 0
        %1885 = vmatprep.mubr.bf16.mxu0 0
        %1886 = vmatmul.mubr.bf16.gmra.mxu0 %v1721
        %v1887 = vpop.f32.mrf.mxu0
        %v1888 = vadd.f32 %v1847, %v1887
        %v1889 = vpop.f32.mrf.mxu0
        %v1890 = vadd.f32 %v1849, %v1889
        %v1891 = vpop.f32.mrf.mxu0
        %v1892 = vpop.f32.mrf.mxu0
        %1893 = vdwg.mxu0
        %1894 = vmatprep.subr.bf16.mxu0 %v893
        %1895 = vmatpush1.bf16.msra.mxu0 %v892
        %1896 = vmatprep.subr.bf16.mxu0 %v877
        %1897 = vmatpush1.bf16.msra.mxu0 %v876
        %1898 = vmatprep.subr.bf16.mxu0 %v861
        %1899 = vmatpush1.bf16.msra.mxu0 %v860
        %1900 = vmatprep.subr.bf16.mxu0 %v845
        %1901 = vmatpush1.bf16.msra.mxu0 %v844
        %1902 = vmatprep.subr.bf16.mxu0 %v829
        %1903 = vmatpush1.bf16.msra.mxu0 %v828
        %1904 = vmatprep.subr.bf16.mxu0 %v813
        %1905 = vmatpush1.bf16.msra.mxu0 %v812
        %1906 = vmatprep.subr.bf16.mxu0 %v797
        %1907 = vmatpush1.bf16.msra.mxu0 %v796
        %1908 = vmatprep.subr.bf16.mxu0 %v781
        %1909 = vmatpush1.bf16.msra.mxu0 %v780
        %1910 = vmatprep.subr.bf16.mxu0 %v1021
        %1911 = vmatpush2.bf16.msra.mxu0 %v1020
        %1912 = vmatprep.subr.bf16.mxu0 %v1005
        %1913 = vmatpush2.bf16.msra.mxu0 %v1004
        %1914 = vmatprep.subr.bf16.mxu0 %v989
        %1915 = vmatpush2.bf16.msra.mxu0 %v988
        %1916 = vmatprep.subr.bf16.mxu0 %v973
        %1917 = vmatpush2.bf16.msra.mxu0 %v972
        %1918 = vmatprep.subr.bf16.mxu0 %v957
        %1919 = vmatpush2.bf16.msra.mxu0 %v956
        %1920 = vmatprep.subr.bf16.mxu0 %v941
        %1921 = vmatpush2.bf16.msra.mxu0 %v940
        %1922 = vmatprep.subr.bf16.mxu0 %v925
        %1923 = vmatpush2.bf16.msra.mxu0 %v924
        %1924 = vmatprep.subr.bf16.mxu0 %v909
        %1925 = vmatpush2.bf16.msra.mxu0 %v908
        %1926 = vmatprep.mubr.bf16.mxu0 %v1712
        %1927 = vmatmul.mubr.bf16.gmra.mxu0 %v1698
        %v1928 = vpop.f32.mrf.mxu0
        %v1929 = vadd.f32 0.0, %v1928
        %v1930 = vpop.f32.mrf.mxu0
        %v1931 = vadd.f32 0.0, %v1930
        %v1932 = vpop.f32.mrf.mxu0
        %v1933 = vpop.f32.mrf.mxu0
        %1934 = vdwg.mxu0
        %1935 = vmatprep.subr.bf16.mxu0 %v1149
        %1936 = vmatpush1.bf16.msra.mxu0 %v1148
        %1937 = vmatprep.subr.bf16.mxu0 %v1133
        %1938 = vmatpush1.bf16.msra.mxu0 %v1132
        %1939 = vmatprep.subr.bf16.mxu0 %v1117
        %1940 = vmatpush1.bf16.msra.mxu0 %v1116
        %1941 = vmatprep.subr.bf16.mxu0 %v1101
        %1942 = vmatpush1.bf16.msra.mxu0 %v1100
        %1943 = vmatprep.subr.bf16.mxu0 %v1085
        %1944 = vmatpush1.bf16.msra.mxu0 %v1084
        %1945 = vmatprep.subr.bf16.mxu0 %v1069
        %1946 = vmatpush1.bf16.msra.mxu0 %v1068
        %1947 = vmatprep.subr.bf16.mxu0 %v1053
        %1948 = vmatpush1.bf16.msra.mxu0 %v1052
        %1949 = vmatprep.subr.bf16.mxu0 %v1037
        %1950 = vmatpush1.bf16.msra.mxu0 %v1036
        %1951 = vmatprep.subr.bf16.mxu0 %v1277
        %1952 = vmatpush2.bf16.msra.mxu0 %v1276
        %1953 = vmatprep.subr.bf16.mxu0 %v1261
        %1954 = vmatpush2.bf16.msra.mxu0 %v1260
        %1955 = vmatprep.subr.bf16.mxu0 %v1245
        %1956 = vmatpush2.bf16.msra.mxu0 %v1244
        %1957 = vmatprep.subr.bf16.mxu0 %v1229
        %1958 = vmatpush2.bf16.msra.mxu0 %v1228
        %1959 = vmatprep.subr.bf16.mxu0 %v1213
        %1960 = vmatpush2.bf16.msra.mxu0 %v1212
        %1961 = vmatprep.subr.bf16.mxu0 %v1197
        %1962 = vmatpush2.bf16.msra.mxu0 %v1196
        %1963 = vmatprep.subr.bf16.mxu0 %v1181
        %1964 = vmatpush2.bf16.msra.mxu0 %v1180
        %1965 = vmatprep.subr.bf16.mxu0 %v1165
        %1966 = vmatpush2.bf16.msra.mxu0 %v1164
        %1967 = vmatprep.mubr.bf16.mxu0 %v1722
        %1968 = vmatmul.mubr.bf16.gmra.mxu0 %v1720
        %v1969 = vpop.f32.mrf.mxu0
        %v1970 = vadd.f32 %v1929, %v1969
        %v1971 = vpop.f32.mrf.mxu0
        %v1972 = vadd.f32 %v1931, %v1971
        %v1973 = vpop.f32.mrf.mxu0
        %v1974 = vpop.f32.mrf.mxu0
        %1975 = vdwg.mxu0
        %1976 = vmatprep.subr.bf16.mxu0 %v1405
        %1977 = vmatpush1.bf16.msra.mxu0 %v1404
        %1978 = vmatprep.subr.bf16.mxu0 %v1389
        %1979 = vmatpush1.bf16.msra.mxu0 %v1388
        %1980 = vmatprep.subr.bf16.mxu0 %v1373
        %1981 = vmatpush1.bf16.msra.mxu0 %v1372
        %1982 = vmatprep.subr.bf16.mxu0 %v1357
        %1983 = vmatpush1.bf16.msra.mxu0 %v1356
        %1984 = vmatprep.subr.bf16.mxu0 %v1341
        %1985 = vmatpush1.bf16.msra.mxu0 %v1340
        %1986 = vmatprep.subr.bf16.mxu0 %v1325
        %1987 = vmatpush1.bf16.msra.mxu0 %v1324
        %1988 = vmatprep.subr.bf16.mxu0 %v1309
        %1989 = vmatpush1.bf16.msra.mxu0 %v1308
        %1990 = vmatprep.subr.bf16.mxu0 %v1293
        %1991 = vmatpush1.bf16.msra.mxu0 %v1292
        %1992 = vmatprep.subr.bf16.mxu0 %v1533
        %1993 = vmatpush2.bf16.msra.mxu0 %v1532
        %1994 = vmatprep.subr.bf16.mxu0 %v1517
        %1995 = vmatpush2.bf16.msra.mxu0 %v1516
        %1996 = vmatprep.subr.bf16.mxu0 %v1501
        %1997 = vmatpush2.bf16.msra.mxu0 %v1500
        %1998 = vmatprep.subr.bf16.mxu0 %v1485
        %1999 = vmatpush2.bf16.msra.mxu0 %v1484
        %2000 = vmatprep.subr.bf16.mxu0 %v1469
        %2001 = vmatpush2.bf16.msra.mxu0 %v1468
        %2002 = vmatprep.subr.bf16.mxu0 %v1453
        %2003 = vmatpush2.bf16.msra.mxu0 %v1452
        %2004 = vmatprep.subr.bf16.mxu0 %v1437
        %2005 = vmatpush2.bf16.msra.mxu0 %v1436
        %2006 = vmatprep.subr.bf16.mxu0 %v1421
        %2007 = vmatpush2.bf16.msra.mxu0 %v1420
        %2008 = vmatprep.mubr.bf16.mxu0 %v1719
        %2009 = vmatmul.mubr.bf16.gmra.mxu0 %v1705
        %v2010 = vpop.f32.mrf.mxu0
        %v2011 = vadd.f32 %v1970, %v2010
        %v2012 = vpop.f32.mrf.mxu0
        %v2013 = vadd.f32 %v1972, %v2012
        %v2014 = vpop.f32.mrf.mxu0
        %v2015 = vpop.f32.mrf.mxu0
        %2016 = vdwg.mxu0
        %2017 = vmatprep.subr.bf16.mxu0 %v1661
        %2018 = vmatpush1.bf16.msra.mxu0 %v1660
        %2019 = vmatprep.subr.bf16.mxu0 %v1645
        %2020 = vmatpush1.bf16.msra.mxu0 %v1644
        %2021 = vmatprep.subr.bf16.mxu0 %v1629
        %2022 = vmatpush1.bf16.msra.mxu0 %v1628
        %2023 = vmatprep.subr.bf16.mxu0 %v1613
        %2024 = vmatpush1.bf16.msra.mxu0 %v1612
        %2025 = vmatprep.subr.bf16.mxu0 %v1597
        %2026 = vmatpush1.bf16.msra.mxu0 %v1596
        %2027 = vmatprep.subr.bf16.mxu0 %v1581
        %2028 = vmatpush1.bf16.msra.mxu0 %v1580
        %2029 = vmatprep.subr.bf16.mxu0 %v1565
        %2030 = vmatpush1.bf16.msra.mxu0 %v1564
        %2031 = vmatprep.subr.bf16.mxu0 %v1549
        %2032 = vmatpush1.bf16.msra.mxu0 %v1548
        %2033 = vmatprep.subr.bf16.mxu0 0
        %2034 = vmatpush2.bf16.msra.mxu0 0
        %2035 = vmatprep.subr.bf16.mxu0 0
        %2036 = vmatpush2.bf16.msra.mxu0 0
        %2037 = vmatprep.subr.bf16.mxu0 0
        %2038 = vmatpush2.bf16.msra.mxu0 0
        %2039 = vmatprep.subr.bf16.mxu0 0
        %2040 = vmatpush2.bf16.msra.mxu0 0
        %2041 = vmatprep.subr.bf16.mxu0 0
        %2042 = vmatpush2.bf16.msra.mxu0 0
        %2043 = vmatprep.subr.bf16.mxu0 0
        %2044 = vmatpush2.bf16.msra.mxu0 0
        %2045 = vmatprep.subr.bf16.mxu0 0
        %2046 = vmatpush2.bf16.msra.mxu0 0
        %2047 = vmatprep.subr.bf16.mxu0 0
        %2048 = vmatpush2.bf16.msra.mxu0 0
        %2049 = vmatprep.mubr.bf16.mxu0 0
        %2050 = vmatmul.mubr.bf16.gmra.mxu0 %v1721
        %v2051 = vpop.f32.mrf.mxu0
        %v2052 = vadd.f32 %v2011, %v2051
        %v2053 = vpop.f32.mrf.mxu0
        %v2054 = vadd.f32 %v2013, %v2053
        %v2055 = vpop.f32.mrf.mxu0
        %v2056 = vpop.f32.mrf.mxu0
        %2057 = vdwg.mxu0
        %2058 = vmatprep.subr.bf16.mxu0 %v895
        %2059 = vmatpush1.bf16.msra.mxu0 %v894
        %2060 = vmatprep.subr.bf16.mxu0 %v879
        %2061 = vmatpush1.bf16.msra.mxu0 %v878
        %2062 = vmatprep.subr.bf16.mxu0 %v863
        %2063 = vmatpush1.bf16.msra.mxu0 %v862
        %2064 = vmatprep.subr.bf16.mxu0 %v847
        %2065 = vmatpush1.bf16.msra.mxu0 %v846
        %2066 = vmatprep.subr.bf16.mxu0 %v831
        %2067 = vmatpush1.bf16.msra.mxu0 %v830
        %2068 = vmatprep.subr.bf16.mxu0 %v815
        %2069 = vmatpush1.bf16.msra.mxu0 %v814
        %2070 = vmatprep.subr.bf16.mxu0 %v799
        %2071 = vmatpush1.bf16.msra.mxu0 %v798
        %2072 = vmatprep.subr.bf16.mxu0 %v783
        %2073 = vmatpush1.bf16.msra.mxu0 %v782
        %2074 = vmatprep.subr.bf16.mxu0 %v1023
        %2075 = vmatpush2.bf16.msra.mxu0 %v1022
        %2076 = vmatprep.subr.bf16.mxu0 %v1007
        %2077 = vmatpush2.bf16.msra.mxu0 %v1006
        %2078 = vmatprep.subr.bf16.mxu0 %v991
        %2079 = vmatpush2.bf16.msra.mxu0 %v990
        %2080 = vmatprep.subr.bf16.mxu0 %v975
        %2081 = vmatpush2.bf16.msra.mxu0 %v974
        %2082 = vmatprep.subr.bf16.mxu0 %v959
        %2083 = vmatpush2.bf16.msra.mxu0 %v958
        %2084 = vmatprep.subr.bf16.mxu0 %v943
        %2085 = vmatpush2.bf16.msra.mxu0 %v942
        %2086 = vmatprep.subr.bf16.mxu0 %v927
        %2087 = vmatpush2.bf16.msra.mxu0 %v926
        %2088 = vmatprep.subr.bf16.mxu0 %v911
        %2089 = vmatpush2.bf16.msra.mxu0 %v910
        %2090 = vmatprep.mubr.bf16.mxu0 %v1712
        %2091 = vmatmul.mubr.bf16.gmra.mxu0 %v1698
        %v2092 = vpop.f32.mrf.mxu0
        %v2093 = vadd.f32 0.0, %v2092
        %v2094 = vpop.f32.mrf.mxu0
        %v2095 = vadd.f32 0.0, %v2094
        %v2096 = vpop.f32.mrf.mxu0
        %v2097 = vpop.f32.mrf.mxu0
        %2098 = vdwg.mxu0
        %2099 = vmatprep.subr.bf16.mxu0 %v1151
        %2100 = vmatpush1.bf16.msra.mxu0 %v1150
        %2101 = vmatprep.subr.bf16.mxu0 %v1135
        %2102 = vmatpush1.bf16.msra.mxu0 %v1134
        %2103 = vmatprep.subr.bf16.mxu0 %v1119
        %2104 = vmatpush1.bf16.msra.mxu0 %v1118
        %2105 = vmatprep.subr.bf16.mxu0 %v1103
        %2106 = vmatpush1.bf16.msra.mxu0 %v1102
        %2107 = vmatprep.subr.bf16.mxu0 %v1087
        %2108 = vmatpush1.bf16.msra.mxu0 %v1086
        %2109 = vmatprep.subr.bf16.mxu0 %v1071
        %2110 = vmatpush1.bf16.msra.mxu0 %v1070
        %2111 = vmatprep.subr.bf16.mxu0 %v1055
        %2112 = vmatpush1.bf16.msra.mxu0 %v1054
        %2113 = vmatprep.subr.bf16.mxu0 %v1039
        %2114 = vmatpush1.bf16.msra.mxu0 %v1038
        %2115 = vmatprep.subr.bf16.mxu0 %v1279
        %2116 = vmatpush2.bf16.msra.mxu0 %v1278
        %2117 = vmatprep.subr.bf16.mxu0 %v1263
        %2118 = vmatpush2.bf16.msra.mxu0 %v1262
        %2119 = vmatprep.subr.bf16.mxu0 %v1247
        %2120 = vmatpush2.bf16.msra.mxu0 %v1246
        %2121 = vmatprep.subr.bf16.mxu0 %v1231
        %2122 = vmatpush2.bf16.msra.mxu0 %v1230
        %2123 = vmatprep.subr.bf16.mxu0 %v1215
        %2124 = vmatpush2.bf16.msra.mxu0 %v1214
        %2125 = vmatprep.subr.bf16.mxu0 %v1199
        %2126 = vmatpush2.bf16.msra.mxu0 %v1198
        %2127 = vmatprep.subr.bf16.mxu0 %v1183
        %2128 = vmatpush2.bf16.msra.mxu0 %v1182
        %2129 = vmatprep.subr.bf16.mxu0 %v1167
        %2130 = vmatpush2.bf16.msra.mxu0 %v1166
        %2131 = vmatprep.mubr.bf16.mxu0 %v1722
        %2132 = vmatmul.mubr.bf16.gmra.mxu0 %v1720
        %v2133 = vpop.f32.mrf.mxu0
        %v2134 = vadd.f32 %v2093, %v2133
        %v2135 = vpop.f32.mrf.mxu0
        %v2136 = vadd.f32 %v2095, %v2135
        %v2137 = vpop.f32.mrf.mxu0
        %v2138 = vpop.f32.mrf.mxu0
        %2139 = vdwg.mxu0
        %2140 = vmatprep.subr.bf16.mxu0 %v1407
        %2141 = vmatpush1.bf16.msra.mxu0 %v1406
        %2142 = vmatprep.subr.bf16.mxu0 %v1391
        %2143 = vmatpush1.bf16.msra.mxu0 %v1390
        %2144 = vmatprep.subr.bf16.mxu0 %v1375
        %2145 = vmatpush1.bf16.msra.mxu0 %v1374
        %2146 = vmatprep.subr.bf16.mxu0 %v1359
        %2147 = vmatpush1.bf16.msra.mxu0 %v1358
        %2148 = vmatprep.subr.bf16.mxu0 %v1343
        %2149 = vmatpush1.bf16.msra.mxu0 %v1342
        %2150 = vmatprep.subr.bf16.mxu0 %v1327
        %2151 = vmatpush1.bf16.msra.mxu0 %v1326
        %2152 = vmatprep.subr.bf16.mxu0 %v1311
        %2153 = vmatpush1.bf16.msra.mxu0 %v1310
        %2154 = vmatprep.subr.bf16.mxu0 %v1295
        %2155 = vmatpush1.bf16.msra.mxu0 %v1294
        %2156 = vmatprep.subr.bf16.mxu0 %v1535
        %2157 = vmatpush2.bf16.msra.mxu0 %v1534
        %2158 = vmatprep.subr.bf16.mxu0 %v1519
        %2159 = vmatpush2.bf16.msra.mxu0 %v1518
        %2160 = vmatprep.subr.bf16.mxu0 %v1503
        %2161 = vmatpush2.bf16.msra.mxu0 %v1502
        %2162 = vmatprep.subr.bf16.mxu0 %v1487
        %2163 = vmatpush2.bf16.msra.mxu0 %v1486
        %2164 = vmatprep.subr.bf16.mxu0 %v1471
        %2165 = vmatpush2.bf16.msra.mxu0 %v1470
        %2166 = vmatprep.subr.bf16.mxu0 %v1455
        %2167 = vmatpush2.bf16.msra.mxu0 %v1454
        %2168 = vmatprep.subr.bf16.mxu0 %v1439
        %2169 = vmatpush2.bf16.msra.mxu0 %v1438
        %2170 = vmatprep.subr.bf16.mxu0 %v1423
        %2171 = vmatpush2.bf16.msra.mxu0 %v1422
        %2172 = vmatprep.mubr.bf16.mxu0 %v1719
        %2173 = vmatmul.mubr.bf16.gmra.mxu0 %v1705
        %v2174 = vpop.f32.mrf.mxu0
        %v2175 = vadd.f32 %v2134, %v2174
        %v2176 = vpop.f32.mrf.mxu0
        %v2177 = vadd.f32 %v2136, %v2176
        %v2178 = vpop.f32.mrf.mxu0
        %v2179 = vpop.f32.mrf.mxu0
        %2180 = vdwg.mxu0
        %2181 = vmatprep.subr.bf16.mxu0 %v1663
        %2182 = vmatpush1.bf16.msra.mxu0 %v1662
        %2183 = vmatprep.subr.bf16.mxu0 %v1647
        %2184 = vmatpush1.bf16.msra.mxu0 %v1646
        %2185 = vmatprep.subr.bf16.mxu0 %v1631
        %2186 = vmatpush1.bf16.msra.mxu0 %v1630
        %2187 = vmatprep.subr.bf16.mxu0 %v1615
        %2188 = vmatpush1.bf16.msra.mxu0 %v1614
        %2189 = vmatprep.subr.bf16.mxu0 %v1599
        %2190 = vmatpush1.bf16.msra.mxu0 %v1598
        %2191 = vmatprep.subr.bf16.mxu0 %v1583
        %2192 = vmatpush1.bf16.msra.mxu0 %v1582
        %2193 = vmatprep.subr.bf16.mxu0 %v1567
        %2194 = vmatpush1.bf16.msra.mxu0 %v1566
        %2195 = vmatprep.subr.bf16.mxu0 %v1551
        %2196 = vmatpush1.bf16.msra.mxu0 %v1550
        %2197 = vmatprep.subr.bf16.mxu0 0
        %2198 = vmatpush2.bf16.msra.mxu0 0
        %2199 = vmatprep.subr.bf16.mxu0 0
        %2200 = vmatpush2.bf16.msra.mxu0 0
        %2201 = vmatprep.subr.bf16.mxu0 0
        %2202 = vmatpush2.bf16.msra.mxu0 0
        %2203 = vmatprep.subr.bf16.mxu0 0
        %2204 = vmatpush2.bf16.msra.mxu0 0
        %2205 = vmatprep.subr.bf16.mxu0 0
        %2206 = vmatpush2.bf16.msra.mxu0 0
        %2207 = vmatprep.subr.bf16.mxu0 0
        %2208 = vmatpush2.bf16.msra.mxu0 0
        %2209 = vmatprep.subr.bf16.mxu0 0
        %2210 = vmatpush2.bf16.msra.mxu0 0
        %2211 = vmatprep.subr.bf16.mxu0 0
        %2212 = vmatpush2.bf16.msra.mxu0 0
        %2213 = vmatprep.mubr.bf16.mxu0 0
        %2214 = vmatmul.mubr.bf16.gmra.mxu0 %v1721
        %v2215 = vpop.f32.mrf.mxu0
        %v2216 = vadd.f32 %v2175, %v2215
        %v2217 = vpop.f32.mrf.mxu0
        %v2218 = vadd.f32 %v2177, %v2217
        %v2219 = vpop.f32.mrf.mxu0
        %v2220 = vpop.f32.mrf.mxu0
        %2221 = vdwg.mxu0
        %2222 = vmatprep.subr.bf16.mxu0 %v897
        %2223 = vmatpush1.bf16.msra.mxu0 %v896
        %2224 = vmatprep.subr.bf16.mxu0 %v881
        %2225 = vmatpush1.bf16.msra.mxu0 %v880
        %2226 = vmatprep.subr.bf16.mxu0 %v865
        %2227 = vmatpush1.bf16.msra.mxu0 %v864
        %2228 = vmatprep.subr.bf16.mxu0 %v849
        %2229 = vmatpush1.bf16.msra.mxu0 %v848
        %2230 = vmatprep.subr.bf16.mxu0 %v833
        %2231 = vmatpush1.bf16.msra.mxu0 %v832
        %2232 = vmatprep.subr.bf16.mxu0 %v817
        %2233 = vmatpush1.bf16.msra.mxu0 %v816
        %2234 = vmatprep.subr.bf16.mxu0 %v801
        %2235 = vmatpush1.bf16.msra.mxu0 %v800
        %2236 = vmatprep.subr.bf16.mxu0 %v785
        %2237 = vmatpush1.bf16.msra.mxu0 %v784
        %2238 = vmatprep.subr.bf16.mxu0 %v1025
        %2239 = vmatpush2.bf16.msra.mxu0 %v1024
        %2240 = vmatprep.subr.bf16.mxu0 %v1009
        %2241 = vmatpush2.bf16.msra.mxu0 %v1008
        %2242 = vmatprep.subr.bf16.mxu0 %v993
        %2243 = vmatpush2.bf16.msra.mxu0 %v992
        %2244 = vmatprep.subr.bf16.mxu0 %v977
        %2245 = vmatpush2.bf16.msra.mxu0 %v976
        %2246 = vmatprep.subr.bf16.mxu0 %v961
        %2247 = vmatpush2.bf16.msra.mxu0 %v960
        %2248 = vmatprep.subr.bf16.mxu0 %v945
        %2249 = vmatpush2.bf16.msra.mxu0 %v944
        %2250 = vmatprep.subr.bf16.mxu0 %v929
        %2251 = vmatpush2.bf16.msra.mxu0 %v928
        %2252 = vmatprep.subr.bf16.mxu0 %v913
        %2253 = vmatpush2.bf16.msra.mxu0 %v912
        %2254 = vmatprep.mubr.bf16.mxu0 %v1712
        %2255 = vmatmul.mubr.bf16.gmra.mxu0 %v1698
        %v2256 = vpop.f32.mrf.mxu0
        %v2257 = vadd.f32 0.0, %v2256
        %v2258 = vpop.f32.mrf.mxu0
        %v2259 = vadd.f32 0.0, %v2258
        %v2260 = vpop.f32.mrf.mxu0
        %v2261 = vpop.f32.mrf.mxu0
        %2262 = vdwg.mxu0
        %2263 = vmatprep.subr.bf16.mxu0 %v1153
        %2264 = vmatpush1.bf16.msra.mxu0 %v1152
        %2265 = vmatprep.subr.bf16.mxu0 %v1137
        %2266 = vmatpush1.bf16.msra.mxu0 %v1136
        %2267 = vmatprep.subr.bf16.mxu0 %v1121
        %2268 = vmatpush1.bf16.msra.mxu0 %v1120
        %2269 = vmatprep.subr.bf16.mxu0 %v1105
        %2270 = vmatpush1.bf16.msra.mxu0 %v1104
        %2271 = vmatprep.subr.bf16.mxu0 %v1089
        %2272 = vmatpush1.bf16.msra.mxu0 %v1088
        %2273 = vmatprep.subr.bf16.mxu0 %v1073
        %2274 = vmatpush1.bf16.msra.mxu0 %v1072
        %2275 = vmatprep.subr.bf16.mxu0 %v1057
        %2276 = vmatpush1.bf16.msra.mxu0 %v1056
        %2277 = vmatprep.subr.bf16.mxu0 %v1041
        %2278 = vmatpush1.bf16.msra.mxu0 %v1040
        %2279 = vmatprep.subr.bf16.mxu0 %v1281
        %2280 = vmatpush2.bf16.msra.mxu0 %v1280
        %2281 = vmatprep.subr.bf16.mxu0 %v1265
        %2282 = vmatpush2.bf16.msra.mxu0 %v1264
        %2283 = vmatprep.subr.bf16.mxu0 %v1249
        %2284 = vmatpush2.bf16.msra.mxu0 %v1248
        %2285 = vmatprep.subr.bf16.mxu0 %v1233
        %2286 = vmatpush2.bf16.msra.mxu0 %v1232
        %2287 = vmatprep.subr.bf16.mxu0 %v1217
        %2288 = vmatpush2.bf16.msra.mxu0 %v1216
        %2289 = vmatprep.subr.bf16.mxu0 %v1201
        %2290 = vmatpush2.bf16.msra.mxu0 %v1200
        %2291 = vmatprep.subr.bf16.mxu0 %v1185
        %2292 = vmatpush2.bf16.msra.mxu0 %v1184
        %2293 = vmatprep.subr.bf16.mxu0 %v1169
        %2294 = vmatpush2.bf16.msra.mxu0 %v1168
        %2295 = vmatprep.mubr.bf16.mxu0 %v1722
        %2296 = vmatmul.mubr.bf16.gmra.mxu0 %v1720
        %v2297 = vpop.f32.mrf.mxu0
        %v2298 = vadd.f32 %v2257, %v2297
        %v2299 = vpop.f32.mrf.mxu0
        %v2300 = vadd.f32 %v2259, %v2299
        %v2301 = vpop.f32.mrf.mxu0
        %v2302 = vpop.f32.mrf.mxu0
        %2303 = vdwg.mxu0
        %2304 = vmatprep.subr.bf16.mxu0 %v1409
        %2305 = vmatpush1.bf16.msra.mxu0 %v1408
        %2306 = vmatprep.subr.bf16.mxu0 %v1393
        %2307 = vmatpush1.bf16.msra.mxu0 %v1392
        %2308 = vmatprep.subr.bf16.mxu0 %v1377
        %2309 = vmatpush1.bf16.msra.mxu0 %v1376
        %2310 = vmatprep.subr.bf16.mxu0 %v1361
        %2311 = vmatpush1.bf16.msra.mxu0 %v1360
        %2312 = vmatprep.subr.bf16.mxu0 %v1345
        %2313 = vmatpush1.bf16.msra.mxu0 %v1344
        %2314 = vmatprep.subr.bf16.mxu0 %v1329
        %2315 = vmatpush1.bf16.msra.mxu0 %v1328
        %2316 = vmatprep.subr.bf16.mxu0 %v1313
        %2317 = vmatpush1.bf16.msra.mxu0 %v1312
        %2318 = vmatprep.subr.bf16.mxu0 %v1297
        %2319 = vmatpush1.bf16.msra.mxu0 %v1296
        %2320 = vmatprep.subr.bf16.mxu0 %v1537
        %2321 = vmatpush2.bf16.msra.mxu0 %v1536
        %2322 = vmatprep.subr.bf16.mxu0 %v1521
        %2323 = vmatpush2.bf16.msra.mxu0 %v1520
        %2324 = vmatprep.subr.bf16.mxu0 %v1505
        %2325 = vmatpush2.bf16.msra.mxu0 %v1504
        %2326 = vmatprep.subr.bf16.mxu0 %v1489
        %2327 = vmatpush2.bf16.msra.mxu0 %v1488
        %2328 = vmatprep.subr.bf16.mxu0 %v1473
        %2329 = vmatpush2.bf16.msra.mxu0 %v1472
        %2330 = vmatprep.subr.bf16.mxu0 %v1457
        %2331 = vmatpush2.bf16.msra.mxu0 %v1456
        %2332 = vmatprep.subr.bf16.mxu0 %v1441
        %2333 = vmatpush2.bf16.msra.mxu0 %v1440
        %2334 = vmatprep.subr.bf16.mxu0 %v1425
        %2335 = vmatpush2.bf16.msra.mxu0 %v1424
        %2336 = vmatprep.mubr.bf16.mxu0 %v1719
        %2337 = vmatmul.mubr.bf16.gmra.mxu0 %v1705
        %v2338 = vpop.f32.mrf.mxu0
        %v2339 = vadd.f32 %v2298, %v2338
        %v2340 = vpop.f32.mrf.mxu0
        %v2341 = vadd.f32 %v2300, %v2340
        %v2342 = vpop.f32.mrf.mxu0
        %v2343 = vpop.f32.mrf.mxu0
        %2344 = vdwg.mxu0
        %2345 = vmatprep.subr.bf16.mxu0 %v1665
        %2346 = vmatpush1.bf16.msra.mxu0 %v1664
        %2347 = vmatprep.subr.bf16.mxu0 %v1649
        %2348 = vmatpush1.bf16.msra.mxu0 %v1648
        %2349 = vmatprep.subr.bf16.mxu0 %v1633
        %2350 = vmatpush1.bf16.msra.mxu0 %v1632
        %2351 = vmatprep.subr.bf16.mxu0 %v1617
        %2352 = vmatpush1.bf16.msra.mxu0 %v1616
        %2353 = vmatprep.subr.bf16.mxu0 %v1601
        %2354 = vmatpush1.bf16.msra.mxu0 %v1600
        %2355 = vmatprep.subr.bf16.mxu0 %v1585
        %2356 = vmatpush1.bf16.msra.mxu0 %v1584
        %2357 = vmatprep.subr.bf16.mxu0 %v1569
        %2358 = vmatpush1.bf16.msra.mxu0 %v1568
        %2359 = vmatprep.subr.bf16.mxu0 %v1553
        %2360 = vmatpush1.bf16.msra.mxu0 %v1552
        %2361 = vmatprep.subr.bf16.mxu0 0
        %2362 = vmatpush2.bf16.msra.mxu0 0
        %2363 = vmatprep.subr.bf16.mxu0 0
        %2364 = vmatpush2.bf16.msra.mxu0 0
        %2365 = vmatprep.subr.bf16.mxu0 0
        %2366 = vmatpush2.bf16.msra.mxu0 0
        %2367 = vmatprep.subr.bf16.mxu0 0
        %2368 = vmatpush2.bf16.msra.mxu0 0
        %2369 = vmatprep.subr.bf16.mxu0 0
        %2370 = vmatpush2.bf16.msra.mxu0 0
        %2371 = vmatprep.subr.bf16.mxu0 0
        %2372 = vmatpush2.bf16.msra.mxu0 0
        %2373 = vmatprep.subr.bf16.mxu0 0
        %2374 = vmatpush2.bf16.msra.mxu0 0
        %2375 = vmatprep.subr.bf16.mxu0 0
        %2376 = vmatpush2.bf16.msra.mxu0 0
        %2377 = vmatprep.mubr.bf16.mxu0 0
        %2378 = vmatmul.mubr.bf16.gmra.mxu0 %v1721
        %v2379 = vpop.f32.mrf.mxu0
        %v2380 = vadd.f32 %v2339, %v2379
        %v2381 = vpop.f32.mrf.mxu0
        %v2382 = vadd.f32 %v2341, %v2381
        %v2383 = vpop.f32.mrf.mxu0
        %v2384 = vpop.f32.mrf.mxu0
        %2385 = vdwg.mxu0
        %2386 = vmatprep.subr.bf16.mxu0 %v899
        %2387 = vmatpush1.bf16.msra.mxu0 %v898
        %2388 = vmatprep.subr.bf16.mxu0 %v883
        %2389 = vmatpush1.bf16.msra.mxu0 %v882
        %2390 = vmatprep.subr.bf16.mxu0 %v867
        %2391 = vmatpush1.bf16.msra.mxu0 %v866
        %2392 = vmatprep.subr.bf16.mxu0 %v851
        %2393 = vmatpush1.bf16.msra.mxu0 %v850
        %2394 = vmatprep.subr.bf16.mxu0 %v835
        %2395 = vmatpush1.bf16.msra.mxu0 %v834
        %2396 = vmatprep.subr.bf16.mxu0 %v819
        %2397 = vmatpush1.bf16.msra.mxu0 %v818
        %2398 = vmatprep.subr.bf16.mxu0 %v803
        %2399 = vmatpush1.bf16.msra.mxu0 %v802
        %2400 = vmatprep.subr.bf16.mxu0 %v787
        %2401 = vmatpush1.bf16.msra.mxu0 %v786
        %2402 = vmatprep.subr.bf16.mxu0 %v1027
        %2403 = vmatpush2.bf16.msra.mxu0 %v1026
        %2404 = vmatprep.subr.bf16.mxu0 %v1011
        %2405 = vmatpush2.bf16.msra.mxu0 %v1010
        %2406 = vmatprep.subr.bf16.mxu0 %v995
        %2407 = vmatpush2.bf16.msra.mxu0 %v994
        %2408 = vmatprep.subr.bf16.mxu0 %v979
        %2409 = vmatpush2.bf16.msra.mxu0 %v978
        %2410 = vmatprep.subr.bf16.mxu0 %v963
        %2411 = vmatpush2.bf16.msra.mxu0 %v962
        %2412 = vmatprep.subr.bf16.mxu0 %v947
        %2413 = vmatpush2.bf16.msra.mxu0 %v946
        %2414 = vmatprep.subr.bf16.mxu0 %v931
        %2415 = vmatpush2.bf16.msra.mxu0 %v930
        %2416 = vmatprep.subr.bf16.mxu0 %v915
        %2417 = vmatpush2.bf16.msra.mxu0 %v914
        %2418 = vmatprep.mubr.bf16.mxu0 %v1712
        %2419 = vmatmul.mubr.bf16.gmra.mxu0 %v1698
        %v2420 = vpop.f32.mrf.mxu0
        %v2421 = vadd.f32 0.0, %v2420
        %v2422 = vpop.f32.mrf.mxu0
        %v2423 = vadd.f32 0.0, %v2422
        %v2424 = vpop.f32.mrf.mxu0
        %v2425 = vpop.f32.mrf.mxu0
        %2426 = vdwg.mxu0
        %2427 = vmatprep.subr.bf16.mxu0 %v1155
        %2428 = vmatpush1.bf16.msra.mxu0 %v1154
        %2429 = vmatprep.subr.bf16.mxu0 %v1139
        %2430 = vmatpush1.bf16.msra.mxu0 %v1138
        %2431 = vmatprep.subr.bf16.mxu0 %v1123
        %2432 = vmatpush1.bf16.msra.mxu0 %v1122
        %2433 = vmatprep.subr.bf16.mxu0 %v1107
        %2434 = vmatpush1.bf16.msra.mxu0 %v1106
        %2435 = vmatprep.subr.bf16.mxu0 %v1091
        %2436 = vmatpush1.bf16.msra.mxu0 %v1090
        %2437 = vmatprep.subr.bf16.mxu0 %v1075
        %2438 = vmatpush1.bf16.msra.mxu0 %v1074
        %2439 = vmatprep.subr.bf16.mxu0 %v1059
        %2440 = vmatpush1.bf16.msra.mxu0 %v1058
        %2441 = vmatprep.subr.bf16.mxu0 %v1043
        %2442 = vmatpush1.bf16.msra.mxu0 %v1042
        %2443 = vmatprep.subr.bf16.mxu0 %v1283
        %2444 = vmatpush2.bf16.msra.mxu0 %v1282
        %2445 = vmatprep.subr.bf16.mxu0 %v1267
        %2446 = vmatpush2.bf16.msra.mxu0 %v1266
        %2447 = vmatprep.subr.bf16.mxu0 %v1251
        %2448 = vmatpush2.bf16.msra.mxu0 %v1250
        %2449 = vmatprep.subr.bf16.mxu0 %v1235
        %2450 = vmatpush2.bf16.msra.mxu0 %v1234
        %2451 = vmatprep.subr.bf16.mxu0 %v1219
        %2452 = vmatpush2.bf16.msra.mxu0 %v1218
        %2453 = vmatprep.subr.bf16.mxu0 %v1203
        %2454 = vmatpush2.bf16.msra.mxu0 %v1202
        %2455 = vmatprep.subr.bf16.mxu0 %v1187
        %2456 = vmatpush2.bf16.msra.mxu0 %v1186
        %2457 = vmatprep.subr.bf16.mxu0 %v1171
        %2458 = vmatpush2.bf16.msra.mxu0 %v1170
        %2459 = vmatprep.mubr.bf16.mxu0 %v1722
        %2460 = vmatmul.mubr.bf16.gmra.mxu0 %v1720
        %v2461 = vpop.f32.mrf.mxu0
        %v2462 = vadd.f32 %v2421, %v2461
        %v2463 = vpop.f32.mrf.mxu0
        %v2464 = vadd.f32 %v2423, %v2463
        %v2465 = vpop.f32.mrf.mxu0
        %v2466 = vpop.f32.mrf.mxu0
        %2467 = vdwg.mxu0
        %2468 = vmatprep.subr.bf16.mxu0 %v1411
        %2469 = vmatpush1.bf16.msra.mxu0 %v1410
        %2470 = vmatprep.subr.bf16.mxu0 %v1395
        %2471 = vmatpush1.bf16.msra.mxu0 %v1394
        %2472 = vmatprep.subr.bf16.mxu0 %v1379
        %2473 = vmatpush1.bf16.msra.mxu0 %v1378
        %2474 = vmatprep.subr.bf16.mxu0 %v1363
        %2475 = vmatpush1.bf16.msra.mxu0 %v1362
        %2476 = vmatprep.subr.bf16.mxu0 %v1347
        %2477 = vmatpush1.bf16.msra.mxu0 %v1346
        %2478 = vmatprep.subr.bf16.mxu0 %v1331
        %2479 = vmatpush1.bf16.msra.mxu0 %v1330
        %2480 = vmatprep.subr.bf16.mxu0 %v1315
        %2481 = vmatpush1.bf16.msra.mxu0 %v1314
        %2482 = vmatprep.subr.bf16.mxu0 %v1299
        %2483 = vmatpush1.bf16.msra.mxu0 %v1298
        %2484 = vmatprep.subr.bf16.mxu0 %v1539
        %2485 = vmatpush2.bf16.msra.mxu0 %v1538
        %2486 = vmatprep.subr.bf16.mxu0 %v1523
        %2487 = vmatpush2.bf16.msra.mxu0 %v1522
        %2488 = vmatprep.subr.bf16.mxu0 %v1507
        %2489 = vmatpush2.bf16.msra.mxu0 %v1506
        %2490 = vmatprep.subr.bf16.mxu0 %v1491
        %2491 = vmatpush2.bf16.msra.mxu0 %v1490
        %2492 = vmatprep.subr.bf16.mxu0 %v1475
        %2493 = vmatpush2.bf16.msra.mxu0 %v1474
        %2494 = vmatprep.subr.bf16.mxu0 %v1459
        %2495 = vmatpush2.bf16.msra.mxu0 %v1458
        %2496 = vmatprep.subr.bf16.mxu0 %v1443
        %2497 = vmatpush2.bf16.msra.mxu0 %v1442
        %2498 = vmatprep.subr.bf16.mxu0 %v1427
        %2499 = vmatpush2.bf16.msra.mxu0 %v1426
        %2500 = vmatprep.mubr.bf16.mxu0 %v1719
        %2501 = vmatmul.mubr.bf16.gmra.mxu0 %v1705
        %v2502 = vpop.f32.mrf.mxu0
        %v2503 = vadd.f32 %v2462, %v2502
        %v2504 = vpop.f32.mrf.mxu0
        %v2505 = vadd.f32 %v2464, %v2504
        %v2506 = vpop.f32.mrf.mxu0
        %v2507 = vpop.f32.mrf.mxu0
        %2508 = vdwg.mxu0
        %2509 = vmatprep.subr.bf16.mxu0 %v1667
        %2510 = vmatpush1.bf16.msra.mxu0 %v1666
        %2511 = vmatprep.subr.bf16.mxu0 %v1651
        %2512 = vmatpush1.bf16.msra.mxu0 %v1650
        %2513 = vmatprep.subr.bf16.mxu0 %v1635
        %2514 = vmatpush1.bf16.msra.mxu0 %v1634
        %2515 = vmatprep.subr.bf16.mxu0 %v1619
        %2516 = vmatpush1.bf16.msra.mxu0 %v1618
        %2517 = vmatprep.subr.bf16.mxu0 %v1603
        %2518 = vmatpush1.bf16.msra.mxu0 %v1602
        %2519 = vmatprep.subr.bf16.mxu0 %v1587
        %2520 = vmatpush1.bf16.msra.mxu0 %v1586
        %2521 = vmatprep.subr.bf16.mxu0 %v1571
        %2522 = vmatpush1.bf16.msra.mxu0 %v1570
        %2523 = vmatprep.subr.bf16.mxu0 %v1555
        %2524 = vmatpush1.bf16.msra.mxu0 %v1554
        %2525 = vmatprep.subr.bf16.mxu0 0
        %2526 = vmatpush2.bf16.msra.mxu0 0
        %2527 = vmatprep.subr.bf16.mxu0 0
        %2528 = vmatpush2.bf16.msra.mxu0 0
        %2529 = vmatprep.subr.bf16.mxu0 0
        %2530 = vmatpush2.bf16.msra.mxu0 0
        %2531 = vmatprep.subr.bf16.mxu0 0
        %2532 = vmatpush2.bf16.msra.mxu0 0
        %2533 = vmatprep.subr.bf16.mxu0 0
        %2534 = vmatpush2.bf16.msra.mxu0 0
        %2535 = vmatprep.subr.bf16.mxu0 0
        %2536 = vmatpush2.bf16.msra.mxu0 0
        %2537 = vmatprep.subr.bf16.mxu0 0
        %2538 = vmatpush2.bf16.msra.mxu0 0
        %2539 = vmatprep.subr.bf16.mxu0 0
        %2540 = vmatpush2.bf16.msra.mxu0 0
        %2541 = vmatprep.mubr.bf16.mxu0 0
        %2542 = vmatmul.mubr.bf16.gmra.mxu0 %v1721
        %v2543 = vpop.f32.mrf.mxu0
        %v2544 = vadd.f32 %v2503, %v2543
        %v2545 = vpop.f32.mrf.mxu0
        %v2546 = vadd.f32 %v2505, %v2545
        %v2547 = vpop.f32.mrf.mxu0
        %v2548 = vpop.f32.mrf.mxu0
        %2549 = vdwg.mxu0
        %2550 = vmatprep.subr.bf16.mxu0 %v901
        %2551 = vmatpush1.bf16.msra.mxu0 %v900
        %2552 = vmatprep.subr.bf16.mxu0 %v885
        %2553 = vmatpush1.bf16.msra.mxu0 %v884
        %2554 = vmatprep.subr.bf16.mxu0 %v869
        %2555 = vmatpush1.bf16.msra.mxu0 %v868
        %2556 = vmatprep.subr.bf16.mxu0 %v853
        %2557 = vmatpush1.bf16.msra.mxu0 %v852
        %2558 = vmatprep.subr.bf16.mxu0 %v837
        %2559 = vmatpush1.bf16.msra.mxu0 %v836
        %2560 = vmatprep.subr.bf16.mxu0 %v821
        %2561 = vmatpush1.bf16.msra.mxu0 %v820
        %2562 = vmatprep.subr.bf16.mxu0 %v805
        %2563 = vmatpush1.bf16.msra.mxu0 %v804
        %2564 = vmatprep.subr.bf16.mxu0 %v789
        %2565 = vmatpush1.bf16.msra.mxu0 %v788
        %2566 = vmatprep.subr.bf16.mxu0 %v1029
        %2567 = vmatpush2.bf16.msra.mxu0 %v1028
        %2568 = vmatprep.subr.bf16.mxu0 %v1013
        %2569 = vmatpush2.bf16.msra.mxu0 %v1012
        %2570 = vmatprep.subr.bf16.mxu0 %v997
        %2571 = vmatpush2.bf16.msra.mxu0 %v996
        %2572 = vmatprep.subr.bf16.mxu0 %v981
        %2573 = vmatpush2.bf16.msra.mxu0 %v980
        %2574 = vmatprep.subr.bf16.mxu0 %v965
        %2575 = vmatpush2.bf16.msra.mxu0 %v964
        %2576 = vmatprep.subr.bf16.mxu0 %v949
        %2577 = vmatpush2.bf16.msra.mxu0 %v948
        %2578 = vmatprep.subr.bf16.mxu0 %v933
        %2579 = vmatpush2.bf16.msra.mxu0 %v932
        %2580 = vmatprep.subr.bf16.mxu0 %v917
        %2581 = vmatpush2.bf16.msra.mxu0 %v916
        %2582 = vmatprep.mubr.bf16.mxu0 %v1712
        %2583 = vmatmul.mubr.bf16.gmra.mxu0 %v1698
        %v2584 = vpop.f32.mrf.mxu0
        %v2585 = vadd.f32 0.0, %v2584
        %v2586 = vpop.f32.mrf.mxu0
        %v2587 = vadd.f32 0.0, %v2586
        %v2588 = vpop.f32.mrf.mxu0
        %v2589 = vpop.f32.mrf.mxu0
        %2590 = vdwg.mxu0
        %2591 = vmatprep.subr.bf16.mxu0 %v1157
        %2592 = vmatpush1.bf16.msra.mxu0 %v1156
        %2593 = vmatprep.subr.bf16.mxu0 %v1141
        %2594 = vmatpush1.bf16.msra.mxu0 %v1140
        %2595 = vmatprep.subr.bf16.mxu0 %v1125
        %2596 = vmatpush1.bf16.msra.mxu0 %v1124
        %2597 = vmatprep.subr.bf16.mxu0 %v1109
        %2598 = vmatpush1.bf16.msra.mxu0 %v1108
        %2599 = vmatprep.subr.bf16.mxu0 %v1093
        %2600 = vmatpush1.bf16.msra.mxu0 %v1092
        %2601 = vmatprep.subr.bf16.mxu0 %v1077
        %2602 = vmatpush1.bf16.msra.mxu0 %v1076
        %2603 = vmatprep.subr.bf16.mxu0 %v1061
        %2604 = vmatpush1.bf16.msra.mxu0 %v1060
        %2605 = vmatprep.subr.bf16.mxu0 %v1045
        %2606 = vmatpush1.bf16.msra.mxu0 %v1044
        %2607 = vmatprep.subr.bf16.mxu0 %v1285
        %2608 = vmatpush2.bf16.msra.mxu0 %v1284
        %2609 = vmatprep.subr.bf16.mxu0 %v1269
        %2610 = vmatpush2.bf16.msra.mxu0 %v1268
        %2611 = vmatprep.subr.bf16.mxu0 %v1253
        %2612 = vmatpush2.bf16.msra.mxu0 %v1252
        %2613 = vmatprep.subr.bf16.mxu0 %v1237
        %2614 = vmatpush2.bf16.msra.mxu0 %v1236
        %2615 = vmatprep.subr.bf16.mxu0 %v1221
        %2616 = vmatpush2.bf16.msra.mxu0 %v1220
        %2617 = vmatprep.subr.bf16.mxu0 %v1205
        %2618 = vmatpush2.bf16.msra.mxu0 %v1204
        %2619 = vmatprep.subr.bf16.mxu0 %v1189
        %2620 = vmatpush2.bf16.msra.mxu0 %v1188
        %2621 = vmatprep.subr.bf16.mxu0 %v1173
        %2622 = vmatpush2.bf16.msra.mxu0 %v1172
        %2623 = vmatprep.mubr.bf16.mxu0 %v1722
        %2624 = vmatmul.mubr.bf16.gmra.mxu0 %v1720
        %v2625 = vpop.f32.mrf.mxu0
        %v2626 = vadd.f32 %v2585, %v2625
        %v2627 = vpop.f32.mrf.mxu0
        %v2628 = vadd.f32 %v2587, %v2627
        %v2629 = vpop.f32.mrf.mxu0
        %v2630 = vpop.f32.mrf.mxu0
        %2631 = vdwg.mxu0
        %2632 = vmatprep.subr.bf16.mxu0 %v1413
        %2633 = vmatpush1.bf16.msra.mxu0 %v1412
        %2634 = vmatprep.subr.bf16.mxu0 %v1397
        %2635 = vmatpush1.bf16.msra.mxu0 %v1396
        %2636 = vmatprep.subr.bf16.mxu0 %v1381
        %2637 = vmatpush1.bf16.msra.mxu0 %v1380
        %2638 = vmatprep.subr.bf16.mxu0 %v1365
        %2639 = vmatpush1.bf16.msra.mxu0 %v1364
        %2640 = vmatprep.subr.bf16.mxu0 %v1349
        %2641 = vmatpush1.bf16.msra.mxu0 %v1348
        %2642 = vmatprep.subr.bf16.mxu0 %v1333
        %2643 = vmatpush1.bf16.msra.mxu0 %v1332
        %2644 = vmatprep.subr.bf16.mxu0 %v1317
        %2645 = vmatpush1.bf16.msra.mxu0 %v1316
        %2646 = vmatprep.subr.bf16.mxu0 %v1301
        %2647 = vmatpush1.bf16.msra.mxu0 %v1300
        %2648 = vmatprep.subr.bf16.mxu0 %v1541
        %2649 = vmatpush2.bf16.msra.mxu0 %v1540
        %2650 = vmatprep.subr.bf16.mxu0 %v1525
        %2651 = vmatpush2.bf16.msra.mxu0 %v1524
        %2652 = vmatprep.subr.bf16.mxu0 %v1509
        %2653 = vmatpush2.bf16.msra.mxu0 %v1508
        %2654 = vmatprep.subr.bf16.mxu0 %v1493
        %2655 = vmatpush2.bf16.msra.mxu0 %v1492
        %2656 = vmatprep.subr.bf16.mxu0 %v1477
        %2657 = vmatpush2.bf16.msra.mxu0 %v1476
        %2658 = vmatprep.subr.bf16.mxu0 %v1461
        %2659 = vmatpush2.bf16.msra.mxu0 %v1460
        %2660 = vmatprep.subr.bf16.mxu0 %v1445
        %2661 = vmatpush2.bf16.msra.mxu0 %v1444
        %2662 = vmatprep.subr.bf16.mxu0 %v1429
        %2663 = vmatpush2.bf16.msra.mxu0 %v1428
        %2664 = vmatprep.mubr.bf16.mxu0 %v1719
        %2665 = vmatmul.mubr.bf16.gmra.mxu0 %v1705
        %v2666 = vpop.f32.mrf.mxu0
        %v2667 = vadd.f32 %v2626, %v2666
        %v2668 = vpop.f32.mrf.mxu0
        %v2669 = vadd.f32 %v2628, %v2668
        %v2670 = vpop.f32.mrf.mxu0
        %v2671 = vpop.f32.mrf.mxu0
        %2672 = vdwg.mxu0
        %2673 = vmatprep.subr.bf16.mxu0 %v1669
        %2674 = vmatpush1.bf16.msra.mxu0 %v1668
        %2675 = vmatprep.subr.bf16.mxu0 %v1653
        %2676 = vmatpush1.bf16.msra.mxu0 %v1652
        %2677 = vmatprep.subr.bf16.mxu0 %v1637
        %2678 = vmatpush1.bf16.msra.mxu0 %v1636
        %2679 = vmatprep.subr.bf16.mxu0 %v1621
        %2680 = vmatpush1.bf16.msra.mxu0 %v1620
        %2681 = vmatprep.subr.bf16.mxu0 %v1605
        %2682 = vmatpush1.bf16.msra.mxu0 %v1604
        %2683 = vmatprep.subr.bf16.mxu0 %v1589
        %2684 = vmatpush1.bf16.msra.mxu0 %v1588
        %2685 = vmatprep.subr.bf16.mxu0 %v1573
        %2686 = vmatpush1.bf16.msra.mxu0 %v1572
        %2687 = vmatprep.subr.bf16.mxu0 %v1557
        %2688 = vmatpush1.bf16.msra.mxu0 %v1556
        %2689 = vmatprep.subr.bf16.mxu0 0
        %2690 = vmatpush2.bf16.msra.mxu0 0
        %2691 = vmatprep.subr.bf16.mxu0 0
        %2692 = vmatpush2.bf16.msra.mxu0 0
        %2693 = vmatprep.subr.bf16.mxu0 0
        %2694 = vmatpush2.bf16.msra.mxu0 0
        %2695 = vmatprep.subr.bf16.mxu0 0
        %2696 = vmatpush2.bf16.msra.mxu0 0
        %2697 = vmatprep.subr.bf16.mxu0 0
        %2698 = vmatpush2.bf16.msra.mxu0 0
        %2699 = vmatprep.subr.bf16.mxu0 0
        %2700 = vmatpush2.bf16.msra.mxu0 0
        %2701 = vmatprep.subr.bf16.mxu0 0
        %2702 = vmatpush2.bf16.msra.mxu0 0
        %2703 = vmatprep.subr.bf16.mxu0 0
        %2704 = vmatpush2.bf16.msra.mxu0 0
        %2705 = vmatprep.mubr.bf16.mxu0 0
        %2706 = vmatmul.mubr.bf16.gmra.mxu0 %v1721
        %v2707 = vpop.f32.mrf.mxu0
        %v2708 = vadd.f32 %v2667, %v2707
        %v2709 = vpop.f32.mrf.mxu0
        %v2710 = vadd.f32 %v2669, %v2709
        %v2711 = vpop.f32.mrf.mxu0
        %v2712 = vpop.f32.mrf.mxu0
        %2713 = vdwg.mxu0
        %2714 = vmatprep.subr.bf16.mxu0 %v903
        %2715 = vmatpush1.bf16.msra.mxu0 %v902
        %2716 = vmatprep.subr.bf16.mxu0 %v887
        %2717 = vmatpush1.bf16.msra.mxu0 %v886
        %2718 = vmatprep.subr.bf16.mxu0 %v871
        %2719 = vmatpush1.bf16.msra.mxu0 %v870
        %2720 = vmatprep.subr.bf16.mxu0 %v855
        %2721 = vmatpush1.bf16.msra.mxu0 %v854
        %2722 = vmatprep.subr.bf16.mxu0 %v839
        %2723 = vmatpush1.bf16.msra.mxu0 %v838
        %2724 = vmatprep.subr.bf16.mxu0 %v823
        %2725 = vmatpush1.bf16.msra.mxu0 %v822
        %2726 = vmatprep.subr.bf16.mxu0 %v807
        %2727 = vmatpush1.bf16.msra.mxu0 %v806
        %2728 = vmatprep.subr.bf16.mxu0 %v791
        %2729 = vmatpush1.bf16.msra.mxu0 %v790
        %2730 = vmatprep.subr.bf16.mxu0 %v1031
        %2731 = vmatpush2.bf16.msra.mxu0 %v1030
        %2732 = vmatprep.subr.bf16.mxu0 %v1015
        %2733 = vmatpush2.bf16.msra.mxu0 %v1014
        %2734 = vmatprep.subr.bf16.mxu0 %v999
        %2735 = vmatpush2.bf16.msra.mxu0 %v998
        %2736 = vmatprep.subr.bf16.mxu0 %v983
        %2737 = vmatpush2.bf16.msra.mxu0 %v982
        %2738 = vmatprep.subr.bf16.mxu0 %v967
        %2739 = vmatpush2.bf16.msra.mxu0 %v966
        %2740 = vmatprep.subr.bf16.mxu0 %v951
        %2741 = vmatpush2.bf16.msra.mxu0 %v950
        %2742 = vmatprep.subr.bf16.mxu0 %v935
        %2743 = vmatpush2.bf16.msra.mxu0 %v934
        %2744 = vmatprep.subr.bf16.mxu0 %v919
        %2745 = vmatpush2.bf16.msra.mxu0 %v918
        %2746 = vmatprep.mubr.bf16.mxu0 %v1712
        %2747 = vmatmul.mubr.bf16.gmra.mxu0 %v1698
        %v2748 = vpop.f32.mrf.mxu0
        %v2749 = vadd.f32 0.0, %v2748
        %v2750 = vpop.f32.mrf.mxu0
        %v2751 = vadd.f32 0.0, %v2750
        %v2752 = vpop.f32.mrf.mxu0
        %v2753 = vpop.f32.mrf.mxu0
        %2754 = vdwg.mxu0
        %2755 = vmatprep.subr.bf16.mxu0 %v1159
        %2756 = vmatpush1.bf16.msra.mxu0 %v1158
        %2757 = vmatprep.subr.bf16.mxu0 %v1143
        %2758 = vmatpush1.bf16.msra.mxu0 %v1142
        %2759 = vmatprep.subr.bf16.mxu0 %v1127
        %2760 = vmatpush1.bf16.msra.mxu0 %v1126
        %2761 = vmatprep.subr.bf16.mxu0 %v1111
        %2762 = vmatpush1.bf16.msra.mxu0 %v1110
        %2763 = vmatprep.subr.bf16.mxu0 %v1095
        %2764 = vmatpush1.bf16.msra.mxu0 %v1094
        %2765 = vmatprep.subr.bf16.mxu0 %v1079
        %2766 = vmatpush1.bf16.msra.mxu0 %v1078
        %2767 = vmatprep.subr.bf16.mxu0 %v1063
        %2768 = vmatpush1.bf16.msra.mxu0 %v1062
        %2769 = vmatprep.subr.bf16.mxu0 %v1047
        %2770 = vmatpush1.bf16.msra.mxu0 %v1046
        %2771 = vmatprep.subr.bf16.mxu0 %v1287
        %2772 = vmatpush2.bf16.msra.mxu0 %v1286
        %2773 = vmatprep.subr.bf16.mxu0 %v1271
        %2774 = vmatpush2.bf16.msra.mxu0 %v1270
        %2775 = vmatprep.subr.bf16.mxu0 %v1255
        %2776 = vmatpush2.bf16.msra.mxu0 %v1254
        %2777 = vmatprep.subr.bf16.mxu0 %v1239
        %2778 = vmatpush2.bf16.msra.mxu0 %v1238
        %2779 = vmatprep.subr.bf16.mxu0 %v1223
        %2780 = vmatpush2.bf16.msra.mxu0 %v1222
        %2781 = vmatprep.subr.bf16.mxu0 %v1207
        %2782 = vmatpush2.bf16.msra.mxu0 %v1206
        %2783 = vmatprep.subr.bf16.mxu0 %v1191
        %2784 = vmatpush2.bf16.msra.mxu0 %v1190
        %2785 = vmatprep.subr.bf16.mxu0 %v1175
        %2786 = vmatpush2.bf16.msra.mxu0 %v1174
        %2787 = vmatprep.mubr.bf16.mxu0 %v1722
        %2788 = vmatmul.mubr.bf16.gmra.mxu0 %v1720
        %v2789 = vpop.f32.mrf.mxu0
        %v2790 = vadd.f32 %v2749, %v2789
        %v2791 = vpop.f32.mrf.mxu0
        %v2792 = vadd.f32 %v2751, %v2791
        %v2793 = vpop.f32.mrf.mxu0
        %v2794 = vpop.f32.mrf.mxu0
        %2795 = vdwg.mxu0
        %2796 = vmatprep.subr.bf16.mxu0 %v1415
        %2797 = vmatpush1.bf16.msra.mxu0 %v1414
        %2798 = vmatprep.subr.bf16.mxu0 %v1399
        %2799 = vmatpush1.bf16.msra.mxu0 %v1398
        %2800 = vmatprep.subr.bf16.mxu0 %v1383
        %2801 = vmatpush1.bf16.msra.mxu0 %v1382
        %2802 = vmatprep.subr.bf16.mxu0 %v1367
        %2803 = vmatpush1.bf16.msra.mxu0 %v1366
        %2804 = vmatprep.subr.bf16.mxu0 %v1351
        %2805 = vmatpush1.bf16.msra.mxu0 %v1350
        %2806 = vmatprep.subr.bf16.mxu0 %v1335
        %2807 = vmatpush1.bf16.msra.mxu0 %v1334
        %2808 = vmatprep.subr.bf16.mxu0 %v1319
        %2809 = vmatpush1.bf16.msra.mxu0 %v1318
        %2810 = vmatprep.subr.bf16.mxu0 %v1303
        %2811 = vmatpush1.bf16.msra.mxu0 %v1302
        %2812 = vmatprep.subr.bf16.mxu0 %v1543
        %2813 = vmatpush2.bf16.msra.mxu0 %v1542
        %2814 = vmatprep.subr.bf16.mxu0 %v1527
        %2815 = vmatpush2.bf16.msra.mxu0 %v1526
        %2816 = vmatprep.subr.bf16.mxu0 %v1511
        %2817 = vmatpush2.bf16.msra.mxu0 %v1510
        %2818 = vmatprep.subr.bf16.mxu0 %v1495
        %2819 = vmatpush2.bf16.msra.mxu0 %v1494
        %2820 = vmatprep.subr.bf16.mxu0 %v1479
        %2821 = vmatpush2.bf16.msra.mxu0 %v1478
        %2822 = vmatprep.subr.bf16.mxu0 %v1463
        %2823 = vmatpush2.bf16.msra.mxu0 %v1462
        %2824 = vmatprep.subr.bf16.mxu0 %v1447
        %2825 = vmatpush2.bf16.msra.mxu0 %v1446
        %2826 = vmatprep.subr.bf16.mxu0 %v1431
        %2827 = vmatpush2.bf16.msra.mxu0 %v1430
        %2828 = vmatprep.mubr.bf16.mxu0 %v1719
        %2829 = vmatmul.mubr.bf16.gmra.mxu0 %v1705
        %v2830 = vpop.f32.mrf.mxu0
        %v2831 = vadd.f32 %v2790, %v2830
        %v2832 = vpop.f32.mrf.mxu0
        %v2833 = vadd.f32 %v2792, %v2832
        %v2834 = vpop.f32.mrf.mxu0
        %v2835 = vpop.f32.mrf.mxu0
        %2836 = vdwg.mxu0
        %2837 = vmatprep.subr.bf16.mxu0 %v1671
        %2838 = vmatpush1.bf16.msra.mxu0 %v1670
        %2839 = vmatprep.subr.bf16.mxu0 %v1655
        %2840 = vmatpush1.bf16.msra.mxu0 %v1654
        %2841 = vmatprep.subr.bf16.mxu0 %v1639
        %2842 = vmatpush1.bf16.msra.mxu0 %v1638
        %2843 = vmatprep.subr.bf16.mxu0 %v1623
        %2844 = vmatpush1.bf16.msra.mxu0 %v1622
        %2845 = vmatprep.subr.bf16.mxu0 %v1607
        %2846 = vmatpush1.bf16.msra.mxu0 %v1606
        %2847 = vmatprep.subr.bf16.mxu0 %v1591
        %2848 = vmatpush1.bf16.msra.mxu0 %v1590
        %2849 = vmatprep.subr.bf16.mxu0 %v1575
        %2850 = vmatpush1.bf16.msra.mxu0 %v1574
        %2851 = vmatprep.subr.bf16.mxu0 %v1559
        %2852 = vmatpush1.bf16.msra.mxu0 %v1558
        %2853 = vmatprep.subr.bf16.mxu0 0
        %2854 = vmatpush2.bf16.msra.mxu0 0
        %2855 = vmatprep.subr.bf16.mxu0 0
        %2856 = vmatpush2.bf16.msra.mxu0 0
        %2857 = vmatprep.subr.bf16.mxu0 0
        %2858 = vmatpush2.bf16.msra.mxu0 0
        %2859 = vmatprep.subr.bf16.mxu0 0
        %2860 = vmatpush2.bf16.msra.mxu0 0
        %2861 = vmatprep.subr.bf16.mxu0 0
        %2862 = vmatpush2.bf16.msra.mxu0 0
        %2863 = vmatprep.subr.bf16.mxu0 0
        %2864 = vmatpush2.bf16.msra.mxu0 0
        %2865 = vmatprep.subr.bf16.mxu0 0
        %2866 = vmatpush2.bf16.msra.mxu0 0
        %2867 = vmatprep.subr.bf16.mxu0 0
        %2868 = vmatpush2.bf16.msra.mxu0 0
        %2869 = vmatprep.mubr.bf16.mxu0 0
        %2870 = vmatmul.mubr.bf16.gmra.mxu0 %v1721
        %v2871 = vpop.f32.mrf.mxu0
        %v2872 = vadd.f32 %v2831, %v2871
        %v2873 = vpop.f32.mrf.mxu0
        %v2874 = vadd.f32 %v2833, %v2873
        %v2875 = vpop.f32.mrf.mxu0
        %v2876 = vpop.f32.mrf.mxu0
        %2877 = vdwg.mxu0
        %2878 = vmatprep.subr.bf16.mxu0 %v905
        %2879 = vmatpush1.bf16.msra.mxu0 %v904
        %2880 = vmatprep.subr.bf16.mxu0 %v889
        %2881 = vmatpush1.bf16.msra.mxu0 %v888
        %2882 = vmatprep.subr.bf16.mxu0 %v873
        %2883 = vmatpush1.bf16.msra.mxu0 %v872
        %2884 = vmatprep.subr.bf16.mxu0 %v857
        %2885 = vmatpush1.bf16.msra.mxu0 %v856
        %2886 = vmatprep.subr.bf16.mxu0 %v841
        %2887 = vmatpush1.bf16.msra.mxu0 %v840
        %2888 = vmatprep.subr.bf16.mxu0 %v825
        %2889 = vmatpush1.bf16.msra.mxu0 %v824
        %2890 = vmatprep.subr.bf16.mxu0 %v809
        %2891 = vmatpush1.bf16.msra.mxu0 %v808
        %2892 = vmatprep.subr.bf16.mxu0 %v793
        %2893 = vmatpush1.bf16.msra.mxu0 %v792
        %2894 = vmatprep.subr.bf16.mxu0 %v1033
        %2895 = vmatpush2.bf16.msra.mxu0 %v1032
        %2896 = vmatprep.subr.bf16.mxu0 %v1017
        %2897 = vmatpush2.bf16.msra.mxu0 %v1016
        %2898 = vmatprep.subr.bf16.mxu0 %v1001
        %2899 = vmatpush2.bf16.msra.mxu0 %v1000
        %2900 = vmatprep.subr.bf16.mxu0 %v985
        %2901 = vmatpush2.bf16.msra.mxu0 %v984
        %2902 = vmatprep.subr.bf16.mxu0 %v969
        %2903 = vmatpush2.bf16.msra.mxu0 %v968
        %2904 = vmatprep.subr.bf16.mxu0 %v953
        %2905 = vmatpush2.bf16.msra.mxu0 %v952
        %2906 = vmatprep.subr.bf16.mxu0 %v937
        %2907 = vmatpush2.bf16.msra.mxu0 %v936
        %2908 = vmatprep.subr.bf16.mxu0 %v921
        %2909 = vmatpush2.bf16.msra.mxu0 %v920
        %2910 = vmatprep.mubr.bf16.mxu0 %v1712
        %2911 = vmatmul.mubr.bf16.gmra.mxu0 %v1698
        %v2912 = vpop.f32.mrf.mxu0
        %v2913 = vadd.f32 0.0, %v2912
        %v2914 = vpop.f32.mrf.mxu0
        %v2915 = vadd.f32 0.0, %v2914
        %v2916 = vpop.f32.mrf.mxu0
        %v2917 = vpop.f32.mrf.mxu0
        %2918 = vdwg.mxu0
        %2919 = vmatprep.subr.bf16.mxu0 %v1161
        %2920 = vmatpush1.bf16.msra.mxu0 %v1160
        %2921 = vmatprep.subr.bf16.mxu0 %v1145
        %2922 = vmatpush1.bf16.msra.mxu0 %v1144
        %2923 = vmatprep.subr.bf16.mxu0 %v1129
        %2924 = vmatpush1.bf16.msra.mxu0 %v1128
        %2925 = vmatprep.subr.bf16.mxu0 %v1113
        %2926 = vmatpush1.bf16.msra.mxu0 %v1112
        %2927 = vmatprep.subr.bf16.mxu0 %v1097
        %2928 = vmatpush1.bf16.msra.mxu0 %v1096
        %2929 = vmatprep.subr.bf16.mxu0 %v1081
        %2930 = vmatpush1.bf16.msra.mxu0 %v1080
        %2931 = vmatprep.subr.bf16.mxu0 %v1065
        %2932 = vmatpush1.bf16.msra.mxu0 %v1064
        %2933 = vmatprep.subr.bf16.mxu0 %v1049
        %2934 = vmatpush1.bf16.msra.mxu0 %v1048
        %2935 = vmatprep.subr.bf16.mxu0 %v1289
        %2936 = vmatpush2.bf16.msra.mxu0 %v1288
        %2937 = vmatprep.subr.bf16.mxu0 %v1273
        %2938 = vmatpush2.bf16.msra.mxu0 %v1272
        %2939 = vmatprep.subr.bf16.mxu0 %v1257
        %2940 = vmatpush2.bf16.msra.mxu0 %v1256
        %2941 = vmatprep.subr.bf16.mxu0 %v1241
        %2942 = vmatpush2.bf16.msra.mxu0 %v1240
        %2943 = vmatprep.subr.bf16.mxu0 %v1225
        %2944 = vmatpush2.bf16.msra.mxu0 %v1224
        %2945 = vmatprep.subr.bf16.mxu0 %v1209
        %2946 = vmatpush2.bf16.msra.mxu0 %v1208
        %2947 = vmatprep.subr.bf16.mxu0 %v1193
        %2948 = vmatpush2.bf16.msra.mxu0 %v1192
        %2949 = vmatprep.subr.bf16.mxu0 %v1177
        %2950 = vmatpush2.bf16.msra.mxu0 %v1176
        %2951 = vmatprep.mubr.bf16.mxu0 %v1722
        %2952 = vmatmul.mubr.bf16.gmra.mxu0 %v1720
        %v2953 = vpop.f32.mrf.mxu0
        %v2954 = vadd.f32 %v2913, %v2953
        %v2955 = vpop.f32.mrf.mxu0
        %v2956 = vadd.f32 %v2915, %v2955
        %v2957 = vpop.f32.mrf.mxu0
        %v2958 = vpop.f32.mrf.mxu0
        %2959 = vdwg.mxu0
        %2960 = vmatprep.subr.bf16.mxu0 %v1417
        %2961 = vmatpush1.bf16.msra.mxu0 %v1416
        %2962 = vmatprep.subr.bf16.mxu0 %v1401
        %2963 = vmatpush1.bf16.msra.mxu0 %v1400
        %2964 = vmatprep.subr.bf16.mxu0 %v1385
        %2965 = vmatpush1.bf16.msra.mxu0 %v1384
        %2966 = vmatprep.subr.bf16.mxu0 %v1369
        %2967 = vmatpush1.bf16.msra.mxu0 %v1368
        %2968 = vmatprep.subr.bf16.mxu0 %v1353
        %2969 = vmatpush1.bf16.msra.mxu0 %v1352
        %2970 = vmatprep.subr.bf16.mxu0 %v1337
        %2971 = vmatpush1.bf16.msra.mxu0 %v1336
        %2972 = vmatprep.subr.bf16.mxu0 %v1321
        %2973 = vmatpush1.bf16.msra.mxu0 %v1320
        %2974 = vmatprep.subr.bf16.mxu0 %v1305
        %2975 = vmatpush1.bf16.msra.mxu0 %v1304
        %2976 = vmatprep.subr.bf16.mxu0 %v1545
        %2977 = vmatpush2.bf16.msra.mxu0 %v1544
        %2978 = vmatprep.subr.bf16.mxu0 %v1529
        %2979 = vmatpush2.bf16.msra.mxu0 %v1528
        %2980 = vmatprep.subr.bf16.mxu0 %v1513
        %2981 = vmatpush2.bf16.msra.mxu0 %v1512
        %2982 = vmatprep.subr.bf16.mxu0 %v1497
        %2983 = vmatpush2.bf16.msra.mxu0 %v1496
        %2984 = vmatprep.subr.bf16.mxu0 %v1481
        %2985 = vmatpush2.bf16.msra.mxu0 %v1480
        %2986 = vmatprep.subr.bf16.mxu0 %v1465
        %2987 = vmatpush2.bf16.msra.mxu0 %v1464
        %2988 = vmatprep.subr.bf16.mxu0 %v1449
        %2989 = vmatpush2.bf16.msra.mxu0 %v1448
        %2990 = vmatprep.subr.bf16.mxu0 %v1433
        %2991 = vmatpush2.bf16.msra.mxu0 %v1432
        %2992 = vmatprep.mubr.bf16.mxu0 %v1719
        %2993 = vmatmul.mubr.bf16.gmra.mxu0 %v1705
        %v2994 = vpop.f32.mrf.mxu0
        %v2995 = vadd.f32 %v2954, %v2994
        %v2996 = vpop.f32.mrf.mxu0
        %v2997 = vadd.f32 %v2956, %v2996
        %v2998 = vpop.f32.mrf.mxu0
        %v2999 = vpop.f32.mrf.mxu0
        %3000 = vdwg.mxu0
        %3001 = vmatprep.subr.bf16.mxu0 %v1673
        %3002 = vmatpush1.bf16.msra.mxu0 %v1672
        %3003 = vmatprep.subr.bf16.mxu0 %v1657
        %3004 = vmatpush1.bf16.msra.mxu0 %v1656
        %3005 = vmatprep.subr.bf16.mxu0 %v1641
        %3006 = vmatpush1.bf16.msra.mxu0 %v1640
        %3007 = vmatprep.subr.bf16.mxu0 %v1625
        %3008 = vmatpush1.bf16.msra.mxu0 %v1624
        %3009 = vmatprep.subr.bf16.mxu0 %v1609
        %3010 = vmatpush1.bf16.msra.mxu0 %v1608
        %3011 = vmatprep.subr.bf16.mxu0 %v1593
        %3012 = vmatpush1.bf16.msra.mxu0 %v1592
        %3013 = vmatprep.subr.bf16.mxu0 %v1577
        %3014 = vmatpush1.bf16.msra.mxu0 %v1576
        %3015 = vmatprep.subr.bf16.mxu0 %v1561
        %3016 = vmatpush1.bf16.msra.mxu0 %v1560
        %3017 = vmatprep.subr.bf16.mxu0 0
        %3018 = vmatpush2.bf16.msra.mxu0 0
        %3019 = vmatprep.subr.bf16.mxu0 0
        %3020 = vmatpush2.bf16.msra.mxu0 0
        %3021 = vmatprep.subr.bf16.mxu0 0
        %3022 = vmatpush2.bf16.msra.mxu0 0
        %3023 = vmatprep.subr.bf16.mxu0 0
        %3024 = vmatpush2.bf16.msra.mxu0 0
        %3025 = vmatprep.subr.bf16.mxu0 0
        %3026 = vmatpush2.bf16.msra.mxu0 0
        %3027 = vmatprep.subr.bf16.mxu0 0
        %3028 = vmatpush2.bf16.msra.mxu0 0
        %3029 = vmatprep.subr.bf16.mxu0 0
        %3030 = vmatpush2.bf16.msra.mxu0 0
        %3031 = vmatprep.subr.bf16.mxu0 0
        %3032 = vmatpush2.bf16.msra.mxu0 0
        %3033 = vmatprep.mubr.bf16.mxu0 0
        %3034 = vmatmul.mubr.bf16.gmra.mxu0 %v1721
        %v3035 = vpop.f32.mrf.mxu0
        %v3036 = vadd.f32 %v2995, %v3035
        %v3037 = vpop.f32.mrf.mxu0
        %v3038 = vadd.f32 %v2997, %v3037
        %v3039 = vpop.f32.mrf.mxu0
        %v3040 = vpop.f32.mrf.mxu0
        %3041 = vdwg.mxu0
        %v3058 = vcombine.low %v1888, %v1890
        %v3059 = vcombine.low %v2052, %v2054
        %v3061 = vunpack.c.l.s4 1983009808
        %v3062 = vunpack.c.0.s8 %v3061
        %v3063 = vlaneseq
        %v3064 = vshrl.u32 %v3063, 7
        %v3065 = vsub.s32 %v3062, %v3064
        %v3066 = vrot.slane %v3058, %v3065
        %v3068 = vunpack.c.l.s4 1983009808
        %v3069 = vunpack.c.0.s8 %v3068
        %v3070 = vlaneseq
        %v3071 = vshrl.u32 %v3070, 7
        %v3072 = vsub.s32 %v3069, %v3071
        %v3073 = vrot.slane %v3059, %v3072
        %v3074 = vcombine.low %v3066, %v3073
        %v3075 = vcombine.low %v2216, %v2218
        %v3076 = vcombine.low %v2380, %v2382
        %v3078 = vunpack.c.l.s4 1983009808
        %v3079 = vunpack.c.0.s8 %v3078
        %v3080 = vlaneseq
        %v3081 = vshrl.u32 %v3080, 7
        %v3082 = vsub.s32 %v3079, %v3081
        %v3083 = vrot.slane %v3075, %v3082
        %v3085 = vunpack.c.l.s4 1983009808
        %v3086 = vunpack.c.0.s8 %v3085
        %v3087 = vlaneseq
        %v3088 = vshrl.u32 %v3087, 7
        %v3089 = vsub.s32 %v3086, %v3088
        %v3090 = vrot.slane %v3076, %v3089
        %v3091 = vcombine.low %v3083, %v3090
        %v3092 = vcombine.low %v2544, %v2546
        %v3093 = vcombine.low %v2708, %v2710
        %v3095 = vunpack.c.l.s4 1983009808
        %v3096 = vunpack.c.0.s8 %v3095
        %v3097 = vlaneseq
        %v3098 = vshrl.u32 %v3097, 7
        %v3099 = vsub.s32 %v3096, %v3098
        %v3100 = vrot.slane %v3092, %v3099
        %v3102 = vunpack.c.l.s4 1983009808
        %v3103 = vunpack.c.0.s8 %v3102
        %v3104 = vlaneseq
        %v3105 = vshrl.u32 %v3104, 7
        %v3106 = vsub.s32 %v3103, %v3105
        %v3107 = vrot.slane %v3093, %v3106
        %v3108 = vcombine.low %v3100, %v3107
        %v3109 = vcombine.low %v2872, %v2874
        %v3110 = vcombine.low %v3036, %v3038
        %v3112 = vunpack.c.l.s4 1983009808
        %v3113 = vunpack.c.0.s8 %v3112
        %v3114 = vlaneseq
        %v3115 = vshrl.u32 %v3114, 7
        %v3116 = vsub.s32 %v3113, %v3115
        %v3117 = vrot.slane %v3109, %v3116
        %v3119 = vunpack.c.l.s4 1983009808
        %v3120 = vunpack.c.0.s8 %v3119
        %v3121 = vlaneseq
        %v3122 = vshrl.u32 %v3121, 7
        %v3123 = vsub.s32 %v3120, %v3122
        %v3124 = vrot.slane %v3110, %v3123
        %v3125 = vcombine.low %v3117, %v3124
        %v3130 = vadd.f32 %v325, %v3074
        %v3131 = vadd.f32 %v326, %v3091
        %v3132 = vadd.f32 %v327, %v3108
        %v3133 = vadd.f32 %v328, %v3125
        %3134 = vst [vmem:[#allocation2] sm:$0xff] %v3130
        %3135 = vst [vmem:[#allocation2 + $0x8] sm:$0xff] %v3131
        %3136 = vst [vmem:[#allocation2 + $0x10] sm:$0xff] %v3132
        %3137 = vst [vmem:[#allocation2 + $0x18] sm:$0xff] %v3133
        %p3138 = scmp.eq.s32.totalorder %s20, 6
        // Predicated region
        $region57: #{_pipeline.3} parent=51 // pred_check
          %p3139 = pneg %p3138
        $region58: #{_pipeline.3} parent=51 // pred_check_branch
          %3141 = sbr.rel (%p3139) target = $region60
        $region59: #{_pipeline.3} parent=51 // pred_region
          %v3142 = vld [vmem:[#allocation2] sm:$0xff]
          %v3143 = vld [vmem:[#allocation2 + $0x8] sm:$0xff]
          %v3144 = vld [vmem:[#allocation2 + $0x10] sm:$0xff]
          %v3145 = vld [vmem:[#allocation2 + $0x18] sm:$0xff]
          %v3146 = vld [vmem:[%s2] sm:$0xff]
          %v3147 = vld [vmem:[%s2 + $0x8] sm:$0xff]
          %v3150 = vlaneseq
          %v3151 = vshrl.u32 %v3150, 7
          %v3152 = vsub.s32 0, %v3151
          %v3153 = vrot.slane %v3146, %v3152
          %v3154 = vlaneseq
          %v3155 = vshrl.u32 %v3154, 7
          %v3156 = vsub.s32 1, %v3155
          %v3157 = vrot.slane %v3146, %v3156
          %v3158 = vlaneseq
          %v3159 = vshrl.u32 %v3158, 7
          %v3160 = vsub.s32 2, %v3159
          %v3161 = vrot.slane %v3146, %v3160
          %v3162 = vlaneseq
          %v3163 = vshrl.u32 %v3162, 7
          %v3164 = vsub.s32 3, %v3163
          %v3165 = vrot.slane %v3146, %v3164
          %v3166 = vlaneseq
          %v3167 = vshrl.u32 %v3166, 7
          %v3168 = vsub.s32 4, %v3167
          %v3169 = vrot.slane %v3146, %v3168
          %v3170 = vlaneseq
          %v3171 = vshrl.u32 %v3170, 7
          %v3172 = vsub.s32 5, %v3171
          %v3173 = vrot.slane %v3146, %v3172
          %v3174 = vlaneseq
          %v3175 = vshrl.u32 %v3174, 7
          %v3176 = vsub.s32 6, %v3175
          %v3177 = vrot.slane %v3146, %v3176
          %v3178 = vlaneseq
          %v3179 = vshrl.u32 %v3178, 7
          %v3180 = vsub.s32 7, %v3179
          %v3181 = vrot.slane %v3146, %v3180
          %v3182 = vlaneseq
          %v3183 = vshrl.u32 %v3182, 7
          %v3184 = vsub.s32 0, %v3183
          %v3185 = vrot.slane %v3147, %v3184
          %v3186 = vlaneseq
          %v3187 = vshrl.u32 %v3186, 7
          %v3188 = vsub.s32 1, %v3187
          %v3189 = vrot.slane %v3147, %v3188
          %v3190 = vlaneseq
          %v3191 = vshrl.u32 %v3190, 7
          %v3192 = vsub.s32 2, %v3191
          %v3193 = vrot.slane %v3147, %v3192
          %v3194 = vlaneseq
          %v3195 = vshrl.u32 %v3194, 7
          %v3196 = vsub.s32 3, %v3195
          %v3197 = vrot.slane %v3147, %v3196
          %v3198 = vlaneseq
          %v3199 = vshrl.u32 %v3198, 7
          %v3200 = vsub.s32 4, %v3199
          %v3201 = vrot.slane %v3147, %v3200
          %v3202 = vlaneseq
          %v3203 = vshrl.u32 %v3202, 7
          %v3204 = vsub.s32 5, %v3203
          %v3205 = vrot.slane %v3147, %v3204
          %v3206 = vlaneseq
          %v3207 = vshrl.u32 %v3206, 7
          %v3208 = vsub.s32 6, %v3207
          %v3209 = vrot.slane %v3147, %v3208
          %v3210 = vlaneseq
          %v3211 = vshrl.u32 %v3210, 7
          %v3212 = vsub.s32 7, %v3211
          %v3213 = vrot.slane %v3147, %v3212
          %v3214 = vcombine.low %v3153, %v3157
          %v3215 = vcombine.low %v3161, %v3165
          %v3217 = vunpack.c.l.s4 1983009808
          %v3218 = vunpack.c.0.s8 %v3217
          %v3219 = vlaneseq
          %v3220 = vshrl.u32 %v3219, 7
          %v3221 = vsub.s32 %v3218, %v3220
          %v3222 = vrot.slane %v3214, %v3221
          %v3224 = vunpack.c.l.s4 1983009808
          %v3225 = vunpack.c.0.s8 %v3224
          %v3226 = vlaneseq
          %v3227 = vshrl.u32 %v3226, 7
          %v3228 = vsub.s32 %v3225, %v3227
          %v3229 = vrot.slane %v3215, %v3228
          %v3230 = vcombine.low %v3222, %v3229
          %v3231 = vcombine.low %v3169, %v3173
          %v3232 = vcombine.low %v3177, %v3181
          %v3234 = vunpack.c.l.s4 1983009808
          %v3235 = vunpack.c.0.s8 %v3234
          %v3236 = vlaneseq
          %v3237 = vshrl.u32 %v3236, 7
          %v3238 = vsub.s32 %v3235, %v3237
          %v3239 = vrot.slane %v3231, %v3238
          %v3241 = vunpack.c.l.s4 1983009808
          %v3242 = vunpack.c.0.s8 %v3241
          %v3243 = vlaneseq
          %v3244 = vshrl.u32 %v3243, 7
          %v3245 = vsub.s32 %v3242, %v3244
          %v3246 = vrot.slane %v3232, %v3245
          %v3247 = vcombine.low %v3239, %v3246
          %v3248 = vcombine.low %v3185, %v3189
          %v3249 = vcombine.low %v3193, %v3197
          %v3251 = vunpack.c.l.s4 1983009808
          %v3252 = vunpack.c.0.s8 %v3251
          %v3253 = vlaneseq
          %v3254 = vshrl.u32 %v3253, 7
          %v3255 = vsub.s32 %v3252, %v3254
          %v3256 = vrot.slane %v3248, %v3255
          %v3258 = vunpack.c.l.s4 1983009808
          %v3259 = vunpack.c.0.s8 %v3258
          %v3260 = vlaneseq
          %v3261 = vshrl.u32 %v3260, 7
          %v3262 = vsub.s32 %v3259, %v3261
          %v3263 = vrot.slane %v3249, %v3262
          %v3264 = vcombine.low %v3256, %v3263
          %v3265 = vcombine.low %v3201, %v3205
          %v3266 = vcombine.low %v3209, %v3213
          %v3268 = vunpack.c.l.s4 1983009808
          %v3269 = vunpack.c.0.s8 %v3268
          %v3270 = vlaneseq
          %v3271 = vshrl.u32 %v3270, 7
          %v3272 = vsub.s32 %v3269, %v3271
          %v3273 = vrot.slane %v3265, %v3272
          %v3275 = vunpack.c.l.s4 1983009808
          %v3276 = vunpack.c.0.s8 %v3275
          %v3277 = vlaneseq
          %v3278 = vshrl.u32 %v3277, 7
          %v3279 = vsub.s32 %v3276, %v3278
          %v3280 = vrot.slane %v3266, %v3279
          %v3281 = vcombine.low %v3273, %v3280
          %v3286 = vmul.f32 %v3142, %v3230
          %v3287 = vmul.f32 %v3143, %v3247
          %v3288 = vmul.f32 %v3144, %v3264
          %v3289 = vmul.f32 %v3145, %v3281
          %v3290 = vld [vmem:[%s3] sm:$0xff]
          %v3291 = vld [vmem:[%s3 + $0x8] sm:$0xff]
          %v3294 = vlaneseq
          %v3295 = vshrl.u32 %v3294, 7
          %v3296 = vsub.s32 0, %v3295
          %v3297 = vrot.slane %v3290, %v3296
          %v3298 = vlaneseq
          %v3299 = vshrl.u32 %v3298, 7
          %v3300 = vsub.s32 1, %v3299
          %v3301 = vrot.slane %v3290, %v3300
          %v3302 = vlaneseq
          %v3303 = vshrl.u32 %v3302, 7
          %v3304 = vsub.s32 2, %v3303
          %v3305 = vrot.slane %v3290, %v3304
          %v3306 = vlaneseq
          %v3307 = vshrl.u32 %v3306, 7
          %v3308 = vsub.s32 3, %v3307
          %v3309 = vrot.slane %v3290, %v3308
          %v3310 = vlaneseq
          %v3311 = vshrl.u32 %v3310, 7
          %v3312 = vsub.s32 4, %v3311
          %v3313 = vrot.slane %v3290, %v3312
          %v3314 = vlaneseq
          %v3315 = vshrl.u32 %v3314, 7
          %v3316 = vsub.s32 5, %v3315
          %v3317 = vrot.slane %v3290, %v3316
          %v3318 = vlaneseq
          %v3319 = vshrl.u32 %v3318, 7
          %v3320 = vsub.s32 6, %v3319
          %v3321 = vrot.slane %v3290, %v3320
          %v3322 = vlaneseq
          %v3323 = vshrl.u32 %v3322, 7
          %v3324 = vsub.s32 7, %v3323
          %v3325 = vrot.slane %v3290, %v3324
          %v3326 = vlaneseq
          %v3327 = vshrl.u32 %v3326, 7
          %v3328 = vsub.s32 0, %v3327
          %v3329 = vrot.slane %v3291, %v3328
          %v3330 = vlaneseq
          %v3331 = vshrl.u32 %v3330, 7
          %v3332 = vsub.s32 1, %v3331
          %v3333 = vrot.slane %v3291, %v3332
          %v3334 = vlaneseq
          %v3335 = vshrl.u32 %v3334, 7
          %v3336 = vsub.s32 2, %v3335
          %v3337 = vrot.slane %v3291, %v3336
          %v3338 = vlaneseq
          %v3339 = vshrl.u32 %v3338, 7
          %v3340 = vsub.s32 3, %v3339
          %v3341 = vrot.slane %v3291, %v3340
          %v3342 = vlaneseq
          %v3343 = vshrl.u32 %v3342, 7
          %v3344 = vsub.s32 4, %v3343
          %v3345 = vrot.slane %v3291, %v3344
          %v3346 = vlaneseq
          %v3347 = vshrl.u32 %v3346, 7
          %v3348 = vsub.s32 5, %v3347
          %v3349 = vrot.slane %v3291, %v3348
          %v3350 = vlaneseq
          %v3351 = vshrl.u32 %v3350, 7
          %v3352 = vsub.s32 6, %v3351
          %v3353 = vrot.slane %v3291, %v3352
          %v3354 = vlaneseq
          %v3355 = vshrl.u32 %v3354, 7
          %v3356 = vsub.s32 7, %v3355
          %v3357 = vrot.slane %v3291, %v3356
          %v3358 = vcombine.low %v3297, %v3301
          %v3359 = vcombine.low %v3305, %v3309
          %v3361 = vunpack.c.l.s4 1983009808
          %v3362 = vunpack.c.0.s8 %v3361
          %v3363 = vlaneseq
          %v3364 = vshrl.u32 %v3363, 7
          %v3365 = vsub.s32 %v3362, %v3364
          %v3366 = vrot.slane %v3358, %v3365
          %v3368 = vunpack.c.l.s4 1983009808
          %v3369 = vunpack.c.0.s8 %v3368
          %v3370 = vlaneseq
          %v3371 = vshrl.u32 %v3370, 7
          %v3372 = vsub.s32 %v3369, %v3371
          %v3373 = vrot.slane %v3359, %v3372
          %v3374 = vcombine.low %v3366, %v3373
          %v3375 = vcombine.low %v3313, %v3317
          %v3376 = vcombine.low %v3321, %v3325
          %v3378 = vunpack.c.l.s4 1983009808
          %v3379 = vunpack.c.0.s8 %v3378
          %v3380 = vlaneseq
          %v3381 = vshrl.u32 %v3380, 7
          %v3382 = vsub.s32 %v3379, %v3381
          %v3383 = vrot.slane %v3375, %v3382
          %v3385 = vunpack.c.l.s4 1983009808
          %v3386 = vunpack.c.0.s8 %v3385
          %v3387 = vlaneseq
          %v3388 = vshrl.u32 %v3387, 7
          %v3389 = vsub.s32 %v3386, %v3388
          %v3390 = vrot.slane %v3376, %v3389
          %v3391 = vcombine.low %v3383, %v3390
          %v3392 = vcombine.low %v3329, %v3333
          %v3393 = vcombine.low %v3337, %v3341
          %v3395 = vunpack.c.l.s4 1983009808
          %v3396 = vunpack.c.0.s8 %v3395
          %v3397 = vlaneseq
          %v3398 = vshrl.u32 %v3397, 7
          %v3399 = vsub.s32 %v3396, %v3398
          %v3400 = vrot.slane %v3392, %v3399
          %v3402 = vunpack.c.l.s4 1983009808
          %v3403 = vunpack.c.0.s8 %v3402
          %v3404 = vlaneseq
          %v3405 = vshrl.u32 %v3404, 7
          %v3406 = vsub.s32 %v3403, %v3405
          %v3407 = vrot.slane %v3393, %v3406
          %v3408 = vcombine.low %v3400, %v3407
          %v3409 = vcombine.low %v3345, %v3349
          %v3410 = vcombine.low %v3353, %v3357
          %v3412 = vunpack.c.l.s4 1983009808
          %v3413 = vunpack.c.0.s8 %v3412
          %v3414 = vlaneseq
          %v3415 = vshrl.u32 %v3414, 7
          %v3416 = vsub.s32 %v3413, %v3415
          %v3417 = vrot.slane %v3409, %v3416
          %v3419 = vunpack.c.l.s4 1983009808
          %v3420 = vunpack.c.0.s8 %v3419
          %v3421 = vlaneseq
          %v3422 = vshrl.u32 %v3421, 7
          %v3423 = vsub.s32 %v3420, %v3422
          %v3424 = vrot.slane %v3410, %v3423
          %v3425 = vcombine.low %v3417, %v3424
          %v3430 = vadd.f32 %v3286, %v3374
          %v3431 = vadd.f32 %v3287, %v3391
          %v3432 = vadd.f32 %v3288, %v3408
          %v3433 = vadd.f32 %v3289, %v3425
          %v3434 = vmax.f32 %v3430, 0.0
          %v3435 = vmax.f32 %v3431, 0.0
          %v3436 = vmax.f32 %v3432, 0.0
          %v3437 = vmax.f32 %v3433, 0.0
          %v3442 = vcombine.high %v3434, %v3434
          %v3444 = vunpack.c.l.s4 1983009808
          %v3445 = vunpack.c.0.s8 %v3444
          %v3446 = vlaneseq
          %v3447 = vshrl.u32 %v3446, 7
          %v3448 = vsub.s32 %v3445, %v3447
          %v3449 = vrot.slane %v3434, %v3448
          %v3451 = vunpack.c.l.s4 1983009808
          %v3452 = vunpack.c.0.s8 %v3451
          %v3453 = vlaneseq
          %v3454 = vshrl.u32 %v3453, 7
          %v3455 = vsub.s32 %v3452, %v3454
          %v3456 = vrot.slane %v3442, %v3455
          %v3457 = vcombine.high %v3449, %v3449
          %v3458 = vcombine.high %v3456, %v3456
          %v3459 = vcombine.high %v3435, %v3435
          %v3461 = vunpack.c.l.s4 1983009808
          %v3462 = vunpack.c.0.s8 %v3461
          %v3463 = vlaneseq
          %v3464 = vshrl.u32 %v3463, 7
          %v3465 = vsub.s32 %v3462, %v3464
          %v3466 = vrot.slane %v3435, %v3465
          %v3468 = vunpack.c.l.s4 1983009808
          %v3469 = vunpack.c.0.s8 %v3468
          %v3470 = vlaneseq
          %v3471 = vshrl.u32 %v3470, 7
          %v3472 = vsub.s32 %v3469, %v3471
          %v3473 = vrot.slane %v3459, %v3472
          %v3474 = vcombine.high %v3466, %v3466
          %v3475 = vcombine.high %v3473, %v3473
          %v3476 = vcombine.high %v3436, %v3436
          %v3478 = vunpack.c.l.s4 1983009808
          %v3479 = vunpack.c.0.s8 %v3478
          %v3480 = vlaneseq
          %v3481 = vshrl.u32 %v3480, 7
          %v3482 = vsub.s32 %v3479, %v3481
          %v3483 = vrot.slane %v3436, %v3482
          %v3485 = vunpack.c.l.s4 1983009808
          %v3486 = vunpack.c.0.s8 %v3485
          %v3487 = vlaneseq
          %v3488 = vshrl.u32 %v3487, 7
          %v3489 = vsub.s32 %v3486, %v3488
          %v3490 = vrot.slane %v3476, %v3489
          %v3491 = vcombine.high %v3483, %v3483
          %v3492 = vcombine.high %v3490, %v3490
          %v3493 = vcombine.high %v3437, %v3437
          %v3495 = vunpack.c.l.s4 1983009808
          %v3496 = vunpack.c.0.s8 %v3495
          %v3497 = vlaneseq
          %v3498 = vshrl.u32 %v3497, 7
          %v3499 = vsub.s32 %v3496, %v3498
          %v3500 = vrot.slane %v3437, %v3499
          %v3502 = vunpack.c.l.s4 1983009808
          %v3503 = vunpack.c.0.s8 %v3502
          %v3504 = vlaneseq
          %v3505 = vshrl.u32 %v3504, 7
          %v3506 = vsub.s32 %v3503, %v3505
          %v3507 = vrot.slane %v3493, %v3506
          %v3508 = vcombine.high %v3500, %v3500
          %v3509 = vcombine.high %v3507, %v3507
          %v3526 = vpack.c.bf16 %v3449, %v3449
          %v3527 = vpack.c.bf16 %v3457, %v3457
          %v3528 = vpack.c.bf16 %v3456, %v3456
          %v3529 = vpack.c.bf16 %v3458, %v3458
          %v3530 = vpack.c.bf16 %v3466, %v3466
          %v3531 = vpack.c.bf16 %v3474, %v3474
          %v3532 = vpack.c.bf16 %v3473, %v3473
          %v3533 = vpack.c.bf16 %v3475, %v3475
          %v3534 = vpack.c.bf16 %v3483, %v3483
          %v3535 = vpack.c.bf16 %v3491, %v3491
          %v3536 = vpack.c.bf16 %v3490, %v3490
          %v3537 = vpack.c.bf16 %v3492, %v3492
          %v3538 = vpack.c.bf16 %v3500, %v3500
          %v3539 = vpack.c.bf16 %v3508, %v3508
          %v3540 = vpack.c.bf16 %v3507, %v3507
          %v3541 = vpack.c.bf16 %v3509, %v3509
          %v3542 = vld [vmem:[%s4] sm:$0xf]
          %v3543 = vld [vmem:[%s4 + $0x4] sm:$0xf]
          %v3544 = vld [vmem:[%s4 + $0x8] sm:$0xf]
          %v3545 = vld [vmem:[%s4 + $0xc] sm:$0xf]
          %v3546 = vld [vmem:[%s4 + $0x10] sm:$0xf]
          %v3547 = vld [vmem:[%s4 + $0x14] sm:$0xf]
          %v3548 = vld [vmem:[%s4 + $0x18] sm:$0xf]
          %v3549 = vld [vmem:[%s4 + $0x1c] sm:$0xf]
          %v3550 = vld [vmem:[%s4 + $0x20] sm:$0xf]
          %v3551 = vld [vmem:[%s4 + $0x24] sm:$0xf]
          %v3552 = vld [vmem:[%s4 + $0x28] sm:$0xf]
          %v3553 = vld [vmem:[%s4 + $0x2c] sm:$0xf]
          %v3554 = vld [vmem:[%s4 + $0x30] sm:$0xf]
          %v3555 = vld [vmem:[%s4 + $0x34] sm:$0xf]
          %v3556 = vld [vmem:[%s4 + $0x38] sm:$0xf]
          %v3557 = vld [vmem:[%s4 + $0x3c] sm:$0xf]
          %v3558 = vld [vmem:[%s4 + $0x40] sm:$0xf]
          %v3559 = vld [vmem:[%s4 + $0x44] sm:$0xf]
          %v3560 = vld [vmem:[%s4 + $0x48] sm:$0xf]
          %v3561 = vld [vmem:[%s4 + $0x4c] sm:$0xf]
          %v3562 = vld [vmem:[%s4 + $0x50] sm:$0xf]
          %v3563 = vld [vmem:[%s4 + $0x54] sm:$0xf]
          %v3564 = vld [vmem:[%s4 + $0x58] sm:$0xf]
          %v3565 = vld [vmem:[%s4 + $0x5c] sm:$0xf]
          %v3566 = vld [vmem:[%s4 + $0x60] sm:$0xf]
          %v3567 = vld [vmem:[%s4 + $0x64] sm:$0xf]
          %v3568 = vld [vmem:[%s4 + $0x68] sm:$0xf]
          %v3569 = vld [vmem:[%s4 + $0x6c] sm:$0xf]
          %v3570 = vld [vmem:[%s4 + $0x70] sm:$0xf]
          %v3571 = vld [vmem:[%s4 + $0x74] sm:$0xf]
          %v3572 = vld [vmem:[%s4 + $0x78] sm:$0xf]
          %v3573 = vld [vmem:[%s4 + $0x7c] sm:$0xf]
          %v3574 = vld [vmem:[%s4 + $0x80] sm:$0xf]
          %v3575 = vld [vmem:[%s4 + $0x84] sm:$0xf]
          %v3576 = vld [vmem:[%s4 + $0x88] sm:$0xf]
          %v3577 = vld [vmem:[%s4 + $0x8c] sm:$0xf]
          %v3578 = vld [vmem:[%s4 + $0x90] sm:$0xf]
          %v3579 = vld [vmem:[%s4 + $0x94] sm:$0xf]
          %v3580 = vld [vmem:[%s4 + $0x98] sm:$0xf]
          %v3581 = vld [vmem:[%s4 + $0x9c] sm:$0xf]
          %v3582 = vld [vmem:[%s4 + $0xa0] sm:$0xf]
          %v3583 = vld [vmem:[%s4 + $0xa4] sm:$0xf]
          %v3584 = vld [vmem:[%s4 + $0xa8] sm:$0xf]
          %v3585 = vld [vmem:[%s4 + $0xac] sm:$0xf]
          %v3586 = vld [vmem:[%s4 + $0xb0] sm:$0xf]
          %v3587 = vld [vmem:[%s4 + $0xb4] sm:$0xf]
          %v3588 = vld [vmem:[%s4 + $0xb8] sm:$0xf]
          %v3589 = vld [vmem:[%s4 + $0xbc] sm:$0xf]
          %v3590 = vld [vmem:[%s4 + $0xc0] sm:$0xf]
          %v3591 = vld [vmem:[%s4 + $0xc4] sm:$0xf]
          %v3592 = vld [vmem:[%s4 + $0xc8] sm:$0xf]
          %v3593 = vld [vmem:[%s4 + $0xcc] sm:$0xf]
          %v3594 = vld [vmem:[%s4 + $0xd0] sm:$0xf]
          %v3595 = vld [vmem:[%s4 + $0xd4] sm:$0xf]
          %v3596 = vld [vmem:[%s4 + $0xd8] sm:$0xf]
          %v3597 = vld [vmem:[%s4 + $0xdc] sm:$0xf]
          %v3598 = vld [vmem:[%s4 + $0xe0] sm:$0xf]
          %v3599 = vld [vmem:[%s4 + $0xe4] sm:$0xf]
          %v3600 = vld [vmem:[%s4 + $0xe8] sm:$0xf]
          %v3601 = vld [vmem:[%s4 + $0xec] sm:$0xf]
          %v3602 = vld [vmem:[%s4 + $0xf0] sm:$0xf]
          %v3603 = vld [vmem:[%s4 + $0xf4] sm:$0xf]
          %v3604 = vld [vmem:[%s4 + $0xf8] sm:$0xf]
          %v3605 = vld [vmem:[%s4 + $0xfc] sm:$0xf]
          %v3606 = vld [vmem:[%s4 + $0x100] sm:$0xf]
          %v3607 = vld [vmem:[%s4 + $0x104] sm:$0xf]
          %v3608 = vld [vmem:[%s4 + $0x108] sm:$0xf]
          %v3609 = vld [vmem:[%s4 + $0x10c] sm:$0xf]
          %v3610 = vld [vmem:[%s4 + $0x110] sm:$0xf]
          %v3611 = vld [vmem:[%s4 + $0x114] sm:$0xf]
          %v3612 = vld [vmem:[%s4 + $0x118] sm:$0xf]
          %v3613 = vld [vmem:[%s4 + $0x11c] sm:$0xf]
          %v3614 = vld [vmem:[%s4 + $0x120] sm:$0xf]
          %v3615 = vld [vmem:[%s4 + $0x124] sm:$0xf]
          %v3616 = vld [vmem:[%s4 + $0x128] sm:$0xf]
          %v3617 = vld [vmem:[%s4 + $0x12c] sm:$0xf]
          %v3618 = vld [vmem:[%s4 + $0x130] sm:$0xf]
          %v3619 = vld [vmem:[%s4 + $0x134] sm:$0xf]
          %v3620 = vld [vmem:[%s4 + $0x138] sm:$0xf]
          %v3621 = vld [vmem:[%s4 + $0x13c] sm:$0xf]
          %v3622 = vld [vmem:[%s4 + $0x140] sm:$0xf]
          %v3623 = vld [vmem:[%s4 + $0x144] sm:$0xf]
          %v3624 = vld [vmem:[%s4 + $0x148] sm:$0xf]
          %v3625 = vld [vmem:[%s4 + $0x14c] sm:$0xf]
          %v3626 = vld [vmem:[%s4 + $0x150] sm:$0xf]
          %v3627 = vld [vmem:[%s4 + $0x154] sm:$0xf]
          %v3628 = vld [vmem:[%s4 + $0x158] sm:$0xf]
          %v3629 = vld [vmem:[%s4 + $0x15c] sm:$0xf]
          %v3630 = vld [vmem:[%s4 + $0x160] sm:$0xf]
          %v3631 = vld [vmem:[%s4 + $0x164] sm:$0xf]
          %v3632 = vld [vmem:[%s4 + $0x168] sm:$0xf]
          %v3633 = vld [vmem:[%s4 + $0x16c] sm:$0xf]
          %v3634 = vld [vmem:[%s4 + $0x170] sm:$0xf]
          %v3635 = vld [vmem:[%s4 + $0x174] sm:$0xf]
          %v3636 = vld [vmem:[%s4 + $0x178] sm:$0xf]
          %v3637 = vld [vmem:[%s4 + $0x17c] sm:$0xf]
          %v3638 = vld [vmem:[%s4 + $0x180] sm:$0xf]
          %v3639 = vld [vmem:[%s4 + $0x184] sm:$0xf]
          %v3640 = vld [vmem:[%s4 + $0x188] sm:$0xf]
          %v3641 = vld [vmem:[%s4 + $0x18c] sm:$0xf]
          %v3642 = vld [vmem:[%s4 + $0x190] sm:$0xf]
          %v3643 = vld [vmem:[%s4 + $0x194] sm:$0xf]
          %v3644 = vld [vmem:[%s4 + $0x198] sm:$0xf]
          %v3645 = vld [vmem:[%s4 + $0x19c] sm:$0xf]
          %v3646 = vld [vmem:[%s4 + $0x1a0] sm:$0xf]
          %v3647 = vld [vmem:[%s4 + $0x1a4] sm:$0xf]
          %v3648 = vld [vmem:[%s4 + $0x1a8] sm:$0xf]
          %v3649 = vld [vmem:[%s4 + $0x1ac] sm:$0xf]
          %v3650 = vld [vmem:[%s4 + $0x1b0] sm:$0xf]
          %v3651 = vld [vmem:[%s4 + $0x1b4] sm:$0xf]
          %v3652 = vld [vmem:[%s4 + $0x1b8] sm:$0xf]
          %v3653 = vld [vmem:[%s4 + $0x1bc] sm:$0xf]
          %v3654 = vld [vmem:[%s4 + $0x1c0] sm:$0xf]
          %v3655 = vld [vmem:[%s4 + $0x1c4] sm:$0xf]
          %v3656 = vld [vmem:[%s4 + $0x1c8] sm:$0xf]
          %v3657 = vld [vmem:[%s4 + $0x1cc] sm:$0xf]
          %v3658 = vld [vmem:[%s4 + $0x1d0] sm:$0xf]
          %v3659 = vld [vmem:[%s4 + $0x1d4] sm:$0xf]
          %v3660 = vld [vmem:[%s4 + $0x1d8] sm:$0xf]
          %v3661 = vld [vmem:[%s4 + $0x1dc] sm:$0xf]
          %v3662 = vld [vmem:[%s4 + $0x1e0] sm:$0xf]
          %v3663 = vld [vmem:[%s4 + $0x1e4] sm:$0xf]
          %v3664 = vld [vmem:[%s4 + $0x1e8] sm:$0xf]
          %v3665 = vld [vmem:[%s4 + $0x1ec] sm:$0xf]
          %v3666 = vld [vmem:[%s4 + $0x1f0] sm:$0xf]
          %v3667 = vld [vmem:[%s4 + $0x1f4] sm:$0xf]
          %v3668 = vld [vmem:[%s4 + $0x1f8] sm:$0xf]
          %v3669 = vld [vmem:[%s4 + $0x1fc] sm:$0xf]
          %v3670 = vld [vmem:[%s4 + $0x200] sm:$0xf]
          %v3671 = vld [vmem:[%s4 + $0x204] sm:$0xf]
          %v3672 = vld [vmem:[%s4 + $0x208] sm:$0xf]
          %v3673 = vld [vmem:[%s4 + $0x20c] sm:$0xf]
          %v3674 = vld [vmem:[%s4 + $0x210] sm:$0xf]
          %v3675 = vld [vmem:[%s4 + $0x214] sm:$0xf]
          %v3676 = vld [vmem:[%s4 + $0x218] sm:$0xf]
          %v3677 = vld [vmem:[%s4 + $0x21c] sm:$0xf]
          %v3678 = vld [vmem:[%s4 + $0x220] sm:$0xf]
          %v3679 = vld [vmem:[%s4 + $0x224] sm:$0xf]
          %v3680 = vld [vmem:[%s4 + $0x228] sm:$0xf]
          %v3681 = vld [vmem:[%s4 + $0x22c] sm:$0xf]
          %v3682 = vld [vmem:[%s4 + $0x230] sm:$0xf]
          %v3683 = vld [vmem:[%s4 + $0x234] sm:$0xf]
          %v3684 = vld [vmem:[%s4 + $0x238] sm:$0xf]
          %v3685 = vld [vmem:[%s4 + $0x23c] sm:$0xf]
          %v3686 = vld [vmem:[%s4 + $0x240] sm:$0xf]
          %v3687 = vld [vmem:[%s4 + $0x244] sm:$0xf]
          %v3688 = vld [vmem:[%s4 + $0x248] sm:$0xf]
          %v3689 = vld [vmem:[%s4 + $0x24c] sm:$0xf]
          %v3690 = vld [vmem:[%s4 + $0x250] sm:$0xf]
          %v3691 = vld [vmem:[%s4 + $0x254] sm:$0xf]
          %v3692 = vld [vmem:[%s4 + $0x258] sm:$0xf]
          %v3693 = vld [vmem:[%s4 + $0x25c] sm:$0xf]
          %v3694 = vld [vmem:[%s4 + $0x260] sm:$0xf]
          %v3695 = vld [vmem:[%s4 + $0x264] sm:$0xf]
          %v3696 = vld [vmem:[%s4 + $0x268] sm:$0xf]
          %v3697 = vld [vmem:[%s4 + $0x26c] sm:$0xf]
          %v3698 = vld [vmem:[%s4 + $0x270] sm:$0xf]
          %v3699 = vld [vmem:[%s4 + $0x274] sm:$0xf]
          %v3700 = vld [vmem:[%s4 + $0x278] sm:$0xf]
          %v3701 = vld [vmem:[%s4 + $0x27c] sm:$0xf]
          %v3702 = vld [vmem:[%s4 + $0x280] sm:$0xf]
          %v3703 = vld [vmem:[%s4 + $0x284] sm:$0xf]
          %v3704 = vld [vmem:[%s4 + $0x288] sm:$0xf]
          %v3705 = vld [vmem:[%s4 + $0x28c] sm:$0xf]
          %v3706 = vld [vmem:[%s4 + $0x290] sm:$0xf]
          %v3707 = vld [vmem:[%s4 + $0x294] sm:$0xf]
          %v3708 = vld [vmem:[%s4 + $0x298] sm:$0xf]
          %v3709 = vld [vmem:[%s4 + $0x29c] sm:$0xf]
          %v3710 = vld [vmem:[%s4 + $0x2a0] sm:$0xf]
          %v3711 = vld [vmem:[%s4 + $0x2a4] sm:$0xf]
          %v3712 = vld [vmem:[%s4 + $0x2a8] sm:$0xf]
          %v3713 = vld [vmem:[%s4 + $0x2ac] sm:$0xf]
          %v3714 = vld [vmem:[%s4 + $0x2b0] sm:$0xf]
          %v3715 = vld [vmem:[%s4 + $0x2b4] sm:$0xf]
          %v3716 = vld [vmem:[%s4 + $0x2b8] sm:$0xf]
          %v3717 = vld [vmem:[%s4 + $0x2bc] sm:$0xf]
          %v3718 = vld [vmem:[%s4 + $0x2c0] sm:$0xf]
          %v3719 = vld [vmem:[%s4 + $0x2c4] sm:$0xf]
          %v3720 = vld [vmem:[%s4 + $0x2c8] sm:$0xf]
          %v3721 = vld [vmem:[%s4 + $0x2cc] sm:$0xf]
          %v3722 = vld [vmem:[%s4 + $0x2d0] sm:$0xf]
          %v3723 = vld [vmem:[%s4 + $0x2d4] sm:$0xf]
          %v3724 = vld [vmem:[%s4 + $0x2d8] sm:$0xf]
          %v3725 = vld [vmem:[%s4 + $0x2dc] sm:$0xf]
          %v3726 = vld [vmem:[%s4 + $0x2e0] sm:$0xf]
          %v3727 = vld [vmem:[%s4 + $0x2e4] sm:$0xf]
          %v3728 = vld [vmem:[%s4 + $0x2e8] sm:$0xf]
          %v3729 = vld [vmem:[%s4 + $0x2ec] sm:$0xf]
          %v3730 = vld [vmem:[%s4 + $0x2f0] sm:$0xf]
          %v3731 = vld [vmem:[%s4 + $0x2f4] sm:$0xf]
          %v3732 = vld [vmem:[%s4 + $0x2f8] sm:$0xf]
          %v3733 = vld [vmem:[%s4 + $0x2fc] sm:$0xf]
          %v3734 = vld [vmem:[%s4 + $0x300] sm:$0xf]
          %v3735 = vld [vmem:[%s4 + $0x304] sm:$0xf]
          %v3736 = vld [vmem:[%s4 + $0x308] sm:$0xf]
          %v3737 = vld [vmem:[%s4 + $0x30c] sm:$0xf]
          %v3738 = vld [vmem:[%s4 + $0x310] sm:$0xf]
          %v3739 = vld [vmem:[%s4 + $0x314] sm:$0xf]
          %v3740 = vld [vmem:[%s4 + $0x318] sm:$0xf]
          %v3741 = vld [vmem:[%s4 + $0x31c] sm:$0xf]
          %v3742 = vld [vmem:[%s4 + $0x320] sm:$0xf]
          %v3743 = vld [vmem:[%s4 + $0x324] sm:$0xf]
          %v3744 = vld [vmem:[%s4 + $0x328] sm:$0xf]
          %v3745 = vld [vmem:[%s4 + $0x32c] sm:$0xf]
          %v3746 = vld [vmem:[%s4 + $0x330] sm:$0xf]
          %v3747 = vld [vmem:[%s4 + $0x334] sm:$0xf]
          %v3748 = vld [vmem:[%s4 + $0x338] sm:$0xf]
          %v3749 = vld [vmem:[%s4 + $0x33c] sm:$0xf]
          %v3750 = vld [vmem:[%s4 + $0x340] sm:$0xf]
          %v3751 = vld [vmem:[%s4 + $0x344] sm:$0xf]
          %v3752 = vld [vmem:[%s4 + $0x348] sm:$0xf]
          %v3753 = vld [vmem:[%s4 + $0x34c] sm:$0xf]
          %v3754 = vld [vmem:[%s4 + $0x350] sm:$0xf]
          %v3755 = vld [vmem:[%s4 + $0x354] sm:$0xf]
          %v3756 = vld [vmem:[%s4 + $0x358] sm:$0xf]
          %v3757 = vld [vmem:[%s4 + $0x35c] sm:$0xf]
          %v3758 = vld [vmem:[%s4 + $0x360] sm:$0xf]
          %v3759 = vld [vmem:[%s4 + $0x364] sm:$0xf]
          %v3760 = vld [vmem:[%s4 + $0x368] sm:$0xf]
          %v3761 = vld [vmem:[%s4 + $0x36c] sm:$0xf]
          %v3762 = vld [vmem:[%s4 + $0x370] sm:$0xf]
          %v3763 = vld [vmem:[%s4 + $0x374] sm:$0xf]
          %v3764 = vld [vmem:[%s4 + $0x378] sm:$0xf]
          %v3765 = vld [vmem:[%s4 + $0x37c] sm:$0xf]
          %v3766 = vld [vmem:[%s4 + $0x380] sm:$0xf]
          %v3767 = vld [vmem:[%s4 + $0x384] sm:$0xf]
          %v3768 = vld [vmem:[%s4 + $0x388] sm:$0xf]
          %v3769 = vld [vmem:[%s4 + $0x38c] sm:$0xf]
          %v3770 = vld [vmem:[%s4 + $0x390] sm:$0xf]
          %v3771 = vld [vmem:[%s4 + $0x394] sm:$0xf]
          %v3772 = vld [vmem:[%s4 + $0x398] sm:$0xf]
          %v3773 = vld [vmem:[%s4 + $0x39c] sm:$0xf]
          %v3774 = vld [vmem:[%s4 + $0x3a0] sm:$0xf]
          %v3775 = vld [vmem:[%s4 + $0x3a4] sm:$0xf]
          %v3776 = vld [vmem:[%s4 + $0x3a8] sm:$0xf]
          %v3777 = vld [vmem:[%s4 + $0x3ac] sm:$0xf]
          %v3778 = vld [vmem:[%s4 + $0x3b0] sm:$0xf]
          %v3779 = vld [vmem:[%s4 + $0x3b4] sm:$0xf]
          %v3780 = vld [vmem:[%s4 + $0x3b8] sm:$0xf]
          %v3781 = vld [vmem:[%s4 + $0x3bc] sm:$0xf]
          %v3782 = vld [vmem:[%s4 + $0x3c0] sm:$0xf]
          %v3783 = vld [vmem:[%s4 + $0x3c4] sm:$0xf]
          %v3784 = vld [vmem:[%s4 + $0x3c8] sm:$0xf]
          %v3785 = vld [vmem:[%s4 + $0x3cc] sm:$0xf]
          %v3786 = vld [vmem:[%s4 + $0x3d0] sm:$0xf]
          %v3787 = vld [vmem:[%s4 + $0x3d4] sm:$0xf]
          %v3788 = vld [vmem:[%s4 + $0x3d8] sm:$0xf]
          %v3789 = vld [vmem:[%s4 + $0x3dc] sm:$0xf]
          %v3790 = vld [vmem:[%s4 + $0x3e0] sm:$0xf]
          %v3791 = vld [vmem:[%s4 + $0x3e4] sm:$0xf]
          %v3792 = vld [vmem:[%s4 + $0x3e8] sm:$0xf]
          %v3793 = vld [vmem:[%s4 + $0x3ec] sm:$0xf]
          %v3794 = vld [vmem:[%s4 + $0x3f0] sm:$0xf]
          %v3795 = vld [vmem:[%s4 + $0x3f4] sm:$0xf]
          %v3796 = vld [vmem:[%s4 + $0x3f8] sm:$0xf]
          %v3797 = vld [vmem:[%s4 + $0x3fc] sm:$0xf]
          %v3798 = vld [vmem:[%s5] sm:$0x1]
          %v3800 = vlaneseq
          %v3801 = vshrl.u32 %v3800, 7
          %v3802 = vsub.s32 0, %v3801
          %v3803 = vrot.slane %v3798, %v3802
          %v4061 = vunpack.c.l.b16 %v3542
          %v4062 = vunpack.c.l.b16 %v3543
          %v4063 = vunpack.c.l.b16 %v3544
          %v4064 = vunpack.c.l.b16 %v3545
          %v4065 = vunpack.c.l.b16 %v3546
          %v4066 = vunpack.c.l.b16 %v3547
          %v4067 = vunpack.c.l.b16 %v3548
          %v4068 = vunpack.c.l.b16 %v3549
          %v4069 = vunpack.c.l.b16 %v3550
          %v4070 = vunpack.c.l.b16 %v3551
          %v4071 = vunpack.c.l.b16 %v3552
          %v4072 = vunpack.c.l.b16 %v3553
          %v4073 = vunpack.c.l.b16 %v3554
          %v4074 = vunpack.c.l.b16 %v3555
          %v4075 = vunpack.c.l.b16 %v3556
          %v4076 = vunpack.c.l.b16 %v3557
          %v4077 = vunpack.c.l.b16 %v3558
          %v4078 = vunpack.c.l.b16 %v3559
          %v4079 = vunpack.c.l.b16 %v3560
          %v4080 = vunpack.c.l.b16 %v3561
          %v4081 = vunpack.c.l.b16 %v3562
          %v4082 = vunpack.c.l.b16 %v3563
          %v4083 = vunpack.c.l.b16 %v3564
          %v4084 = vunpack.c.l.b16 %v3565
          %v4085 = vunpack.c.l.b16 %v3566
          %v4086 = vunpack.c.l.b16 %v3567
          %v4087 = vunpack.c.l.b16 %v3568
          %v4088 = vunpack.c.l.b16 %v3569
          %v4089 = vunpack.c.l.b16 %v3570
          %v4090 = vunpack.c.l.b16 %v3571
          %v4091 = vunpack.c.l.b16 %v3572
          %v4092 = vunpack.c.l.b16 %v3573
          %v4093 = vunpack.c.l.b16 %v3574
          %v4094 = vunpack.c.l.b16 %v3575
          %v4095 = vunpack.c.l.b16 %v3576
          %v4096 = vunpack.c.l.b16 %v3577
          %v4097 = vunpack.c.l.b16 %v3578
          %v4098 = vunpack.c.l.b16 %v3579
          %v4099 = vunpack.c.l.b16 %v3580
          %v4100 = vunpack.c.l.b16 %v3581
          %v4101 = vunpack.c.l.b16 %v3582
          %v4102 = vunpack.c.l.b16 %v3583
          %v4103 = vunpack.c.l.b16 %v3584
          %v4104 = vunpack.c.l.b16 %v3585
          %v4105 = vunpack.c.l.b16 %v3586
          %v4106 = vunpack.c.l.b16 %v3587
          %v4107 = vunpack.c.l.b16 %v3588
          %v4108 = vunpack.c.l.b16 %v3589
          %v4109 = vunpack.c.l.b16 %v3590
          %v4110 = vunpack.c.l.b16 %v3591
          %v4111 = vunpack.c.l.b16 %v3592
          %v4112 = vunpack.c.l.b16 %v3593
          %v4113 = vunpack.c.l.b16 %v3594
          %v4114 = vunpack.c.l.b16 %v3595
          %v4115 = vunpack.c.l.b16 %v3596
          %v4116 = vunpack.c.l.b16 %v3597
          %v4117 = vunpack.c.l.b16 %v3598
          %v4118 = vunpack.c.l.b16 %v3599
          %v4119 = vunpack.c.l.b16 %v3600
          %v4120 = vunpack.c.l.b16 %v3601
          %v4121 = vunpack.c.l.b16 %v3602
          %v4122 = vunpack.c.l.b16 %v3603
          %v4123 = vunpack.c.l.b16 %v3604
          %v4124 = vunpack.c.l.b16 %v3605
          %v4125 = vunpack.c.l.b16 %v3606
          %v4126 = vunpack.c.l.b16 %v3607
          %v4127 = vunpack.c.l.b16 %v3608
          %v4128 = vunpack.c.l.b16 %v3609
          %v4129 = vunpack.c.l.b16 %v3610
          %v4130 = vunpack.c.l.b16 %v3611
          %v4131 = vunpack.c.l.b16 %v3612
          %v4132 = vunpack.c.l.b16 %v3613
          %v4133 = vunpack.c.l.b16 %v3614
          %v4134 = vunpack.c.l.b16 %v3615
          %v4135 = vunpack.c.l.b16 %v3616
          %v4136 = vunpack.c.l.b16 %v3617
          %v4137 = vunpack.c.l.b16 %v3618
          %v4138 = vunpack.c.l.b16 %v3619
          %v4139 = vunpack.c.l.b16 %v3620
          %v4140 = vunpack.c.l.b16 %v3621
          %v4141 = vunpack.c.l.b16 %v3622
          %v4142 = vunpack.c.l.b16 %v3623
          %v4143 = vunpack.c.l.b16 %v3624
          %v4144 = vunpack.c.l.b16 %v3625
          %v4145 = vunpack.c.l.b16 %v3626
          %v4146 = vunpack.c.l.b16 %v3627
          %v4147 = vunpack.c.l.b16 %v3628
          %v4148 = vunpack.c.l.b16 %v3629
          %v4149 = vunpack.c.l.b16 %v3630
          %v4150 = vunpack.c.l.b16 %v3631
          %v4151 = vunpack.c.l.b16 %v3632
          %v4152 = vunpack.c.l.b16 %v3633
          %v4153 = vunpack.c.l.b16 %v3634
          %v4154 = vunpack.c.l.b16 %v3635
          %v4155 = vunpack.c.l.b16 %v3636
          %v4156 = vunpack.c.l.b16 %v3637
          %v4157 = vunpack.c.l.b16 %v3638
          %v4158 = vunpack.c.l.b16 %v3639
          %v4159 = vunpack.c.l.b16 %v3640
          %v4160 = vunpack.c.l.b16 %v3641
          %v4161 = vunpack.c.l.b16 %v3642
          %v4162 = vunpack.c.l.b16 %v3643
          %v4163 = vunpack.c.l.b16 %v3644
          %v4164 = vunpack.c.l.b16 %v3645
          %v4165 = vunpack.c.l.b16 %v3646
          %v4166 = vunpack.c.l.b16 %v3647
          %v4167 = vunpack.c.l.b16 %v3648
          %v4168 = vunpack.c.l.b16 %v3649
          %v4169 = vunpack.c.l.b16 %v3650
          %v4170 = vunpack.c.l.b16 %v3651
          %v4171 = vunpack.c.l.b16 %v3652
          %v4172 = vunpack.c.l.b16 %v3653
          %v4173 = vunpack.c.l.b16 %v3654
          %v4174 = vunpack.c.l.b16 %v3655
          %v4175 = vunpack.c.l.b16 %v3656
          %v4176 = vunpack.c.l.b16 %v3657
          %v4177 = vunpack.c.l.b16 %v3658
          %v4178 = vunpack.c.l.b16 %v3659
          %v4179 = vunpack.c.l.b16 %v3660
          %v4180 = vunpack.c.l.b16 %v3661
          %v4181 = vunpack.c.l.b16 %v3662
          %v4182 = vunpack.c.l.b16 %v3663
          %v4183 = vunpack.c.l.b16 %v3664
          %v4184 = vunpack.c.l.b16 %v3665
          %v4185 = vunpack.c.l.b16 %v3666
          %v4186 = vunpack.c.l.b16 %v3667
          %v4187 = vunpack.c.l.b16 %v3668
          %v4188 = vunpack.c.l.b16 %v3669
          %v4189 = vunpack.c.l.b16 %v3670
          %v4190 = vunpack.c.l.b16 %v3671
          %v4191 = vunpack.c.l.b16 %v3672
          %v4192 = vunpack.c.l.b16 %v3673
          %v4193 = vunpack.c.l.b16 %v3674
          %v4194 = vunpack.c.l.b16 %v3675
          %v4195 = vunpack.c.l.b16 %v3676
          %v4196 = vunpack.c.l.b16 %v3677
          %v4197 = vunpack.c.l.b16 %v3678
          %v4198 = vunpack.c.l.b16 %v3679
          %v4199 = vunpack.c.l.b16 %v3680
          %v4200 = vunpack.c.l.b16 %v3681
          %v4201 = vunpack.c.l.b16 %v3682
          %v4202 = vunpack.c.l.b16 %v3683
          %v4203 = vunpack.c.l.b16 %v3684
          %v4204 = vunpack.c.l.b16 %v3685
          %v4205 = vunpack.c.l.b16 %v3686
          %v4206 = vunpack.c.l.b16 %v3687
          %v4207 = vunpack.c.l.b16 %v3688
          %v4208 = vunpack.c.l.b16 %v3689
          %v4209 = vunpack.c.l.b16 %v3690
          %v4210 = vunpack.c.l.b16 %v3691
          %v4211 = vunpack.c.l.b16 %v3692
          %v4212 = vunpack.c.l.b16 %v3693
          %v4213 = vunpack.c.l.b16 %v3694
          %v4214 = vunpack.c.l.b16 %v3695
          %v4215 = vunpack.c.l.b16 %v3696
          %v4216 = vunpack.c.l.b16 %v3697
          %v4217 = vunpack.c.l.b16 %v3698
          %v4218 = vunpack.c.l.b16 %v3699
          %v4219 = vunpack.c.l.b16 %v3700
          %v4220 = vunpack.c.l.b16 %v3701
          %v4221 = vunpack.c.l.b16 %v3702
          %v4222 = vunpack.c.l.b16 %v3703
          %v4223 = vunpack.c.l.b16 %v3704
          %v4224 = vunpack.c.l.b16 %v3705
          %v4225 = vunpack.c.l.b16 %v3706
          %v4226 = vunpack.c.l.b16 %v3707
          %v4227 = vunpack.c.l.b16 %v3708
          %v4228 = vunpack.c.l.b16 %v3709
          %v4229 = vunpack.c.l.b16 %v3710
          %v4230 = vunpack.c.l.b16 %v3711
          %v4231 = vunpack.c.l.b16 %v3712
          %v4232 = vunpack.c.l.b16 %v3713
          %v4233 = vunpack.c.l.b16 %v3714
          %v4234 = vunpack.c.l.b16 %v3715
          %v4235 = vunpack.c.l.b16 %v3716
          %v4236 = vunpack.c.l.b16 %v3717
          %v4237 = vunpack.c.l.b16 %v3718
          %v4238 = vunpack.c.l.b16 %v3719
          %v4239 = vunpack.c.l.b16 %v3720
          %v4240 = vunpack.c.l.b16 %v3721
          %v4241 = vunpack.c.l.b16 %v3722
          %v4242 = vunpack.c.l.b16 %v3723
          %v4243 = vunpack.c.l.b16 %v3724
          %v4244 = vunpack.c.l.b16 %v3725
          %v4245 = vunpack.c.l.b16 %v3726
          %v4246 = vunpack.c.l.b16 %v3727
          %v4247 = vunpack.c.l.b16 %v3728
          %v4248 = vunpack.c.l.b16 %v3729
          %v4249 = vunpack.c.l.b16 %v3730
          %v4250 = vunpack.c.l.b16 %v3731
          %v4251 = vunpack.c.l.b16 %v3732
          %v4252 = vunpack.c.l.b16 %v3733
          %v4253 = vunpack.c.l.b16 %v3734
          %v4254 = vunpack.c.l.b16 %v3735
          %v4255 = vunpack.c.l.b16 %v3736
          %v4256 = vunpack.c.l.b16 %v3737
          %v4257 = vunpack.c.l.b16 %v3738
          %v4258 = vunpack.c.l.b16 %v3739
          %v4259 = vunpack.c.l.b16 %v3740
          %v4260 = vunpack.c.l.b16 %v3741
          %v4261 = vunpack.c.l.b16 %v3742
          %v4262 = vunpack.c.l.b16 %v3743
          %v4263 = vunpack.c.l.b16 %v3744
          %v4264 = vunpack.c.l.b16 %v3745
          %v4265 = vunpack.c.l.b16 %v3746
          %v4266 = vunpack.c.l.b16 %v3747
          %v4267 = vunpack.c.l.b16 %v3748
          %v4268 = vunpack.c.l.b16 %v3749
          %v4269 = vunpack.c.l.b16 %v3750
          %v4270 = vunpack.c.l.b16 %v3751
          %v4271 = vunpack.c.l.b16 %v3752
          %v4272 = vunpack.c.l.b16 %v3753
          %v4273 = vunpack.c.l.b16 %v3754
          %v4274 = vunpack.c.l.b16 %v3755
          %v4275 = vunpack.c.l.b16 %v3756
          %v4276 = vunpack.c.l.b16 %v3757
          %v4277 = vunpack.c.l.b16 %v3758
          %v4278 = vunpack.c.l.b16 %v3759
          %v4279 = vunpack.c.l.b16 %v3760
          %v4280 = vunpack.c.l.b16 %v3761
          %v4281 = vunpack.c.l.b16 %v3762
          %v4282 = vunpack.c.l.b16 %v3763
          %v4283 = vunpack.c.l.b16 %v3764
          %v4284 = vunpack.c.l.b16 %v3765
          %v4285 = vunpack.c.l.b16 %v3766
          %v4286 = vunpack.c.l.b16 %v3767
          %v4287 = vunpack.c.l.b16 %v3768
          %v4288 = vunpack.c.l.b16 %v3769
          %v4289 = vunpack.c.l.b16 %v3770
          %v4290 = vunpack.c.l.b16 %v3771
          %v4291 = vunpack.c.l.b16 %v3772
          %v4292 = vunpack.c.l.b16 %v3773
          %v4293 = vunpack.c.l.b16 %v3774
          %v4294 = vunpack.c.l.b16 %v3775
          %v4295 = vunpack.c.l.b16 %v3776
          %v4296 = vunpack.c.l.b16 %v3777
          %v4297 = vunpack.c.l.b16 %v3778
          %v4298 = vunpack.c.l.b16 %v3779
          %v4299 = vunpack.c.l.b16 %v3780
          %v4300 = vunpack.c.l.b16 %v3781
          %v4301 = vunpack.c.l.b16 %v3782
          %v4302 = vunpack.c.l.b16 %v3783
          %v4303 = vunpack.c.l.b16 %v3784
          %v4304 = vunpack.c.l.b16 %v3785
          %v4305 = vunpack.c.l.b16 %v3786
          %v4306 = vunpack.c.l.b16 %v3787
          %v4307 = vunpack.c.l.b16 %v3788
          %v4308 = vunpack.c.l.b16 %v3789
          %v4309 = vunpack.c.l.b16 %v3790
          %v4310 = vunpack.c.l.b16 %v3791
          %v4311 = vunpack.c.l.b16 %v3792
          %v4312 = vunpack.c.l.b16 %v3793
          %v4313 = vunpack.c.l.b16 %v3794
          %v4314 = vunpack.c.l.b16 %v3795
          %v4315 = vunpack.c.l.b16 %v3796
          %v4316 = vunpack.c.l.b16 %v3797
          %v4317 = vpack.c.b16 %v4062, %v4061
          %v4318 = vpack.c.b16 %v4064, %v4063
          %v4319 = vpack.c.b16 %v4066, %v4065
          %v4320 = vpack.c.b16 %v4068, %v4067
          %v4321 = vpack.c.b16 %v4070, %v4069
          %v4322 = vpack.c.b16 %v4072, %v4071
          %v4323 = vpack.c.b16 %v4074, %v4073
          %v4324 = vpack.c.b16 %v4076, %v4075
          %v4325 = vpack.c.b16 %v4078, %v4077
          %v4326 = vpack.c.b16 %v4080, %v4079
          %v4327 = vpack.c.b16 %v4082, %v4081
          %v4328 = vpack.c.b16 %v4084, %v4083
          %v4329 = vpack.c.b16 %v4086, %v4085
          %v4330 = vpack.c.b16 %v4088, %v4087
          %v4331 = vpack.c.b16 %v4090, %v4089
          %v4332 = vpack.c.b16 %v4092, %v4091
          %v4333 = vpack.c.b16 %v4094, %v4093
          %v4334 = vpack.c.b16 %v4096, %v4095
          %v4335 = vpack.c.b16 %v4098, %v4097
          %v4336 = vpack.c.b16 %v4100, %v4099
          %v4337 = vpack.c.b16 %v4102, %v4101
          %v4338 = vpack.c.b16 %v4104, %v4103
          %v4339 = vpack.c.b16 %v4106, %v4105
          %v4340 = vpack.c.b16 %v4108, %v4107
          %v4341 = vpack.c.b16 %v4110, %v4109
          %v4342 = vpack.c.b16 %v4112, %v4111
          %v4343 = vpack.c.b16 %v4114, %v4113
          %v4344 = vpack.c.b16 %v4116, %v4115
          %v4345 = vpack.c.b16 %v4118, %v4117
          %v4346 = vpack.c.b16 %v4120, %v4119
          %v4347 = vpack.c.b16 %v4122, %v4121
          %v4348 = vpack.c.b16 %v4124, %v4123
          %v4349 = vpack.c.b16 %v4126, %v4125
          %v4350 = vpack.c.b16 %v4128, %v4127
          %v4351 = vpack.c.b16 %v4130, %v4129
          %v4352 = vpack.c.b16 %v4132, %v4131
          %v4353 = vpack.c.b16 %v4134, %v4133
          %v4354 = vpack.c.b16 %v4136, %v4135
          %v4355 = vpack.c.b16 %v4138, %v4137
          %v4356 = vpack.c.b16 %v4140, %v4139
          %v4357 = vpack.c.b16 %v4142, %v4141
          %v4358 = vpack.c.b16 %v4144, %v4143
          %v4359 = vpack.c.b16 %v4146, %v4145
          %v4360 = vpack.c.b16 %v4148, %v4147
          %v4361 = vpack.c.b16 %v4150, %v4149
          %v4362 = vpack.c.b16 %v4152, %v4151
          %v4363 = vpack.c.b16 %v4154, %v4153
          %v4364 = vpack.c.b16 %v4156, %v4155
          %v4365 = vpack.c.b16 %v4158, %v4157
          %v4366 = vpack.c.b16 %v4160, %v4159
          %v4367 = vpack.c.b16 %v4162, %v4161
          %v4368 = vpack.c.b16 %v4164, %v4163
          %v4369 = vpack.c.b16 %v4166, %v4165
          %v4370 = vpack.c.b16 %v4168, %v4167
          %v4371 = vpack.c.b16 %v4170, %v4169
          %v4372 = vpack.c.b16 %v4172, %v4171
          %v4373 = vpack.c.b16 %v4174, %v4173
          %v4374 = vpack.c.b16 %v4176, %v4175
          %v4375 = vpack.c.b16 %v4178, %v4177
          %v4376 = vpack.c.b16 %v4180, %v4179
          %v4377 = vpack.c.b16 %v4182, %v4181
          %v4378 = vpack.c.b16 %v4184, %v4183
          %v4379 = vpack.c.b16 %v4186, %v4185
          %v4380 = vpack.c.b16 %v4188, %v4187
          %v4381 = vpack.c.b16 %v4190, %v4189
          %v4382 = vpack.c.b16 %v4192, %v4191
          %v4383 = vpack.c.b16 %v4194, %v4193
          %v4384 = vpack.c.b16 %v4196, %v4195
          %v4385 = vpack.c.b16 %v4198, %v4197
          %v4386 = vpack.c.b16 %v4200, %v4199
          %v4387 = vpack.c.b16 %v4202, %v4201
          %v4388 = vpack.c.b16 %v4204, %v4203
          %v4389 = vpack.c.b16 %v4206, %v4205
          %v4390 = vpack.c.b16 %v4208, %v4207
          %v4391 = vpack.c.b16 %v4210, %v4209
          %v4392 = vpack.c.b16 %v4212, %v4211
          %v4393 = vpack.c.b16 %v4214, %v4213
          %v4394 = vpack.c.b16 %v4216, %v4215
          %v4395 = vpack.c.b16 %v4218, %v4217
          %v4396 = vpack.c.b16 %v4220, %v4219
          %v4397 = vpack.c.b16 %v4222, %v4221
          %v4398 = vpack.c.b16 %v4224, %v4223
          %v4399 = vpack.c.b16 %v4226, %v4225
          %v4400 = vpack.c.b16 %v4228, %v4227
          %v4401 = vpack.c.b16 %v4230, %v4229
          %v4402 = vpack.c.b16 %v4232, %v4231
          %v4403 = vpack.c.b16 %v4234, %v4233
          %v4404 = vpack.c.b16 %v4236, %v4235
          %v4405 = vpack.c.b16 %v4238, %v4237
          %v4406 = vpack.c.b16 %v4240, %v4239
          %v4407 = vpack.c.b16 %v4242, %v4241
          %v4408 = vpack.c.b16 %v4244, %v4243
          %v4409 = vpack.c.b16 %v4246, %v4245
          %v4410 = vpack.c.b16 %v4248, %v4247
          %v4411 = vpack.c.b16 %v4250, %v4249
          %v4412 = vpack.c.b16 %v4252, %v4251
          %v4413 = vpack.c.b16 %v4254, %v4253
          %v4414 = vpack.c.b16 %v4256, %v4255
          %v4415 = vpack.c.b16 %v4258, %v4257
          %v4416 = vpack.c.b16 %v4260, %v4259
          %v4417 = vpack.c.b16 %v4262, %v4261
          %v4418 = vpack.c.b16 %v4264, %v4263
          %v4419 = vpack.c.b16 %v4266, %v4265
          %v4420 = vpack.c.b16 %v4268, %v4267
          %v4421 = vpack.c.b16 %v4270, %v4269
          %v4422 = vpack.c.b16 %v4272, %v4271
          %v4423 = vpack.c.b16 %v4274, %v4273
          %v4424 = vpack.c.b16 %v4276, %v4275
          %v4425 = vpack.c.b16 %v4278, %v4277
          %v4426 = vpack.c.b16 %v4280, %v4279
          %v4427 = vpack.c.b16 %v4282, %v4281
          %v4428 = vpack.c.b16 %v4284, %v4283
          %v4429 = vpack.c.b16 %v4286, %v4285
          %v4430 = vpack.c.b16 %v4288, %v4287
          %v4431 = vpack.c.b16 %v4290, %v4289
          %v4432 = vpack.c.b16 %v4292, %v4291
          %v4433 = vpack.c.b16 %v4294, %v4293
          %v4434 = vpack.c.b16 %v4296, %v4295
          %v4435 = vpack.c.b16 %v4298, %v4297
          %v4436 = vpack.c.b16 %v4300, %v4299
          %v4437 = vpack.c.b16 %v4302, %v4301
          %v4438 = vpack.c.b16 %v4304, %v4303
          %v4439 = vpack.c.b16 %v4306, %v4305
          %v4440 = vpack.c.b16 %v4308, %v4307
          %v4441 = vpack.c.b16 %v4310, %v4309
          %v4442 = vpack.c.b16 %v4312, %v4311
          %v4443 = vpack.c.b16 %v4314, %v4313
          %v4444 = vpack.c.b16 %v4316, %v4315
          %4573 = vmatprep.subr.bf16.mxu0 0
          %4574 = vmatpush1.bf16.msra.mxu0 %v4324
          %4575 = vmatprep.subr.bf16.mxu0 0
          %4576 = vmatpush1.bf16.msra.mxu0 %v4323
          %4577 = vmatprep.subr.bf16.mxu0 0
          %4578 = vmatpush1.bf16.msra.mxu0 %v4322
          %4579 = vmatprep.subr.bf16.mxu0 0
          %4580 = vmatpush1.bf16.msra.mxu0 %v4321
          %4581 = vmatprep.subr.bf16.mxu0 0
          %4582 = vmatpush1.bf16.msra.mxu0 %v4320
          %4583 = vmatprep.subr.bf16.mxu0 0
          %4584 = vmatpush1.bf16.msra.mxu0 %v4319
          %4585 = vmatprep.subr.bf16.mxu0 0
          %4586 = vmatpush1.bf16.msra.mxu0 %v4318
          %4587 = vmatprep.subr.bf16.mxu0 0
          %4588 = vmatpush1.bf16.msra.mxu0 %v4317
          %4589 = vmatprep.subr.bf16.mxu0 0
          %4590 = vmatpush2.bf16.msra.mxu0 %v4332
          %4591 = vmatprep.subr.bf16.mxu0 0
          %4592 = vmatpush2.bf16.msra.mxu0 %v4331
          %4593 = vmatprep.subr.bf16.mxu0 0
          %4594 = vmatpush2.bf16.msra.mxu0 %v4330
          %4595 = vmatprep.subr.bf16.mxu0 0
          %4596 = vmatpush2.bf16.msra.mxu0 %v4329
          %4597 = vmatprep.subr.bf16.mxu0 0
          %4598 = vmatpush2.bf16.msra.mxu0 %v4328
          %4599 = vmatprep.subr.bf16.mxu0 0
          %4600 = vmatpush2.bf16.msra.mxu0 %v4327
          %4601 = vmatprep.subr.bf16.mxu0 0
          %4602 = vmatpush2.bf16.msra.mxu0 %v4326
          %4603 = vmatprep.subr.bf16.mxu0 0
          %4604 = vmatpush2.bf16.msra.mxu0 %v4325
          %4605 = vmatprep.mubr.bf16.mxu0 %v3527
          %4606 = vmatmul.mubr.bf16.gmra.mxu0 %v3526
          %v4607 = vpop.f32.mrf.mxu0
          %v4608 = vadd.f32 %v3803, %v4607
          %v4609 = vpop.f32.mrf.mxu0
          %v4610 = vpop.f32.mrf.mxu0
          %v4611 = vpop.f32.mrf.mxu0
          %4612 = vdwg.mxu0
          %4613 = vmatprep.subr.bf16.mxu0 0
          %4614 = vmatpush1.bf16.msra.mxu0 %v4340
          %4615 = vmatprep.subr.bf16.mxu0 0
          %4616 = vmatpush1.bf16.msra.mxu0 %v4339
          %4617 = vmatprep.subr.bf16.mxu0 0
          %4618 = vmatpush1.bf16.msra.mxu0 %v4338
          %4619 = vmatprep.subr.bf16.mxu0 0
          %4620 = vmatpush1.bf16.msra.mxu0 %v4337
          %4621 = vmatprep.subr.bf16.mxu0 0
          %4622 = vmatpush1.bf16.msra.mxu0 %v4336
          %4623 = vmatprep.subr.bf16.mxu0 0
          %4624 = vmatpush1.bf16.msra.mxu0 %v4335
          %4625 = vmatprep.subr.bf16.mxu0 0
          %4626 = vmatpush1.bf16.msra.mxu0 %v4334
          %4627 = vmatprep.subr.bf16.mxu0 0
          %4628 = vmatpush1.bf16.msra.mxu0 %v4333
          %4629 = vmatprep.subr.bf16.mxu0 0
          %4630 = vmatpush2.bf16.msra.mxu0 %v4348
          %4631 = vmatprep.subr.bf16.mxu0 0
          %4632 = vmatpush2.bf16.msra.mxu0 %v4347
          %4633 = vmatprep.subr.bf16.mxu0 0
          %4634 = vmatpush2.bf16.msra.mxu0 %v4346
          %4635 = vmatprep.subr.bf16.mxu0 0
          %4636 = vmatpush2.bf16.msra.mxu0 %v4345
          %4637 = vmatprep.subr.bf16.mxu0 0
          %4638 = vmatpush2.bf16.msra.mxu0 %v4344
          %4639 = vmatprep.subr.bf16.mxu0 0
          %4640 = vmatpush2.bf16.msra.mxu0 %v4343
          %4641 = vmatprep.subr.bf16.mxu0 0
          %4642 = vmatpush2.bf16.msra.mxu0 %v4342
          %4643 = vmatprep.subr.bf16.mxu0 0
          %4644 = vmatpush2.bf16.msra.mxu0 %v4341
          %4645 = vmatprep.mubr.bf16.mxu0 %v3529
          %4646 = vmatmul.mubr.bf16.gmra.mxu0 %v3528
          %v4647 = vpop.f32.mrf.mxu0
          %v4648 = vadd.f32 %v4608, %v4647
          %v4649 = vpop.f32.mrf.mxu0
          %v4650 = vpop.f32.mrf.mxu0
          %v4651 = vpop.f32.mrf.mxu0
          %4652 = vdwg.mxu0
          %4653 = vmatprep.subr.bf16.mxu0 0
          %4654 = vmatpush1.bf16.msra.mxu0 %v4356
          %4655 = vmatprep.subr.bf16.mxu0 0
          %4656 = vmatpush1.bf16.msra.mxu0 %v4355
          %4657 = vmatprep.subr.bf16.mxu0 0
          %4658 = vmatpush1.bf16.msra.mxu0 %v4354
          %4659 = vmatprep.subr.bf16.mxu0 0
          %4660 = vmatpush1.bf16.msra.mxu0 %v4353
          %4661 = vmatprep.subr.bf16.mxu0 0
          %4662 = vmatpush1.bf16.msra.mxu0 %v4352
          %4663 = vmatprep.subr.bf16.mxu0 0
          %4664 = vmatpush1.bf16.msra.mxu0 %v4351
          %4665 = vmatprep.subr.bf16.mxu0 0
          %4666 = vmatpush1.bf16.msra.mxu0 %v4350
          %4667 = vmatprep.subr.bf16.mxu0 0
          %4668 = vmatpush1.bf16.msra.mxu0 %v4349
          %4669 = vmatprep.subr.bf16.mxu0 0
          %4670 = vmatpush2.bf16.msra.mxu0 %v4364
          %4671 = vmatprep.subr.bf16.mxu0 0
          %4672 = vmatpush2.bf16.msra.mxu0 %v4363
          %4673 = vmatprep.subr.bf16.mxu0 0
          %4674 = vmatpush2.bf16.msra.mxu0 %v4362
          %4675 = vmatprep.subr.bf16.mxu0 0
          %4676 = vmatpush2.bf16.msra.mxu0 %v4361
          %4677 = vmatprep.subr.bf16.mxu0 0
          %4678 = vmatpush2.bf16.msra.mxu0 %v4360
          %4679 = vmatprep.subr.bf16.mxu0 0
          %4680 = vmatpush2.bf16.msra.mxu0 %v4359
          %4681 = vmatprep.subr.bf16.mxu0 0
          %4682 = vmatpush2.bf16.msra.mxu0 %v4358
          %4683 = vmatprep.subr.bf16.mxu0 0
          %4684 = vmatpush2.bf16.msra.mxu0 %v4357
          %4685 = vmatprep.mubr.bf16.mxu0 %v3531
          %4686 = vmatmul.mubr.bf16.gmra.mxu0 %v3530
          %v4687 = vpop.f32.mrf.mxu0
          %v4688 = vadd.f32 %v4648, %v4687
          %v4689 = vpop.f32.mrf.mxu0
          %v4690 = vpop.f32.mrf.mxu0
          %v4691 = vpop.f32.mrf.mxu0
          %4692 = vdwg.mxu0
          %4693 = vmatprep.subr.bf16.mxu0 0
          %4694 = vmatpush1.bf16.msra.mxu0 %v4372
          %4695 = vmatprep.subr.bf16.mxu0 0
          %4696 = vmatpush1.bf16.msra.mxu0 %v4371
          %4697 = vmatprep.subr.bf16.mxu0 0
          %4698 = vmatpush1.bf16.msra.mxu0 %v4370
          %4699 = vmatprep.subr.bf16.mxu0 0
          %4700 = vmatpush1.bf16.msra.mxu0 %v4369
          %4701 = vmatprep.subr.bf16.mxu0 0
          %4702 = vmatpush1.bf16.msra.mxu0 %v4368
          %4703 = vmatprep.subr.bf16.mxu0 0
          %4704 = vmatpush1.bf16.msra.mxu0 %v4367
          %4705 = vmatprep.subr.bf16.mxu0 0
          %4706 = vmatpush1.bf16.msra.mxu0 %v4366
          %4707 = vmatprep.subr.bf16.mxu0 0
          %4708 = vmatpush1.bf16.msra.mxu0 %v4365
          %4709 = vmatprep.subr.bf16.mxu0 0
          %4710 = vmatpush2.bf16.msra.mxu0 %v4380
          %4711 = vmatprep.subr.bf16.mxu0 0
          %4712 = vmatpush2.bf16.msra.mxu0 %v4379
          %4713 = vmatprep.subr.bf16.mxu0 0
          %4714 = vmatpush2.bf16.msra.mxu0 %v4378
          %4715 = vmatprep.subr.bf16.mxu0 0
          %4716 = vmatpush2.bf16.msra.mxu0 %v4377
          %4717 = vmatprep.subr.bf16.mxu0 0
          %4718 = vmatpush2.bf16.msra.mxu0 %v4376
          %4719 = vmatprep.subr.bf16.mxu0 0
          %4720 = vmatpush2.bf16.msra.mxu0 %v4375
          %4721 = vmatprep.subr.bf16.mxu0 0
          %4722 = vmatpush2.bf16.msra.mxu0 %v4374
          %4723 = vmatprep.subr.bf16.mxu0 0
          %4724 = vmatpush2.bf16.msra.mxu0 %v4373
          %4725 = vmatprep.mubr.bf16.mxu0 %v3533
          %4726 = vmatmul.mubr.bf16.gmra.mxu0 %v3532
          %v4727 = vpop.f32.mrf.mxu0
          %v4728 = vadd.f32 %v4688, %v4727
          %v4729 = vpop.f32.mrf.mxu0
          %v4730 = vpop.f32.mrf.mxu0
          %v4731 = vpop.f32.mrf.mxu0
          %4732 = vdwg.mxu0
          %4733 = vmatprep.subr.bf16.mxu0 0
          %4734 = vmatpush1.bf16.msra.mxu0 %v4388
          %4735 = vmatprep.subr.bf16.mxu0 0
          %4736 = vmatpush1.bf16.msra.mxu0 %v4387
          %4737 = vmatprep.subr.bf16.mxu0 0
          %4738 = vmatpush1.bf16.msra.mxu0 %v4386
          %4739 = vmatprep.subr.bf16.mxu0 0
          %4740 = vmatpush1.bf16.msra.mxu0 %v4385
          %4741 = vmatprep.subr.bf16.mxu0 0
          %4742 = vmatpush1.bf16.msra.mxu0 %v4384
          %4743 = vmatprep.subr.bf16.mxu0 0
          %4744 = vmatpush1.bf16.msra.mxu0 %v4383
          %4745 = vmatprep.subr.bf16.mxu0 0
          %4746 = vmatpush1.bf16.msra.mxu0 %v4382
          %4747 = vmatprep.subr.bf16.mxu0 0
          %4748 = vmatpush1.bf16.msra.mxu0 %v4381
          %4749 = vmatprep.subr.bf16.mxu0 0
          %4750 = vmatpush2.bf16.msra.mxu0 %v4396
          %4751 = vmatprep.subr.bf16.mxu0 0
          %4752 = vmatpush2.bf16.msra.mxu0 %v4395
          %4753 = vmatprep.subr.bf16.mxu0 0
          %4754 = vmatpush2.bf16.msra.mxu0 %v4394
          %4755 = vmatprep.subr.bf16.mxu0 0
          %4756 = vmatpush2.bf16.msra.mxu0 %v4393
          %4757 = vmatprep.subr.bf16.mxu0 0
          %4758 = vmatpush2.bf16.msra.mxu0 %v4392
          %4759 = vmatprep.subr.bf16.mxu0 0
          %4760 = vmatpush2.bf16.msra.mxu0 %v4391
          %4761 = vmatprep.subr.bf16.mxu0 0
          %4762 = vmatpush2.bf16.msra.mxu0 %v4390
          %4763 = vmatprep.subr.bf16.mxu0 0
          %4764 = vmatpush2.bf16.msra.mxu0 %v4389
          %4765 = vmatprep.mubr.bf16.mxu0 %v3535
          %4766 = vmatmul.mubr.bf16.gmra.mxu0 %v3534
          %v4767 = vpop.f32.mrf.mxu0
          %v4768 = vadd.f32 %v4728, %v4767
          %v4769 = vpop.f32.mrf.mxu0
          %v4770 = vpop.f32.mrf.mxu0
          %v4771 = vpop.f32.mrf.mxu0
          %4772 = vdwg.mxu0
          %4773 = vmatprep.subr.bf16.mxu0 0
          %4774 = vmatpush1.bf16.msra.mxu0 %v4404
          %4775 = vmatprep.subr.bf16.mxu0 0
          %4776 = vmatpush1.bf16.msra.mxu0 %v4403
          %4777 = vmatprep.subr.bf16.mxu0 0
          %4778 = vmatpush1.bf16.msra.mxu0 %v4402
          %4779 = vmatprep.subr.bf16.mxu0 0
          %4780 = vmatpush1.bf16.msra.mxu0 %v4401
          %4781 = vmatprep.subr.bf16.mxu0 0
          %4782 = vmatpush1.bf16.msra.mxu0 %v4400
          %4783 = vmatprep.subr.bf16.mxu0 0
          %4784 = vmatpush1.bf16.msra.mxu0 %v4399
          %4785 = vmatprep.subr.bf16.mxu0 0
          %4786 = vmatpush1.bf16.msra.mxu0 %v4398
          %4787 = vmatprep.subr.bf16.mxu0 0
          %4788 = vmatpush1.bf16.msra.mxu0 %v4397
          %4789 = vmatprep.subr.bf16.mxu0 0
          %4790 = vmatpush2.bf16.msra.mxu0 %v4412
          %4791 = vmatprep.subr.bf16.mxu0 0
          %4792 = vmatpush2.bf16.msra.mxu0 %v4411
          %4793 = vmatprep.subr.bf16.mxu0 0
          %4794 = vmatpush2.bf16.msra.mxu0 %v4410
          %4795 = vmatprep.subr.bf16.mxu0 0
          %4796 = vmatpush2.bf16.msra.mxu0 %v4409
          %4797 = vmatprep.subr.bf16.mxu0 0
          %4798 = vmatpush2.bf16.msra.mxu0 %v4408
          %4799 = vmatprep.subr.bf16.mxu0 0
          %4800 = vmatpush2.bf16.msra.mxu0 %v4407
          %4801 = vmatprep.subr.bf16.mxu0 0
          %4802 = vmatpush2.bf16.msra.mxu0 %v4406
          %4803 = vmatprep.subr.bf16.mxu0 0
          %4804 = vmatpush2.bf16.msra.mxu0 %v4405
          %4805 = vmatprep.mubr.bf16.mxu0 %v3537
          %4806 = vmatmul.mubr.bf16.gmra.mxu0 %v3536
          %v4807 = vpop.f32.mrf.mxu0
          %v4808 = vadd.f32 %v4768, %v4807
          %v4809 = vpop.f32.mrf.mxu0
          %v4810 = vpop.f32.mrf.mxu0
          %v4811 = vpop.f32.mrf.mxu0
          %4812 = vdwg.mxu0
          %4813 = vmatprep.subr.bf16.mxu0 0
          %4814 = vmatpush1.bf16.msra.mxu0 %v4420
          %4815 = vmatprep.subr.bf16.mxu0 0
          %4816 = vmatpush1.bf16.msra.mxu0 %v4419
          %4817 = vmatprep.subr.bf16.mxu0 0
          %4818 = vmatpush1.bf16.msra.mxu0 %v4418
          %4819 = vmatprep.subr.bf16.mxu0 0
          %4820 = vmatpush1.bf16.msra.mxu0 %v4417
          %4821 = vmatprep.subr.bf16.mxu0 0
          %4822 = vmatpush1.bf16.msra.mxu0 %v4416
          %4823 = vmatprep.subr.bf16.mxu0 0
          %4824 = vmatpush1.bf16.msra.mxu0 %v4415
          %4825 = vmatprep.subr.bf16.mxu0 0
          %4826 = vmatpush1.bf16.msra.mxu0 %v4414
          %4827 = vmatprep.subr.bf16.mxu0 0
          %4828 = vmatpush1.bf16.msra.mxu0 %v4413
          %4829 = vmatprep.subr.bf16.mxu0 0
          %4830 = vmatpush2.bf16.msra.mxu0 %v4428
          %4831 = vmatprep.subr.bf16.mxu0 0
          %4832 = vmatpush2.bf16.msra.mxu0 %v4427
          %4833 = vmatprep.subr.bf16.mxu0 0
          %4834 = vmatpush2.bf16.msra.mxu0 %v4426
          %4835 = vmatprep.subr.bf16.mxu0 0
          %4836 = vmatpush2.bf16.msra.mxu0 %v4425
          %4837 = vmatprep.subr.bf16.mxu0 0
          %4838 = vmatpush2.bf16.msra.mxu0 %v4424
          %4839 = vmatprep.subr.bf16.mxu0 0
          %4840 = vmatpush2.bf16.msra.mxu0 %v4423
          %4841 = vmatprep.subr.bf16.mxu0 0
          %4842 = vmatpush2.bf16.msra.mxu0 %v4422
          %4843 = vmatprep.subr.bf16.mxu0 0
          %4844 = vmatpush2.bf16.msra.mxu0 %v4421
          %4845 = vmatprep.mubr.bf16.mxu0 %v3539
          %4846 = vmatmul.mubr.bf16.gmra.mxu0 %v3538
          %v4847 = vpop.f32.mrf.mxu0
          %v4848 = vadd.f32 %v4808, %v4847
          %v4849 = vpop.f32.mrf.mxu0
          %v4850 = vpop.f32.mrf.mxu0
          %v4851 = vpop.f32.mrf.mxu0
          %4852 = vdwg.mxu0
          %4853 = vmatprep.subr.bf16.mxu0 0
          %4854 = vmatpush1.bf16.msra.mxu0 %v4436
          %4855 = vmatprep.subr.bf16.mxu0 0
          %4856 = vmatpush1.bf16.msra.mxu0 %v4435
          %4857 = vmatprep.subr.bf16.mxu0 0
          %4858 = vmatpush1.bf16.msra.mxu0 %v4434
          %4859 = vmatprep.subr.bf16.mxu0 0
          %4860 = vmatpush1.bf16.msra.mxu0 %v4433
          %4861 = vmatprep.subr.bf16.mxu0 0
          %4862 = vmatpush1.bf16.msra.mxu0 %v4432
          %4863 = vmatprep.subr.bf16.mxu0 0
          %4864 = vmatpush1.bf16.msra.mxu0 %v4431
          %4865 = vmatprep.subr.bf16.mxu0 0
          %4866 = vmatpush1.bf16.msra.mxu0 %v4430
          %4867 = vmatprep.subr.bf16.mxu0 0
          %4868 = vmatpush1.bf16.msra.mxu0 %v4429
          %4869 = vmatprep.subr.bf16.mxu0 0
          %4870 = vmatpush2.bf16.msra.mxu0 %v4444
          %4871 = vmatprep.subr.bf16.mxu0 0
          %4872 = vmatpush2.bf16.msra.mxu0 %v4443
          %4873 = vmatprep.subr.bf16.mxu0 0
          %4874 = vmatpush2.bf16.msra.mxu0 %v4442
          %4875 = vmatprep.subr.bf16.mxu0 0
          %4876 = vmatpush2.bf16.msra.mxu0 %v4441
          %4877 = vmatprep.subr.bf16.mxu0 0
          %4878 = vmatpush2.bf16.msra.mxu0 %v4440
          %4879 = vmatprep.subr.bf16.mxu0 0
          %4880 = vmatpush2.bf16.msra.mxu0 %v4439
          %4881 = vmatprep.subr.bf16.mxu0 0
          %4882 = vmatpush2.bf16.msra.mxu0 %v4438
          %4883 = vmatprep.subr.bf16.mxu0 0
          %4884 = vmatpush2.bf16.msra.mxu0 %v4437
          %4885 = vmatprep.mubr.bf16.mxu0 %v3541
          %4886 = vmatmul.mubr.bf16.gmra.mxu0 %v3540
          %v4887 = vpop.f32.mrf.mxu0
          %v4888 = vadd.f32 %v4848, %v4887
          %v4889 = vpop.f32.mrf.mxu0
          %v4890 = vpop.f32.mrf.mxu0
          %v4891 = vpop.f32.mrf.mxu0
          %4892 = vdwg.mxu0
          %v4893 = vmax.f32 %v4888, 0.0
          %v4894 = vld [vmem:[%s6] sm:$0xff]
          %v4895 = vld [vmem:[%s6 + $0x8] sm:$0xff]
          %v4896 = vld [vmem:[%s6 + $0x10] sm:$0xff]
          %v4897 = vld [vmem:[%s6 + $0x18] sm:$0xff]
          %v4898 = vld [vmem:[%s6 + $0x20] sm:$0xff]
          %v4899 = vld [vmem:[%s6 + $0x28] sm:$0xff]
          %v4900 = vld [vmem:[%s6 + $0x30] sm:$0xff]
          %v4901 = vld [vmem:[%s6 + $0x38] sm:$0xff]
          %v4902 = vld [vmem:[%s6 + $0x40] sm:$0xff]
          %v4903 = vld [vmem:[%s6 + $0x48] sm:$0xff]
          %v4904 = vld [vmem:[%s6 + $0x50] sm:$0xff]
          %v4905 = vld [vmem:[%s6 + $0x58] sm:$0xff]
          %v4906 = vld [vmem:[%s6 + $0x60] sm:$0xff]
          %v4907 = vld [vmem:[%s6 + $0x68] sm:$0xff]
          %v4908 = vld [vmem:[%s6 + $0x70] sm:$0xff]
          %v4909 = vld [vmem:[%s6 + $0x78] sm:$0xff]
          %v4910 = vld [vmem:[%s7] sm:$0x1]
          %v4912 = vlaneseq
          %v4913 = vshrl.u32 %v4912, 7
          %v4914 = vsub.s32 0, %v4913
          %v4915 = vrot.slane %v4910, %v4914
          %4917 = vmatprep.subr.mxu0 0.0
          %4918 = vmatpush1.msra.mxu0 %v4909
          %4919 = vmatprep.subr.mxu0 0.0
          %4920 = vmatpush1.msra.mxu0 %v4908
          %4921 = vmatprep.subr.mxu0 0.0
          %4922 = vmatpush1.msra.mxu0 %v4907
          %4923 = vmatprep.subr.mxu0 0.0
          %4924 = vmatpush1.msra.mxu0 %v4906
          %4925 = vmatprep.subr.mxu0 0.0
          %4926 = vmatpush1.msra.mxu0 %v4905
          %4927 = vmatprep.subr.mxu0 0.0
          %4928 = vmatpush1.msra.mxu0 %v4904
          %4929 = vmatprep.subr.mxu0 0.0
          %4930 = vmatpush1.msra.mxu0 %v4903
          %4931 = vmatprep.subr.mxu0 0.0
          %4932 = vmatpush1.msra.mxu0 %v4902
          %4933 = vmatprep.subr.mxu0 0.0
          %4934 = vmatpush1.msra.mxu0 %v4901
          %4935 = vmatprep.subr.mxu0 0.0
          %4936 = vmatpush1.msra.mxu0 %v4900
          %4937 = vmatprep.subr.mxu0 0.0
          %4938 = vmatpush1.msra.mxu0 %v4899
          %4939 = vmatprep.subr.mxu0 0.0
          %4940 = vmatpush1.msra.mxu0 %v4898
          %4941 = vmatprep.subr.mxu0 0.0
          %4942 = vmatpush1.msra.mxu0 %v4897
          %4943 = vmatprep.subr.mxu0 0.0
          %4944 = vmatpush1.msra.mxu0 %v4896
          %4945 = vmatprep.subr.mxu0 0.0
          %4946 = vmatpush1.msra.mxu0 %v4895
          %4947 = vmatprep.subr.mxu0 0.0
          %4948 = vmatpush1.msra.mxu0 %v4894
          %4949 = vmatprep.subr.mxu0 0.0
          %4950 = vmatpush2.msra.mxu0 0.0
          %4951 = vmatprep.subr.mxu0 0.0
          %4952 = vmatpush2.msra.mxu0 0.0
          %4953 = vmatprep.subr.mxu0 0.0
          %4954 = vmatpush2.msra.mxu0 0.0
          %4955 = vmatprep.subr.mxu0 0.0
          %4956 = vmatpush2.msra.mxu0 0.0
          %4957 = vmatprep.subr.mxu0 0.0
          %4958 = vmatpush2.msra.mxu0 0.0
          %4959 = vmatprep.subr.mxu0 0.0
          %4960 = vmatpush2.msra.mxu0 0.0
          %4961 = vmatprep.subr.mxu0 0.0
          %4962 = vmatpush2.msra.mxu0 0.0
          %4963 = vmatprep.subr.mxu0 0.0
          %4964 = vmatpush2.msra.mxu0 0.0
          %4965 = vmatprep.subr.mxu0 0.0
          %4966 = vmatpush2.msra.mxu0 0.0
          %4967 = vmatprep.subr.mxu0 0.0
          %4968 = vmatpush2.msra.mxu0 0.0
          %4969 = vmatprep.subr.mxu0 0.0
          %4970 = vmatpush2.msra.mxu0 0.0
          %4971 = vmatprep.subr.mxu0 0.0
          %4972 = vmatpush2.msra.mxu0 0.0
          %4973 = vmatprep.subr.mxu0 0.0
          %4974 = vmatpush2.msra.mxu0 0.0
          %4975 = vmatprep.subr.mxu0 0.0
          %4976 = vmatpush2.msra.mxu0 0.0
          %4977 = vmatprep.subr.mxu0 0.0
          %4978 = vmatpush2.msra.mxu0 0.0
          %4979 = vmatprep.subr.mxu0 0.0
          %4980 = vmatpush2.msra.mxu0 0.0
          %4981 = vmatprep.mubr.f32.mxu0 0.0
          %4982 = vmatmul.mubr.f32.gmra.mxu0 %v4893
          %v4983 = vpop.f32.mrf.mxu0
          %v4984 = vadd.f32 %v4915, %v4983
          %v4985 = vpop.f32.mrf.mxu0
          %4986 = vdwg.mxu0
          %vm4987 = vcmask 1041408
          %v4988 = vsel %vm4987, %v4984, -inf
          %4989 = vmax.xlane.f32.xlu0 %v4988
          %v4990 = vpop.xlane.xlu0 %4989
          %v4991 = vsub.f32 %v4984, %v4990
          %v4992 = vmul.f32 %v4991, 1.442695
          %v4993 = vpow.pop %v4992
          %v4994 = vsel %vm4987, %v4993, 0.0
          %4995 = vadd.xlane.f32.xlu0 %v4994
          %v4996 = vpop.xlane.xlu0 %4995
          %v4997 = vrcp.pop %v4996
          %v4998 = vmul.f32 %v4993, %v4997
          %4999 = vst [vmem:[#allocation3] sm:$0x3] %v4998
        $region60: #{_pipeline.3} parent=51 // pred_fallthru
          _
        // Predicated region
        $region61: #{_pipeline.3} parent=51 // pred_check
          %p5000 = pneg %p211
        $region62: #{_pipeline.3} parent=51 // pred_check_branch
          %5002 = sbr.rel (%p5000) target = $region64
        $region63: #{_pipeline.3} parent=51 // pred_region
          %s5004 = ssub.s32 32, 32
          %5005 = vsyncadd [#allocation4], %s5004
          %s5007 = sshll.u32 [#allocation3], 4
          %s5008 = int_to_ptr.vmem [resolvable:$true] %s5007
          %5010 = dma.vmem_to_hbm [thread:$0]  %s5008, 32, %s8, [#allocation4]
        $region64: #{_pipeline.3} parent=51 // pred_fallthru
          _
        // Predicated region
        $region65: #{_pipeline.3} parent=51 // pred_check
          %p5011 = pneg %p211
        $region66: #{_pipeline.3} parent=51 // pred_check_branch
          %5013 = sbr.rel (%p5011) target = $region68
        $region67: #{_pipeline.3} parent=51 // pred_region
          %5014 = dma.done [#allocation4], 32
        $region68: #{_pipeline.3} parent=51 // pred_fallthru
          _
      $region52: #{_pipeline.3} parent=5 // pred_fallthru
        _
      %p5015 = scmp.le.s32.totalorder 2, %s15
      // Predicated region
      $region69: #{_pipeline.3} parent=5 // pred_check
        %p5016 = pneg %p5015
      $region70: #{_pipeline.3} parent=5 // pred_check_branch
        %5018 = sbr.rel (%p5016) target = $region72
      $region71: #{_pipeline.3} parent=5 // pred_region
        %s5019 = ssub.s32 %s15, 2
      $region72: #{_pipeline.3} parent=5 // pred_fallthru
        _
    $region6: #{_pipeline.3} parent=1 // loop_footer
      %s19 = sadd.s32 1, %s15
    $region7: #{_pipeline.3} parent=1 // loop_footer_branch
      %14 = sbr.rel target = $region3
    $region8: #{_pipeline.3} parent=1 // loop_exit
      _
    %5020 = vsyncpa [#allocation4], 1
    %s5021 = scalar_lea.sflag [#allocation4], 1
    %5022 = vsyncpa %s5021, 1

</llo_original>
